<compile_context>
chip_gen: v7x
topology: tpu7x:2x2x1
jax: 0.10.0
libtpu: 0.0.40
codegen_flags: <defaults>
</compile_context>

<pallas_src>
import functools

import jax
import jax.numpy as jnp
from jax.experimental import pallas as pl
from jax.experimental.pallas import tpu as pltpu


def basic_block_kernel(x_ref, mask_ref, w1_ref, b1_ref, w2_ref, b2_ref,
                       out_ref, mid_ref, *, H, W, Wp, Cp, rh):
    """One batch element per grid step, flattened-spatial layout.

    x_ref    : (1, L, Cp)  bf16  zero-padded input, rows flattened (L = 8 + (H+2)*Wp + 8)
    mask_ref : (TM, 1)     f32   1.0 on valid (interior) columns, 0.0 elsewhere
    w1_ref   : (9, Cp, Cp) bf16  conv1 weights (tap-major, BN1 scale folded in)
    b1_ref   : (1, Cp)     f32   BN1 shift
    w2_ref   : (9, Cp, Cp) bf16  conv2 weights (BN2 scale folded in)
    b2_ref   : (1, Cp)     f32   BN2 shift
    out_ref  : (1, H*Wp, Cp) f32 flattened output slab (padded rows 1..H)
    mid_ref  : (L, Cp)     bf16  VMEM scratch for the conv1 -> conv2 intermediate
    """
    PTOP = 8                      # zero rows in front of the flattened image
    M = H * Wp                    # rows of the output slab (padded rows 1..H)
    TM = rh * Wp                  # rows per chunk
    base = PTOP + Wp              # flat row index of the first output-slab row
    L = mid_ref.shape[0]

    # Zero only the halo rows of the scratch that conv2 reads but conv1 never
    # writes (padded rows 0 / H+1 plus the 8-row flanks).  Done every grid
    # step (cheap: ~2*Wp rows) so correctness does not depend on which core
    # of a megacore chip ran the first grid step.
    mid_ref[0:base, :] = jnp.zeros((base, Cp), mid_ref.dtype)
    mid_ref[base + M:L, :] = jnp.zeros((L - base - M, Cp), mid_ref.dtype)

    b1 = b1_ref[...]              # (1, Cp)
    b2 = b2_ref[...]              # (1, Cp)
    col_mask = mask_ref[...]      # (TM, 1), hoisted once

    def conv9(read, w_ref, o):
        # 9 shifted row-slices x (Cp, Cp) matmuls, f32 accumulation chain
        # (first tap initialises the accumulator -> no zero fill).
        acc = None
        for k in range(9):
            dy, dx = k // 3, k % 3
            s = o + (dy - 1) * Wp + (dx - 1)
            d = jnp.dot(read(s), w_ref[k], preferred_element_type=jnp.float32)
            acc = d if acc is None else acc + d
        return acc

    n_chunks = H // rh

    # ---- conv1 (+ folded bn1 scale) + shift + relu -> mid scratch ----------
    for c in range(n_chunks):
        o = base + c * TM
        acc = conv9(lambda s: x_ref[0, s:s + TM, :], w1_ref, o)
        # Mask out the padding columns so they stay exactly zero for conv2.
        h1 = jnp.maximum(acc + b1, 0.0) * col_mask
        mid_ref[o:o + TM, :] = h1.astype(mid_ref.dtype)   # sublane-aligned write

    # ---- conv2 (+ folded bn2 scale) + shift + residual + relu -> out -------
    for c in range(n_chunks):
        o = base + c * TM
        acc = conv9(lambda s: mid_ref[s:s + TM, :], w2_ref, o)
        ident = x_ref[0, o:o + TM, :].astype(jnp.float32)  # residual from same stream
        out = jnp.maximum(acc + b2 + ident, 0.0)
        out_ref[0, c * TM:(c + 1) * TM, :] = out.astype(out_ref.dtype)


def _round_up(x, m):
    return (x + m - 1) // m * m


def _rows_per_chunk(H, Wp, Cp):
    # Largest row count (dividing H) whose f32 accumulator stays ~vreg-sized.
    for rh in (8, 4, 2, 1):
        if H % rh == 0 and rh * Wp * Cp * 4 <= (256 << 10):
            return rh
    return 1


def _fold_conv_bn(w_oihw, gamma, beta, mean, var, eps, Cp):
    """3x3 conv weight + eval-mode BN -> tap-major bf16 weights + f32 shift."""
    Cout, Cin = w_oihw.shape[0], w_oihw.shape[1]
    scale = gamma / jnp.sqrt(var + eps)                       # (Cout,)
    shift = beta - mean * scale                               # (Cout,)
    w = jnp.transpose(w_oihw, (2, 3, 1, 0)).reshape(9, Cin, Cout)  # k = ky*3+kx
    w = w * scale[None, None, :]                              # BN scale rides the MXU
    w = jnp.pad(w, ((0, 0), (0, Cp - Cin), (0, Cp - Cout))).astype(jnp.bfloat16)
    b = jnp.pad(shift, (0, Cp - Cout)).reshape(1, Cp).astype(jnp.float32)
    return w, b


@functools.partial(jax.jit, static_argnames=("eps",))
def basic_block_pallas(x_nchw, w1, g1, be1, m1, v1, w2, g2, be2, m2, v2,
                       eps=1e-5):
    N, Cin, H, W = x_nchw.shape
    Cout = w1.shape[0]
    # stride=1 / downsample=None BasicBlock: residual requires matching shapes.
    assert Cin == Cout, "BasicBlock with downsample=None needs inplanes == planes"

    C = Cin
    Cp = _round_up(C, 128)         # lane-dense channel dim
    Wp = _round_up(W + 2, 8)       # padded width, multiple of 8 (aligned rows)
    PTOP = 8
    L = PTOP + (H + 2) * Wp + 8    # flattened length incl. halo flanks
    M = H * Wp
    rh = _rows_per_chunk(H, Wp, Cp)
    TM = rh * Wp

    # NCHW -> NHWC, zero-pad spatially (right-pad to Wp) and channels to Cp,
    # then flatten (row, col) -> one axis so every conv tap is a row slice.
    x_nhwc = jnp.transpose(x_nchw, (0, 2, 3, 1))
    x_pad = jnp.pad(x_nhwc, ((0, 0), (1, 1), (1, Wp - W - 1), (0, Cp - C)))
    x_flat = jnp.pad(x_pad.reshape(N, (H + 2) * Wp, Cp),
                     ((0, 0), (PTOP, 8), (0, 0))).astype(jnp.bfloat16)

    # Column-validity mask (periodic with Wp), built once outside the kernel.
    q = jnp.arange(TM, dtype=jnp.int32) % Wp
    col_mask = ((q >= 1) & (q <= W)).astype(jnp.float32).reshape(TM, 1)

    w1_k, b1_s = _fold_conv_bn(w1, g1, be1, m1, v1, eps, Cp)
    w2_k, b2_s = _fold_conv_bn(w2, g2, be2, m2, v2, eps, Cp)

    kernel = functools.partial(basic_block_kernel,
                               H=H, W=W, Wp=Wp, Cp=Cp, rh=rh)

    out_flat = pl.pallas_call(
        kernel,
        out_shape=jax.ShapeDtypeStruct((N, M, Cp), jnp.float32),
        grid_spec=pltpu.PrefetchScalarGridSpec(
            num_scalar_prefetch=0,
            grid=(N,),
            in_specs=[
                pl.BlockSpec((1, L, Cp), lambda n: (n, 0, 0)),
                pl.BlockSpec((TM, 1), lambda n: (0, 0)),
                pl.BlockSpec((9, Cp, Cp), lambda n: (0, 0, 0)),
                pl.BlockSpec((1, Cp), lambda n: (0, 0)),
                pl.BlockSpec((9, Cp, Cp), lambda n: (0, 0, 0)),
                pl.BlockSpec((1, Cp), lambda n: (0, 0)),
            ],
            out_specs=pl.BlockSpec((1, M, Cp), lambda n: (n, 0, 0)),
            scratch_shapes=[pltpu.VMEM((L, Cp), jnp.bfloat16)],
        ),
        compiler_params=pltpu.CompilerParams(
            # Each batch element writes a distinct output block -> safe to
            # shard the grid across TensorCores on v7x; no-op on v5e/v6e.
            dimension_semantics=("parallel",)),
    )(x_flat, col_mask, w1_k, b1_s, w2_k, b2_s)

    # Un-flatten, drop padding columns / channels, back to NCHW.
    out = out_flat.reshape(N, H, Wp, Cp)[:, :, 1:W + 1, :C]
    return jnp.transpose(out, (0, 3, 1, 2))


def basic_block_reference(x_nchw, w1, g1, be1, m1, v1,
                          w2, g2, be2, m2, v2, eps=1e-5):
    """Pure-JAX f32 reference mirroring the PyTorch forward (eval-mode BN)."""
    def conv(x, w):
        return jax.lax.conv_general_dilated(
            x, w, window_strides=(1, 1), padding=((1, 1), (1, 1)),
            dimension_numbers=("NCHW", "OIHW", "NCHW"))

    def bn(x, g, b, m, v):
        g, b, m, v = (t[None, :, None, None] for t in (g, b, m, v))
        return (x - m) / jnp.sqrt(v + eps) * g + b

    out = jax.nn.relu(bn(conv(x_nchw, w1), g1, be1, m1, v1))
    out = bn(conv(out, w2), g2, be2, m2, v2)
    return jax.nn.relu(out + x_nchw)


if __name__ == "__main__":
    # Small shapes: batch=2, inplanes=planes=4, spatial=16x16, stride=1.
    N, C, H, W = 2, 4, 16, 16

    key = jax.random.PRNGKey(0)
    keys = jax.random.split(key, 11)

    x = jax.random.normal(keys[0], (N, C, H, W), jnp.float32)

    w1 = jax.random.normal(keys[1], (C, C, 3, 3), jnp.float32) * 0.1
    g1 = jax.random.uniform(keys[2], (C,), jnp.float32, 0.5, 1.5)
    be1 = jax.random.normal(keys[3], (C,), jnp.float32) * 0.1
    m1 = jax.random.normal(keys[4], (C,), jnp.float32) * 0.1
    v1 = jax.random.uniform(keys[5], (C,), jnp.float32, 0.5, 1.5)

    w2 = jax.random.normal(keys[6], (C, C, 3, 3), jnp.float32) * 0.1
    g2 = jax.random.uniform(keys[7], (C,), jnp.float32, 0.5, 1.5)
    be2 = jax.random.normal(keys[8], (C,), jnp.float32) * 0.1
    m2 = jax.random.normal(keys[9], (C,), jnp.float32) * 0.1
    v2 = jax.random.uniform(keys[10], (C,), jnp.float32, 0.5, 1.5)

    out = basic_block_pallas(x, w1, g1, be1, m1, v1, w2, g2, be2, m2, v2)
    out = jax.block_until_ready(out)

    ref = basic_block_reference(x, w1, g1, be1, m1, v1, w2, g2, be2, m2, v2)
    ref = jax.block_until_ready(ref)

    assert out.shape == (N, C, H, W), out.shape
    # bf16 matmul operands (f32 accumulation) -> bf16-level tolerance vs f32 ref.
    max_err = float(jnp.max(jnp.abs(out - ref)))
    assert jnp.allclose(out, ref, rtol=2e-2, atol=2e-2), max_err

    print("KERNEL_OK")
</pallas_src>

<mosaic_0001>
module attributes {stable_mosaic.version = 11 : i64} {
  func.func @basic_block_kernel(%arg0: i32, %arg1: memref<1x448x128xbf16, #tpu.memory_space<vmem>>, %arg2: memref<192x1xf32, #tpu.memory_space<vmem>>, %arg3: memref<9x128x128xbf16, #tpu.memory_space<vmem>>, %arg4: memref<1x128xf32, #tpu.memory_space<vmem>>, %arg5: memref<9x128x128xbf16, #tpu.memory_space<vmem>>, %arg6: memref<1x128xf32, #tpu.memory_space<vmem>>, %arg7: memref<1x384x128xf32, #tpu.memory_space<vmem>>, %arg8: memref<448x128xbf16, #tpu.memory_space<vmem>>) attributes {dimension_semantics = [#tpu.dimension_semantics<parallel>], iteration_bounds = array<i64: 2>, scalar_prefetch = 0 : i64, scratch_operands = 1 : i64, tpu.core_type = #tpu.core_type<tc>, window_params = [{transform_indices = @transform_0, window_bounds = array<i64: 1, 448, 128>}, {pipeline_mode = #tpu.pipeline_mode<synchronous>, transform_indices = @transform_1, window_bounds = array<i64: 192, 1>}, {pipeline_mode = #tpu.pipeline_mode<synchronous>, transform_indices = @transform_2, window_bounds = array<i64: 9, 128, 128>}, {pipeline_mode = #tpu.pipeline_mode<synchronous>, transform_indices = @transform_3, window_bounds = array<i64: 1, 128>}, {pipeline_mode = #tpu.pipeline_mode<synchronous>, transform_indices = @transform_4, window_bounds = array<i64: 9, 128, 128>}, {pipeline_mode = #tpu.pipeline_mode<synchronous>, transform_indices = @transform_5, window_bounds = array<i64: 1, 128>}, {transform_indices = @transform_6, window_bounds = array<i64: 1, 384, 128>}]} {
    %cst = arith.constant 0.000000e+00 : bf16
    %0 = vector.broadcast %cst : bf16 to vector<32x128xbf16>
    %c0 = arith.constant 0 : index
    %c0_0 = arith.constant 0 : index
    %1 = vector.load %arg8[%c0, %c0_0] : memref<448x128xbf16, #tpu.memory_space<vmem>>, vector<32x128xbf16>
    tpu.vector_store %arg8[%c0, %c0_0], %0 {strides = array<i32>} : memref<448x128xbf16, #tpu.memory_space<vmem>>, vector<32x128xbf16>,
    %cst_1 = arith.constant 0.000000e+00 : bf16
    %2 = vector.broadcast %cst_1 : bf16 to vector<32x128xbf16>
    %c416 = arith.constant 416 : index
    %c0_2 = arith.constant 0 : index
    %3 = vector.load %arg8[%c416, %c0_2] : memref<448x128xbf16, #tpu.memory_space<vmem>>, vector<32x128xbf16>
    tpu.vector_store %arg8[%c416, %c0_2], %2 {strides = array<i32>} : memref<448x128xbf16, #tpu.memory_space<vmem>>, vector<32x128xbf16>,
    %c0_3 = arith.constant 0 : index
    %c0_4 = arith.constant 0 : index
    %4 = vector.load %arg4[%c0_3, %c0_4] : memref<1x128xf32, #tpu.memory_space<vmem>>, vector<1x128xf32>
    %c0_5 = arith.constant 0 : index
    %c0_6 = arith.constant 0 : index
    %5 = vector.load %arg6[%c0_5, %c0_6] : memref<1x128xf32, #tpu.memory_space<vmem>>, vector<1x128xf32>
    %c0_7 = arith.constant 0 : index
    %c0_8 = arith.constant 0 : index
    %6 = vector.load %arg2[%c0_7, %c0_8] : memref<192x1xf32, #tpu.memory_space<vmem>>, vector<192x1xf32>
    %c0_9 = arith.constant 0 : index
    %c7 = arith.constant 7 : index
    %c0_10 = arith.constant 0 : index
    %7 = vector.load %arg1[%c0_9, %c7, %c0_10] : memref<1x448x128xbf16, #tpu.memory_space<vmem>>, vector<1x192x128xbf16>
    %8 = vector.shape_cast %7 : vector<1x192x128xbf16> to vector<192x128xbf16>
    %c0_11 = arith.constant 0 : index
    %c0_12 = arith.constant 0 : index
    %c0_13 = arith.constant 0 : index
    %9 = vector.load %arg3[%c0_11, %c0_12, %c0_13] : memref<9x128x128xbf16, #tpu.memory_space<vmem>>, vector<1x128x128xbf16>
    %10 = vector.shape_cast %9 : vector<1x128x128xbf16> to vector<128x128xbf16>
    %cst_14 = arith.constant dense<0.000000e+00> : vector<192x128xf32>
    %11 = tpu.matmul %8, %10, %cst_14 {dimension_numbers = #tpu.dot_dimension_numbers<[1], [0], [0], [1], [0, 0, 1, 1], [], []>} : vector<192x128xbf16>, vector<128x128xbf16>, vector<192x128xf32> -> vector<192x128xf32>
    %c0_15 = arith.constant 0 : index
    %c8 = arith.constant 8 : index
    %c0_16 = arith.constant 0 : index
    %12 = vector.load %arg1[%c0_15, %c8, %c0_16] : memref<1x448x128xbf16, #tpu.memory_space<vmem>>, vector<1x192x128xbf16>
    %13 = vector.shape_cast %12 : vector<1x192x128xbf16> to vector<192x128xbf16>
    %c1 = arith.constant 1 : index
    %c0_17 = arith.constant 0 : index
    %c0_18 = arith.constant 0 : index
    %14 = vector.load %arg3[%c1, %c0_17, %c0_18] : memref<9x128x128xbf16, #tpu.memory_space<vmem>>, vector<1x128x128xbf16>
    %15 = vector.shape_cast %14 : vector<1x128x128xbf16> to vector<128x128xbf16>
    %cst_19 = arith.constant dense<0.000000e+00> : vector<192x128xf32>
    %16 = tpu.matmul %13, %15, %cst_19 {dimension_numbers = #tpu.dot_dimension_numbers<[1], [0], [0], [1], [0, 0, 1, 1], [], []>} : vector<192x128xbf16>, vector<128x128xbf16>, vector<192x128xf32> -> vector<192x128xf32>
    %17 = arith.addf %11, %16 : vector<192x128xf32>
    %c0_20 = arith.constant 0 : index
    %c9 = arith.constant 9 : index
    %c0_21 = arith.constant 0 : index
    %18 = vector.load %arg1[%c0_20, %c9, %c0_21] : memref<1x448x128xbf16, #tpu.memory_space<vmem>>, vector<1x192x128xbf16>
    %19 = vector.shape_cast %18 : vector<1x192x128xbf16> to vector<192x128xbf16>
    %c2 = arith.constant 2 : index
    %c0_22 = arith.constant 0 : index
    %c0_23 = arith.constant 0 : index
    %20 = vector.load %arg3[%c2, %c0_22, %c0_23] : memref<9x128x128xbf16, #tpu.memory_space<vmem>>, vector<1x128x128xbf16>
    %21 = vector.shape_cast %20 : vector<1x128x128xbf16> to vector<128x128xbf16>
    %cst_24 = arith.constant dense<0.000000e+00> : vector<192x128xf32>
    %22 = tpu.matmul %19, %21, %cst_24 {dimension_numbers = #tpu.dot_dimension_numbers<[1], [0], [0], [1], [0, 0, 1, 1], [], []>} : vector<192x128xbf16>, vector<128x128xbf16>, vector<192x128xf32> -> vector<192x128xf32>
    %23 = arith.addf %17, %22 : vector<192x128xf32>
    %c0_25 = arith.constant 0 : index
    %c31 = arith.constant 31 : index
    %c0_26 = arith.constant 0 : index
    %24 = vector.load %arg1[%c0_25, %c31, %c0_26] : memref<1x448x128xbf16, #tpu.memory_space<vmem>>, vector<1x192x128xbf16>
    %25 = vector.shape_cast %24 : vector<1x192x128xbf16> to vector<192x128xbf16>
    %c3 = arith.constant 3 : index
    %c0_27 = arith.constant 0 : index
    %c0_28 = arith.constant 0 : index
    %26 = vector.load %arg3[%c3, %c0_27, %c0_28] : memref<9x128x128xbf16, #tpu.memory_space<vmem>>, vector<1x128x128xbf16>
    %27 = vector.shape_cast %26 : vector<1x128x128xbf16> to vector<128x128xbf16>
    %cst_29 = arith.constant dense<0.000000e+00> : vector<192x128xf32>
    %28 = tpu.matmul %25, %27, %cst_29 {dimension_numbers = #tpu.dot_dimension_numbers<[1], [0], [0], [1], [0, 0, 1, 1], [], []>} : vector<192x128xbf16>, vector<128x128xbf16>, vector<192x128xf32> -> vector<192x128xf32>
    %29 = arith.addf %23, %28 : vector<192x128xf32>
    %c0_30 = arith.constant 0 : index
    %c32 = arith.constant 32 : index
    %c0_31 = arith.constant 0 : index
    %30 = vector.load %arg1[%c0_30, %c32, %c0_31] : memref<1x448x128xbf16, #tpu.memory_space<vmem>>, vector<1x192x128xbf16>
    %31 = vector.shape_cast %30 : vector<1x192x128xbf16> to vector<192x128xbf16>
    %c4 = arith.constant 4 : index
    %c0_32 = arith.constant 0 : index
    %c0_33 = arith.constant 0 : index
    %32 = vector.load %arg3[%c4, %c0_32, %c0_33] : memref<9x128x128xbf16, #tpu.memory_space<vmem>>, vector<1x128x128xbf16>
    %33 = vector.shape_cast %32 : vector<1x128x128xbf16> to vector<128x128xbf16>
    %cst_34 = arith.constant dense<0.000000e+00> : vector<192x128xf32>
    %34 = tpu.matmul %31, %33, %cst_34 {dimension_numbers = #tpu.dot_dimension_numbers<[1], [0], [0], [1], [0, 0, 1, 1], [], []>} : vector<192x128xbf16>, vector<128x128xbf16>, vector<192x128xf32> -> vector<192x128xf32>
    %35 = arith.addf %29, %34 : vector<192x128xf32>
    %c0_35 = arith.constant 0 : index
    %c33 = arith.constant 33 : index
    %c0_36 = arith.constant 0 : index
    %36 = vector.load %arg1[%c0_35, %c33, %c0_36] : memref<1x448x128xbf16, #tpu.memory_space<vmem>>, vector<1x192x128xbf16>
    %37 = vector.shape_cast %36 : vector<1x192x128xbf16> to vector<192x128xbf16>
    %c5 = arith.constant 5 : index
    %c0_37 = arith.constant 0 : index
    %c0_38 = arith.constant 0 : index
    %38 = vector.load %arg3[%c5, %c0_37, %c0_38] : memref<9x128x128xbf16, #tpu.memory_space<vmem>>, vector<1x128x128xbf16>
    %39 = vector.shape_cast %38 : vector<1x128x128xbf16> to vector<128x128xbf16>
    %cst_39 = arith.constant dense<0.000000e+00> : vector<192x128xf32>
    %40 = tpu.matmul %37, %39, %cst_39 {dimension_numbers = #tpu.dot_dimension_numbers<[1], [0], [0], [1], [0, 0, 1, 1], [], []>} : vector<192x128xbf16>, vector<128x128xbf16>, vector<192x128xf32> -> vector<192x128xf32>
    %41 = arith.addf %35, %40 : vector<192x128xf32>
    %c0_40 = arith.constant 0 : index
    %c55 = arith.constant 55 : index
    %c0_41 = arith.constant 0 : index
    %42 = vector.load %arg1[%c0_40, %c55, %c0_41] : memref<1x448x128xbf16, #tpu.memory_space<vmem>>, vector<1x192x128xbf16>
    %43 = vector.shape_cast %42 : vector<1x192x128xbf16> to vector<192x128xbf16>
    %c6 = arith.constant 6 : index
    %c0_42 = arith.constant 0 : index
    %c0_43 = arith.constant 0 : index
    %44 = vector.load %arg3[%c6, %c0_42, %c0_43] : memref<9x128x128xbf16, #tpu.memory_space<vmem>>, vector<1x128x128xbf16>
    %45 = vector.shape_cast %44 : vector<1x128x128xbf16> to vector<128x128xbf16>
    %cst_44 = arith.constant dense<0.000000e+00> : vector<192x128xf32>
    %46 = tpu.matmul %43, %45, %cst_44 {dimension_numbers = #tpu.dot_dimension_numbers<[1], [0], [0], [1], [0, 0, 1, 1], [], []>} : vector<192x128xbf16>, vector<128x128xbf16>, vector<192x128xf32> -> vector<192x128xf32>
    %47 = arith.addf %41, %46 : vector<192x128xf32>
    %c0_45 = arith.constant 0 : index
    %c56 = arith.constant 56 : index
    %c0_46 = arith.constant 0 : index
    %48 = vector.load %arg1[%c0_45, %c56, %c0_46] : memref<1x448x128xbf16, #tpu.memory_space<vmem>>, vector<1x192x128xbf16>
    %49 = vector.shape_cast %48 : vector<1x192x128xbf16> to vector<192x128xbf16>
    %c7_47 = arith.constant 7 : index
    %c0_48 = arith.constant 0 : index
    %c0_49 = arith.constant 0 : index
    %50 = vector.load %arg3[%c7_47, %c0_48, %c0_49] : memref<9x128x128xbf16, #tpu.memory_space<vmem>>, vector<1x128x128xbf16>
    %51 = vector.shape_cast %50 : vector<1x128x128xbf16> to vector<128x128xbf16>
    %cst_50 = arith.constant dense<0.000000e+00> : vector<192x128xf32>
    %52 = tpu.matmul %49, %51, %cst_50 {dimension_numbers = #tpu.dot_dimension_numbers<[1], [0], [0], [1], [0, 0, 1, 1], [], []>} : vector<192x128xbf16>, vector<128x128xbf16>, vector<192x128xf32> -> vector<192x128xf32>
    %53 = arith.addf %47, %52 : vector<192x128xf32>
    %c0_51 = arith.constant 0 : index
    %c57 = arith.constant 57 : index
    %c0_52 = arith.constant 0 : index
    %54 = vector.load %arg1[%c0_51, %c57, %c0_52] : memref<1x448x128xbf16, #tpu.memory_space<vmem>>, vector<1x192x128xbf16>
    %55 = vector.shape_cast %54 : vector<1x192x128xbf16> to vector<192x128xbf16>
    %c8_53 = arith.constant 8 : index
    %c0_54 = arith.constant 0 : index
    %c0_55 = arith.constant 0 : index
    %56 = vector.load %arg3[%c8_53, %c0_54, %c0_55] : memref<9x128x128xbf16, #tpu.memory_space<vmem>>, vector<1x128x128xbf16>
    %57 = vector.shape_cast %56 : vector<1x128x128xbf16> to vector<128x128xbf16>
    %cst_56 = arith.constant dense<0.000000e+00> : vector<192x128xf32>
    %58 = tpu.matmul %55, %57, %cst_56 {dimension_numbers = #tpu.dot_dimension_numbers<[1], [0], [0], [1], [0, 0, 1, 1], [], []>} : vector<192x128xbf16>, vector<128x128xbf16>, vector<192x128xf32> -> vector<192x128xf32>
    %59 = arith.addf %53, %58 : vector<192x128xf32>
    %60 = vector.broadcast %4 : vector<1x128xf32> to vector<192x128xf32>
    %61 = arith.addf %59, %60 : vector<192x128xf32>
    %cst_57 = arith.constant 0.000000e+00 : f32
    %62 = vector.broadcast %cst_57 : f32 to vector<192x128xf32>
    %63 = arith.maximumf %61, %62 : vector<192x128xf32>
    %64 = vector.broadcast %6 : vector<192x1xf32> to vector<192x128xf32>
    %65 = arith.mulf %63, %64 : vector<192x128xf32>
    %66 = arith.truncf %65 : vector<192x128xf32> to vector<192x128xbf16>
    %c32_58 = arith.constant 32 : index
    %c0_59 = arith.constant 0 : index
    %67 = vector.load %arg8[%c32_58, %c0_59] : memref<448x128xbf16, #tpu.memory_space<vmem>>, vector<192x128xbf16>
    tpu.vector_store %arg8[%c32_58, %c0_59], %66 {strides = array<i32>} : memref<448x128xbf16, #tpu.memory_space<vmem>>, vector<192x128xbf16>,
    %c0_60 = arith.constant 0 : index
    %c199 = arith.constant 199 : index
    %c0_61 = arith.constant 0 : index
    %68 = vector.load %arg1[%c0_60, %c199, %c0_61] : memref<1x448x128xbf16, #tpu.memory_space<vmem>>, vector<1x192x128xbf16>
    %69 = vector.shape_cast %68 : vector<1x192x128xbf16> to vector<192x128xbf16>
    %c0_62 = arith.constant 0 : index
    %c0_63 = arith.constant 0 : index
    %c0_64 = arith.constant 0 : index
    %70 = vector.load %arg3[%c0_62, %c0_63, %c0_64] : memref<9x128x128xbf16, #tpu.memory_space<vmem>>, vector<1x128x128xbf16>
    %71 = vector.shape_cast %70 : vector<1x128x128xbf16> to vector<128x128xbf16>
    %cst_65 = arith.constant dense<0.000000e+00> : vector<192x128xf32>
    %72 = tpu.matmul %69, %71, %cst_65 {dimension_numbers = #tpu.dot_dimension_numbers<[1], [0], [0], [1], [0, 0, 1, 1], [], []>} : vector<192x128xbf16>, vector<128x128xbf16>, vector<192x128xf32> -> vector<192x128xf32>
    %c0_66 = arith.constant 0 : index
    %c200 = arith.constant 200 : index
    %c0_67 = arith.constant 0 : index
    %73 = vector.load %arg1[%c0_66, %c200, %c0_67] : memref<1x448x128xbf16, #tpu.memory_space<vmem>>, vector<1x192x128xbf16>
    %74 = vector.shape_cast %73 : vector<1x192x128xbf16> to vector<192x128xbf16>
    %c1_68 = arith.constant 1 : index
    %c0_69 = arith.constant 0 : index
    %c0_70 = arith.constant 0 : index
    %75 = vector.load %arg3[%c1_68, %c0_69, %c0_70] : memref<9x128x128xbf16, #tpu.memory_space<vmem>>, vector<1x128x128xbf16>
    %76 = vector.shape_cast %75 : vector<1x128x128xbf16> to vector<128x128xbf16>
    %cst_71 = arith.constant dense<0.000000e+00> : vector<192x128xf32>
    %77 = tpu.matmul %74, %76, %cst_71 {dimension_numbers = #tpu.dot_dimension_numbers<[1], [0], [0], [1], [0, 0, 1, 1], [], []>} : vector<192x128xbf16>, vector<128x128xbf16>, vector<192x128xf32> -> vector<192x128xf32>
    %78 = arith.addf %72, %77 : vector<192x128xf32>
    %c0_72 = arith.constant 0 : index
    %c201 = arith.constant 201 : index
    %c0_73 = arith.constant 0 : index
    %79 = vector.load %arg1[%c0_72, %c201, %c0_73] : memref<1x448x128xbf16, #tpu.memory_space<vmem>>, vector<1x192x128xbf16>
    %80 = vector.shape_cast %79 : vector<1x192x128xbf16> to vector<192x128xbf16>
    %c2_74 = arith.constant 2 : index
    %c0_75 = arith.constant 0 : index
    %c0_76 = arith.constant 0 : index
    %81 = vector.load %arg3[%c2_74, %c0_75, %c0_76] : memref<9x128x128xbf16, #tpu.memory_space<vmem>>, vector<1x128x128xbf16>
    %82 = vector.shape_cast %81 : vector<1x128x128xbf16> to vector<128x128xbf16>
    %cst_77 = arith.constant dense<0.000000e+00> : vector<192x128xf32>
    %83 = tpu.matmul %80, %82, %cst_77 {dimension_numbers = #tpu.dot_dimension_numbers<[1], [0], [0], [1], [0, 0, 1, 1], [], []>} : vector<192x128xbf16>, vector<128x128xbf16>, vector<192x128xf32> -> vector<192x128xf32>
    %84 = arith.addf %78, %83 : vector<192x128xf32>
    %c0_78 = arith.constant 0 : index
    %c223 = arith.constant 223 : index
    %c0_79 = arith.constant 0 : index
    %85 = vector.load %arg1[%c0_78, %c223, %c0_79] : memref<1x448x128xbf16, #tpu.memory_space<vmem>>, vector<1x192x128xbf16>
    %86 = vector.shape_cast %85 : vector<1x192x128xbf16> to vector<192x128xbf16>
    %c3_80 = arith.constant 3 : index
    %c0_81 = arith.constant 0 : index
    %c0_82 = arith.constant 0 : index
    %87 = vector.load %arg3[%c3_80, %c0_81, %c0_82] : memref<9x128x128xbf16, #tpu.memory_space<vmem>>, vector<1x128x128xbf16>
    %88 = vector.shape_cast %87 : vector<1x128x128xbf16> to vector<128x128xbf16>
    %cst_83 = arith.constant dense<0.000000e+00> : vector<192x128xf32>
    %89 = tpu.matmul %86, %88, %cst_83 {dimension_numbers = #tpu.dot_dimension_numbers<[1], [0], [0], [1], [0, 0, 1, 1], [], []>} : vector<192x128xbf16>, vector<128x128xbf16>, vector<192x128xf32> -> vector<192x128xf32>
    %90 = arith.addf %84, %89 : vector<192x128xf32>
    %c0_84 = arith.constant 0 : index
    %c224 = arith.constant 224 : index
    %c0_85 = arith.constant 0 : index
    %91 = vector.load %arg1[%c0_84, %c224, %c0_85] : memref<1x448x128xbf16, #tpu.memory_space<vmem>>, vector<1x192x128xbf16>
    %92 = vector.shape_cast %91 : vector<1x192x128xbf16> to vector<192x128xbf16>
    %c4_86 = arith.constant 4 : index
    %c0_87 = arith.constant 0 : index
    %c0_88 = arith.constant 0 : index
    %93 = vector.load %arg3[%c4_86, %c0_87, %c0_88] : memref<9x128x128xbf16, #tpu.memory_space<vmem>>, vector<1x128x128xbf16>
    %94 = vector.shape_cast %93 : vector<1x128x128xbf16> to vector<128x128xbf16>
    %cst_89 = arith.constant dense<0.000000e+00> : vector<192x128xf32>
    %95 = tpu.matmul %92, %94, %cst_89 {dimension_numbers = #tpu.dot_dimension_numbers<[1], [0], [0], [1], [0, 0, 1, 1], [], []>} : vector<192x128xbf16>, vector<128x128xbf16>, vector<192x128xf32> -> vector<192x128xf32>
    %96 = arith.addf %90, %95 : vector<192x128xf32>
    %c0_90 = arith.constant 0 : index
    %c225 = arith.constant 225 : index
    %c0_91 = arith.constant 0 : index
    %97 = vector.load %arg1[%c0_90, %c225, %c0_91] : memref<1x448x128xbf16, #tpu.memory_space<vmem>>, vector<1x192x128xbf16>
    %98 = vector.shape_cast %97 : vector<1x192x128xbf16> to vector<192x128xbf16>
    %c5_92 = arith.constant 5 : index
    %c0_93 = arith.constant 0 : index
    %c0_94 = arith.constant 0 : index
    %99 = vector.load %arg3[%c5_92, %c0_93, %c0_94] : memref<9x128x128xbf16, #tpu.memory_space<vmem>>, vector<1x128x128xbf16>
    %100 = vector.shape_cast %99 : vector<1x128x128xbf16> to vector<128x128xbf16>
    %cst_95 = arith.constant dense<0.000000e+00> : vector<192x128xf32>
    %101 = tpu.matmul %98, %100, %cst_95 {dimension_numbers = #tpu.dot_dimension_numbers<[1], [0], [0], [1], [0, 0, 1, 1], [], []>} : vector<192x128xbf16>, vector<128x128xbf16>, vector<192x128xf32> -> vector<192x128xf32>
    %102 = arith.addf %96, %101 : vector<192x128xf32>
    %c0_96 = arith.constant 0 : index
    %c247 = arith.constant 247 : index
    %c0_97 = arith.constant 0 : index
    %103 = vector.load %arg1[%c0_96, %c247, %c0_97] : memref<1x448x128xbf16, #tpu.memory_space<vmem>>, vector<1x192x128xbf16>
    %104 = vector.shape_cast %103 : vector<1x192x128xbf16> to vector<192x128xbf16>
    %c6_98 = arith.constant 6 : index
    %c0_99 = arith.constant 0 : index
    %c0_100 = arith.constant 0 : index
    %105 = vector.load %arg3[%c6_98, %c0_99, %c0_100] : memref<9x128x128xbf16, #tpu.memory_space<vmem>>, vector<1x128x128xbf16>
    %106 = vector.shape_cast %105 : vector<1x128x128xbf16> to vector<128x128xbf16>
    %cst_101 = arith.constant dense<0.000000e+00> : vector<192x128xf32>
    %107 = tpu.matmul %104, %106, %cst_101 {dimension_numbers = #tpu.dot_dimension_numbers<[1], [0], [0], [1], [0, 0, 1, 1], [], []>} : vector<192x128xbf16>, vector<128x128xbf16>, vector<192x128xf32> -> vector<192x128xf32>
    %108 = arith.addf %102, %107 : vector<192x128xf32>
    %c0_102 = arith.constant 0 : index
    %c248 = arith.constant 248 : index
    %c0_103 = arith.constant 0 : index
    %109 = vector.load %arg1[%c0_102, %c248, %c0_103] : memref<1x448x128xbf16, #tpu.memory_space<vmem>>, vector<1x192x128xbf16>
    %110 = vector.shape_cast %109 : vector<1x192x128xbf16> to vector<192x128xbf16>
    %c7_104 = arith.constant 7 : index
    %c0_105 = arith.constant 0 : index
    %c0_106 = arith.constant 0 : index
    %111 = vector.load %arg3[%c7_104, %c0_105, %c0_106] : memref<9x128x128xbf16, #tpu.memory_space<vmem>>, vector<1x128x128xbf16>
    %112 = vector.shape_cast %111 : vector<1x128x128xbf16> to vector<128x128xbf16>
    %cst_107 = arith.constant dense<0.000000e+00> : vector<192x128xf32>
    %113 = tpu.matmul %110, %112, %cst_107 {dimension_numbers = #tpu.dot_dimension_numbers<[1], [0], [0], [1], [0, 0, 1, 1], [], []>} : vector<192x128xbf16>, vector<128x128xbf16>, vector<192x128xf32> -> vector<192x128xf32>
    %114 = arith.addf %108, %113 : vector<192x128xf32>
    %c0_108 = arith.constant 0 : index
    %c249 = arith.constant 249 : index
    %c0_109 = arith.constant 0 : index
    %115 = vector.load %arg1[%c0_108, %c249, %c0_109] : memref<1x448x128xbf16, #tpu.memory_space<vmem>>, vector<1x192x128xbf16>
    %116 = vector.shape_cast %115 : vector<1x192x128xbf16> to vector<192x128xbf16>
    %c8_110 = arith.constant 8 : index
    %c0_111 = arith.constant 0 : index
    %c0_112 = arith.constant 0 : index
    %117 = vector.load %arg3[%c8_110, %c0_111, %c0_112] : memref<9x128x128xbf16, #tpu.memory_space<vmem>>, vector<1x128x128xbf16>
    %118 = vector.shape_cast %117 : vector<1x128x128xbf16> to vector<128x128xbf16>
    %cst_113 = arith.constant dense<0.000000e+00> : vector<192x128xf32>
    %119 = tpu.matmul %116, %118, %cst_113 {dimension_numbers = #tpu.dot_dimension_numbers<[1], [0], [0], [1], [0, 0, 1, 1], [], []>} : vector<192x128xbf16>, vector<128x128xbf16>, vector<192x128xf32> -> vector<192x128xf32>
    %120 = arith.addf %114, %119 : vector<192x128xf32>
    %121 = vector.broadcast %4 : vector<1x128xf32> to vector<192x128xf32>
    %122 = arith.addf %120, %121 : vector<192x128xf32>
    %cst_114 = arith.constant 0.000000e+00 : f32
    %123 = vector.broadcast %cst_114 : f32 to vector<192x128xf32>
    %124 = arith.maximumf %122, %123 : vector<192x128xf32>
    %125 = vector.broadcast %6 : vector<192x1xf32> to vector<192x128xf32>
    %126 = arith.mulf %124, %125 : vector<192x128xf32>
    %127 = arith.truncf %126 : vector<192x128xf32> to vector<192x128xbf16>
    %c224_115 = arith.constant 224 : index
    %c0_116 = arith.constant 0 : index
    %128 = vector.load %arg8[%c224_115, %c0_116] : memref<448x128xbf16, #tpu.memory_space<vmem>>, vector<192x128xbf16>
    tpu.vector_store %arg8[%c224_115, %c0_116], %127 {strides = array<i32>} : memref<448x128xbf16, #tpu.memory_space<vmem>>, vector<192x128xbf16>,
    %c7_117 = arith.constant 7 : index
    %c0_118 = arith.constant 0 : index
    %129 = vector.load %arg8[%c7_117, %c0_118] : memref<448x128xbf16, #tpu.memory_space<vmem>>, vector<192x128xbf16>
    %c0_119 = arith.constant 0 : index
    %c0_120 = arith.constant 0 : index
    %c0_121 = arith.constant 0 : index
    %130 = vector.load %arg5[%c0_119, %c0_120, %c0_121] : memref<9x128x128xbf16, #tpu.memory_space<vmem>>, vector<1x128x128xbf16>
    %131 = vector.shape_cast %130 : vector<1x128x128xbf16> to vector<128x128xbf16>
    %cst_122 = arith.constant dense<0.000000e+00> : vector<192x128xf32>
    %132 = tpu.matmul %129, %131, %cst_122 {dimension_numbers = #tpu.dot_dimension_numbers<[1], [0], [0], [1], [0, 0, 1, 1], [], []>} : vector<192x128xbf16>, vector<128x128xbf16>, vector<192x128xf32> -> vector<192x128xf32>
    %c8_123 = arith.constant 8 : index
    %c0_124 = arith.constant 0 : index
    %133 = vector.load %arg8[%c8_123, %c0_124] : memref<448x128xbf16, #tpu.memory_space<vmem>>, vector<192x128xbf16>
    %c1_125 = arith.constant 1 : index
    %c0_126 = arith.constant 0 : index
    %c0_127 = arith.constant 0 : index
    %134 = vector.load %arg5[%c1_125, %c0_126, %c0_127] : memref<9x128x128xbf16, #tpu.memory_space<vmem>>, vector<1x128x128xbf16>
    %135 = vector.shape_cast %134 : vector<1x128x128xbf16> to vector<128x128xbf16>
    %cst_128 = arith.constant dense<0.000000e+00> : vector<192x128xf32>
    %136 = tpu.matmul %133, %135, %cst_128 {dimension_numbers = #tpu.dot_dimension_numbers<[1], [0], [0], [1], [0, 0, 1, 1], [], []>} : vector<192x128xbf16>, vector<128x128xbf16>, vector<192x128xf32> -> vector<192x128xf32>
    %137 = arith.addf %132, %136 : vector<192x128xf32>
    %c9_129 = arith.constant 9 : index
    %c0_130 = arith.constant 0 : index
    %138 = vector.load %arg8[%c9_129, %c0_130] : memref<448x128xbf16, #tpu.memory_space<vmem>>, vector<192x128xbf16>
    %c2_131 = arith.constant 2 : index
    %c0_132 = arith.constant 0 : index
    %c0_133 = arith.constant 0 : index
    %139 = vector.load %arg5[%c2_131, %c0_132, %c0_133] : memref<9x128x128xbf16, #tpu.memory_space<vmem>>, vector<1x128x128xbf16>
    %140 = vector.shape_cast %139 : vector<1x128x128xbf16> to vector<128x128xbf16>
    %cst_134 = arith.constant dense<0.000000e+00> : vector<192x128xf32>
    %141 = tpu.matmul %138, %140, %cst_134 {dimension_numbers = #tpu.dot_dimension_numbers<[1], [0], [0], [1], [0, 0, 1, 1], [], []>} : vector<192x128xbf16>, vector<128x128xbf16>, vector<192x128xf32> -> vector<192x128xf32>
    %142 = arith.addf %137, %141 : vector<192x128xf32>
    %c31_135 = arith.constant 31 : index
    %c0_136 = arith.constant 0 : index
    %143 = vector.load %arg8[%c31_135, %c0_136] : memref<448x128xbf16, #tpu.memory_space<vmem>>, vector<192x128xbf16>
    %c3_137 = arith.constant 3 : index
    %c0_138 = arith.constant 0 : index
    %c0_139 = arith.constant 0 : index
    %144 = vector.load %arg5[%c3_137, %c0_138, %c0_139] : memref<9x128x128xbf16, #tpu.memory_space<vmem>>, vector<1x128x128xbf16>
    %145 = vector.shape_cast %144 : vector<1x128x128xbf16> to vector<128x128xbf16>
    %cst_140 = arith.constant dense<0.000000e+00> : vector<192x128xf32>
    %146 = tpu.matmul %143, %145, %cst_140 {dimension_numbers = #tpu.dot_dimension_numbers<[1], [0], [0], [1], [0, 0, 1, 1], [], []>} : vector<192x128xbf16>, vector<128x128xbf16>, vector<192x128xf32> -> vector<192x128xf32>
    %147 = arith.addf %142, %146 : vector<192x128xf32>
    %c32_141 = arith.constant 32 : index
    %c0_142 = arith.constant 0 : index
    %148 = vector.load %arg8[%c32_141, %c0_142] : memref<448x128xbf16, #tpu.memory_space<vmem>>, vector<192x128xbf16>
    %c4_143 = arith.constant 4 : index
    %c0_144 = arith.constant 0 : index
    %c0_145 = arith.constant 0 : index
    %149 = vector.load %arg5[%c4_143, %c0_144, %c0_145] : memref<9x128x128xbf16, #tpu.memory_space<vmem>>, vector<1x128x128xbf16>
    %150 = vector.shape_cast %149 : vector<1x128x128xbf16> to vector<128x128xbf16>
    %cst_146 = arith.constant dense<0.000000e+00> : vector<192x128xf32>
    %151 = tpu.matmul %148, %150, %cst_146 {dimension_numbers = #tpu.dot_dimension_numbers<[1], [0], [0], [1], [0, 0, 1, 1], [], []>} : vector<192x128xbf16>, vector<128x128xbf16>, vector<192x128xf32> -> vector<192x128xf32>
    %152 = arith.addf %147, %151 : vector<192x128xf32>
    %c33_147 = arith.constant 33 : index
    %c0_148 = arith.constant 0 : index
    %153 = vector.load %arg8[%c33_147, %c0_148] : memref<448x128xbf16, #tpu.memory_space<vmem>>, vector<192x128xbf16>
    %c5_149 = arith.constant 5 : index
    %c0_150 = arith.constant 0 : index
    %c0_151 = arith.constant 0 : index
    %154 = vector.load %arg5[%c5_149, %c0_150, %c0_151] : memref<9x128x128xbf16, #tpu.memory_space<vmem>>, vector<1x128x128xbf16>
    %155 = vector.shape_cast %154 : vector<1x128x128xbf16> to vector<128x128xbf16>
    %cst_152 = arith.constant dense<0.000000e+00> : vector<192x128xf32>
    %156 = tpu.matmul %153, %155, %cst_152 {dimension_numbers = #tpu.dot_dimension_numbers<[1], [0], [0], [1], [0, 0, 1, 1], [], []>} : vector<192x128xbf16>, vector<128x128xbf16>, vector<192x128xf32> -> vector<192x128xf32>
    %157 = arith.addf %152, %156 : vector<192x128xf32>
    %c55_153 = arith.constant 55 : index
    %c0_154 = arith.constant 0 : index
    %158 = vector.load %arg8[%c55_153, %c0_154] : memref<448x128xbf16, #tpu.memory_space<vmem>>, vector<192x128xbf16>
    %c6_155 = arith.constant 6 : index
    %c0_156 = arith.constant 0 : index
    %c0_157 = arith.constant 0 : index
    %159 = vector.load %arg5[%c6_155, %c0_156, %c0_157] : memref<9x128x128xbf16, #tpu.memory_space<vmem>>, vector<1x128x128xbf16>
    %160 = vector.shape_cast %159 : vector<1x128x128xbf16> to vector<128x128xbf16>
    %cst_158 = arith.constant dense<0.000000e+00> : vector<192x128xf32>
    %161 = tpu.matmul %158, %160, %cst_158 {dimension_numbers = #tpu.dot_dimension_numbers<[1], [0], [0], [1], [0, 0, 1, 1], [], []>} : vector<192x128xbf16>, vector<128x128xbf16>, vector<192x128xf32> -> vector<192x128xf32>
    %162 = arith.addf %157, %161 : vector<192x128xf32>
    %c56_159 = arith.constant 56 : index
    %c0_160 = arith.constant 0 : index
    %163 = vector.load %arg8[%c56_159, %c0_160] : memref<448x128xbf16, #tpu.memory_space<vmem>>, vector<192x128xbf16>
    %c7_161 = arith.constant 7 : index
    %c0_162 = arith.constant 0 : index
    %c0_163 = arith.constant 0 : index
    %164 = vector.load %arg5[%c7_161, %c0_162, %c0_163] : memref<9x128x128xbf16, #tpu.memory_space<vmem>>, vector<1x128x128xbf16>
    %165 = vector.shape_cast %164 : vector<1x128x128xbf16> to vector<128x128xbf16>
    %cst_164 = arith.constant dense<0.000000e+00> : vector<192x128xf32>
    %166 = tpu.matmul %163, %165, %cst_164 {dimension_numbers = #tpu.dot_dimension_numbers<[1], [0], [0], [1], [0, 0, 1, 1], [], []>} : vector<192x128xbf16>, vector<128x128xbf16>, vector<192x128xf32> -> vector<192x128xf32>
    %167 = arith.addf %162, %166 : vector<192x128xf32>
    %c57_165 = arith.constant 57 : index
    %c0_166 = arith.constant 0 : index
    %168 = vector.load %arg8[%c57_165, %c0_166] : memref<448x128xbf16, #tpu.memory_space<vmem>>, vector<192x128xbf16>
    %c8_167 = arith.constant 8 : index
    %c0_168 = arith.constant 0 : index
    %c0_169 = arith.constant 0 : index
    %169 = vector.load %arg5[%c8_167, %c0_168, %c0_169] : memref<9x128x128xbf16, #tpu.memory_space<vmem>>, vector<1x128x128xbf16>
    %170 = vector.shape_cast %169 : vector<1x128x128xbf16> to vector<128x128xbf16>
    %cst_170 = arith.constant dense<0.000000e+00> : vector<192x128xf32>
    %171 = tpu.matmul %168, %170, %cst_170 {dimension_numbers = #tpu.dot_dimension_numbers<[1], [0], [0], [1], [0, 0, 1, 1], [], []>} : vector<192x128xbf16>, vector<128x128xbf16>, vector<192x128xf32> -> vector<192x128xf32>
    %172 = arith.addf %167, %171 : vector<192x128xf32>
    %c0_171 = arith.constant 0 : index
    %c32_172 = arith.constant 32 : index
    %c0_173 = arith.constant 0 : index
    %173 = vector.load %arg1[%c0_171, %c32_172, %c0_173] : memref<1x448x128xbf16, #tpu.memory_space<vmem>>, vector<1x192x128xbf16>
    %174 = vector.shape_cast %173 : vector<1x192x128xbf16> to vector<192x128xbf16>
    %175 = arith.extf %174 : vector<192x128xbf16> to vector<192x128xf32>
    %176 = vector.broadcast %5 : vector<1x128xf32> to vector<192x128xf32>
    %177 = arith.addf %172, %176 : vector<192x128xf32>
    %178 = arith.addf %177, %175 : vector<192x128xf32>
    %cst_174 = arith.constant 0.000000e+00 : f32
    %179 = vector.broadcast %cst_174 : f32 to vector<192x128xf32>
    %180 = arith.maximumf %178, %179 : vector<192x128xf32>
    %c0_175 = arith.constant 0 : index
    %c0_176 = arith.constant 0 : index
    %c0_177 = arith.constant 0 : index
    %181 = vector.load %arg7[%c0_175, %c0_176, %c0_177] : memref<1x384x128xf32, #tpu.memory_space<vmem>>, vector<1x192x128xf32>
    %182 = vector.shape_cast %181 : vector<1x192x128xf32> to vector<192x128xf32>
    %183 = vector.shape_cast %180 : vector<192x128xf32> to vector<1x192x128xf32>
    tpu.vector_store %arg7[%c0_175, %c0_176, %c0_177], %183 {strides = array<i32>} : memref<1x384x128xf32, #tpu.memory_space<vmem>>, vector<1x192x128xf32>,
    %c199_178 = arith.constant 199 : index
    %c0_179 = arith.constant 0 : index
    %184 = vector.load %arg8[%c199_178, %c0_179] : memref<448x128xbf16, #tpu.memory_space<vmem>>, vector<192x128xbf16>
    %c0_180 = arith.constant 0 : index
    %c0_181 = arith.constant 0 : index
    %c0_182 = arith.constant 0 : index
    %185 = vector.load %arg5[%c0_180, %c0_181, %c0_182] : memref<9x128x128xbf16, #tpu.memory_space<vmem>>, vector<1x128x128xbf16>
    %186 = vector.shape_cast %185 : vector<1x128x128xbf16> to vector<128x128xbf16>
    %cst_183 = arith.constant dense<0.000000e+00> : vector<192x128xf32>
    %187 = tpu.matmul %184, %186, %cst_183 {dimension_numbers = #tpu.dot_dimension_numbers<[1], [0], [0], [1], [0, 0, 1, 1], [], []>} : vector<192x128xbf16>, vector<128x128xbf16>, vector<192x128xf32> -> vector<192x128xf32>
    %c200_184 = arith.constant 200 : index
    %c0_185 = arith.constant 0 : index
    %188 = vector.load %arg8[%c200_184, %c0_185] : memref<448x128xbf16, #tpu.memory_space<vmem>>, vector<192x128xbf16>
    %c1_186 = arith.constant 1 : index
    %c0_187 = arith.constant 0 : index
    %c0_188 = arith.constant 0 : index
    %189 = vector.load %arg5[%c1_186, %c0_187, %c0_188] : memref<9x128x128xbf16, #tpu.memory_space<vmem>>, vector<1x128x128xbf16>
    %190 = vector.shape_cast %189 : vector<1x128x128xbf16> to vector<128x128xbf16>
    %cst_189 = arith.constant dense<0.000000e+00> : vector<192x128xf32>
    %191 = tpu.matmul %188, %190, %cst_189 {dimension_numbers = #tpu.dot_dimension_numbers<[1], [0], [0], [1], [0, 0, 1, 1], [], []>} : vector<192x128xbf16>, vector<128x128xbf16>, vector<192x128xf32> -> vector<192x128xf32>
    %192 = arith.addf %187, %191 : vector<192x128xf32>
    %c201_190 = arith.constant 201 : index
    %c0_191 = arith.constant 0 : index
    %193 = vector.load %arg8[%c201_190, %c0_191] : memref<448x128xbf16, #tpu.memory_space<vmem>>, vector<192x128xbf16>
    %c2_192 = arith.constant 2 : index
    %c0_193 = arith.constant 0 : index
    %c0_194 = arith.constant 0 : index
    %194 = vector.load %arg5[%c2_192, %c0_193, %c0_194] : memref<9x128x128xbf16, #tpu.memory_space<vmem>>, vector<1x128x128xbf16>
    %195 = vector.shape_cast %194 : vector<1x128x128xbf16> to vector<128x128xbf16>
    %cst_195 = arith.constant dense<0.000000e+00> : vector<192x128xf32>
    %196 = tpu.matmul %193, %195, %cst_195 {dimension_numbers = #tpu.dot_dimension_numbers<[1], [0], [0], [1], [0, 0, 1, 1], [], []>} : vector<192x128xbf16>, vector<128x128xbf16>, vector<192x128xf32> -> vector<192x128xf32>
    %197 = arith.addf %192, %196 : vector<192x128xf32>
    %c223_196 = arith.constant 223 : index
    %c0_197 = arith.constant 0 : index
    %198 = vector.load %arg8[%c223_196, %c0_197] : memref<448x128xbf16, #tpu.memory_space<vmem>>, vector<192x128xbf16>
    %c3_198 = arith.constant 3 : index
    %c0_199 = arith.constant 0 : index
    %c0_200 = arith.constant 0 : index
    %199 = vector.load %arg5[%c3_198, %c0_199, %c0_200] : memref<9x128x128xbf16, #tpu.memory_space<vmem>>, vector<1x128x128xbf16>
    %200 = vector.shape_cast %199 : vector<1x128x128xbf16> to vector<128x128xbf16>
    %cst_201 = arith.constant dense<0.000000e+00> : vector<192x128xf32>
    %201 = tpu.matmul %198, %200, %cst_201 {dimension_numbers = #tpu.dot_dimension_numbers<[1], [0], [0], [1], [0, 0, 1, 1], [], []>} : vector<192x128xbf16>, vector<128x128xbf16>, vector<192x128xf32> -> vector<192x128xf32>
    %202 = arith.addf %197, %201 : vector<192x128xf32>
    %c224_202 = arith.constant 224 : index
    %c0_203 = arith.constant 0 : index
    %203 = vector.load %arg8[%c224_202, %c0_203] : memref<448x128xbf16, #tpu.memory_space<vmem>>, vector<192x128xbf16>
    %c4_204 = arith.constant 4 : index
    %c0_205 = arith.constant 0 : index
    %c0_206 = arith.constant 0 : index
    %204 = vector.load %arg5[%c4_204, %c0_205, %c0_206] : memref<9x128x128xbf16, #tpu.memory_space<vmem>>, vector<1x128x128xbf16>
    %205 = vector.shape_cast %204 : vector<1x128x128xbf16> to vector<128x128xbf16>
    %cst_207 = arith.constant dense<0.000000e+00> : vector<192x128xf32>
    %206 = tpu.matmul %203, %205, %cst_207 {dimension_numbers = #tpu.dot_dimension_numbers<[1], [0], [0], [1], [0, 0, 1, 1], [], []>} : vector<192x128xbf16>, vector<128x128xbf16>, vector<192x128xf32> -> vector<192x128xf32>
    %207 = arith.addf %202, %206 : vector<192x128xf32>
    %c225_208 = arith.constant 225 : index
    %c0_209 = arith.constant 0 : index
    %208 = vector.load %arg8[%c225_208, %c0_209] : memref<448x128xbf16, #tpu.memory_space<vmem>>, vector<192x128xbf16>
    %c5_210 = arith.constant 5 : index
    %c0_211 = arith.constant 0 : index
    %c0_212 = arith.constant 0 : index
    %209 = vector.load %arg5[%c5_210, %c0_211, %c0_212] : memref<9x128x128xbf16, #tpu.memory_space<vmem>>, vector<1x128x128xbf16>
    %210 = vector.shape_cast %209 : vector<1x128x128xbf16> to vector<128x128xbf16>
    %cst_213 = arith.constant dense<0.000000e+00> : vector<192x128xf32>
    %211 = tpu.matmul %208, %210, %cst_213 {dimension_numbers = #tpu.dot_dimension_numbers<[1], [0], [0], [1], [0, 0, 1, 1], [], []>} : vector<192x128xbf16>, vector<128x128xbf16>, vector<192x128xf32> -> vector<192x128xf32>
    %212 = arith.addf %207, %211 : vector<192x128xf32>
    %c247_214 = arith.constant 247 : index
    %c0_215 = arith.constant 0 : index
    %213 = vector.load %arg8[%c247_214, %c0_215] : memref<448x128xbf16, #tpu.memory_space<vmem>>, vector<192x128xbf16>
    %c6_216 = arith.constant 6 : index
    %c0_217 = arith.constant 0 : index
    %c0_218 = arith.constant 0 : index
    %214 = vector.load %arg5[%c6_216, %c0_217, %c0_218] : memref<9x128x128xbf16, #tpu.memory_space<vmem>>, vector<1x128x128xbf16>
    %215 = vector.shape_cast %214 : vector<1x128x128xbf16> to vector<128x128xbf16>
    %cst_219 = arith.constant dense<0.000000e+00> : vector<192x128xf32>
    %216 = tpu.matmul %213, %215, %cst_219 {dimension_numbers = #tpu.dot_dimension_numbers<[1], [0], [0], [1], [0, 0, 1, 1], [], []>} : vector<192x128xbf16>, vector<128x128xbf16>, vector<192x128xf32> -> vector<192x128xf32>
    %217 = arith.addf %212, %216 : vector<192x128xf32>
    %c248_220 = arith.constant 248 : index
    %c0_221 = arith.constant 0 : index
    %218 = vector.load %arg8[%c248_220, %c0_221] : memref<448x128xbf16, #tpu.memory_space<vmem>>, vector<192x128xbf16>
    %c7_222 = arith.constant 7 : index
    %c0_223 = arith.constant 0 : index
    %c0_224 = arith.constant 0 : index
    %219 = vector.load %arg5[%c7_222, %c0_223, %c0_224] : memref<9x128x128xbf16, #tpu.memory_space<vmem>>, vector<1x128x128xbf16>
    %220 = vector.shape_cast %219 : vector<1x128x128xbf16> to vector<128x128xbf16>
    %cst_225 = arith.constant dense<0.000000e+00> : vector<192x128xf32>
    %221 = tpu.matmul %218, %220, %cst_225 {dimension_numbers = #tpu.dot_dimension_numbers<[1], [0], [0], [1], [0, 0, 1, 1], [], []>} : vector<192x128xbf16>, vector<128x128xbf16>, vector<192x128xf32> -> vector<192x128xf32>
    %222 = arith.addf %217, %221 : vector<192x128xf32>
    %c249_226 = arith.constant 249 : index
    %c0_227 = arith.constant 0 : index
    %223 = vector.load %arg8[%c249_226, %c0_227] : memref<448x128xbf16, #tpu.memory_space<vmem>>, vector<192x128xbf16>
    %c8_228 = arith.constant 8 : index
    %c0_229 = arith.constant 0 : index
    %c0_230 = arith.constant 0 : index
    %224 = vector.load %arg5[%c8_228, %c0_229, %c0_230] : memref<9x128x128xbf16, #tpu.memory_space<vmem>>, vector<1x128x128xbf16>
    %225 = vector.shape_cast %224 : vector<1x128x128xbf16> to vector<128x128xbf16>
    %cst_231 = arith.constant dense<0.000000e+00> : vector<192x128xf32>
    %226 = tpu.matmul %223, %225, %cst_231 {dimension_numbers = #tpu.dot_dimension_numbers<[1], [0], [0], [1], [0, 0, 1, 1], [], []>} : vector<192x128xbf16>, vector<128x128xbf16>, vector<192x128xf32> -> vector<192x128xf32>
    %227 = arith.addf %222, %226 : vector<192x128xf32>
    %c0_232 = arith.constant 0 : index
    %c224_233 = arith.constant 224 : index
    %c0_234 = arith.constant 0 : index
    %228 = vector.load %arg1[%c0_232, %c224_233, %c0_234] : memref<1x448x128xbf16, #tpu.memory_space<vmem>>, vector<1x192x128xbf16>
    %229 = vector.shape_cast %228 : vector<1x192x128xbf16> to vector<192x128xbf16>
    %230 = arith.extf %229 : vector<192x128xbf16> to vector<192x128xf32>
    %231 = vector.broadcast %5 : vector<1x128xf32> to vector<192x128xf32>
    %232 = arith.addf %227, %231 : vector<192x128xf32>
    %233 = arith.addf %232, %230 : vector<192x128xf32>
    %cst_235 = arith.constant 0.000000e+00 : f32
    %234 = vector.broadcast %cst_235 : f32 to vector<192x128xf32>
    %235 = arith.maximumf %233, %234 : vector<192x128xf32>
    %c0_236 = arith.constant 0 : index
    %c192 = arith.constant 192 : index
    %c0_237 = arith.constant 0 : index
    %236 = vector.load %arg7[%c0_236, %c192, %c0_237] : memref<1x384x128xf32, #tpu.memory_space<vmem>>, vector<1x192x128xf32>
    %237 = vector.shape_cast %236 : vector<1x192x128xf32> to vector<192x128xf32>
    %238 = vector.shape_cast %235 : vector<192x128xf32> to vector<1x192x128xf32>
    tpu.vector_store %arg7[%c0_236, %c192, %c0_237], %238 {strides = array<i32>} : memref<1x384x128xf32, #tpu.memory_space<vmem>>, vector<1x192x128xf32>,
    return
  }
  func.func @transform_0(%arg0: i32) -> (i32, i32, i32) {
    %c0_i32 = arith.constant 0 : i32
    %c0_i32_0 = arith.constant 0 : i32
    %c0_i32_1 = arith.constant 0 : i32
    return %arg0, %c0_i32, %c0_i32_0 : i32, i32, i32
  }
  func.func @transform_1(%arg0: i32) -> (i32, i32) {
    %c0_i32 = arith.constant 0 : i32
    %c0_i32_0 = arith.constant 0 : i32
    %c0_i32_1 = arith.constant 0 : i32
    return %c0_i32, %c0_i32_0 : i32, i32
  }
  func.func @transform_2(%arg0: i32) -> (i32, i32, i32) {
    %c0_i32 = arith.constant 0 : i32
    %c0_i32_0 = arith.constant 0 : i32
    %c0_i32_1 = arith.constant 0 : i32
    %c0_i32_2 = arith.constant 0 : i32
    return %c0_i32, %c0_i32_0, %c0_i32_1 : i32, i32, i32
  }
  func.func @transform_3(%arg0: i32) -> (i32, i32) {
    %c0_i32 = arith.constant 0 : i32
    %c0_i32_0 = arith.constant 0 : i32
    %c0_i32_1 = arith.constant 0 : i32
    return %c0_i32, %c0_i32_0 : i32, i32
  }
  func.func @transform_4(%arg0: i32) -> (i32, i32, i32) {
    %c0_i32 = arith.constant 0 : i32
    %c0_i32_0 = arith.constant 0 : i32
    %c0_i32_1 = arith.constant 0 : i32
    %c0_i32_2 = arith.constant 0 : i32
    return %c0_i32, %c0_i32_0, %c0_i32_1 : i32, i32, i32
  }
  func.func @transform_5(%arg0: i32) -> (i32, i32) {
    %c0_i32 = arith.constant 0 : i32
    %c0_i32_0 = arith.constant 0 : i32
    %c0_i32_1 = arith.constant 0 : i32
    return %c0_i32, %c0_i32_0 : i32, i32
  }
  func.func @transform_6(%arg0: i32) -> (i32, i32, i32) {
    %c0_i32 = arith.constant 0 : i32
    %c0_i32_0 = arith.constant 0 : i32
    %c0_i32_1 = arith.constant 0 : i32
    return %arg0, %c0_i32, %c0_i32_0 : i32, i32, i32
  }
}

</mosaic_0001>

<llo_original>
// kernel: basic_block_pallas.1
$region0: #{basic_block_pallas.1}
  #allocation0 [shape = 'u32[]', space=smem, size = 0x4, offset = 0x4, fixed_abs, tag = 'smem constant byte address 0x4 - core index']
  #allocation1 [shape = 'u32[144,128]{1,0:T(1,128)}', space=vmem, size = 0x12000, scoped, tag = 'internal scratch']
  #allocation2 [shape = 'bf16[448,128]{1,0:T(16,128)(2,1)}', space=vmem, size = 0x1c000, scoped, tag = 'scratch operand']
  %s0 = inlined_call_operand.vmem [shape: bf16[2,448,128], index: 0, kind: input, shape index: {}]
  %s1 = inlined_call_operand.vmem [shape: f32[192,1], index: 1, kind: input, shape index: {}]
  %s2 = inlined_call_operand.vmem [shape: bf16[9,128,128], index: 2, kind: input, shape index: {}]
  %s3 = inlined_call_operand.vmem [shape: f32[1,128], index: 3, kind: input, shape index: {}]
  %s4 = inlined_call_operand.vmem [shape: bf16[9,128,128], index: 4, kind: input, shape index: {}]
  %s5 = inlined_call_operand.vmem [shape: f32[1,128], index: 5, kind: input, shape index: {}]
  %s6 = inlined_call_operand.vmem [shape: f32[2,384,128], index: 6, kind: output, shape index: {}]
  %s7 = sld [smem:[#allocation0]]
  $region57: #{basic_block_pallas.1} parent=0
    _
  %s9 = ssub.s32 1, %s7
  %s10 = scalar_select 0, %s9, %s7
  loop: start=0, step=1, limit=4
  $region2: #{basic_block_pallas.1} parent=0 // loop_pre_header
    _
  $region3: #{basic_block_pallas.1} parent=0 // loop_header
    %s12 = sphi 0, %s16
    %p13 = scmp.ge.s32.totalorder %s12, 4
    %s22 = sphi 0, %s24
    %s25 = sphi 0, %s22
    %s26 = sphi 0, %s25
    %s42 = sphi 0, %s26
    %s46 = sphi 0, %s46
    %s48 = sphi 0, %s46
    %s49 = sphi 0, %s48
    %s63 = sphi 0, %s49
    %s67 = sphi 0, %s67
    %s69 = sphi 0, %s67
    %s70 = sphi 0, %s69
    %s84 = sphi 0, %s70
    %s88 = sphi 0, %s88
    %s90 = sphi 0, %s88
    %s91 = sphi 0, %s90
    %s105 = sphi 0, %s91
    %s109 = sphi 0, %s109
    %s111 = sphi 0, %s109
    %s112 = sphi 0, %s111
    %s126 = sphi 0, %s112
    %s130 = sphi 0, %s130
    %s132 = sphi 0, %s130
    %s133 = sphi 0, %s132
    %s147 = sphi 0, %s133
    %s153 = sphi 0, %s155
    %s156 = sphi 0, %s153
    %s157 = sphi 0, %s156
    %s173 = sphi 0, %s157
  $region4: #{basic_block_pallas.1} parent=0 // loop_header_branch
    %15 = sbr.rel (%p13) target = $region8
  $region5: #{basic_block_pallas.1} parent=0 // loop_body
    %s17 = ssub.s32 %s12, 1
    %s18 = ssub.s32 %s12, 2
    %s19 = sadd.s32 %s12, 1
    %s20 = ssub.s32 %s12, %s19
    %p21 = scmp.eq.s32.totalorder %s20, 0
    %s23 = sadd.s32 %s22, 1
    %s24 = scalar_select %p21, %s22, %s23
    %p27 = pneg %p21
    %p28 = scmp.eq.s32.totalorder %s12, 1
    %p29 = por %p27, %p28
    %p30 = scmp.ne.s32.totalorder %s22, %s25
    %p31 = scmp.eq.s32.totalorder %s12, 0
    %p32 = por %p30, %p31
    %p33 = scmp.ne.s32.totalorder %s22, %s25
    %p34 = scmp.eq.s32.totalorder %s17, 1
    %p35 = por %p33, %p34
    %p36 = scmp.ne.s32.totalorder %s25, %s26
    %p37 = scmp.eq.s32.totalorder %s17, 0
    %p38 = por %p36, %p37
    %p39 = scmp.ne.s32.totalorder %s25, %s26
    %p40 = scmp.eq.s32.totalorder %s18, 1
    %p41 = por %p39, %p40
    %p43 = scmp.ne.s32.totalorder %s26, %s42
    %p44 = scmp.eq.s32.totalorder %s18, 0
    %p45 = por %p43, %p44
    %s47 = sadd.s32 %s46, 1
    %p50 = scmp.eq.s32.totalorder %s12, 1
    %p51 = scmp.ne.s32.totalorder %s46, %s48
    %p52 = scmp.eq.s32.totalorder %s12, 0
    %p53 = por %p51, %p52
    %p54 = scmp.ne.s32.totalorder %s46, %s48
    %p55 = scmp.eq.s32.totalorder %s17, 1
    %p56 = por %p54, %p55
    %p57 = scmp.ne.s32.totalorder %s48, %s49
    %p58 = scmp.eq.s32.totalorder %s17, 0
    %p59 = por %p57, %p58
    %p60 = scmp.ne.s32.totalorder %s48, %s49
    %p61 = scmp.eq.s32.totalorder %s18, 1
    %p62 = por %p60, %p61
    %p64 = scmp.ne.s32.totalorder %s49, %s63
    %p65 = scmp.eq.s32.totalorder %s18, 0
    %p66 = por %p64, %p65
    %s68 = sadd.s32 %s67, 1
    %p71 = scmp.eq.s32.totalorder %s12, 1
    %p72 = scmp.ne.s32.totalorder %s67, %s69
    %p73 = scmp.eq.s32.totalorder %s12, 0
    %p74 = por %p72, %p73
    %p75 = scmp.ne.s32.totalorder %s67, %s69
    %p76 = scmp.eq.s32.totalorder %s17, 1
    %p77 = por %p75, %p76
    %p78 = scmp.ne.s32.totalorder %s69, %s70
    %p79 = scmp.eq.s32.totalorder %s17, 0
    %p80 = por %p78, %p79
    %p81 = scmp.ne.s32.totalorder %s69, %s70
    %p82 = scmp.eq.s32.totalorder %s18, 1
    %p83 = por %p81, %p82
    %p85 = scmp.ne.s32.totalorder %s70, %s84
    %p86 = scmp.eq.s32.totalorder %s18, 0
    %p87 = por %p85, %p86
    %s89 = sadd.s32 %s88, 1
    %p92 = scmp.eq.s32.totalorder %s12, 1
    %p93 = scmp.ne.s32.totalorder %s88, %s90
    %p94 = scmp.eq.s32.totalorder %s12, 0
    %p95 = por %p93, %p94
    %p96 = scmp.ne.s32.totalorder %s88, %s90
    %p97 = scmp.eq.s32.totalorder %s17, 1
    %p98 = por %p96, %p97
    %p99 = scmp.ne.s32.totalorder %s90, %s91
    %p100 = scmp.eq.s32.totalorder %s17, 0
    %p101 = por %p99, %p100
    %p102 = scmp.ne.s32.totalorder %s90, %s91
    %p103 = scmp.eq.s32.totalorder %s18, 1
    %p104 = por %p102, %p103
    %p106 = scmp.ne.s32.totalorder %s91, %s105
    %p107 = scmp.eq.s32.totalorder %s18, 0
    %p108 = por %p106, %p107
    %s110 = sadd.s32 %s109, 1
    %p113 = scmp.eq.s32.totalorder %s12, 1
    %p114 = scmp.ne.s32.totalorder %s109, %s111
    %p115 = scmp.eq.s32.totalorder %s12, 0
    %p116 = por %p114, %p115
    %p117 = scmp.ne.s32.totalorder %s109, %s111
    %p118 = scmp.eq.s32.totalorder %s17, 1
    %p119 = por %p117, %p118
    %p120 = scmp.ne.s32.totalorder %s111, %s112
    %p121 = scmp.eq.s32.totalorder %s17, 0
    %p122 = por %p120, %p121
    %p123 = scmp.ne.s32.totalorder %s111, %s112
    %p124 = scmp.eq.s32.totalorder %s18, 1
    %p125 = por %p123, %p124
    %p127 = scmp.ne.s32.totalorder %s112, %s126
    %p128 = scmp.eq.s32.totalorder %s18, 0
    %p129 = por %p127, %p128
    %s131 = sadd.s32 %s130, 1
    %p134 = scmp.eq.s32.totalorder %s12, 1
    %p135 = scmp.ne.s32.totalorder %s130, %s132
    %p136 = scmp.eq.s32.totalorder %s12, 0
    %p137 = por %p135, %p136
    %p138 = scmp.ne.s32.totalorder %s130, %s132
    %p139 = scmp.eq.s32.totalorder %s17, 1
    %p140 = por %p138, %p139
    %p141 = scmp.ne.s32.totalorder %s132, %s133
    %p142 = scmp.eq.s32.totalorder %s17, 0
    %p143 = por %p141, %p142
    %p144 = scmp.ne.s32.totalorder %s132, %s133
    %p145 = scmp.eq.s32.totalorder %s18, 1
    %p146 = por %p144, %p145
    %p148 = scmp.ne.s32.totalorder %s133, %s147
    %p149 = scmp.eq.s32.totalorder %s18, 0
    %p150 = por %p148, %p149
    %s151 = ssub.s32 %s12, %s19
    %p152 = scmp.eq.s32.totalorder %s151, 0
    %s154 = sadd.s32 %s153, 1
    %s155 = scalar_select %p152, %s153, %s154
    %p158 = pneg %p152
    %p159 = scmp.eq.s32.totalorder %s12, 1
    %p160 = por %p158, %p159
    %p161 = scmp.ne.s32.totalorder %s153, %s156
    %p162 = scmp.eq.s32.totalorder %s12, 0
    %p163 = por %p161, %p162
    %p164 = scmp.ne.s32.totalorder %s153, %s156
    %p165 = scmp.eq.s32.totalorder %s17, 1
    %p166 = por %p164, %p165
    %p167 = scmp.ne.s32.totalorder %s156, %s157
    %p168 = scmp.eq.s32.totalorder %s17, 0
    %p169 = por %p167, %p168
    %p170 = scmp.ne.s32.totalorder %s156, %s157
    %p171 = scmp.eq.s32.totalorder %s18, 1
    %p172 = por %p170, %p171
    %p174 = scmp.ne.s32.totalorder %s157, %s173
    %p175 = scmp.eq.s32.totalorder %s18, 0
    %p176 = por %p174, %p175
    %p177 = scmp.le.s32.totalorder 1, %s12
    %p178 = scmp.lt.s32.totalorder %s12, 3
    %p179 = pnand %p177, %p178
    %p180 = pneg %p179
    // Predicated region
    $region9: #{basic_block_pallas.1} parent=5 // pred_check
      _
    $region10: #{basic_block_pallas.1} parent=5 // pred_check_branch
      %182 = sbr.rel (%p179) target = $region12
    $region11: #{basic_block_pallas.1} parent=5 // pred_region
      %s183 = ssub.s32 %s12, 1
      // Predicated region
      $region13: #{basic_block_pallas.1} parent=11 // pred_check
        %p184 = pneg %p59
      $region14: #{basic_block_pallas.1} parent=11 // pred_check_branch
        %186 = sbr.rel (%p184) target = $region16
      $region15: #{basic_block_pallas.1} parent=11 // pred_region
        _
      $region16: #{basic_block_pallas.1} parent=11 // pred_fallthru
        _
      // Predicated region
      $region17: #{basic_block_pallas.1} parent=11 // pred_check
        %p187 = pneg %p80
      $region18: #{basic_block_pallas.1} parent=11 // pred_check_branch
        %189 = sbr.rel (%p187) target = $region20
      $region19: #{basic_block_pallas.1} parent=11 // pred_region
        _
      $region20: #{basic_block_pallas.1} parent=11 // pred_fallthru
        _
      // Predicated region
      $region21: #{basic_block_pallas.1} parent=11 // pred_check
        %p190 = pneg %p101
      $region22: #{basic_block_pallas.1} parent=11 // pred_check_branch
        %192 = sbr.rel (%p190) target = $region24
      $region23: #{basic_block_pallas.1} parent=11 // pred_region
        _
      $region24: #{basic_block_pallas.1} parent=11 // pred_fallthru
        _
      // Predicated region
      $region25: #{basic_block_pallas.1} parent=11 // pred_check
        %p193 = pneg %p122
      $region26: #{basic_block_pallas.1} parent=11 // pred_check_branch
        %195 = sbr.rel (%p193) target = $region28
      $region27: #{basic_block_pallas.1} parent=11 // pred_region
        _
      $region28: #{basic_block_pallas.1} parent=11 // pred_fallthru
        _
      // Predicated region
      $region29: #{basic_block_pallas.1} parent=11 // pred_check
        %p196 = pneg %p143
      $region30: #{basic_block_pallas.1} parent=11 // pred_check_branch
        %198 = sbr.rel (%p196) target = $region32
      $region31: #{basic_block_pallas.1} parent=11 // pred_region
        _
      $region32: #{basic_block_pallas.1} parent=11 // pred_fallthru
        _
    $region12: #{basic_block_pallas.1} parent=5 // pred_fallthru
      _
    %p199 = scmp.lt.s32.totalorder %s12, 2
    // Predicated region
    $region33: #{basic_block_pallas.1} parent=5 // pred_check
      %p200 = pneg %p199
    $region34: #{basic_block_pallas.1} parent=5 // pred_check_branch
      %202 = sbr.rel (%p200) target = $region36
    $region35: #{basic_block_pallas.1} parent=5 // pred_region
      // Predicated region
      $region37: #{basic_block_pallas.1} parent=35 // pred_check
        %p203 = pneg %p32
      $region38: #{basic_block_pallas.1} parent=35 // pred_check_branch
        %205 = sbr.rel (%p203) target = $region40
      $region39: #{basic_block_pallas.1} parent=35 // pred_region
        %p206 = scmp.lt.s32.totalorder %s12, 1
        %s207 = scalar_select %p206, %s12, 1
        %s208 = smul.addr %s207, 56
        %s209 = smul.addr %s208, 4
        %s210 = scalar_lea.vmem %s0, %s209
      $region40: #{basic_block_pallas.1} parent=35 // pred_fallthru
        _
    $region36: #{basic_block_pallas.1} parent=5 // pred_fallthru
      _
    %p211 = scmp.le.s32.totalorder 1, %s12
    %p212 = scmp.lt.s32.totalorder %s12, 3
    %p213 = pnand %p211, %p212
    %p214 = pneg %p213
    // Predicated region
    $region41: #{basic_block_pallas.1} parent=5 // pred_check
      _
    $region42: #{basic_block_pallas.1} parent=5 // pred_check_branch
      %216 = sbr.rel (%p213) target = $region44
    $region43: #{basic_block_pallas.1} parent=5 // pred_region
      %s217 = ssub.s32 %s12, 1
      %p218 = scmp.lt.s32.totalorder %s17, 1
      %s219 = scalar_select %p218, %s17, 1
      %s220 = smul.addr %s219, 56
      %s221 = smul.addr %s220, 4
      %s222 = scalar_lea.vmem %s0, %s221
      %p223 = pneg %p38
      %p224 = pneg %p35
      %p225 = pneg %p59
      %p226 = pneg %p56
      %p227 = pneg %p80
      %p228 = pneg %p77
      %p229 = pneg %p101
      %p230 = pneg %p98
      %p231 = pneg %p122
      %p232 = pneg %p119
      %p233 = pneg %p143
      %p234 = pneg %p140
      %p235 = pneg %p169
      %p236 = pneg %p166
      %p237 = scmp.lt.s32.totalorder %s17, 1
      %s238 = scalar_select %p237, %s17, 1
      %s239 = smul.addr %s238, 48
      %s240 = smul.addr %s239, 8
      %s241 = scalar_lea.vmem %s6, %s240
      %p242 = scmp.lt.s32.totalorder %s17, 1
      %s243 = scalar_select %p242, %s17, 1
      %s244 = smul.addr %s243, 56
      %s245 = smul.addr %s244, 4
      %s246 = scalar_lea.vmem %s0, %s245
      %p247 = scmp.lt.s32.totalorder %s17, 1
      %s248 = scalar_select %p247, %s17, 1
      %s249 = smul.addr %s248, 48
      %s250 = smul.addr %s249, 8
      %s251 = scalar_lea.vmem %s6, %s250
      %253 = vst [vmem:[#allocation2] sm:$0xff] 0
      %254 = vst [vmem:[#allocation2 + $0x8] sm:$0xff] 0
      %255 = vst [vmem:[#allocation2 + $0xd0] sm:$0xff] 0
      %256 = vst [vmem:[#allocation2 + $0xd8] sm:$0xff] 0
      %v257 = vld [vmem:[%s3] sm:$0x1]
      %v258 = vld [vmem:[%s5] sm:$0x1]
      %v259 = vld [vmem:[%s1] sm:$0xff]
      %v260 = vld [vmem:[%s1 + $0x8] sm:$0xff]
      %v261 = vld [vmem:[%s1 + $0x10] sm:$0xff]
      %v262 = vld [vmem:[%s1 + $0x18] sm:$0xff]
      %v263 = vld [vmem:[%s1 + $0x20] sm:$0xff]
      %v264 = vld [vmem:[%s1 + $0x28] sm:$0xff]
      %v265 = vld [vmem:[%s1 + $0x30] sm:$0xff]
      %v266 = vld [vmem:[%s1 + $0x38] sm:$0xff]
      %v267 = vld [vmem:[%s1 + $0x40] sm:$0xff]
      %v268 = vld [vmem:[%s1 + $0x48] sm:$0xff]
      %v269 = vld [vmem:[%s1 + $0x50] sm:$0xff]
      %v270 = vld [vmem:[%s1 + $0x58] sm:$0xff]
      %v271 = vld [vmem:[%s1 + $0x60] sm:$0xff]
      %v272 = vld [vmem:[%s1 + $0x68] sm:$0xff]
      %v273 = vld [vmem:[%s1 + $0x70] sm:$0xff]
      %v274 = vld [vmem:[%s1 + $0x78] sm:$0xff]
      %v275 = vld [vmem:[%s1 + $0x80] sm:$0xff]
      %v276 = vld [vmem:[%s1 + $0x88] sm:$0xff]
      %v277 = vld [vmem:[%s1 + $0x90] sm:$0xff]
      %v278 = vld [vmem:[%s1 + $0x98] sm:$0xff]
      %v279 = vld [vmem:[%s1 + $0xa0] sm:$0xff]
      %v280 = vld [vmem:[%s1 + $0xa8] sm:$0xff]
      %v281 = vld [vmem:[%s1 + $0xb0] sm:$0xff]
      %v282 = vld [vmem:[%s1 + $0xb8] sm:$0xff]
      %v283 = vld [vmem:[%s246] sm:$0x8]
      %v284 = vld [vmem:[%s246 + $0x4] sm:$0xf]
      %v285 = vld [vmem:[%s246 + $0x8] sm:$0xf]
      %v286 = vld [vmem:[%s246 + $0xc] sm:$0xf]
      %v287 = vld [vmem:[%s246 + $0x10] sm:$0xf]
      %v288 = vld [vmem:[%s246 + $0x14] sm:$0xf]
      %v289 = vld [vmem:[%s246 + $0x18] sm:$0xf]
      %v290 = vld [vmem:[%s246 + $0x1c] sm:$0xf]
      %v291 = vld [vmem:[%s246 + $0x20] sm:$0xf]
      %v292 = vld [vmem:[%s246 + $0x24] sm:$0xf]
      %v293 = vld [vmem:[%s246 + $0x28] sm:$0xf]
      %v294 = vld [vmem:[%s246 + $0x2c] sm:$0xf]
      %v295 = vld [vmem:[%s246 + $0x30] sm:$0xf]
      %v296 = vld [vmem:[%s246 + $0x34] sm:$0xf]
      %v297 = vld [vmem:[%s246 + $0x38] sm:$0xf]
      %v298 = vld [vmem:[%s246 + $0x3c] sm:$0xf]
      %v299 = vld [vmem:[%s246 + $0x40] sm:$0xf]
      %v300 = vld [vmem:[%s246 + $0x44] sm:$0xf]
      %v301 = vld [vmem:[%s246 + $0x48] sm:$0xf]
      %v302 = vld [vmem:[%s246 + $0x4c] sm:$0xf]
      %v303 = vld [vmem:[%s246 + $0x50] sm:$0xf]
      %v304 = vld [vmem:[%s246 + $0x54] sm:$0xf]
      %v305 = vld [vmem:[%s246 + $0x58] sm:$0xf]
      %v306 = vld [vmem:[%s246 + $0x5c] sm:$0xf]
      %v307 = vld [vmem:[%s246 + $0x60] sm:$0xf]
      %v308 = vld [vmem:[%s2] sm:$0xf]
      %v309 = vld [vmem:[%s2 + $0x4] sm:$0xf]
      %v310 = vld [vmem:[%s2 + $0x8] sm:$0xf]
      %v311 = vld [vmem:[%s2 + $0xc] sm:$0xf]
      %v312 = vld [vmem:[%s2 + $0x10] sm:$0xf]
      %v313 = vld [vmem:[%s2 + $0x14] sm:$0xf]
      %v314 = vld [vmem:[%s2 + $0x18] sm:$0xf]
      %v315 = vld [vmem:[%s2 + $0x1c] sm:$0xf]
      %v316 = vld [vmem:[%s2 + $0x20] sm:$0xf]
      %v317 = vld [vmem:[%s2 + $0x24] sm:$0xf]
      %v318 = vld [vmem:[%s2 + $0x28] sm:$0xf]
      %v319 = vld [vmem:[%s2 + $0x2c] sm:$0xf]
      %v320 = vld [vmem:[%s2 + $0x30] sm:$0xf]
      %v321 = vld [vmem:[%s2 + $0x34] sm:$0xf]
      %v322 = vld [vmem:[%s2 + $0x38] sm:$0xf]
      %v323 = vld [vmem:[%s2 + $0x3c] sm:$0xf]
      %s324 = scalar_lea.vmem %s2, 64
      %v325 = vld [vmem:[%s324] sm:$0xf]
      %v326 = vld [vmem:[%s324 + $0x4] sm:$0xf]
      %v327 = vld [vmem:[%s324 + $0x8] sm:$0xf]
      %v328 = vld [vmem:[%s324 + $0xc] sm:$0xf]
      %v329 = vld [vmem:[%s324 + $0x10] sm:$0xf]
      %v330 = vld [vmem:[%s324 + $0x14] sm:$0xf]
      %v331 = vld [vmem:[%s324 + $0x18] sm:$0xf]
      %v332 = vld [vmem:[%s324 + $0x1c] sm:$0xf]
      %v333 = vld [vmem:[%s324 + $0x20] sm:$0xf]
      %v334 = vld [vmem:[%s324 + $0x24] sm:$0xf]
      %v335 = vld [vmem:[%s324 + $0x28] sm:$0xf]
      %v336 = vld [vmem:[%s324 + $0x2c] sm:$0xf]
      %v337 = vld [vmem:[%s324 + $0x30] sm:$0xf]
      %v338 = vld [vmem:[%s324 + $0x34] sm:$0xf]
      %v339 = vld [vmem:[%s324 + $0x38] sm:$0xf]
      %v340 = vld [vmem:[%s324 + $0x3c] sm:$0xf]
      %v365 = vunpack.c.l.b16 %v284
      %v366 = vunpack.c.l.b16 %v285
      %v367 = vunpack.c.l.b16 %v286
      %v368 = vunpack.c.l.b16 %v287
      %v369 = vunpack.c.l.b16 %v288
      %v370 = vunpack.c.l.b16 %v289
      %v371 = vunpack.c.l.b16 %v290
      %v372 = vunpack.c.l.b16 %v291
      %v373 = vunpack.c.l.b16 %v292
      %v374 = vunpack.c.l.b16 %v293
      %v375 = vunpack.c.l.b16 %v294
      %v376 = vunpack.c.l.b16 %v295
      %v377 = vunpack.c.l.b16 %v296
      %v378 = vunpack.c.l.b16 %v297
      %v379 = vunpack.c.l.b16 %v298
      %v380 = vunpack.c.l.b16 %v299
      %v381 = vunpack.c.l.b16 %v300
      %v382 = vunpack.c.l.b16 %v301
      %v383 = vunpack.c.l.b16 %v302
      %v384 = vunpack.c.l.b16 %v303
      %v385 = vunpack.c.l.b16 %v304
      %v386 = vunpack.c.l.b16 %v305
      %v387 = vunpack.c.l.b16 %v306
      %v388 = vunpack.c.l.b16 %v307
      %v389 = vpack.c.b16 %v366, %v365
      %v390 = vpack.c.b16 %v368, %v367
      %v391 = vpack.c.b16 %v370, %v369
      %v392 = vpack.c.b16 %v372, %v371
      %v393 = vpack.c.b16 %v374, %v373
      %v394 = vpack.c.b16 %v376, %v375
      %v395 = vpack.c.b16 %v378, %v377
      %v396 = vpack.c.b16 %v380, %v379
      %v397 = vpack.c.b16 %v382, %v381
      %v398 = vpack.c.b16 %v384, %v383
      %v399 = vpack.c.b16 %v386, %v385
      %v400 = vpack.c.b16 %v388, %v387
      %v429 = vunpack.c.l.b16 %v325
      %v430 = vunpack.c.l.b16 %v326
      %v431 = vunpack.c.l.b16 %v327
      %v432 = vunpack.c.l.b16 %v328
      %v433 = vunpack.c.l.b16 %v329
      %v434 = vunpack.c.l.b16 %v330
      %v435 = vunpack.c.l.b16 %v331
      %v436 = vunpack.c.l.b16 %v332
      %v437 = vunpack.c.l.b16 %v333
      %v438 = vunpack.c.l.b16 %v334
      %v439 = vunpack.c.l.b16 %v335
      %v440 = vunpack.c.l.b16 %v336
      %v441 = vunpack.c.l.b16 %v337
      %v442 = vunpack.c.l.b16 %v338
      %v443 = vunpack.c.l.b16 %v339
      %v444 = vunpack.c.l.b16 %v340
      %v445 = vpack.c.b16 %v430, %v429
      %v446 = vpack.c.b16 %v432, %v431
      %v447 = vpack.c.b16 %v434, %v433
      %v448 = vpack.c.b16 %v436, %v435
      %v449 = vpack.c.b16 %v438, %v437
      %v450 = vpack.c.b16 %v440, %v439
      %v451 = vpack.c.b16 %v442, %v441
      %v452 = vpack.c.b16 %v444, %v443
      %461 = vmatprep.subr.bf16.mxu0 0
      %462 = vmatpush1.bf16.msra.mxu0 %v445
      %463 = vmatprep.subr.bf16.mxu0 0
      %464 = vmatpush1.bf16.msra.mxu0 %v446
      %465 = vmatprep.subr.bf16.mxu0 0
      %466 = vmatpush1.bf16.msra.mxu0 %v447
      %467 = vmatprep.subr.bf16.mxu0 0
      %468 = vmatpush1.bf16.msra.mxu0 %v448
      %469 = vmatprep.subr.bf16.mxu0 0
      %470 = vmatpush1.bf16.msra.mxu0 %v449
      %471 = vmatprep.subr.bf16.mxu0 0
      %472 = vmatpush1.bf16.msra.mxu0 %v450
      %473 = vmatprep.subr.bf16.mxu0 0
      %474 = vmatpush1.bf16.msra.mxu0 %v451
      %475 = vmatprep.subr.bf16.mxu0 0
      %476 = vmatpush1.bf16.msra.mxu0 %v452
      %477 = vmatprep.subr.bf16.mxu0 0
      %478 = vmatpush1.bf16.msra.mxu0 0
      %479 = vmatprep.subr.bf16.mxu0 0
      %480 = vmatpush1.bf16.msra.mxu0 0
      %481 = vmatprep.subr.bf16.mxu0 0
      %482 = vmatpush1.bf16.msra.mxu0 0
      %483 = vmatprep.subr.bf16.mxu0 0
      %484 = vmatpush1.bf16.msra.mxu0 0
      %485 = vmatprep.subr.bf16.mxu0 0
      %486 = vmatpush1.bf16.msra.mxu0 0
      %487 = vmatprep.subr.bf16.mxu0 0
      %488 = vmatpush1.bf16.msra.mxu0 0
      %489 = vmatprep.subr.bf16.mxu0 0
      %490 = vmatpush1.bf16.msra.mxu0 0
      %491 = vmatprep.subr.bf16.mxu0 0
      %492 = vmatpush1.bf16.msra.mxu0 0
      %493 = vmatprep.mubr.bf16.mxu0 0
      %494 = vmatmul.mubr.bf16.gmra.mrb[0].mxu0 %v389
      %v495 = vpop.f32.mrb[0].mxu0
      %v496 = vadd.f32 0.0, %v495
      %v497 = vpop.f32.mrb[0].mxu0
      %v498 = vpop.f32.mrb[0].mxu0
      %v499 = vadd.f32 0.0, %v498
      %v500 = vpop.f32.mrb[0].mxu0
      %501 = vmatprep.mubr.bf16.mxu0 0
      %502 = vmatmul.mubr.bf16.gmra.mrb[0].mxu0 %v390
      %v503 = vpop.f32.mrb[0].mxu0
      %v504 = vadd.f32 0.0, %v503
      %v505 = vpop.f32.mrb[0].mxu0
      %v506 = vpop.f32.mrb[0].mxu0
      %v507 = vadd.f32 0.0, %v506
      %v508 = vpop.f32.mrb[0].mxu0
      %509 = vmatprep.mubr.bf16.mxu0 0
      %510 = vmatmul.mubr.bf16.gmra.mrb[0].mxu0 %v391
      %v511 = vpop.f32.mrb[0].mxu0
      %v512 = vadd.f32 0.0, %v511
      %v513 = vpop.f32.mrb[0].mxu0
      %v514 = vpop.f32.mrb[0].mxu0
      %v515 = vadd.f32 0.0, %v514
      %v516 = vpop.f32.mrb[0].mxu0
      %517 = vmatprep.mubr.bf16.mxu0 0
      %518 = vmatmul.mubr.bf16.gmra.mrb[0].mxu0 %v392
      %v519 = vpop.f32.mrb[0].mxu0
      %v520 = vadd.f32 0.0, %v519
      %v521 = vpop.f32.mrb[0].mxu0
      %v522 = vpop.f32.mrb[0].mxu0
      %v523 = vadd.f32 0.0, %v522
      %v524 = vpop.f32.mrb[0].mxu0
      %525 = vmatprep.mubr.bf16.mxu0 0
      %526 = vmatmul.mubr.bf16.gmra.mrb[0].mxu0 %v393
      %v527 = vpop.f32.mrb[0].mxu0
      %v528 = vadd.f32 0.0, %v527
      %v529 = vpop.f32.mrb[0].mxu0
      %v530 = vpop.f32.mrb[0].mxu0
      %v531 = vadd.f32 0.0, %v530
      %v532 = vpop.f32.mrb[0].mxu0
      %533 = vmatprep.mubr.bf16.mxu0 0
      %534 = vmatmul.mubr.bf16.gmra.mrb[0].mxu0 %v394
      %v535 = vpop.f32.mrb[0].mxu0
      %v536 = vadd.f32 0.0, %v535
      %v537 = vpop.f32.mrb[0].mxu0
      %v538 = vpop.f32.mrb[0].mxu0
      %v539 = vadd.f32 0.0, %v538
      %v540 = vpop.f32.mrb[0].mxu0
      %541 = vmatprep.mubr.bf16.mxu0 0
      %542 = vmatmul.mubr.bf16.gmra.mrb[0].mxu0 %v395
      %v543 = vpop.f32.mrb[0].mxu0
      %v544 = vadd.f32 0.0, %v543
      %v545 = vpop.f32.mrb[0].mxu0
      %v546 = vpop.f32.mrb[0].mxu0
      %v547 = vadd.f32 0.0, %v546
      %v548 = vpop.f32.mrb[0].mxu0
      %549 = vmatprep.mubr.bf16.mxu0 0
      %550 = vmatmul.mubr.bf16.gmra.mrb[0].mxu0 %v396
      %v551 = vpop.f32.mrb[0].mxu0
      %v552 = vadd.f32 0.0, %v551
      %v553 = vpop.f32.mrb[0].mxu0
      %v554 = vpop.f32.mrb[0].mxu0
      %v555 = vadd.f32 0.0, %v554
      %v556 = vpop.f32.mrb[0].mxu0
      %557 = vmatprep.mubr.bf16.mxu0 0
      %558 = vmatmul.mubr.bf16.gmra.mrb[0].mxu0 %v397
      %v559 = vpop.f32.mrb[0].mxu0
      %v560 = vadd.f32 0.0, %v559
      %v561 = vpop.f32.mrb[0].mxu0
      %v562 = vpop.f32.mrb[0].mxu0
      %v563 = vadd.f32 0.0, %v562
      %v564 = vpop.f32.mrb[0].mxu0
      %565 = vmatprep.mubr.bf16.mxu0 0
      %566 = vmatmul.mubr.bf16.gmra.mrb[0].mxu0 %v398
      %v567 = vpop.f32.mrb[0].mxu0
      %v568 = vadd.f32 0.0, %v567
      %v569 = vpop.f32.mrb[0].mxu0
      %v570 = vpop.f32.mrb[0].mxu0
      %v571 = vadd.f32 0.0, %v570
      %v572 = vpop.f32.mrb[0].mxu0
      %573 = vmatprep.mubr.bf16.mxu0 0
      %574 = vmatmul.mubr.bf16.gmra.mrb[0].mxu0 %v399
      %v575 = vpop.f32.mrb[0].mxu0
      %v576 = vadd.f32 0.0, %v575
      %v577 = vpop.f32.mrb[0].mxu0
      %v578 = vpop.f32.mrb[0].mxu0
      %v579 = vadd.f32 0.0, %v578
      %v580 = vpop.f32.mrb[0].mxu0
      %581 = vmatprep.mubr.bf16.mxu0 0
      %582 = vmatmul.mubr.bf16.gmra.mrb[0].mxu0 %v400
      %v583 = vpop.f32.mrb[0].mxu0
      %v584 = vadd.f32 0.0, %v583
      %v585 = vpop.f32.mrb[0].mxu0
      %v586 = vpop.f32.mrb[0].mxu0
      %v587 = vadd.f32 0.0, %v586
      %v588 = vpop.f32.mrb[0].mxu0
      %589 = vdwg.mxu0
      %v591 = vunpack.c.l.b16 %v283
      %v592 = vpack.c.b16 %v365, %v591
      %v593 = vpack.c.b16 %v367, %v366
      %v594 = vpack.c.b16 %v369, %v368
      %v595 = vpack.c.b16 %v371, %v370
      %v596 = vpack.c.b16 %v373, %v372
      %v597 = vpack.c.b16 %v375, %v374
      %v598 = vpack.c.b16 %v377, %v376
      %v599 = vpack.c.b16 %v379, %v378
      %v600 = vpack.c.b16 %v381, %v380
      %v601 = vpack.c.b16 %v383, %v382
      %v602 = vpack.c.b16 %v385, %v384
      %v603 = vpack.c.b16 %v387, %v386
      %v604 = vpack.c.b16 %v388, %v388
      %vm605 = vsmask.f32 4352
      %v607 = vshrl.u32 %v592, 16
      %v609 = vrot.slane %v607, 3
      %v610 = vshll.u32 %v592, 16
      %v612 = vrot.slane %v610, 4
      %v613 = vor.u32 %v609, %v612
      %v615 = vshrl.u32 %v593, 16
      %v617 = vrot.slane %v615, 3
      %v618 = vshll.u32 %v593, 16
      %v620 = vrot.slane %v618, 4
      %v621 = vor.u32 %v617, %v620
      %v622 = vsel %vm605, %v613, %v621
      %v624 = vshrl.u32 %v594, 16
      %v626 = vrot.slane %v624, 3
      %v627 = vshll.u32 %v594, 16
      %v629 = vrot.slane %v627, 4
      %v630 = vor.u32 %v626, %v629
      %v631 = vsel %vm605, %v621, %v630
      %v633 = vshrl.u32 %v595, 16
      %v635 = vrot.slane %v633, 3
      %v636 = vshll.u32 %v595, 16
      %v638 = vrot.slane %v636, 4
      %v639 = vor.u32 %v635, %v638
      %v640 = vsel %vm605, %v630, %v639
      %v642 = vshrl.u32 %v596, 16
      %v644 = vrot.slane %v642, 3
      %v645 = vshll.u32 %v596, 16
      %v647 = vrot.slane %v645, 4
      %v648 = vor.u32 %v644, %v647
      %v649 = vsel %vm605, %v639, %v648
      %v651 = vshrl.u32 %v597, 16
      %v653 = vrot.slane %v651, 3
      %v654 = vshll.u32 %v597, 16
      %v656 = vrot.slane %v654, 4
      %v657 = vor.u32 %v653, %v656
      %v658 = vsel %vm605, %v648, %v657
      %v660 = vshrl.u32 %v598, 16
      %v662 = vrot.slane %v660, 3
      %v663 = vshll.u32 %v598, 16
      %v665 = vrot.slane %v663, 4
      %v666 = vor.u32 %v662, %v665
      %v667 = vsel %vm605, %v657, %v666
      %v669 = vshrl.u32 %v599, 16
      %v671 = vrot.slane %v669, 3
      %v672 = vshll.u32 %v599, 16
      %v674 = vrot.slane %v672, 4
      %v675 = vor.u32 %v671, %v674
      %v676 = vsel %vm605, %v666, %v675
      %v678 = vshrl.u32 %v600, 16
      %v680 = vrot.slane %v678, 3
      %v681 = vshll.u32 %v600, 16
      %v683 = vrot.slane %v681, 4
      %v684 = vor.u32 %v680, %v683
      %v685 = vsel %vm605, %v675, %v684
      %v687 = vshrl.u32 %v601, 16
      %v689 = vrot.slane %v687, 3
      %v690 = vshll.u32 %v601, 16
      %v692 = vrot.slane %v690, 4
      %v693 = vor.u32 %v689, %v692
      %v694 = vsel %vm605, %v684, %v693
      %v696 = vshrl.u32 %v602, 16
      %v698 = vrot.slane %v696, 3
      %v699 = vshll.u32 %v602, 16
      %v701 = vrot.slane %v699, 4
      %v702 = vor.u32 %v698, %v701
      %v703 = vsel %vm605, %v693, %v702
      %v705 = vshrl.u32 %v603, 16
      %v707 = vrot.slane %v705, 3
      %v708 = vshll.u32 %v603, 16
      %v710 = vrot.slane %v708, 4
      %v711 = vor.u32 %v707, %v710
      %v712 = vsel %vm605, %v702, %v711
      %v714 = vshrl.u32 %v604, 16
      %v716 = vrot.slane %v714, 3
      %v717 = vshll.u32 %v604, 16
      %v719 = vrot.slane %v717, 4
      %v720 = vor.u32 %v716, %v719
      %v721 = vsel %vm605, %v711, %v720
      %v750 = vunpack.c.l.b16 %v308
      %v751 = vunpack.c.l.b16 %v309
      %v752 = vunpack.c.l.b16 %v310
      %v753 = vunpack.c.l.b16 %v311
      %v754 = vunpack.c.l.b16 %v312
      %v755 = vunpack.c.l.b16 %v313
      %v756 = vunpack.c.l.b16 %v314
      %v757 = vunpack.c.l.b16 %v315
      %v758 = vunpack.c.l.b16 %v316
      %v759 = vunpack.c.l.b16 %v317
      %v760 = vunpack.c.l.b16 %v318
      %v761 = vunpack.c.l.b16 %v319
      %v762 = vunpack.c.l.b16 %v320
      %v763 = vunpack.c.l.b16 %v321
      %v764 = vunpack.c.l.b16 %v322
      %v765 = vunpack.c.l.b16 %v323
      %v766 = vpack.c.b16 %v751, %v750
      %v767 = vpack.c.b16 %v753, %v752
      %v768 = vpack.c.b16 %v755, %v754
      %v769 = vpack.c.b16 %v757, %v756
      %v770 = vpack.c.b16 %v759, %v758
      %v771 = vpack.c.b16 %v761, %v760
      %v772 = vpack.c.b16 %v763, %v762
      %v773 = vpack.c.b16 %v765, %v764
      %782 = vmatprep.subr.bf16.mxu0 0
      %783 = vmatpush1.bf16.msra.mxu0 %v766
      %784 = vmatprep.subr.bf16.mxu0 0
      %785 = vmatpush1.bf16.msra.mxu0 %v767
      %786 = vmatprep.subr.bf16.mxu0 0
      %787 = vmatpush1.bf16.msra.mxu0 %v768
      %788 = vmatprep.subr.bf16.mxu0 0
      %789 = vmatpush1.bf16.msra.mxu0 %v769
      %790 = vmatprep.subr.bf16.mxu0 0
      %791 = vmatpush1.bf16.msra.mxu0 %v770
      %792 = vmatprep.subr.bf16.mxu0 0
      %793 = vmatpush1.bf16.msra.mxu0 %v771
      %794 = vmatprep.subr.bf16.mxu0 0
      %795 = vmatpush1.bf16.msra.mxu0 %v772
      %796 = vmatprep.subr.bf16.mxu0 0
      %797 = vmatpush1.bf16.msra.mxu0 %v773
      %798 = vmatprep.subr.bf16.mxu0 0
      %799 = vmatpush1.bf16.msra.mxu0 0
      %800 = vmatprep.subr.bf16.mxu0 0
      %801 = vmatpush1.bf16.msra.mxu0 0
      %802 = vmatprep.subr.bf16.mxu0 0
      %803 = vmatpush1.bf16.msra.mxu0 0
      %804 = vmatprep.subr.bf16.mxu0 0
      %805 = vmatpush1.bf16.msra.mxu0 0
      %806 = vmatprep.subr.bf16.mxu0 0
      %807 = vmatpush1.bf16.msra.mxu0 0
      %808 = vmatprep.subr.bf16.mxu0 0
      %809 = vmatpush1.bf16.msra.mxu0 0
      %810 = vmatprep.subr.bf16.mxu0 0
      %811 = vmatpush1.bf16.msra.mxu0 0
      %812 = vmatprep.subr.bf16.mxu0 0
      %813 = vmatpush1.bf16.msra.mxu0 0
      %814 = vmatprep.mubr.bf16.mxu0 0
      %815 = vmatmul.mubr.bf16.gmra.mrb[0].mxu0 %v622
      %v816 = vpop.f32.mrb[0].mxu0
      %v817 = vadd.f32 %v496, %v816
      %v818 = vpop.f32.mrb[0].mxu0
      %v819 = vpop.f32.mrb[0].mxu0
      %v820 = vadd.f32 %v499, %v819
      %v821 = vpop.f32.mrb[0].mxu0
      %822 = vmatprep.mubr.bf16.mxu0 0
      %823 = vmatmul.mubr.bf16.gmra.mrb[0].mxu0 %v631
      %v824 = vpop.f32.mrb[0].mxu0
      %v825 = vadd.f32 %v504, %v824
      %v826 = vpop.f32.mrb[0].mxu0
      %v827 = vpop.f32.mrb[0].mxu0
      %v828 = vadd.f32 %v507, %v827
      %v829 = vpop.f32.mrb[0].mxu0
      %830 = vmatprep.mubr.bf16.mxu0 0
      %831 = vmatmul.mubr.bf16.gmra.mrb[0].mxu0 %v640
      %v832 = vpop.f32.mrb[0].mxu0
      %v833 = vadd.f32 %v512, %v832
      %v834 = vpop.f32.mrb[0].mxu0
      %v835 = vpop.f32.mrb[0].mxu0
      %v836 = vadd.f32 %v515, %v835
      %v837 = vpop.f32.mrb[0].mxu0
      %838 = vmatprep.mubr.bf16.mxu0 0
      %839 = vmatmul.mubr.bf16.gmra.mrb[0].mxu0 %v649
      %v840 = vpop.f32.mrb[0].mxu0
      %v841 = vadd.f32 %v520, %v840
      %v842 = vpop.f32.mrb[0].mxu0
      %v843 = vpop.f32.mrb[0].mxu0
      %v844 = vadd.f32 %v523, %v843
      %v845 = vpop.f32.mrb[0].mxu0
      %846 = vmatprep.mubr.bf16.mxu0 0
      %847 = vmatmul.mubr.bf16.gmra.mrb[0].mxu0 %v658
      %v848 = vpop.f32.mrb[0].mxu0
      %v849 = vadd.f32 %v528, %v848
      %v850 = vpop.f32.mrb[0].mxu0
      %v851 = vpop.f32.mrb[0].mxu0
      %v852 = vadd.f32 %v531, %v851
      %v853 = vpop.f32.mrb[0].mxu0
      %854 = vmatprep.mubr.bf16.mxu0 0
      %855 = vmatmul.mubr.bf16.gmra.mrb[0].mxu0 %v667
      %v856 = vpop.f32.mrb[0].mxu0
      %v857 = vadd.f32 %v536, %v856
      %v858 = vpop.f32.mrb[0].mxu0
      %v859 = vpop.f32.mrb[0].mxu0
      %v860 = vadd.f32 %v539, %v859
      %v861 = vpop.f32.mrb[0].mxu0
      %862 = vmatprep.mubr.bf16.mxu0 0
      %863 = vmatmul.mubr.bf16.gmra.mrb[0].mxu0 %v676
      %v864 = vpop.f32.mrb[0].mxu0
      %v865 = vadd.f32 %v544, %v864
      %v866 = vpop.f32.mrb[0].mxu0
      %v867 = vpop.f32.mrb[0].mxu0
      %v868 = vadd.f32 %v547, %v867
      %v869 = vpop.f32.mrb[0].mxu0
      %870 = vmatprep.mubr.bf16.mxu0 0
      %871 = vmatmul.mubr.bf16.gmra.mrb[0].mxu0 %v685
      %v872 = vpop.f32.mrb[0].mxu0
      %v873 = vadd.f32 %v552, %v872
      %v874 = vpop.f32.mrb[0].mxu0
      %v875 = vpop.f32.mrb[0].mxu0
      %v876 = vadd.f32 %v555, %v875
      %v877 = vpop.f32.mrb[0].mxu0
      %878 = vmatprep.mubr.bf16.mxu0 0
      %879 = vmatmul.mubr.bf16.gmra.mrb[0].mxu0 %v694
      %v880 = vpop.f32.mrb[0].mxu0
      %v881 = vadd.f32 %v560, %v880
      %v882 = vpop.f32.mrb[0].mxu0
      %v883 = vpop.f32.mrb[0].mxu0
      %v884 = vadd.f32 %v563, %v883
      %v885 = vpop.f32.mrb[0].mxu0
      %886 = vmatprep.mubr.bf16.mxu0 0
      %887 = vmatmul.mubr.bf16.gmra.mrb[0].mxu0 %v703
      %v888 = vpop.f32.mrb[0].mxu0
      %v889 = vadd.f32 %v568, %v888
      %v890 = vpop.f32.mrb[0].mxu0
      %v891 = vpop.f32.mrb[0].mxu0
      %v892 = vadd.f32 %v571, %v891
      %v893 = vpop.f32.mrb[0].mxu0
      %894 = vmatprep.mubr.bf16.mxu0 0
      %895 = vmatmul.mubr.bf16.gmra.mrb[0].mxu0 %v712
      %v896 = vpop.f32.mrb[0].mxu0
      %v897 = vadd.f32 %v576, %v896
      %v898 = vpop.f32.mrb[0].mxu0
      %v899 = vpop.f32.mrb[0].mxu0
      %v900 = vadd.f32 %v579, %v899
      %v901 = vpop.f32.mrb[0].mxu0
      %902 = vmatprep.mubr.bf16.mxu0 0
      %903 = vmatmul.mubr.bf16.gmra.mrb[0].mxu0 %v721
      %v904 = vpop.f32.mrb[0].mxu0
      %v905 = vadd.f32 %v584, %v904
      %v906 = vpop.f32.mrb[0].mxu0
      %v907 = vpop.f32.mrb[0].mxu0
      %v908 = vadd.f32 %v587, %v907
      %v909 = vpop.f32.mrb[0].mxu0
      %910 = vdwg.mxu0
      %v911 = vld [vmem:[%s246 + $0x4] sm:$0xf]
      %v912 = vld [vmem:[%s246 + $0x8] sm:$0xf]
      %v913 = vld [vmem:[%s246 + $0xc] sm:$0xf]
      %v914 = vld [vmem:[%s246 + $0x10] sm:$0xf]
      %v915 = vld [vmem:[%s246 + $0x14] sm:$0xf]
      %v916 = vld [vmem:[%s246 + $0x18] sm:$0xf]
      %v917 = vld [vmem:[%s246 + $0x1c] sm:$0xf]
      %v918 = vld [vmem:[%s246 + $0x20] sm:$0xf]
      %v919 = vld [vmem:[%s246 + $0x24] sm:$0xf]
      %v920 = vld [vmem:[%s246 + $0x28] sm:$0xf]
      %v921 = vld [vmem:[%s246 + $0x2c] sm:$0xf]
      %v922 = vld [vmem:[%s246 + $0x30] sm:$0xf]
      %v923 = vld [vmem:[%s246 + $0x34] sm:$0xf]
      %v924 = vld [vmem:[%s246 + $0x38] sm:$0xf]
      %v925 = vld [vmem:[%s246 + $0x3c] sm:$0xf]
      %v926 = vld [vmem:[%s246 + $0x40] sm:$0xf]
      %v927 = vld [vmem:[%s246 + $0x44] sm:$0xf]
      %v928 = vld [vmem:[%s246 + $0x48] sm:$0xf]
      %v929 = vld [vmem:[%s246 + $0x4c] sm:$0xf]
      %v930 = vld [vmem:[%s246 + $0x50] sm:$0xf]
      %v931 = vld [vmem:[%s246 + $0x54] sm:$0xf]
      %v932 = vld [vmem:[%s246 + $0x58] sm:$0xf]
      %v933 = vld [vmem:[%s246 + $0x5c] sm:$0xf]
      %v934 = vld [vmem:[%s246 + $0x60] sm:$0xf]
      %v935 = vld [vmem:[%s246 + $0x64] sm:$0x1]
      %s936 = scalar_lea.vmem %s2, 128
      %v937 = vld [vmem:[%s936] sm:$0xf]
      %v938 = vld [vmem:[%s936 + $0x4] sm:$0xf]
      %v939 = vld [vmem:[%s936 + $0x8] sm:$0xf]
      %v940 = vld [vmem:[%s936 + $0xc] sm:$0xf]
      %v941 = vld [vmem:[%s936 + $0x10] sm:$0xf]
      %v942 = vld [vmem:[%s936 + $0x14] sm:$0xf]
      %v943 = vld [vmem:[%s936 + $0x18] sm:$0xf]
      %v944 = vld [vmem:[%s936 + $0x1c] sm:$0xf]
      %v945 = vld [vmem:[%s936 + $0x20] sm:$0xf]
      %v946 = vld [vmem:[%s936 + $0x24] sm:$0xf]
      %v947 = vld [vmem:[%s936 + $0x28] sm:$0xf]
      %v948 = vld [vmem:[%s936 + $0x2c] sm:$0xf]
      %v949 = vld [vmem:[%s936 + $0x30] sm:$0xf]
      %v950 = vld [vmem:[%s936 + $0x34] sm:$0xf]
      %v951 = vld [vmem:[%s936 + $0x38] sm:$0xf]
      %v952 = vld [vmem:[%s936 + $0x3c] sm:$0xf]
      %v978 = vunpack.c.l.b16 %v911
      %v979 = vunpack.c.l.b16 %v912
      %v980 = vunpack.c.l.b16 %v913
      %v981 = vunpack.c.l.b16 %v914
      %v982 = vunpack.c.l.b16 %v915
      %v983 = vunpack.c.l.b16 %v916
      %v984 = vunpack.c.l.b16 %v917
      %v985 = vunpack.c.l.b16 %v918
      %v986 = vunpack.c.l.b16 %v919
      %v987 = vunpack.c.l.b16 %v920
      %v988 = vunpack.c.l.b16 %v921
      %v989 = vunpack.c.l.b16 %v922
      %v990 = vunpack.c.l.b16 %v923
      %v991 = vunpack.c.l.b16 %v924
      %v992 = vunpack.c.l.b16 %v925
      %v993 = vunpack.c.l.b16 %v926
      %v994 = vunpack.c.l.b16 %v927
      %v995 = vunpack.c.l.b16 %v928
      %v996 = vunpack.c.l.b16 %v929
      %v997 = vunpack.c.l.b16 %v930
      %v998 = vunpack.c.l.b16 %v931
      %v999 = vunpack.c.l.b16 %v932
      %v1000 = vunpack.c.l.b16 %v933
      %v1001 = vunpack.c.l.b16 %v934
      %v1002 = vunpack.c.l.b16 %v935
      %v1003 = vpack.c.b16 %v979, %v978
      %v1004 = vpack.c.b16 %v981, %v980
      %v1005 = vpack.c.b16 %v983, %v982
      %v1006 = vpack.c.b16 %v985, %v984
      %v1007 = vpack.c.b16 %v987, %v986
      %v1008 = vpack.c.b16 %v989, %v988
      %v1009 = vpack.c.b16 %v991, %v990
      %v1010 = vpack.c.b16 %v993, %v992
      %v1011 = vpack.c.b16 %v995, %v994
      %v1012 = vpack.c.b16 %v997, %v996
      %v1013 = vpack.c.b16 %v999, %v998
      %v1014 = vpack.c.b16 %v1001, %v1000
      %v1015 = vpack.c.b16 %v1002, %v1002
      %vm1016 = vsmask.f32 7424
      %v1018 = vshrl.u32 %v1003, 16
      %v1020 = vshll.u32 %v1003, 16
      %v1022 = vrot.slane %v1020, 1
      %v1023 = vor.u32 %v1018, %v1022
      %v1025 = vshll.u32 %v1004, 16
      %v1027 = vrot.slane %v1025, 1
      %v1028 = vsel %vm1016, %v1023, %v1027
      %v1029 = vshrl.u32 %v1004, 16
      %v1031 = vor.u32 %v1029, %v1027
      %v1033 = vshll.u32 %v1005, 16
      %v1035 = vrot.slane %v1033, 1
      %v1036 = vsel %vm1016, %v1031, %v1035
      %v1037 = vshrl.u32 %v1005, 16
      %v1039 = vor.u32 %v1037, %v1035
      %v1041 = vshll.u32 %v1006, 16
      %v1043 = vrot.slane %v1041, 1
      %v1044 = vsel %vm1016, %v1039, %v1043
      %v1045 = vshrl.u32 %v1006, 16
      %v1047 = vor.u32 %v1045, %v1043
      %v1049 = vshll.u32 %v1007, 16
      %v1051 = vrot.slane %v1049, 1
      %v1052 = vsel %vm1016, %v1047, %v1051
      %v1053 = vshrl.u32 %v1007, 16
      %v1055 = vor.u32 %v1053, %v1051
      %v1057 = vshll.u32 %v1008, 16
      %v1059 = vrot.slane %v1057, 1
      %v1060 = vsel %vm1016, %v1055, %v1059
      %v1061 = vshrl.u32 %v1008, 16
      %v1063 = vor.u32 %v1061, %v1059
      %v1065 = vshll.u32 %v1009, 16
      %v1067 = vrot.slane %v1065, 1
      %v1068 = vsel %vm1016, %v1063, %v1067
      %v1069 = vshrl.u32 %v1009, 16
      %v1071 = vor.u32 %v1069, %v1067
      %v1073 = vshll.u32 %v1010, 16
      %v1075 = vrot.slane %v1073, 1
      %v1076 = vsel %vm1016, %v1071, %v1075
      %v1077 = vshrl.u32 %v1010, 16
      %v1079 = vor.u32 %v1077, %v1075
      %v1081 = vshll.u32 %v1011, 16
      %v1083 = vrot.slane %v1081, 1
      %v1084 = vsel %vm1016, %v1079, %v1083
      %v1085 = vshrl.u32 %v1011, 16
      %v1087 = vor.u32 %v1085, %v1083
      %v1089 = vshll.u32 %v1012, 16
      %v1091 = vrot.slane %v1089, 1
      %v1092 = vsel %vm1016, %v1087, %v1091
      %v1093 = vshrl.u32 %v1012, 16
      %v1095 = vor.u32 %v1093, %v1091
      %v1097 = vshll.u32 %v1013, 16
      %v1099 = vrot.slane %v1097, 1
      %v1100 = vsel %vm1016, %v1095, %v1099
      %v1101 = vshrl.u32 %v1013, 16
      %v1103 = vor.u32 %v1101, %v1099
      %v1105 = vshll.u32 %v1014, 16
      %v1107 = vrot.slane %v1105, 1
      %v1108 = vsel %vm1016, %v1103, %v1107
      %v1109 = vshrl.u32 %v1014, 16
      %v1111 = vor.u32 %v1109, %v1107
      %v1113 = vshll.u32 %v1015, 16
      %v1115 = vrot.slane %v1113, 1
      %v1116 = vsel %vm1016, %v1111, %v1115
      %v1145 = vunpack.c.l.b16 %v937
      %v1146 = vunpack.c.l.b16 %v938
      %v1147 = vunpack.c.l.b16 %v939
      %v1148 = vunpack.c.l.b16 %v940
      %v1149 = vunpack.c.l.b16 %v941
      %v1150 = vunpack.c.l.b16 %v942
      %v1151 = vunpack.c.l.b16 %v943
      %v1152 = vunpack.c.l.b16 %v944
      %v1153 = vunpack.c.l.b16 %v945
      %v1154 = vunpack.c.l.b16 %v946
      %v1155 = vunpack.c.l.b16 %v947
      %v1156 = vunpack.c.l.b16 %v948
      %v1157 = vunpack.c.l.b16 %v949
      %v1158 = vunpack.c.l.b16 %v950
      %v1159 = vunpack.c.l.b16 %v951
      %v1160 = vunpack.c.l.b16 %v952
      %v1161 = vpack.c.b16 %v1146, %v1145
      %v1162 = vpack.c.b16 %v1148, %v1147
      %v1163 = vpack.c.b16 %v1150, %v1149
      %v1164 = vpack.c.b16 %v1152, %v1151
      %v1165 = vpack.c.b16 %v1154, %v1153
      %v1166 = vpack.c.b16 %v1156, %v1155
      %v1167 = vpack.c.b16 %v1158, %v1157
      %v1168 = vpack.c.b16 %v1160, %v1159
      %1177 = vmatprep.subr.bf16.mxu0 0
      %1178 = vmatpush1.bf16.msra.mxu0 %v1161
      %1179 = vmatprep.subr.bf16.mxu0 0
      %1180 = vmatpush1.bf16.msra.mxu0 %v1162
      %1181 = vmatprep.subr.bf16.mxu0 0
      %1182 = vmatpush1.bf16.msra.mxu0 %v1163
      %1183 = vmatprep.subr.bf16.mxu0 0
      %1184 = vmatpush1.bf16.msra.mxu0 %v1164
      %1185 = vmatprep.subr.bf16.mxu0 0
      %1186 = vmatpush1.bf16.msra.mxu0 %v1165
      %1187 = vmatprep.subr.bf16.mxu0 0
      %1188 = vmatpush1.bf16.msra.mxu0 %v1166
      %1189 = vmatprep.subr.bf16.mxu0 0
      %1190 = vmatpush1.bf16.msra.mxu0 %v1167
      %1191 = vmatprep.subr.bf16.mxu0 0
      %1192 = vmatpush1.bf16.msra.mxu0 %v1168
      %1193 = vmatprep.subr.bf16.mxu0 0
      %1194 = vmatpush1.bf16.msra.mxu0 0
      %1195 = vmatprep.subr.bf16.mxu0 0
      %1196 = vmatpush1.bf16.msra.mxu0 0
      %1197 = vmatprep.subr.bf16.mxu0 0
      %1198 = vmatpush1.bf16.msra.mxu0 0
      %1199 = vmatprep.subr.bf16.mxu0 0
      %1200 = vmatpush1.bf16.msra.mxu0 0
      %1201 = vmatprep.subr.bf16.mxu0 0
      %1202 = vmatpush1.bf16.msra.mxu0 0
      %1203 = vmatprep.subr.bf16.mxu0 0
      %1204 = vmatpush1.bf16.msra.mxu0 0
      %1205 = vmatprep.subr.bf16.mxu0 0
      %1206 = vmatpush1.bf16.msra.mxu0 0
      %1207 = vmatprep.subr.bf16.mxu0 0
      %1208 = vmatpush1.bf16.msra.mxu0 0
      %1209 = vmatprep.mubr.bf16.mxu0 0
      %1210 = vmatmul.mubr.bf16.gmra.mrb[0].mxu0 %v1028
      %v1211 = vpop.f32.mrb[0].mxu0
      %v1212 = vadd.f32 0.0, %v1211
      %v1213 = vpop.f32.mrb[0].mxu0
      %v1214 = vpop.f32.mrb[0].mxu0
      %v1215 = vadd.f32 0.0, %v1214
      %v1216 = vpop.f32.mrb[0].mxu0
      %1217 = vmatprep.mubr.bf16.mxu0 0
      %1218 = vmatmul.mubr.bf16.gmra.mrb[0].mxu0 %v1036
      %v1219 = vpop.f32.mrb[0].mxu0
      %v1220 = vadd.f32 0.0, %v1219
      %v1221 = vpop.f32.mrb[0].mxu0
      %v1222 = vpop.f32.mrb[0].mxu0
      %v1223 = vadd.f32 0.0, %v1222
      %v1224 = vpop.f32.mrb[0].mxu0
      %1225 = vmatprep.mubr.bf16.mxu0 0
      %1226 = vmatmul.mubr.bf16.gmra.mrb[0].mxu0 %v1044
      %v1227 = vpop.f32.mrb[0].mxu0
      %v1228 = vadd.f32 0.0, %v1227
      %v1229 = vpop.f32.mrb[0].mxu0
      %v1230 = vpop.f32.mrb[0].mxu0
      %v1231 = vadd.f32 0.0, %v1230
      %v1232 = vpop.f32.mrb[0].mxu0
      %1233 = vmatprep.mubr.bf16.mxu0 0
      %1234 = vmatmul.mubr.bf16.gmra.mrb[0].mxu0 %v1052
      %v1235 = vpop.f32.mrb[0].mxu0
      %v1236 = vadd.f32 0.0, %v1235
      %v1237 = vpop.f32.mrb[0].mxu0
      %v1238 = vpop.f32.mrb[0].mxu0
      %v1239 = vadd.f32 0.0, %v1238
      %v1240 = vpop.f32.mrb[0].mxu0
      %1241 = vmatprep.mubr.bf16.mxu0 0
      %1242 = vmatmul.mubr.bf16.gmra.mrb[0].mxu0 %v1060
      %v1243 = vpop.f32.mrb[0].mxu0
      %v1244 = vadd.f32 0.0, %v1243
      %v1245 = vpop.f32.mrb[0].mxu0
      %v1246 = vpop.f32.mrb[0].mxu0
      %v1247 = vadd.f32 0.0, %v1246
      %v1248 = vpop.f32.mrb[0].mxu0
      %1249 = vmatprep.mubr.bf16.mxu0 0
      %1250 = vmatmul.mubr.bf16.gmra.mrb[0].mxu0 %v1068
      %v1251 = vpop.f32.mrb[0].mxu0
      %v1252 = vadd.f32 0.0, %v1251
      %v1253 = vpop.f32.mrb[0].mxu0
      %v1254 = vpop.f32.mrb[0].mxu0
      %v1255 = vadd.f32 0.0, %v1254
      %v1256 = vpop.f32.mrb[0].mxu0
      %1257 = vmatprep.mubr.bf16.mxu0 0
      %1258 = vmatmul.mubr.bf16.gmra.mrb[0].mxu0 %v1076
      %v1259 = vpop.f32.mrb[0].mxu0
      %v1260 = vadd.f32 0.0, %v1259
      %v1261 = vpop.f32.mrb[0].mxu0
      %v1262 = vpop.f32.mrb[0].mxu0
      %v1263 = vadd.f32 0.0, %v1262
      %v1264 = vpop.f32.mrb[0].mxu0
      %1265 = vmatprep.mubr.bf16.mxu0 0
      %1266 = vmatmul.mubr.bf16.gmra.mrb[0].mxu0 %v1084
      %v1267 = vpop.f32.mrb[0].mxu0
      %v1268 = vadd.f32 0.0, %v1267
      %v1269 = vpop.f32.mrb[0].mxu0
      %v1270 = vpop.f32.mrb[0].mxu0
      %v1271 = vadd.f32 0.0, %v1270
      %v1272 = vpop.f32.mrb[0].mxu0
      %1273 = vmatprep.mubr.bf16.mxu0 0
      %1274 = vmatmul.mubr.bf16.gmra.mrb[0].mxu0 %v1092
      %v1275 = vpop.f32.mrb[0].mxu0
      %v1276 = vadd.f32 0.0, %v1275
      %v1277 = vpop.f32.mrb[0].mxu0
      %v1278 = vpop.f32.mrb[0].mxu0
      %v1279 = vadd.f32 0.0, %v1278
      %v1280 = vpop.f32.mrb[0].mxu0
      %1281 = vmatprep.mubr.bf16.mxu0 0
      %1282 = vmatmul.mubr.bf16.gmra.mrb[0].mxu0 %v1100
      %v1283 = vpop.f32.mrb[0].mxu0
      %v1284 = vadd.f32 0.0, %v1283
      %v1285 = vpop.f32.mrb[0].mxu0
      %v1286 = vpop.f32.mrb[0].mxu0
      %v1287 = vadd.f32 0.0, %v1286
      %v1288 = vpop.f32.mrb[0].mxu0
      %1289 = vmatprep.mubr.bf16.mxu0 0
      %1290 = vmatmul.mubr.bf16.gmra.mrb[0].mxu0 %v1108
      %v1291 = vpop.f32.mrb[0].mxu0
      %v1292 = vadd.f32 0.0, %v1291
      %v1293 = vpop.f32.mrb[0].mxu0
      %v1294 = vpop.f32.mrb[0].mxu0
      %v1295 = vadd.f32 0.0, %v1294
      %v1296 = vpop.f32.mrb[0].mxu0
      %1297 = vmatprep.mubr.bf16.mxu0 0
      %1298 = vmatmul.mubr.bf16.gmra.mrb[0].mxu0 %v1116
      %v1299 = vpop.f32.mrb[0].mxu0
      %v1300 = vadd.f32 0.0, %v1299
      %v1301 = vpop.f32.mrb[0].mxu0
      %v1302 = vpop.f32.mrb[0].mxu0
      %v1303 = vadd.f32 0.0, %v1302
      %v1304 = vpop.f32.mrb[0].mxu0
      %1305 = vdwg.mxu0
      %v1306 = vadd.f32 %v817, %v1212
      %v1307 = vadd.f32 %v820, %v1215
      %v1308 = vadd.f32 %v825, %v1220
      %v1309 = vadd.f32 %v828, %v1223
      %v1310 = vadd.f32 %v833, %v1228
      %v1311 = vadd.f32 %v836, %v1231
      %v1312 = vadd.f32 %v841, %v1236
      %v1313 = vadd.f32 %v844, %v1239
      %v1314 = vadd.f32 %v849, %v1244
      %v1315 = vadd.f32 %v852, %v1247
      %v1316 = vadd.f32 %v857, %v1252
      %v1317 = vadd.f32 %v860, %v1255
      %v1318 = vadd.f32 %v865, %v1260
      %v1319 = vadd.f32 %v868, %v1263
      %v1320 = vadd.f32 %v873, %v1268
      %v1321 = vadd.f32 %v876, %v1271
      %v1322 = vadd.f32 %v881, %v1276
      %v1323 = vadd.f32 %v884, %v1279
      %v1324 = vadd.f32 %v889, %v1284
      %v1325 = vadd.f32 %v892, %v1287
      %v1326 = vadd.f32 %v897, %v1292
      %v1327 = vadd.f32 %v900, %v1295
      %v1328 = vadd.f32 %v905, %v1300
      %v1329 = vadd.f32 %v908, %v1303
      %v1330 = vld [vmem:[%s246 + $0xc] sm:$0x8]
      %v1331 = vld [vmem:[%s246 + $0x10] sm:$0xf]
      %v1332 = vld [vmem:[%s246 + $0x14] sm:$0xf]
      %v1333 = vld [vmem:[%s246 + $0x18] sm:$0xf]
      %v1334 = vld [vmem:[%s246 + $0x1c] sm:$0xf]
      %v1335 = vld [vmem:[%s246 + $0x20] sm:$0xf]
      %v1336 = vld [vmem:[%s246 + $0x24] sm:$0xf]
      %v1337 = vld [vmem:[%s246 + $0x28] sm:$0xf]
      %v1338 = vld [vmem:[%s246 + $0x2c] sm:$0xf]
      %v1339 = vld [vmem:[%s246 + $0x30] sm:$0xf]
      %v1340 = vld [vmem:[%s246 + $0x34] sm:$0xf]
      %v1341 = vld [vmem:[%s246 + $0x38] sm:$0xf]
      %v1342 = vld [vmem:[%s246 + $0x3c] sm:$0xf]
      %v1343 = vld [vmem:[%s246 + $0x40] sm:$0xf]
      %v1344 = vld [vmem:[%s246 + $0x44] sm:$0xf]
      %v1345 = vld [vmem:[%s246 + $0x48] sm:$0xf]
      %v1346 = vld [vmem:[%s246 + $0x4c] sm:$0xf]
      %v1347 = vld [vmem:[%s246 + $0x50] sm:$0xf]
      %v1348 = vld [vmem:[%s246 + $0x54] sm:$0xf]
      %v1349 = vld [vmem:[%s246 + $0x58] sm:$0xf]
      %v1350 = vld [vmem:[%s246 + $0x5c] sm:$0xf]
      %v1351 = vld [vmem:[%s246 + $0x60] sm:$0xf]
      %v1352 = vld [vmem:[%s246 + $0x64] sm:$0xf]
      %v1353 = vld [vmem:[%s246 + $0x68] sm:$0xf]
      %v1354 = vld [vmem:[%s246 + $0x6c] sm:$0xf]
      %s1355 = scalar_lea.vmem %s2, 192
      %v1356 = vld [vmem:[%s1355] sm:$0xf]
      %v1357 = vld [vmem:[%s1355 + $0x4] sm:$0xf]
      %v1358 = vld [vmem:[%s1355 + $0x8] sm:$0xf]
      %v1359 = vld [vmem:[%s1355 + $0xc] sm:$0xf]
      %v1360 = vld [vmem:[%s1355 + $0x10] sm:$0xf]
      %v1361 = vld [vmem:[%s1355 + $0x14] sm:$0xf]
      %v1362 = vld [vmem:[%s1355 + $0x18] sm:$0xf]
      %v1363 = vld [vmem:[%s1355 + $0x1c] sm:$0xf]
      %v1364 = vld [vmem:[%s1355 + $0x20] sm:$0xf]
      %v1365 = vld [vmem:[%s1355 + $0x24] sm:$0xf]
      %v1366 = vld [vmem:[%s1355 + $0x28] sm:$0xf]
      %v1367 = vld [vmem:[%s1355 + $0x2c] sm:$0xf]
      %v1368 = vld [vmem:[%s1355 + $0x30] sm:$0xf]
      %v1369 = vld [vmem:[%s1355 + $0x34] sm:$0xf]
      %v1370 = vld [vmem:[%s1355 + $0x38] sm:$0xf]
      %v1371 = vld [vmem:[%s1355 + $0x3c] sm:$0xf]
      %v1397 = vunpack.c.l.b16 %v1330
      %v1398 = vunpack.c.l.b16 %v1331
      %v1399 = vunpack.c.l.b16 %v1332
      %v1400 = vunpack.c.l.b16 %v1333
      %v1401 = vunpack.c.l.b16 %v1334
      %v1402 = vunpack.c.l.b16 %v1335
      %v1403 = vunpack.c.l.b16 %v1336
      %v1404 = vunpack.c.l.b16 %v1337
      %v1405 = vunpack.c.l.b16 %v1338
      %v1406 = vunpack.c.l.b16 %v1339
      %v1407 = vunpack.c.l.b16 %v1340
      %v1408 = vunpack.c.l.b16 %v1341
      %v1409 = vunpack.c.l.b16 %v1342
      %v1410 = vunpack.c.l.b16 %v1343
      %v1411 = vunpack.c.l.b16 %v1344
      %v1412 = vunpack.c.l.b16 %v1345
      %v1413 = vunpack.c.l.b16 %v1346
      %v1414 = vunpack.c.l.b16 %v1347
      %v1415 = vunpack.c.l.b16 %v1348
      %v1416 = vunpack.c.l.b16 %v1349
      %v1417 = vunpack.c.l.b16 %v1350
      %v1418 = vunpack.c.l.b16 %v1351
      %v1419 = vunpack.c.l.b16 %v1352
      %v1420 = vunpack.c.l.b16 %v1353
      %v1421 = vunpack.c.l.b16 %v1354
      %v1422 = vpack.c.b16 %v1398, %v1397
      %v1423 = vpack.c.b16 %v1400, %v1399
      %v1424 = vpack.c.b16 %v1402, %v1401
      %v1425 = vpack.c.b16 %v1404, %v1403
      %v1426 = vpack.c.b16 %v1406, %v1405
      %v1427 = vpack.c.b16 %v1408, %v1407
      %v1428 = vpack.c.b16 %v1410, %v1409
      %v1429 = vpack.c.b16 %v1412, %v1411
      %v1430 = vpack.c.b16 %v1414, %v1413
      %v1431 = vpack.c.b16 %v1416, %v1415
      %v1432 = vpack.c.b16 %v1418, %v1417
      %v1433 = vpack.c.b16 %v1420, %v1419
      %v1434 = vpack.c.b16 %v1421, %v1421
      %v1436 = vshrl.u32 %v1422, 16
      %v1438 = vrot.slane %v1436, 3
      %v1439 = vshll.u32 %v1422, 16
      %v1441 = vrot.slane %v1439, 4
      %v1442 = vor.u32 %v1438, %v1441
      %v1444 = vshrl.u32 %v1423, 16
      %v1446 = vrot.slane %v1444, 3
      %v1447 = vshll.u32 %v1423, 16
      %v1449 = vrot.slane %v1447, 4
      %v1450 = vor.u32 %v1446, %v1449
      %v1451 = vsel %vm605, %v1442, %v1450
      %v1453 = vshrl.u32 %v1424, 16
      %v1455 = vrot.slane %v1453, 3
      %v1456 = vshll.u32 %v1424, 16
      %v1458 = vrot.slane %v1456, 4
      %v1459 = vor.u32 %v1455, %v1458
      %v1460 = vsel %vm605, %v1450, %v1459
      %v1462 = vshrl.u32 %v1425, 16
      %v1464 = vrot.slane %v1462, 3
      %v1465 = vshll.u32 %v1425, 16
      %v1467 = vrot.slane %v1465, 4
      %v1468 = vor.u32 %v1464, %v1467
      %v1469 = vsel %vm605, %v1459, %v1468
      %v1471 = vshrl.u32 %v1426, 16
      %v1473 = vrot.slane %v1471, 3
      %v1474 = vshll.u32 %v1426, 16
      %v1476 = vrot.slane %v1474, 4
      %v1477 = vor.u32 %v1473, %v1476
      %v1478 = vsel %vm605, %v1468, %v1477
      %v1480 = vshrl.u32 %v1427, 16
      %v1482 = vrot.slane %v1480, 3
      %v1483 = vshll.u32 %v1427, 16
      %v1485 = vrot.slane %v1483, 4
      %v1486 = vor.u32 %v1482, %v1485
      %v1487 = vsel %vm605, %v1477, %v1486
      %v1489 = vshrl.u32 %v1428, 16
      %v1491 = vrot.slane %v1489, 3
      %v1492 = vshll.u32 %v1428, 16
      %v1494 = vrot.slane %v1492, 4
      %v1495 = vor.u32 %v1491, %v1494
      %v1496 = vsel %vm605, %v1486, %v1495
      %v1498 = vshrl.u32 %v1429, 16
      %v1500 = vrot.slane %v1498, 3
      %v1501 = vshll.u32 %v1429, 16
      %v1503 = vrot.slane %v1501, 4
      %v1504 = vor.u32 %v1500, %v1503
      %v1505 = vsel %vm605, %v1495, %v1504
      %v1507 = vshrl.u32 %v1430, 16
      %v1509 = vrot.slane %v1507, 3
      %v1510 = vshll.u32 %v1430, 16
      %v1512 = vrot.slane %v1510, 4
      %v1513 = vor.u32 %v1509, %v1512
      %v1514 = vsel %vm605, %v1504, %v1513
      %v1516 = vshrl.u32 %v1431, 16
      %v1518 = vrot.slane %v1516, 3
      %v1519 = vshll.u32 %v1431, 16
      %v1521 = vrot.slane %v1519, 4
      %v1522 = vor.u32 %v1518, %v1521
      %v1523 = vsel %vm605, %v1513, %v1522
      %v1525 = vshrl.u32 %v1432, 16
      %v1527 = vrot.slane %v1525, 3
      %v1528 = vshll.u32 %v1432, 16
      %v1530 = vrot.slane %v1528, 4
      %v1531 = vor.u32 %v1527, %v1530
      %v1532 = vsel %vm605, %v1522, %v1531
      %v1534 = vshrl.u32 %v1433, 16
      %v1536 = vrot.slane %v1534, 3
      %v1537 = vshll.u32 %v1433, 16
      %v1539 = vrot.slane %v1537, 4
      %v1540 = vor.u32 %v1536, %v1539
      %v1541 = vsel %vm605, %v1531, %v1540
      %v1543 = vshrl.u32 %v1434, 16
      %v1545 = vrot.slane %v1543, 3
      %v1546 = vshll.u32 %v1434, 16
      %v1548 = vrot.slane %v1546, 4
      %v1549 = vor.u32 %v1545, %v1548
      %v1550 = vsel %vm605, %v1540, %v1549
      %v1579 = vunpack.c.l.b16 %v1356
      %v1580 = vunpack.c.l.b16 %v1357
      %v1581 = vunpack.c.l.b16 %v1358
      %v1582 = vunpack.c.l.b16 %v1359
      %v1583 = vunpack.c.l.b16 %v1360
      %v1584 = vunpack.c.l.b16 %v1361
      %v1585 = vunpack.c.l.b16 %v1362
      %v1586 = vunpack.c.l.b16 %v1363
      %v1587 = vunpack.c.l.b16 %v1364
      %v1588 = vunpack.c.l.b16 %v1365
      %v1589 = vunpack.c.l.b16 %v1366
      %v1590 = vunpack.c.l.b16 %v1367
      %v1591 = vunpack.c.l.b16 %v1368
      %v1592 = vunpack.c.l.b16 %v1369
      %v1593 = vunpack.c.l.b16 %v1370
      %v1594 = vunpack.c.l.b16 %v1371
      %v1595 = vpack.c.b16 %v1580, %v1579
      %v1596 = vpack.c.b16 %v1582, %v1581
      %v1597 = vpack.c.b16 %v1584, %v1583
      %v1598 = vpack.c.b16 %v1586, %v1585
      %v1599 = vpack.c.b16 %v1588, %v1587
      %v1600 = vpack.c.b16 %v1590, %v1589
      %v1601 = vpack.c.b16 %v1592, %v1591
      %v1602 = vpack.c.b16 %v1594, %v1593
      %1611 = vmatprep.subr.bf16.mxu0 0
      %1612 = vmatpush1.bf16.msra.mxu0 %v1595
      %1613 = vmatprep.subr.bf16.mxu0 0
      %1614 = vmatpush1.bf16.msra.mxu0 %v1596
      %1615 = vmatprep.subr.bf16.mxu0 0
      %1616 = vmatpush1.bf16.msra.mxu0 %v1597
      %1617 = vmatprep.subr.bf16.mxu0 0
      %1618 = vmatpush1.bf16.msra.mxu0 %v1598
      %1619 = vmatprep.subr.bf16.mxu0 0
      %1620 = vmatpush1.bf16.msra.mxu0 %v1599
      %1621 = vmatprep.subr.bf16.mxu0 0
      %1622 = vmatpush1.bf16.msra.mxu0 %v1600
      %1623 = vmatprep.subr.bf16.mxu0 0
      %1624 = vmatpush1.bf16.msra.mxu0 %v1601
      %1625 = vmatprep.subr.bf16.mxu0 0
      %1626 = vmatpush1.bf16.msra.mxu0 %v1602
      %1627 = vmatprep.subr.bf16.mxu0 0
      %1628 = vmatpush1.bf16.msra.mxu0 0
      %1629 = vmatprep.subr.bf16.mxu0 0
      %1630 = vmatpush1.bf16.msra.mxu0 0
      %1631 = vmatprep.subr.bf16.mxu0 0
      %1632 = vmatpush1.bf16.msra.mxu0 0
      %1633 = vmatprep.subr.bf16.mxu0 0
      %1634 = vmatpush1.bf16.msra.mxu0 0
      %1635 = vmatprep.subr.bf16.mxu0 0
      %1636 = vmatpush1.bf16.msra.mxu0 0
      %1637 = vmatprep.subr.bf16.mxu0 0
      %1638 = vmatpush1.bf16.msra.mxu0 0
      %1639 = vmatprep.subr.bf16.mxu0 0
      %1640 = vmatpush1.bf16.msra.mxu0 0
      %1641 = vmatprep.subr.bf16.mxu0 0
      %1642 = vmatpush1.bf16.msra.mxu0 0
      %1643 = vmatprep.mubr.bf16.mxu0 0
      %1644 = vmatmul.mubr.bf16.gmra.mrb[0].mxu0 %v1451
      %v1645 = vpop.f32.mrb[0].mxu0
      %v1646 = vadd.f32 0.0, %v1645
      %v1647 = vpop.f32.mrb[0].mxu0
      %v1648 = vpop.f32.mrb[0].mxu0
      %v1649 = vadd.f32 0.0, %v1648
      %v1650 = vpop.f32.mrb[0].mxu0
      %1651 = vmatprep.mubr.bf16.mxu0 0
      %1652 = vmatmul.mubr.bf16.gmra.mrb[0].mxu0 %v1460
      %v1653 = vpop.f32.mrb[0].mxu0
      %v1654 = vadd.f32 0.0, %v1653
      %v1655 = vpop.f32.mrb[0].mxu0
      %v1656 = vpop.f32.mrb[0].mxu0
      %v1657 = vadd.f32 0.0, %v1656
      %v1658 = vpop.f32.mrb[0].mxu0
      %1659 = vmatprep.mubr.bf16.mxu0 0
      %1660 = vmatmul.mubr.bf16.gmra.mrb[0].mxu0 %v1469
      %v1661 = vpop.f32.mrb[0].mxu0
      %v1662 = vadd.f32 0.0, %v1661
      %v1663 = vpop.f32.mrb[0].mxu0
      %v1664 = vpop.f32.mrb[0].mxu0
      %v1665 = vadd.f32 0.0, %v1664
      %v1666 = vpop.f32.mrb[0].mxu0
      %1667 = vmatprep.mubr.bf16.mxu0 0
      %1668 = vmatmul.mubr.bf16.gmra.mrb[0].mxu0 %v1478
      %v1669 = vpop.f32.mrb[0].mxu0
      %v1670 = vadd.f32 0.0, %v1669
      %v1671 = vpop.f32.mrb[0].mxu0
      %v1672 = vpop.f32.mrb[0].mxu0
      %v1673 = vadd.f32 0.0, %v1672
      %v1674 = vpop.f32.mrb[0].mxu0
      %1675 = vmatprep.mubr.bf16.mxu0 0
      %1676 = vmatmul.mubr.bf16.gmra.mrb[0].mxu0 %v1487
      %v1677 = vpop.f32.mrb[0].mxu0
      %v1678 = vadd.f32 0.0, %v1677
      %v1679 = vpop.f32.mrb[0].mxu0
      %v1680 = vpop.f32.mrb[0].mxu0
      %v1681 = vadd.f32 0.0, %v1680
      %v1682 = vpop.f32.mrb[0].mxu0
      %1683 = vmatprep.mubr.bf16.mxu0 0
      %1684 = vmatmul.mubr.bf16.gmra.mrb[0].mxu0 %v1496
      %v1685 = vpop.f32.mrb[0].mxu0
      %v1686 = vadd.f32 0.0, %v1685
      %v1687 = vpop.f32.mrb[0].mxu0
      %v1688 = vpop.f32.mrb[0].mxu0
      %v1689 = vadd.f32 0.0, %v1688
      %v1690 = vpop.f32.mrb[0].mxu0
      %1691 = vmatprep.mubr.bf16.mxu0 0
      %1692 = vmatmul.mubr.bf16.gmra.mrb[0].mxu0 %v1505
      %v1693 = vpop.f32.mrb[0].mxu0
      %v1694 = vadd.f32 0.0, %v1693
      %v1695 = vpop.f32.mrb[0].mxu0
      %v1696 = vpop.f32.mrb[0].mxu0
      %v1697 = vadd.f32 0.0, %v1696
      %v1698 = vpop.f32.mrb[0].mxu0
      %1699 = vmatprep.mubr.bf16.mxu0 0
      %1700 = vmatmul.mubr.bf16.gmra.mrb[0].mxu0 %v1514
      %v1701 = vpop.f32.mrb[0].mxu0
      %v1702 = vadd.f32 0.0, %v1701
      %v1703 = vpop.f32.mrb[0].mxu0
      %v1704 = vpop.f32.mrb[0].mxu0
      %v1705 = vadd.f32 0.0, %v1704
      %v1706 = vpop.f32.mrb[0].mxu0
      %1707 = vmatprep.mubr.bf16.mxu0 0
      %1708 = vmatmul.mubr.bf16.gmra.mrb[0].mxu0 %v1523
      %v1709 = vpop.f32.mrb[0].mxu0
      %v1710 = vadd.f32 0.0, %v1709
      %v1711 = vpop.f32.mrb[0].mxu0
      %v1712 = vpop.f32.mrb[0].mxu0
      %v1713 = vadd.f32 0.0, %v1712
      %v1714 = vpop.f32.mrb[0].mxu0
      %1715 = vmatprep.mubr.bf16.mxu0 0
      %1716 = vmatmul.mubr.bf16.gmra.mrb[0].mxu0 %v1532
      %v1717 = vpop.f32.mrb[0].mxu0
      %v1718 = vadd.f32 0.0, %v1717
      %v1719 = vpop.f32.mrb[0].mxu0
      %v1720 = vpop.f32.mrb[0].mxu0
      %v1721 = vadd.f32 0.0, %v1720
      %v1722 = vpop.f32.mrb[0].mxu0
      %1723 = vmatprep.mubr.bf16.mxu0 0
      %1724 = vmatmul.mubr.bf16.gmra.mrb[0].mxu0 %v1541
      %v1725 = vpop.f32.mrb[0].mxu0
      %v1726 = vadd.f32 0.0, %v1725
      %v1727 = vpop.f32.mrb[0].mxu0
      %v1728 = vpop.f32.mrb[0].mxu0
      %v1729 = vadd.f32 0.0, %v1728
      %v1730 = vpop.f32.mrb[0].mxu0
      %1731 = vmatprep.mubr.bf16.mxu0 0
      %1732 = vmatmul.mubr.bf16.gmra.mrb[0].mxu0 %v1550
      %v1733 = vpop.f32.mrb[0].mxu0
      %v1734 = vadd.f32 0.0, %v1733
      %v1735 = vpop.f32.mrb[0].mxu0
      %v1736 = vpop.f32.mrb[0].mxu0
      %v1737 = vadd.f32 0.0, %v1736
      %v1738 = vpop.f32.mrb[0].mxu0
      %1739 = vdwg.mxu0
      %v1740 = vadd.f32 %v1306, %v1646
      %v1741 = vadd.f32 %v1307, %v1649
      %v1742 = vadd.f32 %v1308, %v1654
      %v1743 = vadd.f32 %v1309, %v1657
      %v1744 = vadd.f32 %v1310, %v1662
      %v1745 = vadd.f32 %v1311, %v1665
      %v1746 = vadd.f32 %v1312, %v1670
      %v1747 = vadd.f32 %v1313, %v1673
      %v1748 = vadd.f32 %v1314, %v1678
      %v1749 = vadd.f32 %v1315, %v1681
      %v1750 = vadd.f32 %v1316, %v1686
      %v1751 = vadd.f32 %v1317, %v1689
      %v1752 = vadd.f32 %v1318, %v1694
      %v1753 = vadd.f32 %v1319, %v1697
      %v1754 = vadd.f32 %v1320, %v1702
      %v1755 = vadd.f32 %v1321, %v1705
      %v1756 = vadd.f32 %v1322, %v1710
      %v1757 = vadd.f32 %v1323, %v1713
      %v1758 = vadd.f32 %v1324, %v1718
      %v1759 = vadd.f32 %v1325, %v1721
      %v1760 = vadd.f32 %v1326, %v1726
      %v1761 = vadd.f32 %v1327, %v1729
      %v1762 = vadd.f32 %v1328, %v1734
      %v1763 = vadd.f32 %v1329, %v1737
      %s1764 = scalar_lea.vmem %s2, 256
      %v1765 = vld [vmem:[%s1764] sm:$0xf]
      %v1766 = vld [vmem:[%s1764 + $0x4] sm:$0xf]
      %v1767 = vld [vmem:[%s1764 + $0x8] sm:$0xf]
      %v1768 = vld [vmem:[%s1764 + $0xc] sm:$0xf]
      %v1769 = vld [vmem:[%s1764 + $0x10] sm:$0xf]
      %v1770 = vld [vmem:[%s1764 + $0x14] sm:$0xf]
      %v1771 = vld [vmem:[%s1764 + $0x18] sm:$0xf]
      %v1772 = vld [vmem:[%s1764 + $0x1c] sm:$0xf]
      %v1773 = vld [vmem:[%s1764 + $0x20] sm:$0xf]
      %v1774 = vld [vmem:[%s1764 + $0x24] sm:$0xf]
      %v1775 = vld [vmem:[%s1764 + $0x28] sm:$0xf]
      %v1776 = vld [vmem:[%s1764 + $0x2c] sm:$0xf]
      %v1777 = vld [vmem:[%s1764 + $0x30] sm:$0xf]
      %v1778 = vld [vmem:[%s1764 + $0x34] sm:$0xf]
      %v1779 = vld [vmem:[%s1764 + $0x38] sm:$0xf]
      %v1780 = vld [vmem:[%s1764 + $0x3c] sm:$0xf]
      %v1781 = vpack.c.b16 %v1399, %v1398
      %v1782 = vpack.c.b16 %v1401, %v1400
      %v1783 = vpack.c.b16 %v1403, %v1402
      %v1784 = vpack.c.b16 %v1405, %v1404
      %v1785 = vpack.c.b16 %v1407, %v1406
      %v1786 = vpack.c.b16 %v1409, %v1408
      %v1787 = vpack.c.b16 %v1411, %v1410
      %v1788 = vpack.c.b16 %v1413, %v1412
      %v1789 = vpack.c.b16 %v1415, %v1414
      %v1790 = vpack.c.b16 %v1417, %v1416
      %v1791 = vpack.c.b16 %v1419, %v1418
      %v1792 = vpack.c.b16 %v1421, %v1420
      %v1821 = vunpack.c.l.b16 %v1765
      %v1822 = vunpack.c.l.b16 %v1766
      %v1823 = vunpack.c.l.b16 %v1767
      %v1824 = vunpack.c.l.b16 %v1768
      %v1825 = vunpack.c.l.b16 %v1769
      %v1826 = vunpack.c.l.b16 %v1770
      %v1827 = vunpack.c.l.b16 %v1771
      %v1828 = vunpack.c.l.b16 %v1772
      %v1829 = vunpack.c.l.b16 %v1773
      %v1830 = vunpack.c.l.b16 %v1774
      %v1831 = vunpack.c.l.b16 %v1775
      %v1832 = vunpack.c.l.b16 %v1776
      %v1833 = vunpack.c.l.b16 %v1777
      %v1834 = vunpack.c.l.b16 %v1778
      %v1835 = vunpack.c.l.b16 %v1779
      %v1836 = vunpack.c.l.b16 %v1780
      %v1837 = vpack.c.b16 %v1822, %v1821
      %v1838 = vpack.c.b16 %v1824, %v1823
      %v1839 = vpack.c.b16 %v1826, %v1825
      %v1840 = vpack.c.b16 %v1828, %v1827
      %v1841 = vpack.c.b16 %v1830, %v1829
      %v1842 = vpack.c.b16 %v1832, %v1831
      %v1843 = vpack.c.b16 %v1834, %v1833
      %v1844 = vpack.c.b16 %v1836, %v1835
      %1853 = vmatprep.subr.bf16.mxu0 0
      %1854 = vmatpush1.bf16.msra.mxu0 %v1837
      %1855 = vmatprep.subr.bf16.mxu0 0
      %1856 = vmatpush1.bf16.msra.mxu0 %v1838
      %1857 = vmatprep.subr.bf16.mxu0 0
      %1858 = vmatpush1.bf16.msra.mxu0 %v1839
      %1859 = vmatprep.subr.bf16.mxu0 0
      %1860 = vmatpush1.bf16.msra.mxu0 %v1840
      %1861 = vmatprep.subr.bf16.mxu0 0
      %1862 = vmatpush1.bf16.msra.mxu0 %v1841
      %1863 = vmatprep.subr.bf16.mxu0 0
      %1864 = vmatpush1.bf16.msra.mxu0 %v1842
      %1865 = vmatprep.subr.bf16.mxu0 0
      %1866 = vmatpush1.bf16.msra.mxu0 %v1843
      %1867 = vmatprep.subr.bf16.mxu0 0
      %1868 = vmatpush1.bf16.msra.mxu0 %v1844
      %1869 = vmatprep.subr.bf16.mxu0 0
      %1870 = vmatpush1.bf16.msra.mxu0 0
      %1871 = vmatprep.subr.bf16.mxu0 0
      %1872 = vmatpush1.bf16.msra.mxu0 0
      %1873 = vmatprep.subr.bf16.mxu0 0
      %1874 = vmatpush1.bf16.msra.mxu0 0
      %1875 = vmatprep.subr.bf16.mxu0 0
      %1876 = vmatpush1.bf16.msra.mxu0 0
      %1877 = vmatprep.subr.bf16.mxu0 0
      %1878 = vmatpush1.bf16.msra.mxu0 0
      %1879 = vmatprep.subr.bf16.mxu0 0
      %1880 = vmatpush1.bf16.msra.mxu0 0
      %1881 = vmatprep.subr.bf16.mxu0 0
      %1882 = vmatpush1.bf16.msra.mxu0 0
      %1883 = vmatprep.subr.bf16.mxu0 0
      %1884 = vmatpush1.bf16.msra.mxu0 0
      %1885 = vmatprep.mubr.bf16.mxu0 0
      %1886 = vmatmul.mubr.bf16.gmra.mrb[0].mxu0 %v1781
      %v1887 = vpop.f32.mrb[0].mxu0
      %v1888 = vadd.f32 0.0, %v1887
      %v1889 = vpop.f32.mrb[0].mxu0
      %v1890 = vpop.f32.mrb[0].mxu0
      %v1891 = vadd.f32 0.0, %v1890
      %v1892 = vpop.f32.mrb[0].mxu0
      %1893 = vmatprep.mubr.bf16.mxu0 0
      %1894 = vmatmul.mubr.bf16.gmra.mrb[0].mxu0 %v1782
      %v1895 = vpop.f32.mrb[0].mxu0
      %v1896 = vadd.f32 0.0, %v1895
      %v1897 = vpop.f32.mrb[0].mxu0
      %v1898 = vpop.f32.mrb[0].mxu0
      %v1899 = vadd.f32 0.0, %v1898
      %v1900 = vpop.f32.mrb[0].mxu0
      %1901 = vmatprep.mubr.bf16.mxu0 0
      %1902 = vmatmul.mubr.bf16.gmra.mrb[0].mxu0 %v1783
      %v1903 = vpop.f32.mrb[0].mxu0
      %v1904 = vadd.f32 0.0, %v1903
      %v1905 = vpop.f32.mrb[0].mxu0
      %v1906 = vpop.f32.mrb[0].mxu0
      %v1907 = vadd.f32 0.0, %v1906
      %v1908 = vpop.f32.mrb[0].mxu0
      %1909 = vmatprep.mubr.bf16.mxu0 0
      %1910 = vmatmul.mubr.bf16.gmra.mrb[0].mxu0 %v1784
      %v1911 = vpop.f32.mrb[0].mxu0
      %v1912 = vadd.f32 0.0, %v1911
      %v1913 = vpop.f32.mrb[0].mxu0
      %v1914 = vpop.f32.mrb[0].mxu0
      %v1915 = vadd.f32 0.0, %v1914
      %v1916 = vpop.f32.mrb[0].mxu0
      %1917 = vmatprep.mubr.bf16.mxu0 0
      %1918 = vmatmul.mubr.bf16.gmra.mrb[0].mxu0 %v1785
      %v1919 = vpop.f32.mrb[0].mxu0
      %v1920 = vadd.f32 0.0, %v1919
      %v1921 = vpop.f32.mrb[0].mxu0
      %v1922 = vpop.f32.mrb[0].mxu0
      %v1923 = vadd.f32 0.0, %v1922
      %v1924 = vpop.f32.mrb[0].mxu0
      %1925 = vmatprep.mubr.bf16.mxu0 0
      %1926 = vmatmul.mubr.bf16.gmra.mrb[0].mxu0 %v1786
      %v1927 = vpop.f32.mrb[0].mxu0
      %v1928 = vadd.f32 0.0, %v1927
      %v1929 = vpop.f32.mrb[0].mxu0
      %v1930 = vpop.f32.mrb[0].mxu0
      %v1931 = vadd.f32 0.0, %v1930
      %v1932 = vpop.f32.mrb[0].mxu0
      %1933 = vmatprep.mubr.bf16.mxu0 0
      %1934 = vmatmul.mubr.bf16.gmra.mrb[0].mxu0 %v1787
      %v1935 = vpop.f32.mrb[0].mxu0
      %v1936 = vadd.f32 0.0, %v1935
      %v1937 = vpop.f32.mrb[0].mxu0
      %v1938 = vpop.f32.mrb[0].mxu0
      %v1939 = vadd.f32 0.0, %v1938
      %v1940 = vpop.f32.mrb[0].mxu0
      %1941 = vmatprep.mubr.bf16.mxu0 0
      %1942 = vmatmul.mubr.bf16.gmra.mrb[0].mxu0 %v1788
      %v1943 = vpop.f32.mrb[0].mxu0
      %v1944 = vadd.f32 0.0, %v1943
      %v1945 = vpop.f32.mrb[0].mxu0
      %v1946 = vpop.f32.mrb[0].mxu0
      %v1947 = vadd.f32 0.0, %v1946
      %v1948 = vpop.f32.mrb[0].mxu0
      %1949 = vmatprep.mubr.bf16.mxu0 0
      %1950 = vmatmul.mubr.bf16.gmra.mrb[0].mxu0 %v1789
      %v1951 = vpop.f32.mrb[0].mxu0
      %v1952 = vadd.f32 0.0, %v1951
      %v1953 = vpop.f32.mrb[0].mxu0
      %v1954 = vpop.f32.mrb[0].mxu0
      %v1955 = vadd.f32 0.0, %v1954
      %v1956 = vpop.f32.mrb[0].mxu0
      %1957 = vmatprep.mubr.bf16.mxu0 0
      %1958 = vmatmul.mubr.bf16.gmra.mrb[0].mxu0 %v1790
      %v1959 = vpop.f32.mrb[0].mxu0
      %v1960 = vadd.f32 0.0, %v1959
      %v1961 = vpop.f32.mrb[0].mxu0
      %v1962 = vpop.f32.mrb[0].mxu0
      %v1963 = vadd.f32 0.0, %v1962
      %v1964 = vpop.f32.mrb[0].mxu0
      %1965 = vmatprep.mubr.bf16.mxu0 0
      %1966 = vmatmul.mubr.bf16.gmra.mrb[0].mxu0 %v1791
      %v1967 = vpop.f32.mrb[0].mxu0
      %v1968 = vadd.f32 0.0, %v1967
      %v1969 = vpop.f32.mrb[0].mxu0
      %v1970 = vpop.f32.mrb[0].mxu0
      %v1971 = vadd.f32 0.0, %v1970
      %v1972 = vpop.f32.mrb[0].mxu0
      %1973 = vmatprep.mubr.bf16.mxu0 0
      %1974 = vmatmul.mubr.bf16.gmra.mrb[0].mxu0 %v1792
      %v1975 = vpop.f32.mrb[0].mxu0
      %v1976 = vadd.f32 0.0, %v1975
      %v1977 = vpop.f32.mrb[0].mxu0
      %v1978 = vpop.f32.mrb[0].mxu0
      %v1979 = vadd.f32 0.0, %v1978
      %v1980 = vpop.f32.mrb[0].mxu0
      %1981 = vdwg.mxu0
      %v1982 = vadd.f32 %v1740, %v1888
      %v1983 = vadd.f32 %v1741, %v1891
      %v1984 = vadd.f32 %v1742, %v1896
      %v1985 = vadd.f32 %v1743, %v1899
      %v1986 = vadd.f32 %v1744, %v1904
      %v1987 = vadd.f32 %v1745, %v1907
      %v1988 = vadd.f32 %v1746, %v1912
      %v1989 = vadd.f32 %v1747, %v1915
      %v1990 = vadd.f32 %v1748, %v1920
      %v1991 = vadd.f32 %v1749, %v1923
      %v1992 = vadd.f32 %v1750, %v1928
      %v1993 = vadd.f32 %v1751, %v1931
      %v1994 = vadd.f32 %v1752, %v1936
      %v1995 = vadd.f32 %v1753, %v1939
      %v1996 = vadd.f32 %v1754, %v1944
      %v1997 = vadd.f32 %v1755, %v1947
      %v1998 = vadd.f32 %v1756, %v1952
      %v1999 = vadd.f32 %v1757, %v1955
      %v2000 = vadd.f32 %v1758, %v1960
      %v2001 = vadd.f32 %v1759, %v1963
      %v2002 = vadd.f32 %v1760, %v1968
      %v2003 = vadd.f32 %v1761, %v1971
      %v2004 = vadd.f32 %v1762, %v1976
      %v2005 = vadd.f32 %v1763, %v1979
      %v2006 = vld [vmem:[%s246 + $0x10] sm:$0xf]
      %v2007 = vld [vmem:[%s246 + $0x14] sm:$0xf]
      %v2008 = vld [vmem:[%s246 + $0x18] sm:$0xf]
      %v2009 = vld [vmem:[%s246 + $0x1c] sm:$0xf]
      %v2010 = vld [vmem:[%s246 + $0x20] sm:$0xf]
      %v2011 = vld [vmem:[%s246 + $0x24] sm:$0xf]
      %v2012 = vld [vmem:[%s246 + $0x28] sm:$0xf]
      %v2013 = vld [vmem:[%s246 + $0x2c] sm:$0xf]
      %v2014 = vld [vmem:[%s246 + $0x30] sm:$0xf]
      %v2015 = vld [vmem:[%s246 + $0x34] sm:$0xf]
      %v2016 = vld [vmem:[%s246 + $0x38] sm:$0xf]
      %v2017 = vld [vmem:[%s246 + $0x3c] sm:$0xf]
      %v2018 = vld [vmem:[%s246 + $0x40] sm:$0xf]
      %v2019 = vld [vmem:[%s246 + $0x44] sm:$0xf]
      %v2020 = vld [vmem:[%s246 + $0x48] sm:$0xf]
      %v2021 = vld [vmem:[%s246 + $0x4c] sm:$0xf]
      %v2022 = vld [vmem:[%s246 + $0x50] sm:$0xf]
      %v2023 = vld [vmem:[%s246 + $0x54] sm:$0xf]
      %v2024 = vld [vmem:[%s246 + $0x58] sm:$0xf]
      %v2025 = vld [vmem:[%s246 + $0x5c] sm:$0xf]
      %v2026 = vld [vmem:[%s246 + $0x60] sm:$0xf]
      %v2027 = vld [vmem:[%s246 + $0x64] sm:$0xf]
      %v2028 = vld [vmem:[%s246 + $0x68] sm:$0xf]
      %v2029 = vld [vmem:[%s246 + $0x6c] sm:$0xf]
      %v2030 = vld [vmem:[%s246 + $0x70] sm:$0x1]
      %s2031 = scalar_lea.vmem %s2, 320
      %v2032 = vld [vmem:[%s2031] sm:$0xf]
      %v2033 = vld [vmem:[%s2031 + $0x4] sm:$0xf]
      %v2034 = vld [vmem:[%s2031 + $0x8] sm:$0xf]
      %v2035 = vld [vmem:[%s2031 + $0xc] sm:$0xf]
      %v2036 = vld [vmem:[%s2031 + $0x10] sm:$0xf]
      %v2037 = vld [vmem:[%s2031 + $0x14] sm:$0xf]
      %v2038 = vld [vmem:[%s2031 + $0x18] sm:$0xf]
      %v2039 = vld [vmem:[%s2031 + $0x1c] sm:$0xf]
      %v2040 = vld [vmem:[%s2031 + $0x20] sm:$0xf]
      %v2041 = vld [vmem:[%s2031 + $0x24] sm:$0xf]
      %v2042 = vld [vmem:[%s2031 + $0x28] sm:$0xf]
      %v2043 = vld [vmem:[%s2031 + $0x2c] sm:$0xf]
      %v2044 = vld [vmem:[%s2031 + $0x30] sm:$0xf]
      %v2045 = vld [vmem:[%s2031 + $0x34] sm:$0xf]
      %v2046 = vld [vmem:[%s2031 + $0x38] sm:$0xf]
      %v2047 = vld [vmem:[%s2031 + $0x3c] sm:$0xf]
      %v2073 = vunpack.c.l.b16 %v2006
      %v2074 = vunpack.c.l.b16 %v2007
      %v2075 = vunpack.c.l.b16 %v2008
      %v2076 = vunpack.c.l.b16 %v2009
      %v2077 = vunpack.c.l.b16 %v2010
      %v2078 = vunpack.c.l.b16 %v2011
      %v2079 = vunpack.c.l.b16 %v2012
      %v2080 = vunpack.c.l.b16 %v2013
      %v2081 = vunpack.c.l.b16 %v2014
      %v2082 = vunpack.c.l.b16 %v2015
      %v2083 = vunpack.c.l.b16 %v2016
      %v2084 = vunpack.c.l.b16 %v2017
      %v2085 = vunpack.c.l.b16 %v2018
      %v2086 = vunpack.c.l.b16 %v2019
      %v2087 = vunpack.c.l.b16 %v2020
      %v2088 = vunpack.c.l.b16 %v2021
      %v2089 = vunpack.c.l.b16 %v2022
      %v2090 = vunpack.c.l.b16 %v2023
      %v2091 = vunpack.c.l.b16 %v2024
      %v2092 = vunpack.c.l.b16 %v2025
      %v2093 = vunpack.c.l.b16 %v2026
      %v2094 = vunpack.c.l.b16 %v2027
      %v2095 = vunpack.c.l.b16 %v2028
      %v2096 = vunpack.c.l.b16 %v2029
      %v2097 = vunpack.c.l.b16 %v2030
      %v2098 = vpack.c.b16 %v2074, %v2073
      %v2099 = vpack.c.b16 %v2076, %v2075
      %v2100 = vpack.c.b16 %v2078, %v2077
      %v2101 = vpack.c.b16 %v2080, %v2079
      %v2102 = vpack.c.b16 %v2082, %v2081
      %v2103 = vpack.c.b16 %v2084, %v2083
      %v2104 = vpack.c.b16 %v2086, %v2085
      %v2105 = vpack.c.b16 %v2088, %v2087
      %v2106 = vpack.c.b16 %v2090, %v2089
      %v2107 = vpack.c.b16 %v2092, %v2091
      %v2108 = vpack.c.b16 %v2094, %v2093
      %v2109 = vpack.c.b16 %v2096, %v2095
      %v2110 = vpack.c.b16 %v2097, %v2097
      %v2112 = vshrl.u32 %v2098, 16
      %v2114 = vshll.u32 %v2098, 16
      %v2116 = vrot.slane %v2114, 1
      %v2117 = vor.u32 %v2112, %v2116
      %v2119 = vshll.u32 %v2099, 16
      %v2121 = vrot.slane %v2119, 1
      %v2122 = vsel %vm1016, %v2117, %v2121
      %v2123 = vshrl.u32 %v2099, 16
      %v2125 = vor.u32 %v2123, %v2121
      %v2127 = vshll.u32 %v2100, 16
      %v2129 = vrot.slane %v2127, 1
      %v2130 = vsel %vm1016, %v2125, %v2129
      %v2131 = vshrl.u32 %v2100, 16
      %v2133 = vor.u32 %v2131, %v2129
      %v2135 = vshll.u32 %v2101, 16
      %v2137 = vrot.slane %v2135, 1
      %v2138 = vsel %vm1016, %v2133, %v2137
      %v2139 = vshrl.u32 %v2101, 16
      %v2141 = vor.u32 %v2139, %v2137
      %v2143 = vshll.u32 %v2102, 16
      %v2145 = vrot.slane %v2143, 1
      %v2146 = vsel %vm1016, %v2141, %v2145
      %v2147 = vshrl.u32 %v2102, 16
      %v2149 = vor.u32 %v2147, %v2145
      %v2151 = vshll.u32 %v2103, 16
      %v2153 = vrot.slane %v2151, 1
      %v2154 = vsel %vm1016, %v2149, %v2153
      %v2155 = vshrl.u32 %v2103, 16
      %v2157 = vor.u32 %v2155, %v2153
      %v2159 = vshll.u32 %v2104, 16
      %v2161 = vrot.slane %v2159, 1
      %v2162 = vsel %vm1016, %v2157, %v2161
      %v2163 = vshrl.u32 %v2104, 16
      %v2165 = vor.u32 %v2163, %v2161
      %v2167 = vshll.u32 %v2105, 16
      %v2169 = vrot.slane %v2167, 1
      %v2170 = vsel %vm1016, %v2165, %v2169
      %v2171 = vshrl.u32 %v2105, 16
      %v2173 = vor.u32 %v2171, %v2169
      %v2175 = vshll.u32 %v2106, 16
      %v2177 = vrot.slane %v2175, 1
      %v2178 = vsel %vm1016, %v2173, %v2177
      %v2179 = vshrl.u32 %v2106, 16
      %v2181 = vor.u32 %v2179, %v2177
      %v2183 = vshll.u32 %v2107, 16
      %v2185 = vrot.slane %v2183, 1
      %v2186 = vsel %vm1016, %v2181, %v2185
      %v2187 = vshrl.u32 %v2107, 16
      %v2189 = vor.u32 %v2187, %v2185
      %v2191 = vshll.u32 %v2108, 16
      %v2193 = vrot.slane %v2191, 1
      %v2194 = vsel %vm1016, %v2189, %v2193
      %v2195 = vshrl.u32 %v2108, 16
      %v2197 = vor.u32 %v2195, %v2193
      %v2199 = vshll.u32 %v2109, 16
      %v2201 = vrot.slane %v2199, 1
      %v2202 = vsel %vm1016, %v2197, %v2201
      %v2203 = vshrl.u32 %v2109, 16
      %v2205 = vor.u32 %v2203, %v2201
      %v2207 = vshll.u32 %v2110, 16
      %v2209 = vrot.slane %v2207, 1
      %v2210 = vsel %vm1016, %v2205, %v2209
      %v2239 = vunpack.c.l.b16 %v2032
      %v2240 = vunpack.c.l.b16 %v2033
      %v2241 = vunpack.c.l.b16 %v2034
      %v2242 = vunpack.c.l.b16 %v2035
      %v2243 = vunpack.c.l.b16 %v2036
      %v2244 = vunpack.c.l.b16 %v2037
      %v2245 = vunpack.c.l.b16 %v2038
      %v2246 = vunpack.c.l.b16 %v2039
      %v2247 = vunpack.c.l.b16 %v2040
      %v2248 = vunpack.c.l.b16 %v2041
      %v2249 = vunpack.c.l.b16 %v2042
      %v2250 = vunpack.c.l.b16 %v2043
      %v2251 = vunpack.c.l.b16 %v2044
      %v2252 = vunpack.c.l.b16 %v2045
      %v2253 = vunpack.c.l.b16 %v2046
      %v2254 = vunpack.c.l.b16 %v2047
      %v2255 = vpack.c.b16 %v2240, %v2239
      %v2256 = vpack.c.b16 %v2242, %v2241
      %v2257 = vpack.c.b16 %v2244, %v2243
      %v2258 = vpack.c.b16 %v2246, %v2245
      %v2259 = vpack.c.b16 %v2248, %v2247
      %v2260 = vpack.c.b16 %v2250, %v2249
      %v2261 = vpack.c.b16 %v2252, %v2251
      %v2262 = vpack.c.b16 %v2254, %v2253
      %2271 = vmatprep.subr.bf16.mxu0 0
      %2272 = vmatpush1.bf16.msra.mxu0 %v2255
      %2273 = vmatprep.subr.bf16.mxu0 0
      %2274 = vmatpush1.bf16.msra.mxu0 %v2256
      %2275 = vmatprep.subr.bf16.mxu0 0
      %2276 = vmatpush1.bf16.msra.mxu0 %v2257
      %2277 = vmatprep.subr.bf16.mxu0 0
      %2278 = vmatpush1.bf16.msra.mxu0 %v2258
      %2279 = vmatprep.subr.bf16.mxu0 0
      %2280 = vmatpush1.bf16.msra.mxu0 %v2259
      %2281 = vmatprep.subr.bf16.mxu0 0
      %2282 = vmatpush1.bf16.msra.mxu0 %v2260
      %2283 = vmatprep.subr.bf16.mxu0 0
      %2284 = vmatpush1.bf16.msra.mxu0 %v2261
      %2285 = vmatprep.subr.bf16.mxu0 0
      %2286 = vmatpush1.bf16.msra.mxu0 %v2262
      %2287 = vmatprep.subr.bf16.mxu0 0
      %2288 = vmatpush1.bf16.msra.mxu0 0
      %2289 = vmatprep.subr.bf16.mxu0 0
      %2290 = vmatpush1.bf16.msra.mxu0 0
      %2291 = vmatprep.subr.bf16.mxu0 0
      %2292 = vmatpush1.bf16.msra.mxu0 0
      %2293 = vmatprep.subr.bf16.mxu0 0
      %2294 = vmatpush1.bf16.msra.mxu0 0
      %2295 = vmatprep.subr.bf16.mxu0 0
      %2296 = vmatpush1.bf16.msra.mxu0 0
      %2297 = vmatprep.subr.bf16.mxu0 0
      %2298 = vmatpush1.bf16.msra.mxu0 0
      %2299 = vmatprep.subr.bf16.mxu0 0
      %2300 = vmatpush1.bf16.msra.mxu0 0
      %2301 = vmatprep.subr.bf16.mxu0 0
      %2302 = vmatpush1.bf16.msra.mxu0 0
      %2303 = vmatprep.mubr.bf16.mxu0 0
      %2304 = vmatmul.mubr.bf16.gmra.mrb[0].mxu0 %v2122
      %v2305 = vpop.f32.mrb[0].mxu0
      %v2306 = vadd.f32 0.0, %v2305
      %v2307 = vpop.f32.mrb[0].mxu0
      %v2308 = vpop.f32.mrb[0].mxu0
      %v2309 = vadd.f32 0.0, %v2308
      %v2310 = vpop.f32.mrb[0].mxu0
      %2311 = vmatprep.mubr.bf16.mxu0 0
      %2312 = vmatmul.mubr.bf16.gmra.mrb[0].mxu0 %v2130
      %v2313 = vpop.f32.mrb[0].mxu0
      %v2314 = vadd.f32 0.0, %v2313
      %v2315 = vpop.f32.mrb[0].mxu0
      %v2316 = vpop.f32.mrb[0].mxu0
      %v2317 = vadd.f32 0.0, %v2316
      %v2318 = vpop.f32.mrb[0].mxu0
      %2319 = vmatprep.mubr.bf16.mxu0 0
      %2320 = vmatmul.mubr.bf16.gmra.mrb[0].mxu0 %v2138
      %v2321 = vpop.f32.mrb[0].mxu0
      %v2322 = vadd.f32 0.0, %v2321
      %v2323 = vpop.f32.mrb[0].mxu0
      %v2324 = vpop.f32.mrb[0].mxu0
      %v2325 = vadd.f32 0.0, %v2324
      %v2326 = vpop.f32.mrb[0].mxu0
      %2327 = vmatprep.mubr.bf16.mxu0 0
      %2328 = vmatmul.mubr.bf16.gmra.mrb[0].mxu0 %v2146
      %v2329 = vpop.f32.mrb[0].mxu0
      %v2330 = vadd.f32 0.0, %v2329
      %v2331 = vpop.f32.mrb[0].mxu0
      %v2332 = vpop.f32.mrb[0].mxu0
      %v2333 = vadd.f32 0.0, %v2332
      %v2334 = vpop.f32.mrb[0].mxu0
      %2335 = vmatprep.mubr.bf16.mxu0 0
      %2336 = vmatmul.mubr.bf16.gmra.mrb[0].mxu0 %v2154
      %v2337 = vpop.f32.mrb[0].mxu0
      %v2338 = vadd.f32 0.0, %v2337
      %v2339 = vpop.f32.mrb[0].mxu0
      %v2340 = vpop.f32.mrb[0].mxu0
      %v2341 = vadd.f32 0.0, %v2340
      %v2342 = vpop.f32.mrb[0].mxu0
      %2343 = vmatprep.mubr.bf16.mxu0 0
      %2344 = vmatmul.mubr.bf16.gmra.mrb[0].mxu0 %v2162
      %v2345 = vpop.f32.mrb[0].mxu0
      %v2346 = vadd.f32 0.0, %v2345
      %v2347 = vpop.f32.mrb[0].mxu0
      %v2348 = vpop.f32.mrb[0].mxu0
      %v2349 = vadd.f32 0.0, %v2348
      %v2350 = vpop.f32.mrb[0].mxu0
      %2351 = vmatprep.mubr.bf16.mxu0 0
      %2352 = vmatmul.mubr.bf16.gmra.mrb[0].mxu0 %v2170
      %v2353 = vpop.f32.mrb[0].mxu0
      %v2354 = vadd.f32 0.0, %v2353
      %v2355 = vpop.f32.mrb[0].mxu0
      %v2356 = vpop.f32.mrb[0].mxu0
      %v2357 = vadd.f32 0.0, %v2356
      %v2358 = vpop.f32.mrb[0].mxu0
      %2359 = vmatprep.mubr.bf16.mxu0 0
      %2360 = vmatmul.mubr.bf16.gmra.mrb[0].mxu0 %v2178
      %v2361 = vpop.f32.mrb[0].mxu0
      %v2362 = vadd.f32 0.0, %v2361
      %v2363 = vpop.f32.mrb[0].mxu0
      %v2364 = vpop.f32.mrb[0].mxu0
      %v2365 = vadd.f32 0.0, %v2364
      %v2366 = vpop.f32.mrb[0].mxu0
      %2367 = vmatprep.mubr.bf16.mxu0 0
      %2368 = vmatmul.mubr.bf16.gmra.mrb[0].mxu0 %v2186
      %v2369 = vpop.f32.mrb[0].mxu0
      %v2370 = vadd.f32 0.0, %v2369
      %v2371 = vpop.f32.mrb[0].mxu0
      %v2372 = vpop.f32.mrb[0].mxu0
      %v2373 = vadd.f32 0.0, %v2372
      %v2374 = vpop.f32.mrb[0].mxu0
      %2375 = vmatprep.mubr.bf16.mxu0 0
      %2376 = vmatmul.mubr.bf16.gmra.mrb[0].mxu0 %v2194
      %v2377 = vpop.f32.mrb[0].mxu0
      %v2378 = vadd.f32 0.0, %v2377
      %v2379 = vpop.f32.mrb[0].mxu0
      %v2380 = vpop.f32.mrb[0].mxu0
      %v2381 = vadd.f32 0.0, %v2380
      %v2382 = vpop.f32.mrb[0].mxu0
      %2383 = vmatprep.mubr.bf16.mxu0 0
      %2384 = vmatmul.mubr.bf16.gmra.mrb[0].mxu0 %v2202
      %v2385 = vpop.f32.mrb[0].mxu0
      %v2386 = vadd.f32 0.0, %v2385
      %v2387 = vpop.f32.mrb[0].mxu0
      %v2388 = vpop.f32.mrb[0].mxu0
      %v2389 = vadd.f32 0.0, %v2388
      %v2390 = vpop.f32.mrb[0].mxu0
      %2391 = vmatprep.mubr.bf16.mxu0 0
      %2392 = vmatmul.mubr.bf16.gmra.mrb[0].mxu0 %v2210
      %v2393 = vpop.f32.mrb[0].mxu0
      %v2394 = vadd.f32 0.0, %v2393
      %v2395 = vpop.f32.mrb[0].mxu0
      %v2396 = vpop.f32.mrb[0].mxu0
      %v2397 = vadd.f32 0.0, %v2396
      %v2398 = vpop.f32.mrb[0].mxu0
      %2399 = vdwg.mxu0
      %v2400 = vadd.f32 %v1982, %v2306
      %v2401 = vadd.f32 %v1983, %v2309
      %v2402 = vadd.f32 %v1984, %v2314
      %v2403 = vadd.f32 %v1985, %v2317
      %v2404 = vadd.f32 %v1986, %v2322
      %v2405 = vadd.f32 %v1987, %v2325
      %v2406 = vadd.f32 %v1988, %v2330
      %v2407 = vadd.f32 %v1989, %v2333
      %v2408 = vadd.f32 %v1990, %v2338
      %v2409 = vadd.f32 %v1991, %v2341
      %v2410 = vadd.f32 %v1992, %v2346
      %v2411 = vadd.f32 %v1993, %v2349
      %v2412 = vadd.f32 %v1994, %v2354
      %v2413 = vadd.f32 %v1995, %v2357
      %v2414 = vadd.f32 %v1996, %v2362
      %v2415 = vadd.f32 %v1997, %v2365
      %v2416 = vadd.f32 %v1998, %v2370
      %v2417 = vadd.f32 %v1999, %v2373
      %v2418 = vadd.f32 %v2000, %v2378
      %v2419 = vadd.f32 %v2001, %v2381
      %v2420 = vadd.f32 %v2002, %v2386
      %v2421 = vadd.f32 %v2003, %v2389
      %v2422 = vadd.f32 %v2004, %v2394
      %v2423 = vadd.f32 %v2005, %v2397
      %v2424 = vld [vmem:[%s246 + $0x18] sm:$0x8]
      %v2425 = vld [vmem:[%s246 + $0x1c] sm:$0xf]
      %v2426 = vld [vmem:[%s246 + $0x20] sm:$0xf]
      %v2427 = vld [vmem:[%s246 + $0x24] sm:$0xf]
      %v2428 = vld [vmem:[%s246 + $0x28] sm:$0xf]
      %v2429 = vld [vmem:[%s246 + $0x2c] sm:$0xf]
      %v2430 = vld [vmem:[%s246 + $0x30] sm:$0xf]
      %v2431 = vld [vmem:[%s246 + $0x34] sm:$0xf]
      %v2432 = vld [vmem:[%s246 + $0x38] sm:$0xf]
      %v2433 = vld [vmem:[%s246 + $0x3c] sm:$0xf]
      %v2434 = vld [vmem:[%s246 + $0x40] sm:$0xf]
      %v2435 = vld [vmem:[%s246 + $0x44] sm:$0xf]
      %v2436 = vld [vmem:[%s246 + $0x48] sm:$0xf]
      %v2437 = vld [vmem:[%s246 + $0x4c] sm:$0xf]
      %v2438 = vld [vmem:[%s246 + $0x50] sm:$0xf]
      %v2439 = vld [vmem:[%s246 + $0x54] sm:$0xf]
      %v2440 = vld [vmem:[%s246 + $0x58] sm:$0xf]
      %v2441 = vld [vmem:[%s246 + $0x5c] sm:$0xf]
      %v2442 = vld [vmem:[%s246 + $0x60] sm:$0xf]
      %v2443 = vld [vmem:[%s246 + $0x64] sm:$0xf]
      %v2444 = vld [vmem:[%s246 + $0x68] sm:$0xf]
      %v2445 = vld [vmem:[%s246 + $0x6c] sm:$0xf]
      %v2446 = vld [vmem:[%s246 + $0x70] sm:$0xf]
      %v2447 = vld [vmem:[%s246 + $0x74] sm:$0xf]
      %v2448 = vld [vmem:[%s246 + $0x78] sm:$0xf]
      %s2449 = scalar_lea.vmem %s2, 384
      %v2450 = vld [vmem:[%s2449] sm:$0xf]
      %v2451 = vld [vmem:[%s2449 + $0x4] sm:$0xf]
      %v2452 = vld [vmem:[%s2449 + $0x8] sm:$0xf]
      %v2453 = vld [vmem:[%s2449 + $0xc] sm:$0xf]
      %v2454 = vld [vmem:[%s2449 + $0x10] sm:$0xf]
      %v2455 = vld [vmem:[%s2449 + $0x14] sm:$0xf]
      %v2456 = vld [vmem:[%s2449 + $0x18] sm:$0xf]
      %v2457 = vld [vmem:[%s2449 + $0x1c] sm:$0xf]
      %v2458 = vld [vmem:[%s2449 + $0x20] sm:$0xf]
      %v2459 = vld [vmem:[%s2449 + $0x24] sm:$0xf]
      %v2460 = vld [vmem:[%s2449 + $0x28] sm:$0xf]
      %v2461 = vld [vmem:[%s2449 + $0x2c] sm:$0xf]
      %v2462 = vld [vmem:[%s2449 + $0x30] sm:$0xf]
      %v2463 = vld [vmem:[%s2449 + $0x34] sm:$0xf]
      %v2464 = vld [vmem:[%s2449 + $0x38] sm:$0xf]
      %v2465 = vld [vmem:[%s2449 + $0x3c] sm:$0xf]
      %v2491 = vunpack.c.l.b16 %v2424
      %v2492 = vunpack.c.l.b16 %v2425
      %v2493 = vunpack.c.l.b16 %v2426
      %v2494 = vunpack.c.l.b16 %v2427
      %v2495 = vunpack.c.l.b16 %v2428
      %v2496 = vunpack.c.l.b16 %v2429
      %v2497 = vunpack.c.l.b16 %v2430
      %v2498 = vunpack.c.l.b16 %v2431
      %v2499 = vunpack.c.l.b16 %v2432
      %v2500 = vunpack.c.l.b16 %v2433
      %v2501 = vunpack.c.l.b16 %v2434
      %v2502 = vunpack.c.l.b16 %v2435
      %v2503 = vunpack.c.l.b16 %v2436
      %v2504 = vunpack.c.l.b16 %v2437
      %v2505 = vunpack.c.l.b16 %v2438
      %v2506 = vunpack.c.l.b16 %v2439
      %v2507 = vunpack.c.l.b16 %v2440
      %v2508 = vunpack.c.l.b16 %v2441
      %v2509 = vunpack.c.l.b16 %v2442
      %v2510 = vunpack.c.l.b16 %v2443
      %v2511 = vunpack.c.l.b16 %v2444
      %v2512 = vunpack.c.l.b16 %v2445
      %v2513 = vunpack.c.l.b16 %v2446
      %v2514 = vunpack.c.l.b16 %v2447
      %v2515 = vunpack.c.l.b16 %v2448
      %v2516 = vpack.c.b16 %v2492, %v2491
      %v2517 = vpack.c.b16 %v2494, %v2493
      %v2518 = vpack.c.b16 %v2496, %v2495
      %v2519 = vpack.c.b16 %v2498, %v2497
      %v2520 = vpack.c.b16 %v2500, %v2499
      %v2521 = vpack.c.b16 %v2502, %v2501
      %v2522 = vpack.c.b16 %v2504, %v2503
      %v2523 = vpack.c.b16 %v2506, %v2505
      %v2524 = vpack.c.b16 %v2508, %v2507
      %v2525 = vpack.c.b16 %v2510, %v2509
      %v2526 = vpack.c.b16 %v2512, %v2511
      %v2527 = vpack.c.b16 %v2514, %v2513
      %v2528 = vpack.c.b16 %v2515, %v2515
      %v2530 = vshrl.u32 %v2516, 16
      %v2532 = vrot.slane %v2530, 3
      %v2533 = vshll.u32 %v2516, 16
      %v2535 = vrot.slane %v2533, 4
      %v2536 = vor.u32 %v2532, %v2535
      %v2538 = vshrl.u32 %v2517, 16
      %v2540 = vrot.slane %v2538, 3
      %v2541 = vshll.u32 %v2517, 16
      %v2543 = vrot.slane %v2541, 4
      %v2544 = vor.u32 %v2540, %v2543
      %v2545 = vsel %vm605, %v2536, %v2544
      %v2547 = vshrl.u32 %v2518, 16
      %v2549 = vrot.slane %v2547, 3
      %v2550 = vshll.u32 %v2518, 16
      %v2552 = vrot.slane %v2550, 4
      %v2553 = vor.u32 %v2549, %v2552
      %v2554 = vsel %vm605, %v2544, %v2553
      %v2556 = vshrl.u32 %v2519, 16
      %v2558 = vrot.slane %v2556, 3
      %v2559 = vshll.u32 %v2519, 16
      %v2561 = vrot.slane %v2559, 4
      %v2562 = vor.u32 %v2558, %v2561
      %v2563 = vsel %vm605, %v2553, %v2562
      %v2565 = vshrl.u32 %v2520, 16
      %v2567 = vrot.slane %v2565, 3
      %v2568 = vshll.u32 %v2520, 16
      %v2570 = vrot.slane %v2568, 4
      %v2571 = vor.u32 %v2567, %v2570
      %v2572 = vsel %vm605, %v2562, %v2571
      %v2574 = vshrl.u32 %v2521, 16
      %v2576 = vrot.slane %v2574, 3
      %v2577 = vshll.u32 %v2521, 16
      %v2579 = vrot.slane %v2577, 4
      %v2580 = vor.u32 %v2576, %v2579
      %v2581 = vsel %vm605, %v2571, %v2580
      %v2583 = vshrl.u32 %v2522, 16
      %v2585 = vrot.slane %v2583, 3
      %v2586 = vshll.u32 %v2522, 16
      %v2588 = vrot.slane %v2586, 4
      %v2589 = vor.u32 %v2585, %v2588
      %v2590 = vsel %vm605, %v2580, %v2589
      %v2592 = vshrl.u32 %v2523, 16
      %v2594 = vrot.slane %v2592, 3
      %v2595 = vshll.u32 %v2523, 16
      %v2597 = vrot.slane %v2595, 4
      %v2598 = vor.u32 %v2594, %v2597
      %v2599 = vsel %vm605, %v2589, %v2598
      %v2601 = vshrl.u32 %v2524, 16
      %v2603 = vrot.slane %v2601, 3
      %v2604 = vshll.u32 %v2524, 16
      %v2606 = vrot.slane %v2604, 4
      %v2607 = vor.u32 %v2603, %v2606
      %v2608 = vsel %vm605, %v2598, %v2607
      %v2610 = vshrl.u32 %v2525, 16
      %v2612 = vrot.slane %v2610, 3
      %v2613 = vshll.u32 %v2525, 16
      %v2615 = vrot.slane %v2613, 4
      %v2616 = vor.u32 %v2612, %v2615
      %v2617 = vsel %vm605, %v2607, %v2616
      %v2619 = vshrl.u32 %v2526, 16
      %v2621 = vrot.slane %v2619, 3
      %v2622 = vshll.u32 %v2526, 16
      %v2624 = vrot.slane %v2622, 4
      %v2625 = vor.u32 %v2621, %v2624
      %v2626 = vsel %vm605, %v2616, %v2625
      %v2628 = vshrl.u32 %v2527, 16
      %v2630 = vrot.slane %v2628, 3
      %v2631 = vshll.u32 %v2527, 16
      %v2633 = vrot.slane %v2631, 4
      %v2634 = vor.u32 %v2630, %v2633
      %v2635 = vsel %vm605, %v2625, %v2634
      %v2637 = vshrl.u32 %v2528, 16
      %v2639 = vrot.slane %v2637, 3
      %v2640 = vshll.u32 %v2528, 16
      %v2642 = vrot.slane %v2640, 4
      %v2643 = vor.u32 %v2639, %v2642
      %v2644 = vsel %vm605, %v2634, %v2643
      %v2673 = vunpack.c.l.b16 %v2450
      %v2674 = vunpack.c.l.b16 %v2451
      %v2675 = vunpack.c.l.b16 %v2452
      %v2676 = vunpack.c.l.b16 %v2453
      %v2677 = vunpack.c.l.b16 %v2454
      %v2678 = vunpack.c.l.b16 %v2455
      %v2679 = vunpack.c.l.b16 %v2456
      %v2680 = vunpack.c.l.b16 %v2457
      %v2681 = vunpack.c.l.b16 %v2458
      %v2682 = vunpack.c.l.b16 %v2459
      %v2683 = vunpack.c.l.b16 %v2460
      %v2684 = vunpack.c.l.b16 %v2461
      %v2685 = vunpack.c.l.b16 %v2462
      %v2686 = vunpack.c.l.b16 %v2463
      %v2687 = vunpack.c.l.b16 %v2464
      %v2688 = vunpack.c.l.b16 %v2465
      %v2689 = vpack.c.b16 %v2674, %v2673
      %v2690 = vpack.c.b16 %v2676, %v2675
      %v2691 = vpack.c.b16 %v2678, %v2677
      %v2692 = vpack.c.b16 %v2680, %v2679
      %v2693 = vpack.c.b16 %v2682, %v2681
      %v2694 = vpack.c.b16 %v2684, %v2683
      %v2695 = vpack.c.b16 %v2686, %v2685
      %v2696 = vpack.c.b16 %v2688, %v2687
      %2705 = vmatprep.subr.bf16.mxu0 0
      %2706 = vmatpush1.bf16.msra.mxu0 %v2689
      %2707 = vmatprep.subr.bf16.mxu0 0
      %2708 = vmatpush1.bf16.msra.mxu0 %v2690
      %2709 = vmatprep.subr.bf16.mxu0 0
      %2710 = vmatpush1.bf16.msra.mxu0 %v2691
      %2711 = vmatprep.subr.bf16.mxu0 0
      %2712 = vmatpush1.bf16.msra.mxu0 %v2692
      %2713 = vmatprep.subr.bf16.mxu0 0
      %2714 = vmatpush1.bf16.msra.mxu0 %v2693
      %2715 = vmatprep.subr.bf16.mxu0 0
      %2716 = vmatpush1.bf16.msra.mxu0 %v2694
      %2717 = vmatprep.subr.bf16.mxu0 0
      %2718 = vmatpush1.bf16.msra.mxu0 %v2695
      %2719 = vmatprep.subr.bf16.mxu0 0
      %2720 = vmatpush1.bf16.msra.mxu0 %v2696
      %2721 = vmatprep.subr.bf16.mxu0 0
      %2722 = vmatpush1.bf16.msra.mxu0 0
      %2723 = vmatprep.subr.bf16.mxu0 0
      %2724 = vmatpush1.bf16.msra.mxu0 0
      %2725 = vmatprep.subr.bf16.mxu0 0
      %2726 = vmatpush1.bf16.msra.mxu0 0
      %2727 = vmatprep.subr.bf16.mxu0 0
      %2728 = vmatpush1.bf16.msra.mxu0 0
      %2729 = vmatprep.subr.bf16.mxu0 0
      %2730 = vmatpush1.bf16.msra.mxu0 0
      %2731 = vmatprep.subr.bf16.mxu0 0
      %2732 = vmatpush1.bf16.msra.mxu0 0
      %2733 = vmatprep.subr.bf16.mxu0 0
      %2734 = vmatpush1.bf16.msra.mxu0 0
      %2735 = vmatprep.subr.bf16.mxu0 0
      %2736 = vmatpush1.bf16.msra.mxu0 0
      %2737 = vmatprep.mubr.bf16.mxu0 0
      %2738 = vmatmul.mubr.bf16.gmra.mrb[0].mxu0 %v2545
      %v2739 = vpop.f32.mrb[0].mxu0
      %v2740 = vadd.f32 0.0, %v2739
      %v2741 = vpop.f32.mrb[0].mxu0
      %v2742 = vpop.f32.mrb[0].mxu0
      %v2743 = vadd.f32 0.0, %v2742
      %v2744 = vpop.f32.mrb[0].mxu0
      %2745 = vmatprep.mubr.bf16.mxu0 0
      %2746 = vmatmul.mubr.bf16.gmra.mrb[0].mxu0 %v2554
      %v2747 = vpop.f32.mrb[0].mxu0
      %v2748 = vadd.f32 0.0, %v2747
      %v2749 = vpop.f32.mrb[0].mxu0
      %v2750 = vpop.f32.mrb[0].mxu0
      %v2751 = vadd.f32 0.0, %v2750
      %v2752 = vpop.f32.mrb[0].mxu0
      %2753 = vmatprep.mubr.bf16.mxu0 0
      %2754 = vmatmul.mubr.bf16.gmra.mrb[0].mxu0 %v2563
      %v2755 = vpop.f32.mrb[0].mxu0
      %v2756 = vadd.f32 0.0, %v2755
      %v2757 = vpop.f32.mrb[0].mxu0
      %v2758 = vpop.f32.mrb[0].mxu0
      %v2759 = vadd.f32 0.0, %v2758
      %v2760 = vpop.f32.mrb[0].mxu0
      %2761 = vmatprep.mubr.bf16.mxu0 0
      %2762 = vmatmul.mubr.bf16.gmra.mrb[0].mxu0 %v2572
      %v2763 = vpop.f32.mrb[0].mxu0
      %v2764 = vadd.f32 0.0, %v2763
      %v2765 = vpop.f32.mrb[0].mxu0
      %v2766 = vpop.f32.mrb[0].mxu0
      %v2767 = vadd.f32 0.0, %v2766
      %v2768 = vpop.f32.mrb[0].mxu0
      %2769 = vmatprep.mubr.bf16.mxu0 0
      %2770 = vmatmul.mubr.bf16.gmra.mrb[0].mxu0 %v2581
      %v2771 = vpop.f32.mrb[0].mxu0
      %v2772 = vadd.f32 0.0, %v2771
      %v2773 = vpop.f32.mrb[0].mxu0
      %v2774 = vpop.f32.mrb[0].mxu0
      %v2775 = vadd.f32 0.0, %v2774
      %v2776 = vpop.f32.mrb[0].mxu0
      %2777 = vmatprep.mubr.bf16.mxu0 0
      %2778 = vmatmul.mubr.bf16.gmra.mrb[0].mxu0 %v2590
      %v2779 = vpop.f32.mrb[0].mxu0
      %v2780 = vadd.f32 0.0, %v2779
      %v2781 = vpop.f32.mrb[0].mxu0
      %v2782 = vpop.f32.mrb[0].mxu0
      %v2783 = vadd.f32 0.0, %v2782
      %v2784 = vpop.f32.mrb[0].mxu0
      %2785 = vmatprep.mubr.bf16.mxu0 0
      %2786 = vmatmul.mubr.bf16.gmra.mrb[0].mxu0 %v2599
      %v2787 = vpop.f32.mrb[0].mxu0
      %v2788 = vadd.f32 0.0, %v2787
      %v2789 = vpop.f32.mrb[0].mxu0
      %v2790 = vpop.f32.mrb[0].mxu0
      %v2791 = vadd.f32 0.0, %v2790
      %v2792 = vpop.f32.mrb[0].mxu0
      %2793 = vmatprep.mubr.bf16.mxu0 0
      %2794 = vmatmul.mubr.bf16.gmra.mrb[0].mxu0 %v2608
      %v2795 = vpop.f32.mrb[0].mxu0
      %v2796 = vadd.f32 0.0, %v2795
      %v2797 = vpop.f32.mrb[0].mxu0
      %v2798 = vpop.f32.mrb[0].mxu0
      %v2799 = vadd.f32 0.0, %v2798
      %v2800 = vpop.f32.mrb[0].mxu0
      %2801 = vmatprep.mubr.bf16.mxu0 0
      %2802 = vmatmul.mubr.bf16.gmra.mrb[0].mxu0 %v2617
      %v2803 = vpop.f32.mrb[0].mxu0
      %v2804 = vadd.f32 0.0, %v2803
      %v2805 = vpop.f32.mrb[0].mxu0
      %v2806 = vpop.f32.mrb[0].mxu0
      %v2807 = vadd.f32 0.0, %v2806
      %v2808 = vpop.f32.mrb[0].mxu0
      %2809 = vmatprep.mubr.bf16.mxu0 0
      %2810 = vmatmul.mubr.bf16.gmra.mrb[0].mxu0 %v2626
      %v2811 = vpop.f32.mrb[0].mxu0
      %v2812 = vadd.f32 0.0, %v2811
      %v2813 = vpop.f32.mrb[0].mxu0
      %v2814 = vpop.f32.mrb[0].mxu0
      %v2815 = vadd.f32 0.0, %v2814
      %v2816 = vpop.f32.mrb[0].mxu0
      %2817 = vmatprep.mubr.bf16.mxu0 0
      %2818 = vmatmul.mubr.bf16.gmra.mrb[0].mxu0 %v2635
      %v2819 = vpop.f32.mrb[0].mxu0
      %v2820 = vadd.f32 0.0, %v2819
      %v2821 = vpop.f32.mrb[0].mxu0
      %v2822 = vpop.f32.mrb[0].mxu0
      %v2823 = vadd.f32 0.0, %v2822
      %v2824 = vpop.f32.mrb[0].mxu0
      %2825 = vmatprep.mubr.bf16.mxu0 0
      %2826 = vmatmul.mubr.bf16.gmra.mrb[0].mxu0 %v2644
      %v2827 = vpop.f32.mrb[0].mxu0
      %v2828 = vadd.f32 0.0, %v2827
      %v2829 = vpop.f32.mrb[0].mxu0
      %v2830 = vpop.f32.mrb[0].mxu0
      %v2831 = vadd.f32 0.0, %v2830
      %v2832 = vpop.f32.mrb[0].mxu0
      %2833 = vdwg.mxu0
      %v2834 = vadd.f32 %v2400, %v2740
      %v2835 = vadd.f32 %v2401, %v2743
      %v2836 = vadd.f32 %v2402, %v2748
      %v2837 = vadd.f32 %v2403, %v2751
      %v2838 = vadd.f32 %v2404, %v2756
      %v2839 = vadd.f32 %v2405, %v2759
      %v2840 = vadd.f32 %v2406, %v2764
      %v2841 = vadd.f32 %v2407, %v2767
      %v2842 = vadd.f32 %v2408, %v2772
      %v2843 = vadd.f32 %v2409, %v2775
      %v2844 = vadd.f32 %v2410, %v2780
      %v2845 = vadd.f32 %v2411, %v2783
      %v2846 = vadd.f32 %v2412, %v2788
      %v2847 = vadd.f32 %v2413, %v2791
      %v2848 = vadd.f32 %v2414, %v2796
      %v2849 = vadd.f32 %v2415, %v2799
      %v2850 = vadd.f32 %v2416, %v2804
      %v2851 = vadd.f32 %v2417, %v2807
      %v2852 = vadd.f32 %v2418, %v2812
      %v2853 = vadd.f32 %v2419, %v2815
      %v2854 = vadd.f32 %v2420, %v2820
      %v2855 = vadd.f32 %v2421, %v2823
      %v2856 = vadd.f32 %v2422, %v2828
      %v2857 = vadd.f32 %v2423, %v2831
      %s2858 = scalar_lea.vmem %s2, 448
      %v2859 = vld [vmem:[%s2858] sm:$0xf]
      %v2860 = vld [vmem:[%s2858 + $0x4] sm:$0xf]
      %v2861 = vld [vmem:[%s2858 + $0x8] sm:$0xf]
      %v2862 = vld [vmem:[%s2858 + $0xc] sm:$0xf]
      %v2863 = vld [vmem:[%s2858 + $0x10] sm:$0xf]
      %v2864 = vld [vmem:[%s2858 + $0x14] sm:$0xf]
      %v2865 = vld [vmem:[%s2858 + $0x18] sm:$0xf]
      %v2866 = vld [vmem:[%s2858 + $0x1c] sm:$0xf]
      %v2867 = vld [vmem:[%s2858 + $0x20] sm:$0xf]
      %v2868 = vld [vmem:[%s2858 + $0x24] sm:$0xf]
      %v2869 = vld [vmem:[%s2858 + $0x28] sm:$0xf]
      %v2870 = vld [vmem:[%s2858 + $0x2c] sm:$0xf]
      %v2871 = vld [vmem:[%s2858 + $0x30] sm:$0xf]
      %v2872 = vld [vmem:[%s2858 + $0x34] sm:$0xf]
      %v2873 = vld [vmem:[%s2858 + $0x38] sm:$0xf]
      %v2874 = vld [vmem:[%s2858 + $0x3c] sm:$0xf]
      %v2875 = vpack.c.b16 %v2493, %v2492
      %v2876 = vpack.c.b16 %v2495, %v2494
      %v2877 = vpack.c.b16 %v2497, %v2496
      %v2878 = vpack.c.b16 %v2499, %v2498
      %v2879 = vpack.c.b16 %v2501, %v2500
      %v2880 = vpack.c.b16 %v2503, %v2502
      %v2881 = vpack.c.b16 %v2505, %v2504
      %v2882 = vpack.c.b16 %v2507, %v2506
      %v2883 = vpack.c.b16 %v2509, %v2508
      %v2884 = vpack.c.b16 %v2511, %v2510
      %v2885 = vpack.c.b16 %v2513, %v2512
      %v2886 = vpack.c.b16 %v2515, %v2514
      %v2915 = vunpack.c.l.b16 %v2859
      %v2916 = vunpack.c.l.b16 %v2860
      %v2917 = vunpack.c.l.b16 %v2861
      %v2918 = vunpack.c.l.b16 %v2862
      %v2919 = vunpack.c.l.b16 %v2863
      %v2920 = vunpack.c.l.b16 %v2864
      %v2921 = vunpack.c.l.b16 %v2865
      %v2922 = vunpack.c.l.b16 %v2866
      %v2923 = vunpack.c.l.b16 %v2867
      %v2924 = vunpack.c.l.b16 %v2868
      %v2925 = vunpack.c.l.b16 %v2869
      %v2926 = vunpack.c.l.b16 %v2870
      %v2927 = vunpack.c.l.b16 %v2871
      %v2928 = vunpack.c.l.b16 %v2872
      %v2929 = vunpack.c.l.b16 %v2873
      %v2930 = vunpack.c.l.b16 %v2874
      %v2931 = vpack.c.b16 %v2916, %v2915
      %v2932 = vpack.c.b16 %v2918, %v2917
      %v2933 = vpack.c.b16 %v2920, %v2919
      %v2934 = vpack.c.b16 %v2922, %v2921
      %v2935 = vpack.c.b16 %v2924, %v2923
      %v2936 = vpack.c.b16 %v2926, %v2925
      %v2937 = vpack.c.b16 %v2928, %v2927
      %v2938 = vpack.c.b16 %v2930, %v2929
      %2947 = vmatprep.subr.bf16.mxu0 0
      %2948 = vmatpush1.bf16.msra.mxu0 %v2931
      %2949 = vmatprep.subr.bf16.mxu0 0
      %2950 = vmatpush1.bf16.msra.mxu0 %v2932
      %2951 = vmatprep.subr.bf16.mxu0 0
      %2952 = vmatpush1.bf16.msra.mxu0 %v2933
      %2953 = vmatprep.subr.bf16.mxu0 0
      %2954 = vmatpush1.bf16.msra.mxu0 %v2934
      %2955 = vmatprep.subr.bf16.mxu0 0
      %2956 = vmatpush1.bf16.msra.mxu0 %v2935
      %2957 = vmatprep.subr.bf16.mxu0 0
      %2958 = vmatpush1.bf16.msra.mxu0 %v2936
      %2959 = vmatprep.subr.bf16.mxu0 0
      %2960 = vmatpush1.bf16.msra.mxu0 %v2937
      %2961 = vmatprep.subr.bf16.mxu0 0
      %2962 = vmatpush1.bf16.msra.mxu0 %v2938
      %2963 = vmatprep.subr.bf16.mxu0 0
      %2964 = vmatpush1.bf16.msra.mxu0 0
      %2965 = vmatprep.subr.bf16.mxu0 0
      %2966 = vmatpush1.bf16.msra.mxu0 0
      %2967 = vmatprep.subr.bf16.mxu0 0
      %2968 = vmatpush1.bf16.msra.mxu0 0
      %2969 = vmatprep.subr.bf16.mxu0 0
      %2970 = vmatpush1.bf16.msra.mxu0 0
      %2971 = vmatprep.subr.bf16.mxu0 0
      %2972 = vmatpush1.bf16.msra.mxu0 0
      %2973 = vmatprep.subr.bf16.mxu0 0
      %2974 = vmatpush1.bf16.msra.mxu0 0
      %2975 = vmatprep.subr.bf16.mxu0 0
      %2976 = vmatpush1.bf16.msra.mxu0 0
      %2977 = vmatprep.subr.bf16.mxu0 0
      %2978 = vmatpush1.bf16.msra.mxu0 0
      %2979 = vmatprep.mubr.bf16.mxu0 0
      %2980 = vmatmul.mubr.bf16.gmra.mrb[0].mxu0 %v2875
      %v2981 = vpop.f32.mrb[0].mxu0
      %v2982 = vadd.f32 0.0, %v2981
      %v2983 = vpop.f32.mrb[0].mxu0
      %v2984 = vpop.f32.mrb[0].mxu0
      %v2985 = vadd.f32 0.0, %v2984
      %v2986 = vpop.f32.mrb[0].mxu0
      %2987 = vmatprep.mubr.bf16.mxu0 0
      %2988 = vmatmul.mubr.bf16.gmra.mrb[0].mxu0 %v2876
      %v2989 = vpop.f32.mrb[0].mxu0
      %v2990 = vadd.f32 0.0, %v2989
      %v2991 = vpop.f32.mrb[0].mxu0
      %v2992 = vpop.f32.mrb[0].mxu0
      %v2993 = vadd.f32 0.0, %v2992
      %v2994 = vpop.f32.mrb[0].mxu0
      %2995 = vmatprep.mubr.bf16.mxu0 0
      %2996 = vmatmul.mubr.bf16.gmra.mrb[0].mxu0 %v2877
      %v2997 = vpop.f32.mrb[0].mxu0
      %v2998 = vadd.f32 0.0, %v2997
      %v2999 = vpop.f32.mrb[0].mxu0
      %v3000 = vpop.f32.mrb[0].mxu0
      %v3001 = vadd.f32 0.0, %v3000
      %v3002 = vpop.f32.mrb[0].mxu0
      %3003 = vmatprep.mubr.bf16.mxu0 0
      %3004 = vmatmul.mubr.bf16.gmra.mrb[0].mxu0 %v2878
      %v3005 = vpop.f32.mrb[0].mxu0
      %v3006 = vadd.f32 0.0, %v3005
      %v3007 = vpop.f32.mrb[0].mxu0
      %v3008 = vpop.f32.mrb[0].mxu0
      %v3009 = vadd.f32 0.0, %v3008
      %v3010 = vpop.f32.mrb[0].mxu0
      %3011 = vmatprep.mubr.bf16.mxu0 0
      %3012 = vmatmul.mubr.bf16.gmra.mrb[0].mxu0 %v2879
      %v3013 = vpop.f32.mrb[0].mxu0
      %v3014 = vadd.f32 0.0, %v3013
      %v3015 = vpop.f32.mrb[0].mxu0
      %v3016 = vpop.f32.mrb[0].mxu0
      %v3017 = vadd.f32 0.0, %v3016
      %v3018 = vpop.f32.mrb[0].mxu0
      %3019 = vmatprep.mubr.bf16.mxu0 0
      %3020 = vmatmul.mubr.bf16.gmra.mrb[0].mxu0 %v2880
      %v3021 = vpop.f32.mrb[0].mxu0
      %v3022 = vadd.f32 0.0, %v3021
      %v3023 = vpop.f32.mrb[0].mxu0
      %v3024 = vpop.f32.mrb[0].mxu0
      %v3025 = vadd.f32 0.0, %v3024
      %v3026 = vpop.f32.mrb[0].mxu0
      %3027 = vmatprep.mubr.bf16.mxu0 0
      %3028 = vmatmul.mubr.bf16.gmra.mrb[0].mxu0 %v2881
      %v3029 = vpop.f32.mrb[0].mxu0
      %v3030 = vadd.f32 0.0, %v3029
      %v3031 = vpop.f32.mrb[0].mxu0
      %v3032 = vpop.f32.mrb[0].mxu0
      %v3033 = vadd.f32 0.0, %v3032
      %v3034 = vpop.f32.mrb[0].mxu0
      %3035 = vmatprep.mubr.bf16.mxu0 0
      %3036 = vmatmul.mubr.bf16.gmra.mrb[0].mxu0 %v2882
      %v3037 = vpop.f32.mrb[0].mxu0
      %v3038 = vadd.f32 0.0, %v3037
      %v3039 = vpop.f32.mrb[0].mxu0
      %v3040 = vpop.f32.mrb[0].mxu0
      %v3041 = vadd.f32 0.0, %v3040
      %v3042 = vpop.f32.mrb[0].mxu0
      %3043 = vmatprep.mubr.bf16.mxu0 0
      %3044 = vmatmul.mubr.bf16.gmra.mrb[0].mxu0 %v2883
      %v3045 = vpop.f32.mrb[0].mxu0
      %v3046 = vadd.f32 0.0, %v3045
      %v3047 = vpop.f32.mrb[0].mxu0
      %v3048 = vpop.f32.mrb[0].mxu0
      %v3049 = vadd.f32 0.0, %v3048
      %v3050 = vpop.f32.mrb[0].mxu0
      %3051 = vmatprep.mubr.bf16.mxu0 0
      %3052 = vmatmul.mubr.bf16.gmra.mrb[0].mxu0 %v2884
      %v3053 = vpop.f32.mrb[0].mxu0
      %v3054 = vadd.f32 0.0, %v3053
      %v3055 = vpop.f32.mrb[0].mxu0
      %v3056 = vpop.f32.mrb[0].mxu0
      %v3057 = vadd.f32 0.0, %v3056
      %v3058 = vpop.f32.mrb[0].mxu0
      %3059 = vmatprep.mubr.bf16.mxu0 0
      %3060 = vmatmul.mubr.bf16.gmra.mrb[0].mxu0 %v2885
      %v3061 = vpop.f32.mrb[0].mxu0
      %v3062 = vadd.f32 0.0, %v3061
      %v3063 = vpop.f32.mrb[0].mxu0
      %v3064 = vpop.f32.mrb[0].mxu0
      %v3065 = vadd.f32 0.0, %v3064
      %v3066 = vpop.f32.mrb[0].mxu0
      %3067 = vmatprep.mubr.bf16.mxu0 0
      %3068 = vmatmul.mubr.bf16.gmra.mrb[0].mxu0 %v2886
      %v3069 = vpop.f32.mrb[0].mxu0
      %v3070 = vadd.f32 0.0, %v3069
      %v3071 = vpop.f32.mrb[0].mxu0
      %v3072 = vpop.f32.mrb[0].mxu0
      %v3073 = vadd.f32 0.0, %v3072
      %v3074 = vpop.f32.mrb[0].mxu0
      %3075 = vdwg.mxu0
      %v3076 = vadd.f32 %v2834, %v2982
      %v3077 = vadd.f32 %v2835, %v2985
      %v3078 = vadd.f32 %v2836, %v2990
      %v3079 = vadd.f32 %v2837, %v2993
      %v3080 = vadd.f32 %v2838, %v2998
      %v3081 = vadd.f32 %v2839, %v3001
      %v3082 = vadd.f32 %v2840, %v3006
      %v3083 = vadd.f32 %v2841, %v3009
      %v3084 = vadd.f32 %v2842, %v3014
      %v3085 = vadd.f32 %v2843, %v3017
      %v3086 = vadd.f32 %v2844, %v3022
      %v3087 = vadd.f32 %v2845, %v3025
      %v3088 = vadd.f32 %v2846, %v3030
      %v3089 = vadd.f32 %v2847, %v3033
      %v3090 = vadd.f32 %v2848, %v3038
      %v3091 = vadd.f32 %v2849, %v3041
      %v3092 = vadd.f32 %v2850, %v3046
      %v3093 = vadd.f32 %v2851, %v3049
      %v3094 = vadd.f32 %v2852, %v3054
      %v3095 = vadd.f32 %v2853, %v3057
      %v3096 = vadd.f32 %v2854, %v3062
      %v3097 = vadd.f32 %v2855, %v3065
      %v3098 = vadd.f32 %v2856, %v3070
      %v3099 = vadd.f32 %v2857, %v3073
      %v3100 = vld [vmem:[%s246 + $0x1c] sm:$0xf]
      %v3101 = vld [vmem:[%s246 + $0x20] sm:$0xf]
      %v3102 = vld [vmem:[%s246 + $0x24] sm:$0xf]
      %v3103 = vld [vmem:[%s246 + $0x28] sm:$0xf]
      %v3104 = vld [vmem:[%s246 + $0x2c] sm:$0xf]
      %v3105 = vld [vmem:[%s246 + $0x30] sm:$0xf]
      %v3106 = vld [vmem:[%s246 + $0x34] sm:$0xf]
      %v3107 = vld [vmem:[%s246 + $0x38] sm:$0xf]
      %v3108 = vld [vmem:[%s246 + $0x3c] sm:$0xf]
      %v3109 = vld [vmem:[%s246 + $0x40] sm:$0xf]
      %v3110 = vld [vmem:[%s246 + $0x44] sm:$0xf]
      %v3111 = vld [vmem:[%s246 + $0x48] sm:$0xf]
      %v3112 = vld [vmem:[%s246 + $0x4c] sm:$0xf]
      %v3113 = vld [vmem:[%s246 + $0x50] sm:$0xf]
      %v3114 = vld [vmem:[%s246 + $0x54] sm:$0xf]
      %v3115 = vld [vmem:[%s246 + $0x58] sm:$0xf]
      %v3116 = vld [vmem:[%s246 + $0x5c] sm:$0xf]
      %v3117 = vld [vmem:[%s246 + $0x60] sm:$0xf]
      %v3118 = vld [vmem:[%s246 + $0x64] sm:$0xf]
      %v3119 = vld [vmem:[%s246 + $0x68] sm:$0xf]
      %v3120 = vld [vmem:[%s246 + $0x6c] sm:$0xf]
      %v3121 = vld [vmem:[%s246 + $0x70] sm:$0xf]
      %v3122 = vld [vmem:[%s246 + $0x74] sm:$0xf]
      %v3123 = vld [vmem:[%s246 + $0x78] sm:$0xf]
      %v3124 = vld [vmem:[%s246 + $0x7c] sm:$0x1]
      %s3125 = scalar_lea.vmem %s2, 512
      %v3126 = vld [vmem:[%s3125] sm:$0xf]
      %v3127 = vld [vmem:[%s3125 + $0x4] sm:$0xf]
      %v3128 = vld [vmem:[%s3125 + $0x8] sm:$0xf]
      %v3129 = vld [vmem:[%s3125 + $0xc] sm:$0xf]
      %v3130 = vld [vmem:[%s3125 + $0x10] sm:$0xf]
      %v3131 = vld [vmem:[%s3125 + $0x14] sm:$0xf]
      %v3132 = vld [vmem:[%s3125 + $0x18] sm:$0xf]
      %v3133 = vld [vmem:[%s3125 + $0x1c] sm:$0xf]
      %v3134 = vld [vmem:[%s3125 + $0x20] sm:$0xf]
      %v3135 = vld [vmem:[%s3125 + $0x24] sm:$0xf]
      %v3136 = vld [vmem:[%s3125 + $0x28] sm:$0xf]
      %v3137 = vld [vmem:[%s3125 + $0x2c] sm:$0xf]
      %v3138 = vld [vmem:[%s3125 + $0x30] sm:$0xf]
      %v3139 = vld [vmem:[%s3125 + $0x34] sm:$0xf]
      %v3140 = vld [vmem:[%s3125 + $0x38] sm:$0xf]
      %v3141 = vld [vmem:[%s3125 + $0x3c] sm:$0xf]
      %v3167 = vunpack.c.l.b16 %v3100
      %v3168 = vunpack.c.l.b16 %v3101
      %v3169 = vunpack.c.l.b16 %v3102
      %v3170 = vunpack.c.l.b16 %v3103
      %v3171 = vunpack.c.l.b16 %v3104
      %v3172 = vunpack.c.l.b16 %v3105
      %v3173 = vunpack.c.l.b16 %v3106
      %v3174 = vunpack.c.l.b16 %v3107
      %v3175 = vunpack.c.l.b16 %v3108
      %v3176 = vunpack.c.l.b16 %v3109
      %v3177 = vunpack.c.l.b16 %v3110
      %v3178 = vunpack.c.l.b16 %v3111
      %v3179 = vunpack.c.l.b16 %v3112
      %v3180 = vunpack.c.l.b16 %v3113
      %v3181 = vunpack.c.l.b16 %v3114
      %v3182 = vunpack.c.l.b16 %v3115
      %v3183 = vunpack.c.l.b16 %v3116
      %v3184 = vunpack.c.l.b16 %v3117
      %v3185 = vunpack.c.l.b16 %v3118
      %v3186 = vunpack.c.l.b16 %v3119
      %v3187 = vunpack.c.l.b16 %v3120
      %v3188 = vunpack.c.l.b16 %v3121
      %v3189 = vunpack.c.l.b16 %v3122
      %v3190 = vunpack.c.l.b16 %v3123
      %v3191 = vunpack.c.l.b16 %v3124
      %v3192 = vpack.c.b16 %v3168, %v3167
      %v3193 = vpack.c.b16 %v3170, %v3169
      %v3194 = vpack.c.b16 %v3172, %v3171
      %v3195 = vpack.c.b16 %v3174, %v3173
      %v3196 = vpack.c.b16 %v3176, %v3175
      %v3197 = vpack.c.b16 %v3178, %v3177
      %v3198 = vpack.c.b16 %v3180, %v3179
      %v3199 = vpack.c.b16 %v3182, %v3181
      %v3200 = vpack.c.b16 %v3184, %v3183
      %v3201 = vpack.c.b16 %v3186, %v3185
      %v3202 = vpack.c.b16 %v3188, %v3187
      %v3203 = vpack.c.b16 %v3190, %v3189
      %v3204 = vpack.c.b16 %v3191, %v3191
      %v3206 = vshrl.u32 %v3192, 16
      %v3208 = vshll.u32 %v3192, 16
      %v3210 = vrot.slane %v3208, 1
      %v3211 = vor.u32 %v3206, %v3210
      %v3213 = vshll.u32 %v3193, 16
      %v3215 = vrot.slane %v3213, 1
      %v3216 = vsel %vm1016, %v3211, %v3215
      %v3217 = vshrl.u32 %v3193, 16
      %v3219 = vor.u32 %v3217, %v3215
      %v3221 = vshll.u32 %v3194, 16
      %v3223 = vrot.slane %v3221, 1
      %v3224 = vsel %vm1016, %v3219, %v3223
      %v3225 = vshrl.u32 %v3194, 16
      %v3227 = vor.u32 %v3225, %v3223
      %v3229 = vshll.u32 %v3195, 16
      %v3231 = vrot.slane %v3229, 1
      %v3232 = vsel %vm1016, %v3227, %v3231
      %v3233 = vshrl.u32 %v3195, 16
      %v3235 = vor.u32 %v3233, %v3231
      %v3237 = vshll.u32 %v3196, 16
      %v3239 = vrot.slane %v3237, 1
      %v3240 = vsel %vm1016, %v3235, %v3239
      %v3241 = vshrl.u32 %v3196, 16
      %v3243 = vor.u32 %v3241, %v3239
      %v3245 = vshll.u32 %v3197, 16
      %v3247 = vrot.slane %v3245, 1
      %v3248 = vsel %vm1016, %v3243, %v3247
      %v3249 = vshrl.u32 %v3197, 16
      %v3251 = vor.u32 %v3249, %v3247
      %v3253 = vshll.u32 %v3198, 16
      %v3255 = vrot.slane %v3253, 1
      %v3256 = vsel %vm1016, %v3251, %v3255
      %v3257 = vshrl.u32 %v3198, 16
      %v3259 = vor.u32 %v3257, %v3255
      %v3261 = vshll.u32 %v3199, 16
      %v3263 = vrot.slane %v3261, 1
      %v3264 = vsel %vm1016, %v3259, %v3263
      %v3265 = vshrl.u32 %v3199, 16
      %v3267 = vor.u32 %v3265, %v3263
      %v3269 = vshll.u32 %v3200, 16
      %v3271 = vrot.slane %v3269, 1
      %v3272 = vsel %vm1016, %v3267, %v3271
      %v3273 = vshrl.u32 %v3200, 16
      %v3275 = vor.u32 %v3273, %v3271
      %v3277 = vshll.u32 %v3201, 16
      %v3279 = vrot.slane %v3277, 1
      %v3280 = vsel %vm1016, %v3275, %v3279
      %v3281 = vshrl.u32 %v3201, 16
      %v3283 = vor.u32 %v3281, %v3279
      %v3285 = vshll.u32 %v3202, 16
      %v3287 = vrot.slane %v3285, 1
      %v3288 = vsel %vm1016, %v3283, %v3287
      %v3289 = vshrl.u32 %v3202, 16
      %v3291 = vor.u32 %v3289, %v3287
      %v3293 = vshll.u32 %v3203, 16
      %v3295 = vrot.slane %v3293, 1
      %v3296 = vsel %vm1016, %v3291, %v3295
      %v3297 = vshrl.u32 %v3203, 16
      %v3299 = vor.u32 %v3297, %v3295
      %v3301 = vshll.u32 %v3204, 16
      %v3303 = vrot.slane %v3301, 1
      %v3304 = vsel %vm1016, %v3299, %v3303
      %v3333 = vunpack.c.l.b16 %v3126
      %v3334 = vunpack.c.l.b16 %v3127
      %v3335 = vunpack.c.l.b16 %v3128
      %v3336 = vunpack.c.l.b16 %v3129
      %v3337 = vunpack.c.l.b16 %v3130
      %v3338 = vunpack.c.l.b16 %v3131
      %v3339 = vunpack.c.l.b16 %v3132
      %v3340 = vunpack.c.l.b16 %v3133
      %v3341 = vunpack.c.l.b16 %v3134
      %v3342 = vunpack.c.l.b16 %v3135
      %v3343 = vunpack.c.l.b16 %v3136
      %v3344 = vunpack.c.l.b16 %v3137
      %v3345 = vunpack.c.l.b16 %v3138
      %v3346 = vunpack.c.l.b16 %v3139
      %v3347 = vunpack.c.l.b16 %v3140
      %v3348 = vunpack.c.l.b16 %v3141
      %v3349 = vpack.c.b16 %v3334, %v3333
      %v3350 = vpack.c.b16 %v3336, %v3335
      %v3351 = vpack.c.b16 %v3338, %v3337
      %v3352 = vpack.c.b16 %v3340, %v3339
      %v3353 = vpack.c.b16 %v3342, %v3341
      %v3354 = vpack.c.b16 %v3344, %v3343
      %v3355 = vpack.c.b16 %v3346, %v3345
      %v3356 = vpack.c.b16 %v3348, %v3347
      %3365 = vmatprep.subr.bf16.mxu0 0
      %3366 = vmatpush1.bf16.msra.mxu0 %v3349
      %3367 = vmatprep.subr.bf16.mxu0 0
      %3368 = vmatpush1.bf16.msra.mxu0 %v3350
      %3369 = vmatprep.subr.bf16.mxu0 0
      %3370 = vmatpush1.bf16.msra.mxu0 %v3351
      %3371 = vmatprep.subr.bf16.mxu0 0
      %3372 = vmatpush1.bf16.msra.mxu0 %v3352
      %3373 = vmatprep.subr.bf16.mxu0 0
      %3374 = vmatpush1.bf16.msra.mxu0 %v3353
      %3375 = vmatprep.subr.bf16.mxu0 0
      %3376 = vmatpush1.bf16.msra.mxu0 %v3354
      %3377 = vmatprep.subr.bf16.mxu0 0
      %3378 = vmatpush1.bf16.msra.mxu0 %v3355
      %3379 = vmatprep.subr.bf16.mxu0 0
      %3380 = vmatpush1.bf16.msra.mxu0 %v3356
      %3381 = vmatprep.subr.bf16.mxu0 0
      %3382 = vmatpush1.bf16.msra.mxu0 0
      %3383 = vmatprep.subr.bf16.mxu0 0
      %3384 = vmatpush1.bf16.msra.mxu0 0
      %3385 = vmatprep.subr.bf16.mxu0 0
      %3386 = vmatpush1.bf16.msra.mxu0 0
      %3387 = vmatprep.subr.bf16.mxu0 0
      %3388 = vmatpush1.bf16.msra.mxu0 0
      %3389 = vmatprep.subr.bf16.mxu0 0
      %3390 = vmatpush1.bf16.msra.mxu0 0
      %3391 = vmatprep.subr.bf16.mxu0 0
      %3392 = vmatpush1.bf16.msra.mxu0 0
      %3393 = vmatprep.subr.bf16.mxu0 0
      %3394 = vmatpush1.bf16.msra.mxu0 0
      %3395 = vmatprep.subr.bf16.mxu0 0
      %3396 = vmatpush1.bf16.msra.mxu0 0
      %3397 = vmatprep.mubr.bf16.mxu0 0
      %3398 = vmatmul.mubr.bf16.gmra.mrb[0].mxu0 %v3216
      %v3399 = vpop.f32.mrb[0].mxu0
      %v3400 = vadd.f32 0.0, %v3399
      %v3401 = vpop.f32.mrb[0].mxu0
      %v3402 = vpop.f32.mrb[0].mxu0
      %v3403 = vadd.f32 0.0, %v3402
      %v3404 = vpop.f32.mrb[0].mxu0
      %3405 = vmatprep.mubr.bf16.mxu0 0
      %3406 = vmatmul.mubr.bf16.gmra.mrb[0].mxu0 %v3224
      %v3407 = vpop.f32.mrb[0].mxu0
      %v3408 = vadd.f32 0.0, %v3407
      %v3409 = vpop.f32.mrb[0].mxu0
      %v3410 = vpop.f32.mrb[0].mxu0
      %v3411 = vadd.f32 0.0, %v3410
      %v3412 = vpop.f32.mrb[0].mxu0
      %3413 = vmatprep.mubr.bf16.mxu0 0
      %3414 = vmatmul.mubr.bf16.gmra.mrb[0].mxu0 %v3232
      %v3415 = vpop.f32.mrb[0].mxu0
      %v3416 = vadd.f32 0.0, %v3415
      %v3417 = vpop.f32.mrb[0].mxu0
      %v3418 = vpop.f32.mrb[0].mxu0
      %v3419 = vadd.f32 0.0, %v3418
      %v3420 = vpop.f32.mrb[0].mxu0
      %3421 = vmatprep.mubr.bf16.mxu0 0
      %3422 = vmatmul.mubr.bf16.gmra.mrb[0].mxu0 %v3240
      %v3423 = vpop.f32.mrb[0].mxu0
      %v3424 = vadd.f32 0.0, %v3423
      %v3425 = vpop.f32.mrb[0].mxu0
      %v3426 = vpop.f32.mrb[0].mxu0
      %v3427 = vadd.f32 0.0, %v3426
      %v3428 = vpop.f32.mrb[0].mxu0
      %3429 = vmatprep.mubr.bf16.mxu0 0
      %3430 = vmatmul.mubr.bf16.gmra.mrb[0].mxu0 %v3248
      %v3431 = vpop.f32.mrb[0].mxu0
      %v3432 = vadd.f32 0.0, %v3431
      %v3433 = vpop.f32.mrb[0].mxu0
      %v3434 = vpop.f32.mrb[0].mxu0
      %v3435 = vadd.f32 0.0, %v3434
      %v3436 = vpop.f32.mrb[0].mxu0
      %3437 = vmatprep.mubr.bf16.mxu0 0
      %3438 = vmatmul.mubr.bf16.gmra.mrb[0].mxu0 %v3256
      %v3439 = vpop.f32.mrb[0].mxu0
      %v3440 = vadd.f32 0.0, %v3439
      %v3441 = vpop.f32.mrb[0].mxu0
      %v3442 = vpop.f32.mrb[0].mxu0
      %v3443 = vadd.f32 0.0, %v3442
      %v3444 = vpop.f32.mrb[0].mxu0
      %3445 = vmatprep.mubr.bf16.mxu0 0
      %3446 = vmatmul.mubr.bf16.gmra.mrb[0].mxu0 %v3264
      %v3447 = vpop.f32.mrb[0].mxu0
      %v3448 = vadd.f32 0.0, %v3447
      %v3449 = vpop.f32.mrb[0].mxu0
      %v3450 = vpop.f32.mrb[0].mxu0
      %v3451 = vadd.f32 0.0, %v3450
      %v3452 = vpop.f32.mrb[0].mxu0
      %3453 = vmatprep.mubr.bf16.mxu0 0
      %3454 = vmatmul.mubr.bf16.gmra.mrb[0].mxu0 %v3272
      %v3455 = vpop.f32.mrb[0].mxu0
      %v3456 = vadd.f32 0.0, %v3455
      %v3457 = vpop.f32.mrb[0].mxu0
      %v3458 = vpop.f32.mrb[0].mxu0
      %v3459 = vadd.f32 0.0, %v3458
      %v3460 = vpop.f32.mrb[0].mxu0
      %3461 = vmatprep.mubr.bf16.mxu0 0
      %3462 = vmatmul.mubr.bf16.gmra.mrb[0].mxu0 %v3280
      %v3463 = vpop.f32.mrb[0].mxu0
      %v3464 = vadd.f32 0.0, %v3463
      %v3465 = vpop.f32.mrb[0].mxu0
      %v3466 = vpop.f32.mrb[0].mxu0
      %v3467 = vadd.f32 0.0, %v3466
      %v3468 = vpop.f32.mrb[0].mxu0
      %3469 = vmatprep.mubr.bf16.mxu0 0
      %3470 = vmatmul.mubr.bf16.gmra.mrb[0].mxu0 %v3288
      %v3471 = vpop.f32.mrb[0].mxu0
      %v3472 = vadd.f32 0.0, %v3471
      %v3473 = vpop.f32.mrb[0].mxu0
      %v3474 = vpop.f32.mrb[0].mxu0
      %v3475 = vadd.f32 0.0, %v3474
      %v3476 = vpop.f32.mrb[0].mxu0
      %3477 = vmatprep.mubr.bf16.mxu0 0
      %3478 = vmatmul.mubr.bf16.gmra.mrb[0].mxu0 %v3296
      %v3479 = vpop.f32.mrb[0].mxu0
      %v3480 = vadd.f32 0.0, %v3479
      %v3481 = vpop.f32.mrb[0].mxu0
      %v3482 = vpop.f32.mrb[0].mxu0
      %v3483 = vadd.f32 0.0, %v3482
      %v3484 = vpop.f32.mrb[0].mxu0
      %3485 = vmatprep.mubr.bf16.mxu0 0
      %3486 = vmatmul.mubr.bf16.gmra.mrb[0].mxu0 %v3304
      %v3487 = vpop.f32.mrb[0].mxu0
      %v3488 = vadd.f32 0.0, %v3487
      %v3489 = vpop.f32.mrb[0].mxu0
      %v3490 = vpop.f32.mrb[0].mxu0
      %v3491 = vadd.f32 0.0, %v3490
      %v3492 = vpop.f32.mrb[0].mxu0
      %3493 = vdwg.mxu0
      %v3494 = vadd.f32 %v3076, %v3400
      %v3495 = vadd.f32 %v3077, %v3403
      %v3496 = vadd.f32 %v3078, %v3408
      %v3497 = vadd.f32 %v3079, %v3411
      %v3498 = vadd.f32 %v3080, %v3416
      %v3499 = vadd.f32 %v3081, %v3419
      %v3500 = vadd.f32 %v3082, %v3424
      %v3501 = vadd.f32 %v3083, %v3427
      %v3502 = vadd.f32 %v3084, %v3432
      %v3503 = vadd.f32 %v3085, %v3435
      %v3504 = vadd.f32 %v3086, %v3440
      %v3505 = vadd.f32 %v3087, %v3443
      %v3506 = vadd.f32 %v3088, %v3448
      %v3507 = vadd.f32 %v3089, %v3451
      %v3508 = vadd.f32 %v3090, %v3456
      %v3509 = vadd.f32 %v3091, %v3459
      %v3510 = vadd.f32 %v3092, %v3464
      %v3511 = vadd.f32 %v3093, %v3467
      %v3512 = vadd.f32 %v3094, %v3472
      %v3513 = vadd.f32 %v3095, %v3475
      %v3514 = vadd.f32 %v3096, %v3480
      %v3515 = vadd.f32 %v3097, %v3483
      %v3516 = vadd.f32 %v3098, %v3488
      %v3517 = vadd.f32 %v3099, %v3491
      %v3519 = vlaneseq
      %v3520 = vshrl.u32 %v3519, 7
      %v3521 = vsub.s32 0, %v3520
      %v3522 = vrot.slane %v257, %v3521
      %v3524 = vadd.f32 %v3494, %v3522
      %v3525 = vadd.f32 %v3495, %v3522
      %v3526 = vadd.f32 %v3496, %v3522
      %v3527 = vadd.f32 %v3497, %v3522
      %v3528 = vadd.f32 %v3498, %v3522
      %v3529 = vadd.f32 %v3499, %v3522
      %v3530 = vadd.f32 %v3500, %v3522
      %v3531 = vadd.f32 %v3501, %v3522
      %v3532 = vadd.f32 %v3502, %v3522
      %v3533 = vadd.f32 %v3503, %v3522
      %v3534 = vadd.f32 %v3504, %v3522
      %v3535 = vadd.f32 %v3505, %v3522
      %v3536 = vadd.f32 %v3506, %v3522
      %v3537 = vadd.f32 %v3507, %v3522
      %v3538 = vadd.f32 %v3508, %v3522
      %v3539 = vadd.f32 %v3509, %v3522
      %v3540 = vadd.f32 %v3510, %v3522
      %v3541 = vadd.f32 %v3511, %v3522
      %v3542 = vadd.f32 %v3512, %v3522
      %v3543 = vadd.f32 %v3513, %v3522
      %v3544 = vadd.f32 %v3514, %v3522
      %v3545 = vadd.f32 %v3515, %v3522
      %v3546 = vadd.f32 %v3516, %v3522
      %v3547 = vadd.f32 %v3517, %v3522
      %v3548 = vmax.f32 %v3524, 0.0
      %v3549 = vmax.f32 %v3525, 0.0
      %v3550 = vmax.f32 %v3526, 0.0
      %v3551 = vmax.f32 %v3527, 0.0
      %v3552 = vmax.f32 %v3528, 0.0
      %v3553 = vmax.f32 %v3529, 0.0
      %v3554 = vmax.f32 %v3530, 0.0
      %v3555 = vmax.f32 %v3531, 0.0
      %v3556 = vmax.f32 %v3532, 0.0
      %v3557 = vmax.f32 %v3533, 0.0
      %v3558 = vmax.f32 %v3534, 0.0
      %v3559 = vmax.f32 %v3535, 0.0
      %v3560 = vmax.f32 %v3536, 0.0
      %v3561 = vmax.f32 %v3537, 0.0
      %v3562 = vmax.f32 %v3538, 0.0
      %v3563 = vmax.f32 %v3539, 0.0
      %v3564 = vmax.f32 %v3540, 0.0
      %v3565 = vmax.f32 %v3541, 0.0
      %v3566 = vmax.f32 %v3542, 0.0
      %v3567 = vmax.f32 %v3543, 0.0
      %v3568 = vmax.f32 %v3544, 0.0
      %v3569 = vmax.f32 %v3545, 0.0
      %v3570 = vmax.f32 %v3546, 0.0
      %v3571 = vmax.f32 %v3547, 0.0
      %3573 = vset.pattern.permute.xlu0 0
      %3574 = vperm.xlu0 %3573, %v259
      %v3575 = vpop.permute.xlu0 %3574
      %3578 = vset.pattern.permute.xlu0 0
      %3579 = vperm.xlu0 %3578, %v260
      %v3580 = vpop.permute.xlu0 %3579
      %3583 = vset.pattern.permute.xlu0 0
      %3584 = vperm.xlu0 %3583, %v261
      %v3585 = vpop.permute.xlu0 %3584
      %3588 = vset.pattern.permute.xlu0 0
      %3589 = vperm.xlu0 %3588, %v262
      %v3590 = vpop.permute.xlu0 %3589
      %3593 = vset.pattern.permute.xlu0 0
      %3594 = vperm.xlu0 %3593, %v263
      %v3595 = vpop.permute.xlu0 %3594
      %3598 = vset.pattern.permute.xlu0 0
      %3599 = vperm.xlu0 %3598, %v264
      %v3600 = vpop.permute.xlu0 %3599
      %3603 = vset.pattern.permute.xlu0 0
      %3604 = vperm.xlu0 %3603, %v265
      %v3605 = vpop.permute.xlu0 %3604
      %3608 = vset.pattern.permute.xlu0 0
      %3609 = vperm.xlu0 %3608, %v266
      %v3610 = vpop.permute.xlu0 %3609
      %3613 = vset.pattern.permute.xlu0 0
      %3614 = vperm.xlu0 %3613, %v267
      %v3615 = vpop.permute.xlu0 %3614
      %3618 = vset.pattern.permute.xlu0 0
      %3619 = vperm.xlu0 %3618, %v268
      %v3620 = vpop.permute.xlu0 %3619
      %3623 = vset.pattern.permute.xlu0 0
      %3624 = vperm.xlu0 %3623, %v269
      %v3625 = vpop.permute.xlu0 %3624
      %3628 = vset.pattern.permute.xlu0 0
      %3629 = vperm.xlu0 %3628, %v270
      %v3630 = vpop.permute.xlu0 %3629
      %3633 = vset.pattern.permute.xlu0 0
      %3634 = vperm.xlu0 %3633, %v271
      %v3635 = vpop.permute.xlu0 %3634
      %3638 = vset.pattern.permute.xlu0 0
      %3639 = vperm.xlu0 %3638, %v272
      %v3640 = vpop.permute.xlu0 %3639
      %3643 = vset.pattern.permute.xlu0 0
      %3644 = vperm.xlu0 %3643, %v273
      %v3645 = vpop.permute.xlu0 %3644
      %3648 = vset.pattern.permute.xlu0 0
      %3649 = vperm.xlu0 %3648, %v274
      %v3650 = vpop.permute.xlu0 %3649
      %3653 = vset.pattern.permute.xlu0 0
      %3654 = vperm.xlu0 %3653, %v275
      %v3655 = vpop.permute.xlu0 %3654
      %3658 = vset.pattern.permute.xlu0 0
      %3659 = vperm.xlu0 %3658, %v276
      %v3660 = vpop.permute.xlu0 %3659
      %3663 = vset.pattern.permute.xlu0 0
      %3664 = vperm.xlu0 %3663, %v277
      %v3665 = vpop.permute.xlu0 %3664
      %3668 = vset.pattern.permute.xlu0 0
      %3669 = vperm.xlu0 %3668, %v278
      %v3670 = vpop.permute.xlu0 %3669
      %3673 = vset.pattern.permute.xlu0 0
      %3674 = vperm.xlu0 %3673, %v279
      %v3675 = vpop.permute.xlu0 %3674
      %3678 = vset.pattern.permute.xlu0 0
      %3679 = vperm.xlu0 %3678, %v280
      %v3680 = vpop.permute.xlu0 %3679
      %3683 = vset.pattern.permute.xlu0 0
      %3684 = vperm.xlu0 %3683, %v281
      %v3685 = vpop.permute.xlu0 %3684
      %3688 = vset.pattern.permute.xlu0 0
      %3689 = vperm.xlu0 %3688, %v282
      %v3690 = vpop.permute.xlu0 %3689
      %v3692 = vmul.f32 %v3548, %v3575
      %v3693 = vmul.f32 %v3549, %v3580
      %v3694 = vmul.f32 %v3550, %v3585
      %v3695 = vmul.f32 %v3551, %v3590
      %v3696 = vmul.f32 %v3552, %v3595
      %v3697 = vmul.f32 %v3553, %v3600
      %v3698 = vmul.f32 %v3554, %v3605
      %v3699 = vmul.f32 %v3555, %v3610
      %v3700 = vmul.f32 %v3556, %v3615
      %v3701 = vmul.f32 %v3557, %v3620
      %v3702 = vmul.f32 %v3558, %v3625
      %v3703 = vmul.f32 %v3559, %v3630
      %v3704 = vmul.f32 %v3560, %v3635
      %v3705 = vmul.f32 %v3561, %v3640
      %v3706 = vmul.f32 %v3562, %v3645
      %v3707 = vmul.f32 %v3563, %v3650
      %v3708 = vmul.f32 %v3564, %v3655
      %v3709 = vmul.f32 %v3565, %v3660
      %v3710 = vmul.f32 %v3566, %v3665
      %v3711 = vmul.f32 %v3567, %v3670
      %v3712 = vmul.f32 %v3568, %v3675
      %v3713 = vmul.f32 %v3569, %v3680
      %v3714 = vmul.f32 %v3570, %v3685
      %v3715 = vmul.f32 %v3571, %v3690
      %v3716 = vpack.c.bf16 %v3693, %v3692
      %v3717 = vpack.c.bf16 %v3695, %v3694
      %v3718 = vpack.c.bf16 %v3697, %v3696
      %v3719 = vpack.c.bf16 %v3699, %v3698
      %v3720 = vpack.c.bf16 %v3701, %v3700
      %v3721 = vpack.c.bf16 %v3703, %v3702
      %v3722 = vpack.c.bf16 %v3705, %v3704
      %v3723 = vpack.c.bf16 %v3707, %v3706
      %v3724 = vpack.c.bf16 %v3709, %v3708
      %v3725 = vpack.c.bf16 %v3711, %v3710
      %v3726 = vpack.c.bf16 %v3713, %v3712
      %v3727 = vpack.c.bf16 %v3715, %v3714
      %3728 = vst [vmem:[#allocation2 + $0x10] sm:$0xff] %v3716
      %3729 = vst [vmem:[#allocation2 + $0x18] sm:$0xff] %v3717
      %3730 = vst [vmem:[#allocation2 + $0x20] sm:$0xff] %v3718
      %3731 = vst [vmem:[#allocation2 + $0x28] sm:$0xff] %v3719
      %3732 = vst [vmem:[#allocation2 + $0x30] sm:$0xff] %v3720
      %3733 = vst [vmem:[#allocation2 + $0x38] sm:$0xff] %v3721
      %3734 = vst [vmem:[#allocation2 + $0x40] sm:$0xff] %v3722
      %3735 = vst [vmem:[#allocation2 + $0x48] sm:$0xff] %v3723
      %3736 = vst [vmem:[#allocation2 + $0x50] sm:$0xff] %v3724
      %3737 = vst [vmem:[#allocation2 + $0x58] sm:$0xff] %v3725
      %3738 = vst [vmem:[#allocation2 + $0x60] sm:$0xff] %v3726
      %3739 = vst [vmem:[#allocation2 + $0x68] sm:$0xff] %v3727
      %v3740 = vld [vmem:[%s246 + $0x60] sm:$0x8]
      %v3741 = vld [vmem:[%s246 + $0x64] sm:$0xf]
      %v3742 = vld [vmem:[%s246 + $0x68] sm:$0xf]
      %v3743 = vld [vmem:[%s246 + $0x6c] sm:$0xf]
      %v3744 = vld [vmem:[%s246 + $0x70] sm:$0xf]
      %v3745 = vld [vmem:[%s246 + $0x74] sm:$0xf]
      %v3746 = vld [vmem:[%s246 + $0x78] sm:$0xf]
      %v3747 = vld [vmem:[%s246 + $0x7c] sm:$0xf]
      %v3748 = vld [vmem:[%s246 + $0x80] sm:$0xf]
      %v3749 = vld [vmem:[%s246 + $0x84] sm:$0xf]
      %v3750 = vld [vmem:[%s246 + $0x88] sm:$0xf]
      %v3751 = vld [vmem:[%s246 + $0x8c] sm:$0xf]
      %v3752 = vld [vmem:[%s246 + $0x90] sm:$0xf]
      %v3753 = vld [vmem:[%s246 + $0x94] sm:$0xf]
      %v3754 = vld [vmem:[%s246 + $0x98] sm:$0xf]
      %v3755 = vld [vmem:[%s246 + $0x9c] sm:$0xf]
      %v3756 = vld [vmem:[%s246 + $0xa0] sm:$0xf]
      %v3757 = vld [vmem:[%s246 + $0xa4] sm:$0xf]
      %v3758 = vld [vmem:[%s246 + $0xa8] sm:$0xf]
      %v3759 = vld [vmem:[%s246 + $0xac] sm:$0xf]
      %v3760 = vld [vmem:[%s246 + $0xb0] sm:$0xf]
      %v3761 = vld [vmem:[%s246 + $0xb4] sm:$0xf]
      %v3762 = vld [vmem:[%s246 + $0xb8] sm:$0xf]
      %v3763 = vld [vmem:[%s246 + $0xbc] sm:$0xf]
      %v3764 = vld [vmem:[%s246 + $0xc0] sm:$0xf]
      %v3765 = vld [vmem:[%s2] sm:$0xf]
      %v3766 = vld [vmem:[%s2 + $0x4] sm:$0xf]
      %v3767 = vld [vmem:[%s2 + $0x8] sm:$0xf]
      %v3768 = vld [vmem:[%s2 + $0xc] sm:$0xf]
      %v3769 = vld [vmem:[%s2 + $0x10] sm:$0xf]
      %v3770 = vld [vmem:[%s2 + $0x14] sm:$0xf]
      %v3771 = vld [vmem:[%s2 + $0x18] sm:$0xf]
      %v3772 = vld [vmem:[%s2 + $0x1c] sm:$0xf]
      %v3773 = vld [vmem:[%s2 + $0x20] sm:$0xf]
      %v3774 = vld [vmem:[%s2 + $0x24] sm:$0xf]
      %v3775 = vld [vmem:[%s2 + $0x28] sm:$0xf]
      %v3776 = vld [vmem:[%s2 + $0x2c] sm:$0xf]
      %v3777 = vld [vmem:[%s2 + $0x30] sm:$0xf]
      %v3778 = vld [vmem:[%s2 + $0x34] sm:$0xf]
      %v3779 = vld [vmem:[%s2 + $0x38] sm:$0xf]
      %v3780 = vld [vmem:[%s2 + $0x3c] sm:$0xf]
      %v3781 = vld [vmem:[%s324] sm:$0xf]
      %v3782 = vld [vmem:[%s324 + $0x4] sm:$0xf]
      %v3783 = vld [vmem:[%s324 + $0x8] sm:$0xf]
      %v3784 = vld [vmem:[%s324 + $0xc] sm:$0xf]
      %v3785 = vld [vmem:[%s324 + $0x10] sm:$0xf]
      %v3786 = vld [vmem:[%s324 + $0x14] sm:$0xf]
      %v3787 = vld [vmem:[%s324 + $0x18] sm:$0xf]
      %v3788 = vld [vmem:[%s324 + $0x1c] sm:$0xf]
      %v3789 = vld [vmem:[%s324 + $0x20] sm:$0xf]
      %v3790 = vld [vmem:[%s324 + $0x24] sm:$0xf]
      %v3791 = vld [vmem:[%s324 + $0x28] sm:$0xf]
      %v3792 = vld [vmem:[%s324 + $0x2c] sm:$0xf]
      %v3793 = vld [vmem:[%s324 + $0x30] sm:$0xf]
      %v3794 = vld [vmem:[%s324 + $0x34] sm:$0xf]
      %v3795 = vld [vmem:[%s324 + $0x38] sm:$0xf]
      %v3796 = vld [vmem:[%s324 + $0x3c] sm:$0xf]
      %v3821 = vunpack.c.l.b16 %v3741
      %v3822 = vunpack.c.l.b16 %v3742
      %v3823 = vunpack.c.l.b16 %v3743
      %v3824 = vunpack.c.l.b16 %v3744
      %v3825 = vunpack.c.l.b16 %v3745
      %v3826 = vunpack.c.l.b16 %v3746
      %v3827 = vunpack.c.l.b16 %v3747
      %v3828 = vunpack.c.l.b16 %v3748
      %v3829 = vunpack.c.l.b16 %v3749
      %v3830 = vunpack.c.l.b16 %v3750
      %v3831 = vunpack.c.l.b16 %v3751
      %v3832 = vunpack.c.l.b16 %v3752
      %v3833 = vunpack.c.l.b16 %v3753
      %v3834 = vunpack.c.l.b16 %v3754
      %v3835 = vunpack.c.l.b16 %v3755
      %v3836 = vunpack.c.l.b16 %v3756
      %v3837 = vunpack.c.l.b16 %v3757
      %v3838 = vunpack.c.l.b16 %v3758
      %v3839 = vunpack.c.l.b16 %v3759
      %v3840 = vunpack.c.l.b16 %v3760
      %v3841 = vunpack.c.l.b16 %v3761
      %v3842 = vunpack.c.l.b16 %v3762
      %v3843 = vunpack.c.l.b16 %v3763
      %v3844 = vunpack.c.l.b16 %v3764
      %v3845 = vpack.c.b16 %v3822, %v3821
      %v3846 = vpack.c.b16 %v3824, %v3823
      %v3847 = vpack.c.b16 %v3826, %v3825
      %v3848 = vpack.c.b16 %v3828, %v3827
      %v3849 = vpack.c.b16 %v3830, %v3829
      %v3850 = vpack.c.b16 %v3832, %v3831
      %v3851 = vpack.c.b16 %v3834, %v3833
      %v3852 = vpack.c.b16 %v3836, %v3835
      %v3853 = vpack.c.b16 %v3838, %v3837
      %v3854 = vpack.c.b16 %v3840, %v3839
      %v3855 = vpack.c.b16 %v3842, %v3841
      %v3856 = vpack.c.b16 %v3844, %v3843
      %v3885 = vunpack.c.l.b16 %v3781
      %v3886 = vunpack.c.l.b16 %v3782
      %v3887 = vunpack.c.l.b16 %v3783
      %v3888 = vunpack.c.l.b16 %v3784
      %v3889 = vunpack.c.l.b16 %v3785
      %v3890 = vunpack.c.l.b16 %v3786
      %v3891 = vunpack.c.l.b16 %v3787
      %v3892 = vunpack.c.l.b16 %v3788
      %v3893 = vunpack.c.l.b16 %v3789
      %v3894 = vunpack.c.l.b16 %v3790
      %v3895 = vunpack.c.l.b16 %v3791
      %v3896 = vunpack.c.l.b16 %v3792
      %v3897 = vunpack.c.l.b16 %v3793
      %v3898 = vunpack.c.l.b16 %v3794
      %v3899 = vunpack.c.l.b16 %v3795
      %v3900 = vunpack.c.l.b16 %v3796
      %v3901 = vpack.c.b16 %v3886, %v3885
      %v3902 = vpack.c.b16 %v3888, %v3887
      %v3903 = vpack.c.b16 %v3890, %v3889
      %v3904 = vpack.c.b16 %v3892, %v3891
      %v3905 = vpack.c.b16 %v3894, %v3893
      %v3906 = vpack.c.b16 %v3896, %v3895
      %v3907 = vpack.c.b16 %v3898, %v3897
      %v3908 = vpack.c.b16 %v3900, %v3899
      %3917 = vmatprep.subr.bf16.mxu0 0
      %3918 = vmatpush1.bf16.msra.mxu0 %v3901
      %3919 = vmatprep.subr.bf16.mxu0 0
      %3920 = vmatpush1.bf16.msra.mxu0 %v3902
      %3921 = vmatprep.subr.bf16.mxu0 0
      %3922 = vmatpush1.bf16.msra.mxu0 %v3903
      %3923 = vmatprep.subr.bf16.mxu0 0
      %3924 = vmatpush1.bf16.msra.mxu0 %v3904
      %3925 = vmatprep.subr.bf16.mxu0 0
      %3926 = vmatpush1.bf16.msra.mxu0 %v3905
      %3927 = vmatprep.subr.bf16.mxu0 0
      %3928 = vmatpush1.bf16.msra.mxu0 %v3906
      %3929 = vmatprep.subr.bf16.mxu0 0
      %3930 = vmatpush1.bf16.msra.mxu0 %v3907
      %3931 = vmatprep.subr.bf16.mxu0 0
      %3932 = vmatpush1.bf16.msra.mxu0 %v3908
      %3933 = vmatprep.subr.bf16.mxu0 0
      %3934 = vmatpush1.bf16.msra.mxu0 0
      %3935 = vmatprep.subr.bf16.mxu0 0
      %3936 = vmatpush1.bf16.msra.mxu0 0
      %3937 = vmatprep.subr.bf16.mxu0 0
      %3938 = vmatpush1.bf16.msra.mxu0 0
      %3939 = vmatprep.subr.bf16.mxu0 0
      %3940 = vmatpush1.bf16.msra.mxu0 0
      %3941 = vmatprep.subr.bf16.mxu0 0
      %3942 = vmatpush1.bf16.msra.mxu0 0
      %3943 = vmatprep.subr.bf16.mxu0 0
      %3944 = vmatpush1.bf16.msra.mxu0 0
      %3945 = vmatprep.subr.bf16.mxu0 0
      %3946 = vmatpush1.bf16.msra.mxu0 0
      %3947 = vmatprep.subr.bf16.mxu0 0
      %3948 = vmatpush1.bf16.msra.mxu0 0
      %3949 = vmatprep.mubr.bf16.mxu0 0
      %3950 = vmatmul.mubr.bf16.gmra.mrb[0].mxu0 %v3845
      %v3951 = vpop.f32.mrb[0].mxu0
      %v3952 = vadd.f32 0.0, %v3951
      %v3953 = vpop.f32.mrb[0].mxu0
      %v3954 = vpop.f32.mrb[0].mxu0
      %v3955 = vadd.f32 0.0, %v3954
      %v3956 = vpop.f32.mrb[0].mxu0
      %3957 = vmatprep.mubr.bf16.mxu0 0
      %3958 = vmatmul.mubr.bf16.gmra.mrb[0].mxu0 %v3846
      %v3959 = vpop.f32.mrb[0].mxu0
      %v3960 = vadd.f32 0.0, %v3959
      %v3961 = vpop.f32.mrb[0].mxu0
      %v3962 = vpop.f32.mrb[0].mxu0
      %v3963 = vadd.f32 0.0, %v3962
      %v3964 = vpop.f32.mrb[0].mxu0
      %3965 = vmatprep.mubr.bf16.mxu0 0
      %3966 = vmatmul.mubr.bf16.gmra.mrb[0].mxu0 %v3847
      %v3967 = vpop.f32.mrb[0].mxu0
      %v3968 = vadd.f32 0.0, %v3967
      %v3969 = vpop.f32.mrb[0].mxu0
      %v3970 = vpop.f32.mrb[0].mxu0
      %v3971 = vadd.f32 0.0, %v3970
      %v3972 = vpop.f32.mrb[0].mxu0
      %3973 = vmatprep.mubr.bf16.mxu0 0
      %3974 = vmatmul.mubr.bf16.gmra.mrb[0].mxu0 %v3848
      %v3975 = vpop.f32.mrb[0].mxu0
      %v3976 = vadd.f32 0.0, %v3975
      %v3977 = vpop.f32.mrb[0].mxu0
      %v3978 = vpop.f32.mrb[0].mxu0
      %v3979 = vadd.f32 0.0, %v3978
      %v3980 = vpop.f32.mrb[0].mxu0
      %3981 = vmatprep.mubr.bf16.mxu0 0
      %3982 = vmatmul.mubr.bf16.gmra.mrb[0].mxu0 %v3849
      %v3983 = vpop.f32.mrb[0].mxu0
      %v3984 = vadd.f32 0.0, %v3983
      %v3985 = vpop.f32.mrb[0].mxu0
      %v3986 = vpop.f32.mrb[0].mxu0
      %v3987 = vadd.f32 0.0, %v3986
      %v3988 = vpop.f32.mrb[0].mxu0
      %3989 = vmatprep.mubr.bf16.mxu0 0
      %3990 = vmatmul.mubr.bf16.gmra.mrb[0].mxu0 %v3850
      %v3991 = vpop.f32.mrb[0].mxu0
      %v3992 = vadd.f32 0.0, %v3991
      %v3993 = vpop.f32.mrb[0].mxu0
      %v3994 = vpop.f32.mrb[0].mxu0
      %v3995 = vadd.f32 0.0, %v3994
      %v3996 = vpop.f32.mrb[0].mxu0
      %3997 = vmatprep.mubr.bf16.mxu0 0
      %3998 = vmatmul.mubr.bf16.gmra.mrb[0].mxu0 %v3851
      %v3999 = vpop.f32.mrb[0].mxu0
      %v4000 = vadd.f32 0.0, %v3999
      %v4001 = vpop.f32.mrb[0].mxu0
      %v4002 = vpop.f32.mrb[0].mxu0
      %v4003 = vadd.f32 0.0, %v4002
      %v4004 = vpop.f32.mrb[0].mxu0
      %4005 = vmatprep.mubr.bf16.mxu0 0
      %4006 = vmatmul.mubr.bf16.gmra.mrb[0].mxu0 %v3852
      %v4007 = vpop.f32.mrb[0].mxu0
      %v4008 = vadd.f32 0.0, %v4007
      %v4009 = vpop.f32.mrb[0].mxu0
      %v4010 = vpop.f32.mrb[0].mxu0
      %v4011 = vadd.f32 0.0, %v4010
      %v4012 = vpop.f32.mrb[0].mxu0
      %4013 = vmatprep.mubr.bf16.mxu0 0
      %4014 = vmatmul.mubr.bf16.gmra.mrb[0].mxu0 %v3853
      %v4015 = vpop.f32.mrb[0].mxu0
      %v4016 = vadd.f32 0.0, %v4015
      %v4017 = vpop.f32.mrb[0].mxu0
      %v4018 = vpop.f32.mrb[0].mxu0
      %v4019 = vadd.f32 0.0, %v4018
      %v4020 = vpop.f32.mrb[0].mxu0
      %4021 = vmatprep.mubr.bf16.mxu0 0
      %4022 = vmatmul.mubr.bf16.gmra.mrb[0].mxu0 %v3854
      %v4023 = vpop.f32.mrb[0].mxu0
      %v4024 = vadd.f32 0.0, %v4023
      %v4025 = vpop.f32.mrb[0].mxu0
      %v4026 = vpop.f32.mrb[0].mxu0
      %v4027 = vadd.f32 0.0, %v4026
      %v4028 = vpop.f32.mrb[0].mxu0
      %4029 = vmatprep.mubr.bf16.mxu0 0
      %4030 = vmatmul.mubr.bf16.gmra.mrb[0].mxu0 %v3855
      %v4031 = vpop.f32.mrb[0].mxu0
      %v4032 = vadd.f32 0.0, %v4031
      %v4033 = vpop.f32.mrb[0].mxu0
      %v4034 = vpop.f32.mrb[0].mxu0
      %v4035 = vadd.f32 0.0, %v4034
      %v4036 = vpop.f32.mrb[0].mxu0
      %4037 = vmatprep.mubr.bf16.mxu0 0
      %4038 = vmatmul.mubr.bf16.gmra.mrb[0].mxu0 %v3856
      %v4039 = vpop.f32.mrb[0].mxu0
      %v4040 = vadd.f32 0.0, %v4039
      %v4041 = vpop.f32.mrb[0].mxu0
      %v4042 = vpop.f32.mrb[0].mxu0
      %v4043 = vadd.f32 0.0, %v4042
      %v4044 = vpop.f32.mrb[0].mxu0
      %4045 = vdwg.mxu0
      %v4047 = vunpack.c.l.b16 %v3740
      %v4048 = vpack.c.b16 %v3821, %v4047
      %v4049 = vpack.c.b16 %v3823, %v3822
      %v4050 = vpack.c.b16 %v3825, %v3824
      %v4051 = vpack.c.b16 %v3827, %v3826
      %v4052 = vpack.c.b16 %v3829, %v3828
      %v4053 = vpack.c.b16 %v3831, %v3830
      %v4054 = vpack.c.b16 %v3833, %v3832
      %v4055 = vpack.c.b16 %v3835, %v3834
      %v4056 = vpack.c.b16 %v3837, %v3836
      %v4057 = vpack.c.b16 %v3839, %v3838
      %v4058 = vpack.c.b16 %v3841, %v3840
      %v4059 = vpack.c.b16 %v3843, %v3842
      %v4060 = vpack.c.b16 %v3844, %v3844
      %v4062 = vshrl.u32 %v4048, 16
      %v4064 = vrot.slane %v4062, 3
      %v4065 = vshll.u32 %v4048, 16
      %v4067 = vrot.slane %v4065, 4
      %v4068 = vor.u32 %v4064, %v4067
      %v4070 = vshrl.u32 %v4049, 16
      %v4072 = vrot.slane %v4070, 3
      %v4073 = vshll.u32 %v4049, 16
      %v4075 = vrot.slane %v4073, 4
      %v4076 = vor.u32 %v4072, %v4075
      %v4077 = vsel %vm605, %v4068, %v4076
      %v4079 = vshrl.u32 %v4050, 16
      %v4081 = vrot.slane %v4079, 3
      %v4082 = vshll.u32 %v4050, 16
      %v4084 = vrot.slane %v4082, 4
      %v4085 = vor.u32 %v4081, %v4084
      %v4086 = vsel %vm605, %v4076, %v4085
      %v4088 = vshrl.u32 %v4051, 16
      %v4090 = vrot.slane %v4088, 3
      %v4091 = vshll.u32 %v4051, 16
      %v4093 = vrot.slane %v4091, 4
      %v4094 = vor.u32 %v4090, %v4093
      %v4095 = vsel %vm605, %v4085, %v4094
      %v4097 = vshrl.u32 %v4052, 16
      %v4099 = vrot.slane %v4097, 3
      %v4100 = vshll.u32 %v4052, 16
      %v4102 = vrot.slane %v4100, 4
      %v4103 = vor.u32 %v4099, %v4102
      %v4104 = vsel %vm605, %v4094, %v4103
      %v4106 = vshrl.u32 %v4053, 16
      %v4108 = vrot.slane %v4106, 3
      %v4109 = vshll.u32 %v4053, 16
      %v4111 = vrot.slane %v4109, 4
      %v4112 = vor.u32 %v4108, %v4111
      %v4113 = vsel %vm605, %v4103, %v4112
      %v4115 = vshrl.u32 %v4054, 16
      %v4117 = vrot.slane %v4115, 3
      %v4118 = vshll.u32 %v4054, 16
      %v4120 = vrot.slane %v4118, 4
      %v4121 = vor.u32 %v4117, %v4120
      %v4122 = vsel %vm605, %v4112, %v4121
      %v4124 = vshrl.u32 %v4055, 16
      %v4126 = vrot.slane %v4124, 3
      %v4127 = vshll.u32 %v4055, 16
      %v4129 = vrot.slane %v4127, 4
      %v4130 = vor.u32 %v4126, %v4129
      %v4131 = vsel %vm605, %v4121, %v4130
      %v4133 = vshrl.u32 %v4056, 16
      %v4135 = vrot.slane %v4133, 3
      %v4136 = vshll.u32 %v4056, 16
      %v4138 = vrot.slane %v4136, 4
      %v4139 = vor.u32 %v4135, %v4138
      %v4140 = vsel %vm605, %v4130, %v4139
      %v4142 = vshrl.u32 %v4057, 16
      %v4144 = vrot.slane %v4142, 3
      %v4145 = vshll.u32 %v4057, 16
      %v4147 = vrot.slane %v4145, 4
      %v4148 = vor.u32 %v4144, %v4147
      %v4149 = vsel %vm605, %v4139, %v4148
      %v4151 = vshrl.u32 %v4058, 16
      %v4153 = vrot.slane %v4151, 3
      %v4154 = vshll.u32 %v4058, 16
      %v4156 = vrot.slane %v4154, 4
      %v4157 = vor.u32 %v4153, %v4156
      %v4158 = vsel %vm605, %v4148, %v4157
      %v4160 = vshrl.u32 %v4059, 16
      %v4162 = vrot.slane %v4160, 3
      %v4163 = vshll.u32 %v4059, 16
      %v4165 = vrot.slane %v4163, 4
      %v4166 = vor.u32 %v4162, %v4165
      %v4167 = vsel %vm605, %v4157, %v4166
      %v4169 = vshrl.u32 %v4060, 16
      %v4171 = vrot.slane %v4169, 3
      %v4172 = vshll.u32 %v4060, 16
      %v4174 = vrot.slane %v4172, 4
      %v4175 = vor.u32 %v4171, %v4174
      %v4176 = vsel %vm605, %v4166, %v4175
      %v4205 = vunpack.c.l.b16 %v3765
      %v4206 = vunpack.c.l.b16 %v3766
      %v4207 = vunpack.c.l.b16 %v3767
      %v4208 = vunpack.c.l.b16 %v3768
      %v4209 = vunpack.c.l.b16 %v3769
      %v4210 = vunpack.c.l.b16 %v3770
      %v4211 = vunpack.c.l.b16 %v3771
      %v4212 = vunpack.c.l.b16 %v3772
      %v4213 = vunpack.c.l.b16 %v3773
      %v4214 = vunpack.c.l.b16 %v3774
      %v4215 = vunpack.c.l.b16 %v3775
      %v4216 = vunpack.c.l.b16 %v3776
      %v4217 = vunpack.c.l.b16 %v3777
      %v4218 = vunpack.c.l.b16 %v3778
      %v4219 = vunpack.c.l.b16 %v3779
      %v4220 = vunpack.c.l.b16 %v3780
      %v4221 = vpack.c.b16 %v4206, %v4205
      %v4222 = vpack.c.b16 %v4208, %v4207
      %v4223 = vpack.c.b16 %v4210, %v4209
      %v4224 = vpack.c.b16 %v4212, %v4211
      %v4225 = vpack.c.b16 %v4214, %v4213
      %v4226 = vpack.c.b16 %v4216, %v4215
      %v4227 = vpack.c.b16 %v4218, %v4217
      %v4228 = vpack.c.b16 %v4220, %v4219
      %4237 = vmatprep.subr.bf16.mxu0 0
      %4238 = vmatpush1.bf16.msra.mxu0 %v4221
      %4239 = vmatprep.subr.bf16.mxu0 0
      %4240 = vmatpush1.bf16.msra.mxu0 %v4222
      %4241 = vmatprep.subr.bf16.mxu0 0
      %4242 = vmatpush1.bf16.msra.mxu0 %v4223
      %4243 = vmatprep.subr.bf16.mxu0 0
      %4244 = vmatpush1.bf16.msra.mxu0 %v4224
      %4245 = vmatprep.subr.bf16.mxu0 0
      %4246 = vmatpush1.bf16.msra.mxu0 %v4225
      %4247 = vmatprep.subr.bf16.mxu0 0
      %4248 = vmatpush1.bf16.msra.mxu0 %v4226
      %4249 = vmatprep.subr.bf16.mxu0 0
      %4250 = vmatpush1.bf16.msra.mxu0 %v4227
      %4251 = vmatprep.subr.bf16.mxu0 0
      %4252 = vmatpush1.bf16.msra.mxu0 %v4228
      %4253 = vmatprep.subr.bf16.mxu0 0
      %4254 = vmatpush1.bf16.msra.mxu0 0
      %4255 = vmatprep.subr.bf16.mxu0 0
      %4256 = vmatpush1.bf16.msra.mxu0 0
      %4257 = vmatprep.subr.bf16.mxu0 0
      %4258 = vmatpush1.bf16.msra.mxu0 0
      %4259 = vmatprep.subr.bf16.mxu0 0
      %4260 = vmatpush1.bf16.msra.mxu0 0
      %4261 = vmatprep.subr.bf16.mxu0 0
      %4262 = vmatpush1.bf16.msra.mxu0 0
      %4263 = vmatprep.subr.bf16.mxu0 0
      %4264 = vmatpush1.bf16.msra.mxu0 0
      %4265 = vmatprep.subr.bf16.mxu0 0
      %4266 = vmatpush1.bf16.msra.mxu0 0
      %4267 = vmatprep.subr.bf16.mxu0 0
      %4268 = vmatpush1.bf16.msra.mxu0 0
      %4269 = vmatprep.mubr.bf16.mxu0 0
      %4270 = vmatmul.mubr.bf16.gmra.mrb[0].mxu0 %v4077
      %v4271 = vpop.f32.mrb[0].mxu0
      %v4272 = vadd.f32 %v3952, %v4271
      %v4273 = vpop.f32.mrb[0].mxu0
      %v4274 = vpop.f32.mrb[0].mxu0
      %v4275 = vadd.f32 %v3955, %v4274
      %v4276 = vpop.f32.mrb[0].mxu0
      %4277 = vmatprep.mubr.bf16.mxu0 0
      %4278 = vmatmul.mubr.bf16.gmra.mrb[0].mxu0 %v4086
      %v4279 = vpop.f32.mrb[0].mxu0
      %v4280 = vadd.f32 %v3960, %v4279
      %v4281 = vpop.f32.mrb[0].mxu0
      %v4282 = vpop.f32.mrb[0].mxu0
      %v4283 = vadd.f32 %v3963, %v4282
      %v4284 = vpop.f32.mrb[0].mxu0
      %4285 = vmatprep.mubr.bf16.mxu0 0
      %4286 = vmatmul.mubr.bf16.gmra.mrb[0].mxu0 %v4095
      %v4287 = vpop.f32.mrb[0].mxu0
      %v4288 = vadd.f32 %v3968, %v4287
      %v4289 = vpop.f32.mrb[0].mxu0
      %v4290 = vpop.f32.mrb[0].mxu0
      %v4291 = vadd.f32 %v3971, %v4290
      %v4292 = vpop.f32.mrb[0].mxu0
      %4293 = vmatprep.mubr.bf16.mxu0 0
      %4294 = vmatmul.mubr.bf16.gmra.mrb[0].mxu0 %v4104
      %v4295 = vpop.f32.mrb[0].mxu0
      %v4296 = vadd.f32 %v3976, %v4295
      %v4297 = vpop.f32.mrb[0].mxu0
      %v4298 = vpop.f32.mrb[0].mxu0
      %v4299 = vadd.f32 %v3979, %v4298
      %v4300 = vpop.f32.mrb[0].mxu0
      %4301 = vmatprep.mubr.bf16.mxu0 0
      %4302 = vmatmul.mubr.bf16.gmra.mrb[0].mxu0 %v4113
      %v4303 = vpop.f32.mrb[0].mxu0
      %v4304 = vadd.f32 %v3984, %v4303
      %v4305 = vpop.f32.mrb[0].mxu0
      %v4306 = vpop.f32.mrb[0].mxu0
      %v4307 = vadd.f32 %v3987, %v4306
      %v4308 = vpop.f32.mrb[0].mxu0
      %4309 = vmatprep.mubr.bf16.mxu0 0
      %4310 = vmatmul.mubr.bf16.gmra.mrb[0].mxu0 %v4122
      %v4311 = vpop.f32.mrb[0].mxu0
      %v4312 = vadd.f32 %v3992, %v4311
      %v4313 = vpop.f32.mrb[0].mxu0
      %v4314 = vpop.f32.mrb[0].mxu0
      %v4315 = vadd.f32 %v3995, %v4314
      %v4316 = vpop.f32.mrb[0].mxu0
      %4317 = vmatprep.mubr.bf16.mxu0 0
      %4318 = vmatmul.mubr.bf16.gmra.mrb[0].mxu0 %v4131
      %v4319 = vpop.f32.mrb[0].mxu0
      %v4320 = vadd.f32 %v4000, %v4319
      %v4321 = vpop.f32.mrb[0].mxu0
      %v4322 = vpop.f32.mrb[0].mxu0
      %v4323 = vadd.f32 %v4003, %v4322
      %v4324 = vpop.f32.mrb[0].mxu0
      %4325 = vmatprep.mubr.bf16.mxu0 0
      %4326 = vmatmul.mubr.bf16.gmra.mrb[0].mxu0 %v4140
      %v4327 = vpop.f32.mrb[0].mxu0
      %v4328 = vadd.f32 %v4008, %v4327
      %v4329 = vpop.f32.mrb[0].mxu0
      %v4330 = vpop.f32.mrb[0].mxu0
      %v4331 = vadd.f32 %v4011, %v4330
      %v4332 = vpop.f32.mrb[0].mxu0
      %4333 = vmatprep.mubr.bf16.mxu0 0
      %4334 = vmatmul.mubr.bf16.gmra.mrb[0].mxu0 %v4149
      %v4335 = vpop.f32.mrb[0].mxu0
      %v4336 = vadd.f32 %v4016, %v4335
      %v4337 = vpop.f32.mrb[0].mxu0
      %v4338 = vpop.f32.mrb[0].mxu0
      %v4339 = vadd.f32 %v4019, %v4338
      %v4340 = vpop.f32.mrb[0].mxu0
      %4341 = vmatprep.mubr.bf16.mxu0 0
      %4342 = vmatmul.mubr.bf16.gmra.mrb[0].mxu0 %v4158
      %v4343 = vpop.f32.mrb[0].mxu0
      %v4344 = vadd.f32 %v4024, %v4343
      %v4345 = vpop.f32.mrb[0].mxu0
      %v4346 = vpop.f32.mrb[0].mxu0
      %v4347 = vadd.f32 %v4027, %v4346
      %v4348 = vpop.f32.mrb[0].mxu0
      %4349 = vmatprep.mubr.bf16.mxu0 0
      %4350 = vmatmul.mubr.bf16.gmra.mrb[0].mxu0 %v4167
      %v4351 = vpop.f32.mrb[0].mxu0
      %v4352 = vadd.f32 %v4032, %v4351
      %v4353 = vpop.f32.mrb[0].mxu0
      %v4354 = vpop.f32.mrb[0].mxu0
      %v4355 = vadd.f32 %v4035, %v4354
      %v4356 = vpop.f32.mrb[0].mxu0
      %4357 = vmatprep.mubr.bf16.mxu0 0
      %4358 = vmatmul.mubr.bf16.gmra.mrb[0].mxu0 %v4176
      %v4359 = vpop.f32.mrb[0].mxu0
      %v4360 = vadd.f32 %v4040, %v4359
      %v4361 = vpop.f32.mrb[0].mxu0
      %v4362 = vpop.f32.mrb[0].mxu0
      %v4363 = vadd.f32 %v4043, %v4362
      %v4364 = vpop.f32.mrb[0].mxu0
      %4365 = vdwg.mxu0
      %v4366 = vld [vmem:[%s246 + $0x64] sm:$0xf]
      %v4367 = vld [vmem:[%s246 + $0x68] sm:$0xf]
      %v4368 = vld [vmem:[%s246 + $0x6c] sm:$0xf]
      %v4369 = vld [vmem:[%s246 + $0x70] sm:$0xf]
      %v4370 = vld [vmem:[%s246 + $0x74] sm:$0xf]
      %v4371 = vld [vmem:[%s246 + $0x78] sm:$0xf]
      %v4372 = vld [vmem:[%s246 + $0x7c] sm:$0xf]
      %v4373 = vld [vmem:[%s246 + $0x80] sm:$0xf]
      %v4374 = vld [vmem:[%s246 + $0x84] sm:$0xf]
      %v4375 = vld [vmem:[%s246 + $0x88] sm:$0xf]
      %v4376 = vld [vmem:[%s246 + $0x8c] sm:$0xf]
      %v4377 = vld [vmem:[%s246 + $0x90] sm:$0xf]
      %v4378 = vld [vmem:[%s246 + $0x94] sm:$0xf]
      %v4379 = vld [vmem:[%s246 + $0x98] sm:$0xf]
      %v4380 = vld [vmem:[%s246 + $0x9c] sm:$0xf]
      %v4381 = vld [vmem:[%s246 + $0xa0] sm:$0xf]
      %v4382 = vld [vmem:[%s246 + $0xa4] sm:$0xf]
      %v4383 = vld [vmem:[%s246 + $0xa8] sm:$0xf]
      %v4384 = vld [vmem:[%s246 + $0xac] sm:$0xf]
      %v4385 = vld [vmem:[%s246 + $0xb0] sm:$0xf]
      %v4386 = vld [vmem:[%s246 + $0xb4] sm:$0xf]
      %v4387 = vld [vmem:[%s246 + $0xb8] sm:$0xf]
      %v4388 = vld [vmem:[%s246 + $0xbc] sm:$0xf]
      %v4389 = vld [vmem:[%s246 + $0xc0] sm:$0xf]
      %v4390 = vld [vmem:[%s246 + $0xc4] sm:$0x1]
      %v4391 = vld [vmem:[%s936] sm:$0xf]
      %v4392 = vld [vmem:[%s936 + $0x4] sm:$0xf]
      %v4393 = vld [vmem:[%s936 + $0x8] sm:$0xf]
      %v4394 = vld [vmem:[%s936 + $0xc] sm:$0xf]
      %v4395 = vld [vmem:[%s936 + $0x10] sm:$0xf]
      %v4396 = vld [vmem:[%s936 + $0x14] sm:$0xf]
      %v4397 = vld [vmem:[%s936 + $0x18] sm:$0xf]
      %v4398 = vld [vmem:[%s936 + $0x1c] sm:$0xf]
      %v4399 = vld [vmem:[%s936 + $0x20] sm:$0xf]
      %v4400 = vld [vmem:[%s936 + $0x24] sm:$0xf]
      %v4401 = vld [vmem:[%s936 + $0x28] sm:$0xf]
      %v4402 = vld [vmem:[%s936 + $0x2c] sm:$0xf]
      %v4403 = vld [vmem:[%s936 + $0x30] sm:$0xf]
      %v4404 = vld [vmem:[%s936 + $0x34] sm:$0xf]
      %v4405 = vld [vmem:[%s936 + $0x38] sm:$0xf]
      %v4406 = vld [vmem:[%s936 + $0x3c] sm:$0xf]
      %v4432 = vunpack.c.l.b16 %v4366
      %v4433 = vunpack.c.l.b16 %v4367
      %v4434 = vunpack.c.l.b16 %v4368
      %v4435 = vunpack.c.l.b16 %v4369
      %v4436 = vunpack.c.l.b16 %v4370
      %v4437 = vunpack.c.l.b16 %v4371
      %v4438 = vunpack.c.l.b16 %v4372
      %v4439 = vunpack.c.l.b16 %v4373
      %v4440 = vunpack.c.l.b16 %v4374
      %v4441 = vunpack.c.l.b16 %v4375
      %v4442 = vunpack.c.l.b16 %v4376
      %v4443 = vunpack.c.l.b16 %v4377
      %v4444 = vunpack.c.l.b16 %v4378
      %v4445 = vunpack.c.l.b16 %v4379
      %v4446 = vunpack.c.l.b16 %v4380
      %v4447 = vunpack.c.l.b16 %v4381
      %v4448 = vunpack.c.l.b16 %v4382
      %v4449 = vunpack.c.l.b16 %v4383
      %v4450 = vunpack.c.l.b16 %v4384
      %v4451 = vunpack.c.l.b16 %v4385
      %v4452 = vunpack.c.l.b16 %v4386
      %v4453 = vunpack.c.l.b16 %v4387
      %v4454 = vunpack.c.l.b16 %v4388
      %v4455 = vunpack.c.l.b16 %v4389
      %v4456 = vunpack.c.l.b16 %v4390
      %v4457 = vpack.c.b16 %v4433, %v4432
      %v4458 = vpack.c.b16 %v4435, %v4434
      %v4459 = vpack.c.b16 %v4437, %v4436
      %v4460 = vpack.c.b16 %v4439, %v4438
      %v4461 = vpack.c.b16 %v4441, %v4440
      %v4462 = vpack.c.b16 %v4443, %v4442
      %v4463 = vpack.c.b16 %v4445, %v4444
      %v4464 = vpack.c.b16 %v4447, %v4446
      %v4465 = vpack.c.b16 %v4449, %v4448
      %v4466 = vpack.c.b16 %v4451, %v4450
      %v4467 = vpack.c.b16 %v4453, %v4452
      %v4468 = vpack.c.b16 %v4455, %v4454
      %v4469 = vpack.c.b16 %v4456, %v4456
      %v4471 = vshrl.u32 %v4457, 16
      %v4473 = vshll.u32 %v4457, 16
      %v4475 = vrot.slane %v4473, 1
      %v4476 = vor.u32 %v4471, %v4475
      %v4478 = vshll.u32 %v4458, 16
      %v4480 = vrot.slane %v4478, 1
      %v4481 = vsel %vm1016, %v4476, %v4480
      %v4482 = vshrl.u32 %v4458, 16
      %v4484 = vor.u32 %v4482, %v4480
      %v4486 = vshll.u32 %v4459, 16
      %v4488 = vrot.slane %v4486, 1
      %v4489 = vsel %vm1016, %v4484, %v4488
      %v4490 = vshrl.u32 %v4459, 16
      %v4492 = vor.u32 %v4490, %v4488
      %v4494 = vshll.u32 %v4460, 16
      %v4496 = vrot.slane %v4494, 1
      %v4497 = vsel %vm1016, %v4492, %v4496
      %v4498 = vshrl.u32 %v4460, 16
      %v4500 = vor.u32 %v4498, %v4496
      %v4502 = vshll.u32 %v4461, 16
      %v4504 = vrot.slane %v4502, 1
      %v4505 = vsel %vm1016, %v4500, %v4504
      %v4506 = vshrl.u32 %v4461, 16
      %v4508 = vor.u32 %v4506, %v4504
      %v4510 = vshll.u32 %v4462, 16
      %v4512 = vrot.slane %v4510, 1
      %v4513 = vsel %vm1016, %v4508, %v4512
      %v4514 = vshrl.u32 %v4462, 16
      %v4516 = vor.u32 %v4514, %v4512
      %v4518 = vshll.u32 %v4463, 16
      %v4520 = vrot.slane %v4518, 1
      %v4521 = vsel %vm1016, %v4516, %v4520
      %v4522 = vshrl.u32 %v4463, 16
      %v4524 = vor.u32 %v4522, %v4520
      %v4526 = vshll.u32 %v4464, 16
      %v4528 = vrot.slane %v4526, 1
      %v4529 = vsel %vm1016, %v4524, %v4528
      %v4530 = vshrl.u32 %v4464, 16
      %v4532 = vor.u32 %v4530, %v4528
      %v4534 = vshll.u32 %v4465, 16
      %v4536 = vrot.slane %v4534, 1
      %v4537 = vsel %vm1016, %v4532, %v4536
      %v4538 = vshrl.u32 %v4465, 16
      %v4540 = vor.u32 %v4538, %v4536
      %v4542 = vshll.u32 %v4466, 16
      %v4544 = vrot.slane %v4542, 1
      %v4545 = vsel %vm1016, %v4540, %v4544
      %v4546 = vshrl.u32 %v4466, 16
      %v4548 = vor.u32 %v4546, %v4544
      %v4550 = vshll.u32 %v4467, 16
      %v4552 = vrot.slane %v4550, 1
      %v4553 = vsel %vm1016, %v4548, %v4552
      %v4554 = vshrl.u32 %v4467, 16
      %v4556 = vor.u32 %v4554, %v4552
      %v4558 = vshll.u32 %v4468, 16
      %v4560 = vrot.slane %v4558, 1
      %v4561 = vsel %vm1016, %v4556, %v4560
      %v4562 = vshrl.u32 %v4468, 16
      %v4564 = vor.u32 %v4562, %v4560
      %v4566 = vshll.u32 %v4469, 16
      %v4568 = vrot.slane %v4566, 1
      %v4569 = vsel %vm1016, %v4564, %v4568
      %v4598 = vunpack.c.l.b16 %v4391
      %v4599 = vunpack.c.l.b16 %v4392
      %v4600 = vunpack.c.l.b16 %v4393
      %v4601 = vunpack.c.l.b16 %v4394
      %v4602 = vunpack.c.l.b16 %v4395
      %v4603 = vunpack.c.l.b16 %v4396
      %v4604 = vunpack.c.l.b16 %v4397
      %v4605 = vunpack.c.l.b16 %v4398
      %v4606 = vunpack.c.l.b16 %v4399
      %v4607 = vunpack.c.l.b16 %v4400
      %v4608 = vunpack.c.l.b16 %v4401
      %v4609 = vunpack.c.l.b16 %v4402
      %v4610 = vunpack.c.l.b16 %v4403
      %v4611 = vunpack.c.l.b16 %v4404
      %v4612 = vunpack.c.l.b16 %v4405
      %v4613 = vunpack.c.l.b16 %v4406
      %v4614 = vpack.c.b16 %v4599, %v4598
      %v4615 = vpack.c.b16 %v4601, %v4600
      %v4616 = vpack.c.b16 %v4603, %v4602
      %v4617 = vpack.c.b16 %v4605, %v4604
      %v4618 = vpack.c.b16 %v4607, %v4606
      %v4619 = vpack.c.b16 %v4609, %v4608
      %v4620 = vpack.c.b16 %v4611, %v4610
      %v4621 = vpack.c.b16 %v4613, %v4612
      %4630 = vmatprep.subr.bf16.mxu0 0
      %4631 = vmatpush1.bf16.msra.mxu0 %v4614
      %4632 = vmatprep.subr.bf16.mxu0 0
      %4633 = vmatpush1.bf16.msra.mxu0 %v4615
      %4634 = vmatprep.subr.bf16.mxu0 0
      %4635 = vmatpush1.bf16.msra.mxu0 %v4616
      %4636 = vmatprep.subr.bf16.mxu0 0
      %4637 = vmatpush1.bf16.msra.mxu0 %v4617
      %4638 = vmatprep.subr.bf16.mxu0 0
      %4639 = vmatpush1.bf16.msra.mxu0 %v4618
      %4640 = vmatprep.subr.bf16.mxu0 0
      %4641 = vmatpush1.bf16.msra.mxu0 %v4619
      %4642 = vmatprep.subr.bf16.mxu0 0
      %4643 = vmatpush1.bf16.msra.mxu0 %v4620
      %4644 = vmatprep.subr.bf16.mxu0 0
      %4645 = vmatpush1.bf16.msra.mxu0 %v4621
      %4646 = vmatprep.subr.bf16.mxu0 0
      %4647 = vmatpush1.bf16.msra.mxu0 0
      %4648 = vmatprep.subr.bf16.mxu0 0
      %4649 = vmatpush1.bf16.msra.mxu0 0
      %4650 = vmatprep.subr.bf16.mxu0 0
      %4651 = vmatpush1.bf16.msra.mxu0 0
      %4652 = vmatprep.subr.bf16.mxu0 0
      %4653 = vmatpush1.bf16.msra.mxu0 0
      %4654 = vmatprep.subr.bf16.mxu0 0
      %4655 = vmatpush1.bf16.msra.mxu0 0
      %4656 = vmatprep.subr.bf16.mxu0 0
      %4657 = vmatpush1.bf16.msra.mxu0 0
      %4658 = vmatprep.subr.bf16.mxu0 0
      %4659 = vmatpush1.bf16.msra.mxu0 0
      %4660 = vmatprep.subr.bf16.mxu0 0
      %4661 = vmatpush1.bf16.msra.mxu0 0
      %4662 = vmatprep.mubr.bf16.mxu0 0
      %4663 = vmatmul.mubr.bf16.gmra.mrb[0].mxu0 %v4481
      %v4664 = vpop.f32.mrb[0].mxu0
      %v4665 = vadd.f32 0.0, %v4664
      %v4666 = vpop.f32.mrb[0].mxu0
      %v4667 = vpop.f32.mrb[0].mxu0
      %v4668 = vadd.f32 0.0, %v4667
      %v4669 = vpop.f32.mrb[0].mxu0
      %4670 = vmatprep.mubr.bf16.mxu0 0
      %4671 = vmatmul.mubr.bf16.gmra.mrb[0].mxu0 %v4489
      %v4672 = vpop.f32.mrb[0].mxu0
      %v4673 = vadd.f32 0.0, %v4672
      %v4674 = vpop.f32.mrb[0].mxu0
      %v4675 = vpop.f32.mrb[0].mxu0
      %v4676 = vadd.f32 0.0, %v4675
      %v4677 = vpop.f32.mrb[0].mxu0
      %4678 = vmatprep.mubr.bf16.mxu0 0
      %4679 = vmatmul.mubr.bf16.gmra.mrb[0].mxu0 %v4497
      %v4680 = vpop.f32.mrb[0].mxu0
      %v4681 = vadd.f32 0.0, %v4680
      %v4682 = vpop.f32.mrb[0].mxu0
      %v4683 = vpop.f32.mrb[0].mxu0
      %v4684 = vadd.f32 0.0, %v4683
      %v4685 = vpop.f32.mrb[0].mxu0
      %4686 = vmatprep.mubr.bf16.mxu0 0
      %4687 = vmatmul.mubr.bf16.gmra.mrb[0].mxu0 %v4505
      %v4688 = vpop.f32.mrb[0].mxu0
      %v4689 = vadd.f32 0.0, %v4688
      %v4690 = vpop.f32.mrb[0].mxu0
      %v4691 = vpop.f32.mrb[0].mxu0
      %v4692 = vadd.f32 0.0, %v4691
      %v4693 = vpop.f32.mrb[0].mxu0
      %4694 = vmatprep.mubr.bf16.mxu0 0
      %4695 = vmatmul.mubr.bf16.gmra.mrb[0].mxu0 %v4513
      %v4696 = vpop.f32.mrb[0].mxu0
      %v4697 = vadd.f32 0.0, %v4696
      %v4698 = vpop.f32.mrb[0].mxu0
      %v4699 = vpop.f32.mrb[0].mxu0
      %v4700 = vadd.f32 0.0, %v4699
      %v4701 = vpop.f32.mrb[0].mxu0
      %4702 = vmatprep.mubr.bf16.mxu0 0
      %4703 = vmatmul.mubr.bf16.gmra.mrb[0].mxu0 %v4521
      %v4704 = vpop.f32.mrb[0].mxu0
      %v4705 = vadd.f32 0.0, %v4704
      %v4706 = vpop.f32.mrb[0].mxu0
      %v4707 = vpop.f32.mrb[0].mxu0
      %v4708 = vadd.f32 0.0, %v4707
      %v4709 = vpop.f32.mrb[0].mxu0
      %4710 = vmatprep.mubr.bf16.mxu0 0
      %4711 = vmatmul.mubr.bf16.gmra.mrb[0].mxu0 %v4529
      %v4712 = vpop.f32.mrb[0].mxu0
      %v4713 = vadd.f32 0.0, %v4712
      %v4714 = vpop.f32.mrb[0].mxu0
      %v4715 = vpop.f32.mrb[0].mxu0
      %v4716 = vadd.f32 0.0, %v4715
      %v4717 = vpop.f32.mrb[0].mxu0
      %4718 = vmatprep.mubr.bf16.mxu0 0
      %4719 = vmatmul.mubr.bf16.gmra.mrb[0].mxu0 %v4537
      %v4720 = vpop.f32.mrb[0].mxu0
      %v4721 = vadd.f32 0.0, %v4720
      %v4722 = vpop.f32.mrb[0].mxu0
      %v4723 = vpop.f32.mrb[0].mxu0
      %v4724 = vadd.f32 0.0, %v4723
      %v4725 = vpop.f32.mrb[0].mxu0
      %4726 = vmatprep.mubr.bf16.mxu0 0
      %4727 = vmatmul.mubr.bf16.gmra.mrb[0].mxu0 %v4545
      %v4728 = vpop.f32.mrb[0].mxu0
      %v4729 = vadd.f32 0.0, %v4728
      %v4730 = vpop.f32.mrb[0].mxu0
      %v4731 = vpop.f32.mrb[0].mxu0
      %v4732 = vadd.f32 0.0, %v4731
      %v4733 = vpop.f32.mrb[0].mxu0
      %4734 = vmatprep.mubr.bf16.mxu0 0
      %4735 = vmatmul.mubr.bf16.gmra.mrb[0].mxu0 %v4553
      %v4736 = vpop.f32.mrb[0].mxu0
      %v4737 = vadd.f32 0.0, %v4736
      %v4738 = vpop.f32.mrb[0].mxu0
      %v4739 = vpop.f32.mrb[0].mxu0
      %v4740 = vadd.f32 0.0, %v4739
      %v4741 = vpop.f32.mrb[0].mxu0
      %4742 = vmatprep.mubr.bf16.mxu0 0
      %4743 = vmatmul.mubr.bf16.gmra.mrb[0].mxu0 %v4561
      %v4744 = vpop.f32.mrb[0].mxu0
      %v4745 = vadd.f32 0.0, %v4744
      %v4746 = vpop.f32.mrb[0].mxu0
      %v4747 = vpop.f32.mrb[0].mxu0
      %v4748 = vadd.f32 0.0, %v4747
      %v4749 = vpop.f32.mrb[0].mxu0
      %4750 = vmatprep.mubr.bf16.mxu0 0
      %4751 = vmatmul.mubr.bf16.gmra.mrb[0].mxu0 %v4569
      %v4752 = vpop.f32.mrb[0].mxu0
      %v4753 = vadd.f32 0.0, %v4752
      %v4754 = vpop.f32.mrb[0].mxu0
      %v4755 = vpop.f32.mrb[0].mxu0
      %v4756 = vadd.f32 0.0, %v4755
      %v4757 = vpop.f32.mrb[0].mxu0
      %4758 = vdwg.mxu0
      %v4759 = vadd.f32 %v4272, %v4665
      %v4760 = vadd.f32 %v4275, %v4668
      %v4761 = vadd.f32 %v4280, %v4673
      %v4762 = vadd.f32 %v4283, %v4676
      %v4763 = vadd.f32 %v4288, %v4681
      %v4764 = vadd.f32 %v4291, %v4684
      %v4765 = vadd.f32 %v4296, %v4689
      %v4766 = vadd.f32 %v4299, %v4692
      %v4767 = vadd.f32 %v4304, %v4697
      %v4768 = vadd.f32 %v4307, %v4700
      %v4769 = vadd.f32 %v4312, %v4705
      %v4770 = vadd.f32 %v4315, %v4708
      %v4771 = vadd.f32 %v4320, %v4713
      %v4772 = vadd.f32 %v4323, %v4716
      %v4773 = vadd.f32 %v4328, %v4721
      %v4774 = vadd.f32 %v4331, %v4724
      %v4775 = vadd.f32 %v4336, %v4729
      %v4776 = vadd.f32 %v4339, %v4732
      %v4777 = vadd.f32 %v4344, %v4737
      %v4778 = vadd.f32 %v4347, %v4740
      %v4779 = vadd.f32 %v4352, %v4745
      %v4780 = vadd.f32 %v4355, %v4748
      %v4781 = vadd.f32 %v4360, %v4753
      %v4782 = vadd.f32 %v4363, %v4756
      %v4783 = vld [vmem:[%s246 + $0x6c] sm:$0x8]
      %v4784 = vld [vmem:[%s246 + $0x70] sm:$0xf]
      %v4785 = vld [vmem:[%s246 + $0x74] sm:$0xf]
      %v4786 = vld [vmem:[%s246 + $0x78] sm:$0xf]
      %v4787 = vld [vmem:[%s246 + $0x7c] sm:$0xf]
      %v4788 = vld [vmem:[%s246 + $0x80] sm:$0xf]
      %v4789 = vld [vmem:[%s246 + $0x84] sm:$0xf]
      %v4790 = vld [vmem:[%s246 + $0x88] sm:$0xf]
      %v4791 = vld [vmem:[%s246 + $0x8c] sm:$0xf]
      %v4792 = vld [vmem:[%s246 + $0x90] sm:$0xf]
      %v4793 = vld [vmem:[%s246 + $0x94] sm:$0xf]
      %v4794 = vld [vmem:[%s246 + $0x98] sm:$0xf]
      %v4795 = vld [vmem:[%s246 + $0x9c] sm:$0xf]
      %v4796 = vld [vmem:[%s246 + $0xa0] sm:$0xf]
      %v4797 = vld [vmem:[%s246 + $0xa4] sm:$0xf]
      %v4798 = vld [vmem:[%s246 + $0xa8] sm:$0xf]
      %v4799 = vld [vmem:[%s246 + $0xac] sm:$0xf]
      %v4800 = vld [vmem:[%s246 + $0xb0] sm:$0xf]
      %v4801 = vld [vmem:[%s246 + $0xb4] sm:$0xf]
      %v4802 = vld [vmem:[%s246 + $0xb8] sm:$0xf]
      %v4803 = vld [vmem:[%s246 + $0xbc] sm:$0xf]
      %v4804 = vld [vmem:[%s246 + $0xc0] sm:$0xf]
      %v4805 = vld [vmem:[%s246 + $0xc4] sm:$0xf]
      %v4806 = vld [vmem:[%s246 + $0xc8] sm:$0xf]
      %v4807 = vld [vmem:[%s246 + $0xcc] sm:$0xf]
      %v4808 = vld [vmem:[%s1355] sm:$0xf]
      %v4809 = vld [vmem:[%s1355 + $0x4] sm:$0xf]
      %v4810 = vld [vmem:[%s1355 + $0x8] sm:$0xf]
      %v4811 = vld [vmem:[%s1355 + $0xc] sm:$0xf]
      %v4812 = vld [vmem:[%s1355 + $0x10] sm:$0xf]
      %v4813 = vld [vmem:[%s1355 + $0x14] sm:$0xf]
      %v4814 = vld [vmem:[%s1355 + $0x18] sm:$0xf]
      %v4815 = vld [vmem:[%s1355 + $0x1c] sm:$0xf]
      %v4816 = vld [vmem:[%s1355 + $0x20] sm:$0xf]
      %v4817 = vld [vmem:[%s1355 + $0x24] sm:$0xf]
      %v4818 = vld [vmem:[%s1355 + $0x28] sm:$0xf]
      %v4819 = vld [vmem:[%s1355 + $0x2c] sm:$0xf]
      %v4820 = vld [vmem:[%s1355 + $0x30] sm:$0xf]
      %v4821 = vld [vmem:[%s1355 + $0x34] sm:$0xf]
      %v4822 = vld [vmem:[%s1355 + $0x38] sm:$0xf]
      %v4823 = vld [vmem:[%s1355 + $0x3c] sm:$0xf]
      %v4849 = vunpack.c.l.b16 %v4783
      %v4850 = vunpack.c.l.b16 %v4784
      %v4851 = vunpack.c.l.b16 %v4785
      %v4852 = vunpack.c.l.b16 %v4786
      %v4853 = vunpack.c.l.b16 %v4787
      %v4854 = vunpack.c.l.b16 %v4788
      %v4855 = vunpack.c.l.b16 %v4789
      %v4856 = vunpack.c.l.b16 %v4790
      %v4857 = vunpack.c.l.b16 %v4791
      %v4858 = vunpack.c.l.b16 %v4792
      %v4859 = vunpack.c.l.b16 %v4793
      %v4860 = vunpack.c.l.b16 %v4794
      %v4861 = vunpack.c.l.b16 %v4795
      %v4862 = vunpack.c.l.b16 %v4796
      %v4863 = vunpack.c.l.b16 %v4797
      %v4864 = vunpack.c.l.b16 %v4798
      %v4865 = vunpack.c.l.b16 %v4799
      %v4866 = vunpack.c.l.b16 %v4800
      %v4867 = vunpack.c.l.b16 %v4801
      %v4868 = vunpack.c.l.b16 %v4802
      %v4869 = vunpack.c.l.b16 %v4803
      %v4870 = vunpack.c.l.b16 %v4804
      %v4871 = vunpack.c.l.b16 %v4805
      %v4872 = vunpack.c.l.b16 %v4806
      %v4873 = vunpack.c.l.b16 %v4807
      %v4874 = vpack.c.b16 %v4850, %v4849
      %v4875 = vpack.c.b16 %v4852, %v4851
      %v4876 = vpack.c.b16 %v4854, %v4853
      %v4877 = vpack.c.b16 %v4856, %v4855
      %v4878 = vpack.c.b16 %v4858, %v4857
      %v4879 = vpack.c.b16 %v4860, %v4859
      %v4880 = vpack.c.b16 %v4862, %v4861
      %v4881 = vpack.c.b16 %v4864, %v4863
      %v4882 = vpack.c.b16 %v4866, %v4865
      %v4883 = vpack.c.b16 %v4868, %v4867
      %v4884 = vpack.c.b16 %v4870, %v4869
      %v4885 = vpack.c.b16 %v4872, %v4871
      %v4886 = vpack.c.b16 %v4873, %v4873
      %v4888 = vshrl.u32 %v4874, 16
      %v4890 = vrot.slane %v4888, 3
      %v4891 = vshll.u32 %v4874, 16
      %v4893 = vrot.slane %v4891, 4
      %v4894 = vor.u32 %v4890, %v4893
      %v4896 = vshrl.u32 %v4875, 16
      %v4898 = vrot.slane %v4896, 3
      %v4899 = vshll.u32 %v4875, 16
      %v4901 = vrot.slane %v4899, 4
      %v4902 = vor.u32 %v4898, %v4901
      %v4903 = vsel %vm605, %v4894, %v4902
      %v4905 = vshrl.u32 %v4876, 16
      %v4907 = vrot.slane %v4905, 3
      %v4908 = vshll.u32 %v4876, 16
      %v4910 = vrot.slane %v4908, 4
      %v4911 = vor.u32 %v4907, %v4910
      %v4912 = vsel %vm605, %v4902, %v4911
      %v4914 = vshrl.u32 %v4877, 16
      %v4916 = vrot.slane %v4914, 3
      %v4917 = vshll.u32 %v4877, 16
      %v4919 = vrot.slane %v4917, 4
      %v4920 = vor.u32 %v4916, %v4919
      %v4921 = vsel %vm605, %v4911, %v4920
      %v4923 = vshrl.u32 %v4878, 16
      %v4925 = vrot.slane %v4923, 3
      %v4926 = vshll.u32 %v4878, 16
      %v4928 = vrot.slane %v4926, 4
      %v4929 = vor.u32 %v4925, %v4928
      %v4930 = vsel %vm605, %v4920, %v4929
      %v4932 = vshrl.u32 %v4879, 16
      %v4934 = vrot.slane %v4932, 3
      %v4935 = vshll.u32 %v4879, 16
      %v4937 = vrot.slane %v4935, 4
      %v4938 = vor.u32 %v4934, %v4937
      %v4939 = vsel %vm605, %v4929, %v4938
      %v4941 = vshrl.u32 %v4880, 16
      %v4943 = vrot.slane %v4941, 3
      %v4944 = vshll.u32 %v4880, 16
      %v4946 = vrot.slane %v4944, 4
      %v4947 = vor.u32 %v4943, %v4946
      %v4948 = vsel %vm605, %v4938, %v4947
      %v4950 = vshrl.u32 %v4881, 16
      %v4952 = vrot.slane %v4950, 3
      %v4953 = vshll.u32 %v4881, 16
      %v4955 = vrot.slane %v4953, 4
      %v4956 = vor.u32 %v4952, %v4955
      %v4957 = vsel %vm605, %v4947, %v4956
      %v4959 = vshrl.u32 %v4882, 16
      %v4961 = vrot.slane %v4959, 3
      %v4962 = vshll.u32 %v4882, 16
      %v4964 = vrot.slane %v4962, 4
      %v4965 = vor.u32 %v4961, %v4964
      %v4966 = vsel %vm605, %v4956, %v4965
      %v4968 = vshrl.u32 %v4883, 16
      %v4970 = vrot.slane %v4968, 3
      %v4971 = vshll.u32 %v4883, 16
      %v4973 = vrot.slane %v4971, 4
      %v4974 = vor.u32 %v4970, %v4973
      %v4975 = vsel %vm605, %v4965, %v4974
      %v4977 = vshrl.u32 %v4884, 16
      %v4979 = vrot.slane %v4977, 3
      %v4980 = vshll.u32 %v4884, 16
      %v4982 = vrot.slane %v4980, 4
      %v4983 = vor.u32 %v4979, %v4982
      %v4984 = vsel %vm605, %v4974, %v4983
      %v4986 = vshrl.u32 %v4885, 16
      %v4988 = vrot.slane %v4986, 3
      %v4989 = vshll.u32 %v4885, 16
      %v4991 = vrot.slane %v4989, 4
      %v4992 = vor.u32 %v4988, %v4991
      %v4993 = vsel %vm605, %v4983, %v4992
      %v4995 = vshrl.u32 %v4886, 16
      %v4997 = vrot.slane %v4995, 3
      %v4998 = vshll.u32 %v4886, 16
      %v5000 = vrot.slane %v4998, 4
      %v5001 = vor.u32 %v4997, %v5000
      %v5002 = vsel %vm605, %v4992, %v5001
      %v5031 = vunpack.c.l.b16 %v4808
      %v5032 = vunpack.c.l.b16 %v4809
      %v5033 = vunpack.c.l.b16 %v4810
      %v5034 = vunpack.c.l.b16 %v4811
      %v5035 = vunpack.c.l.b16 %v4812
      %v5036 = vunpack.c.l.b16 %v4813
      %v5037 = vunpack.c.l.b16 %v4814
      %v5038 = vunpack.c.l.b16 %v4815
      %v5039 = vunpack.c.l.b16 %v4816
      %v5040 = vunpack.c.l.b16 %v4817
      %v5041 = vunpack.c.l.b16 %v4818
      %v5042 = vunpack.c.l.b16 %v4819
      %v5043 = vunpack.c.l.b16 %v4820
      %v5044 = vunpack.c.l.b16 %v4821
      %v5045 = vunpack.c.l.b16 %v4822
      %v5046 = vunpack.c.l.b16 %v4823
      %v5047 = vpack.c.b16 %v5032, %v5031
      %v5048 = vpack.c.b16 %v5034, %v5033
      %v5049 = vpack.c.b16 %v5036, %v5035
      %v5050 = vpack.c.b16 %v5038, %v5037
      %v5051 = vpack.c.b16 %v5040, %v5039
      %v5052 = vpack.c.b16 %v5042, %v5041
      %v5053 = vpack.c.b16 %v5044, %v5043
      %v5054 = vpack.c.b16 %v5046, %v5045
      %5063 = vmatprep.subr.bf16.mxu0 0
      %5064 = vmatpush1.bf16.msra.mxu0 %v5047
      %5065 = vmatprep.subr.bf16.mxu0 0
      %5066 = vmatpush1.bf16.msra.mxu0 %v5048
      %5067 = vmatprep.subr.bf16.mxu0 0
      %5068 = vmatpush1.bf16.msra.mxu0 %v5049
      %5069 = vmatprep.subr.bf16.mxu0 0
      %5070 = vmatpush1.bf16.msra.mxu0 %v5050
      %5071 = vmatprep.subr.bf16.mxu0 0
      %5072 = vmatpush1.bf16.msra.mxu0 %v5051
      %5073 = vmatprep.subr.bf16.mxu0 0
      %5074 = vmatpush1.bf16.msra.mxu0 %v5052
      %5075 = vmatprep.subr.bf16.mxu0 0
      %5076 = vmatpush1.bf16.msra.mxu0 %v5053
      %5077 = vmatprep.subr.bf16.mxu0 0
      %5078 = vmatpush1.bf16.msra.mxu0 %v5054
      %5079 = vmatprep.subr.bf16.mxu0 0
      %5080 = vmatpush1.bf16.msra.mxu0 0
      %5081 = vmatprep.subr.bf16.mxu0 0
      %5082 = vmatpush1.bf16.msra.mxu0 0
      %5083 = vmatprep.subr.bf16.mxu0 0
      %5084 = vmatpush1.bf16.msra.mxu0 0
      %5085 = vmatprep.subr.bf16.mxu0 0
      %5086 = vmatpush1.bf16.msra.mxu0 0
      %5087 = vmatprep.subr.bf16.mxu0 0
      %5088 = vmatpush1.bf16.msra.mxu0 0
      %5089 = vmatprep.subr.bf16.mxu0 0
      %5090 = vmatpush1.bf16.msra.mxu0 0
      %5091 = vmatprep.subr.bf16.mxu0 0
      %5092 = vmatpush1.bf16.msra.mxu0 0
      %5093 = vmatprep.subr.bf16.mxu0 0
      %5094 = vmatpush1.bf16.msra.mxu0 0
      %5095 = vmatprep.mubr.bf16.mxu0 0
      %5096 = vmatmul.mubr.bf16.gmra.mrb[0].mxu0 %v4903
      %v5097 = vpop.f32.mrb[0].mxu0
      %v5098 = vadd.f32 0.0, %v5097
      %v5099 = vpop.f32.mrb[0].mxu0
      %v5100 = vpop.f32.mrb[0].mxu0
      %v5101 = vadd.f32 0.0, %v5100
      %v5102 = vpop.f32.mrb[0].mxu0
      %5103 = vmatprep.mubr.bf16.mxu0 0
      %5104 = vmatmul.mubr.bf16.gmra.mrb[0].mxu0 %v4912
      %v5105 = vpop.f32.mrb[0].mxu0
      %v5106 = vadd.f32 0.0, %v5105
      %v5107 = vpop.f32.mrb[0].mxu0
      %v5108 = vpop.f32.mrb[0].mxu0
      %v5109 = vadd.f32 0.0, %v5108
      %v5110 = vpop.f32.mrb[0].mxu0
      %5111 = vmatprep.mubr.bf16.mxu0 0
      %5112 = vmatmul.mubr.bf16.gmra.mrb[0].mxu0 %v4921
      %v5113 = vpop.f32.mrb[0].mxu0
      %v5114 = vadd.f32 0.0, %v5113
      %v5115 = vpop.f32.mrb[0].mxu0
      %v5116 = vpop.f32.mrb[0].mxu0
      %v5117 = vadd.f32 0.0, %v5116
      %v5118 = vpop.f32.mrb[0].mxu0
      %5119 = vmatprep.mubr.bf16.mxu0 0
      %5120 = vmatmul.mubr.bf16.gmra.mrb[0].mxu0 %v4930
      %v5121 = vpop.f32.mrb[0].mxu0
      %v5122 = vadd.f32 0.0, %v5121
      %v5123 = vpop.f32.mrb[0].mxu0
      %v5124 = vpop.f32.mrb[0].mxu0
      %v5125 = vadd.f32 0.0, %v5124
      %v5126 = vpop.f32.mrb[0].mxu0
      %5127 = vmatprep.mubr.bf16.mxu0 0
      %5128 = vmatmul.mubr.bf16.gmra.mrb[0].mxu0 %v4939
      %v5129 = vpop.f32.mrb[0].mxu0
      %v5130 = vadd.f32 0.0, %v5129
      %v5131 = vpop.f32.mrb[0].mxu0
      %v5132 = vpop.f32.mrb[0].mxu0
      %v5133 = vadd.f32 0.0, %v5132
      %v5134 = vpop.f32.mrb[0].mxu0
      %5135 = vmatprep.mubr.bf16.mxu0 0
      %5136 = vmatmul.mubr.bf16.gmra.mrb[0].mxu0 %v4948
      %v5137 = vpop.f32.mrb[0].mxu0
      %v5138 = vadd.f32 0.0, %v5137
      %v5139 = vpop.f32.mrb[0].mxu0
      %v5140 = vpop.f32.mrb[0].mxu0
      %v5141 = vadd.f32 0.0, %v5140
      %v5142 = vpop.f32.mrb[0].mxu0
      %5143 = vmatprep.mubr.bf16.mxu0 0
      %5144 = vmatmul.mubr.bf16.gmra.mrb[0].mxu0 %v4957
      %v5145 = vpop.f32.mrb[0].mxu0
      %v5146 = vadd.f32 0.0, %v5145
      %v5147 = vpop.f32.mrb[0].mxu0
      %v5148 = vpop.f32.mrb[0].mxu0
      %v5149 = vadd.f32 0.0, %v5148
      %v5150 = vpop.f32.mrb[0].mxu0
      %5151 = vmatprep.mubr.bf16.mxu0 0
      %5152 = vmatmul.mubr.bf16.gmra.mrb[0].mxu0 %v4966
      %v5153 = vpop.f32.mrb[0].mxu0
      %v5154 = vadd.f32 0.0, %v5153
      %v5155 = vpop.f32.mrb[0].mxu0
      %v5156 = vpop.f32.mrb[0].mxu0
      %v5157 = vadd.f32 0.0, %v5156
      %v5158 = vpop.f32.mrb[0].mxu0
      %5159 = vmatprep.mubr.bf16.mxu0 0
      %5160 = vmatmul.mubr.bf16.gmra.mrb[0].mxu0 %v4975
      %v5161 = vpop.f32.mrb[0].mxu0
      %v5162 = vadd.f32 0.0, %v5161
      %v5163 = vpop.f32.mrb[0].mxu0
      %v5164 = vpop.f32.mrb[0].mxu0
      %v5165 = vadd.f32 0.0, %v5164
      %v5166 = vpop.f32.mrb[0].mxu0
      %5167 = vmatprep.mubr.bf16.mxu0 0
      %5168 = vmatmul.mubr.bf16.gmra.mrb[0].mxu0 %v4984
      %v5169 = vpop.f32.mrb[0].mxu0
      %v5170 = vadd.f32 0.0, %v5169
      %v5171 = vpop.f32.mrb[0].mxu0
      %v5172 = vpop.f32.mrb[0].mxu0
      %v5173 = vadd.f32 0.0, %v5172
      %v5174 = vpop.f32.mrb[0].mxu0
      %5175 = vmatprep.mubr.bf16.mxu0 0
      %5176 = vmatmul.mubr.bf16.gmra.mrb[0].mxu0 %v4993
      %v5177 = vpop.f32.mrb[0].mxu0
      %v5178 = vadd.f32 0.0, %v5177
      %v5179 = vpop.f32.mrb[0].mxu0
      %v5180 = vpop.f32.mrb[0].mxu0
      %v5181 = vadd.f32 0.0, %v5180
      %v5182 = vpop.f32.mrb[0].mxu0
      %5183 = vmatprep.mubr.bf16.mxu0 0
      %5184 = vmatmul.mubr.bf16.gmra.mrb[0].mxu0 %v5002
      %v5185 = vpop.f32.mrb[0].mxu0
      %v5186 = vadd.f32 0.0, %v5185
      %v5187 = vpop.f32.mrb[0].mxu0
      %v5188 = vpop.f32.mrb[0].mxu0
      %v5189 = vadd.f32 0.0, %v5188
      %v5190 = vpop.f32.mrb[0].mxu0
      %5191 = vdwg.mxu0
      %v5192 = vadd.f32 %v4759, %v5098
      %v5193 = vadd.f32 %v4760, %v5101
      %v5194 = vadd.f32 %v4761, %v5106
      %v5195 = vadd.f32 %v4762, %v5109
      %v5196 = vadd.f32 %v4763, %v5114
      %v5197 = vadd.f32 %v4764, %v5117
      %v5198 = vadd.f32 %v4765, %v5122
      %v5199 = vadd.f32 %v4766, %v5125
      %v5200 = vadd.f32 %v4767, %v5130
      %v5201 = vadd.f32 %v4768, %v5133
      %v5202 = vadd.f32 %v4769, %v5138
      %v5203 = vadd.f32 %v4770, %v5141
      %v5204 = vadd.f32 %v4771, %v5146
      %v5205 = vadd.f32 %v4772, %v5149
      %v5206 = vadd.f32 %v4773, %v5154
      %v5207 = vadd.f32 %v4774, %v5157
      %v5208 = vadd.f32 %v4775, %v5162
      %v5209 = vadd.f32 %v4776, %v5165
      %v5210 = vadd.f32 %v4777, %v5170
      %v5211 = vadd.f32 %v4778, %v5173
      %v5212 = vadd.f32 %v4779, %v5178
      %v5213 = vadd.f32 %v4780, %v5181
      %v5214 = vadd.f32 %v4781, %v5186
      %v5215 = vadd.f32 %v4782, %v5189
      %v5216 = vld [vmem:[%s1764] sm:$0xf]
      %v5217 = vld [vmem:[%s1764 + $0x4] sm:$0xf]
      %v5218 = vld [vmem:[%s1764 + $0x8] sm:$0xf]
      %v5219 = vld [vmem:[%s1764 + $0xc] sm:$0xf]
      %v5220 = vld [vmem:[%s1764 + $0x10] sm:$0xf]
      %v5221 = vld [vmem:[%s1764 + $0x14] sm:$0xf]
      %v5222 = vld [vmem:[%s1764 + $0x18] sm:$0xf]
      %v5223 = vld [vmem:[%s1764 + $0x1c] sm:$0xf]
      %v5224 = vld [vmem:[%s1764 + $0x20] sm:$0xf]
      %v5225 = vld [vmem:[%s1764 + $0x24] sm:$0xf]
      %v5226 = vld [vmem:[%s1764 + $0x28] sm:$0xf]
      %v5227 = vld [vmem:[%s1764 + $0x2c] sm:$0xf]
      %v5228 = vld [vmem:[%s1764 + $0x30] sm:$0xf]
      %v5229 = vld [vmem:[%s1764 + $0x34] sm:$0xf]
      %v5230 = vld [vmem:[%s1764 + $0x38] sm:$0xf]
      %v5231 = vld [vmem:[%s1764 + $0x3c] sm:$0xf]
      %v5232 = vpack.c.b16 %v4851, %v4850
      %v5233 = vpack.c.b16 %v4853, %v4852
      %v5234 = vpack.c.b16 %v4855, %v4854
      %v5235 = vpack.c.b16 %v4857, %v4856
      %v5236 = vpack.c.b16 %v4859, %v4858
      %v5237 = vpack.c.b16 %v4861, %v4860
      %v5238 = vpack.c.b16 %v4863, %v4862
      %v5239 = vpack.c.b16 %v4865, %v4864
      %v5240 = vpack.c.b16 %v4867, %v4866
      %v5241 = vpack.c.b16 %v4869, %v4868
      %v5242 = vpack.c.b16 %v4871, %v4870
      %v5243 = vpack.c.b16 %v4873, %v4872
      %v5272 = vunpack.c.l.b16 %v5216
      %v5273 = vunpack.c.l.b16 %v5217
      %v5274 = vunpack.c.l.b16 %v5218
      %v5275 = vunpack.c.l.b16 %v5219
      %v5276 = vunpack.c.l.b16 %v5220
      %v5277 = vunpack.c.l.b16 %v5221
      %v5278 = vunpack.c.l.b16 %v5222
      %v5279 = vunpack.c.l.b16 %v5223
      %v5280 = vunpack.c.l.b16 %v5224
      %v5281 = vunpack.c.l.b16 %v5225
      %v5282 = vunpack.c.l.b16 %v5226
      %v5283 = vunpack.c.l.b16 %v5227
      %v5284 = vunpack.c.l.b16 %v5228
      %v5285 = vunpack.c.l.b16 %v5229
      %v5286 = vunpack.c.l.b16 %v5230
      %v5287 = vunpack.c.l.b16 %v5231
      %v5288 = vpack.c.b16 %v5273, %v5272
      %v5289 = vpack.c.b16 %v5275, %v5274
      %v5290 = vpack.c.b16 %v5277, %v5276
      %v5291 = vpack.c.b16 %v5279, %v5278
      %v5292 = vpack.c.b16 %v5281, %v5280
      %v5293 = vpack.c.b16 %v5283, %v5282
      %v5294 = vpack.c.b16 %v5285, %v5284
      %v5295 = vpack.c.b16 %v5287, %v5286
      %5304 = vmatprep.subr.bf16.mxu0 0
      %5305 = vmatpush1.bf16.msra.mxu0 %v5288
      %5306 = vmatprep.subr.bf16.mxu0 0
      %5307 = vmatpush1.bf16.msra.mxu0 %v5289
      %5308 = vmatprep.subr.bf16.mxu0 0
      %5309 = vmatpush1.bf16.msra.mxu0 %v5290
      %5310 = vmatprep.subr.bf16.mxu0 0
      %5311 = vmatpush1.bf16.msra.mxu0 %v5291
      %5312 = vmatprep.subr.bf16.mxu0 0
      %5313 = vmatpush1.bf16.msra.mxu0 %v5292
      %5314 = vmatprep.subr.bf16.mxu0 0
      %5315 = vmatpush1.bf16.msra.mxu0 %v5293
      %5316 = vmatprep.subr.bf16.mxu0 0
      %5317 = vmatpush1.bf16.msra.mxu0 %v5294
      %5318 = vmatprep.subr.bf16.mxu0 0
      %5319 = vmatpush1.bf16.msra.mxu0 %v5295
      %5320 = vmatprep.subr.bf16.mxu0 0
      %5321 = vmatpush1.bf16.msra.mxu0 0
      %5322 = vmatprep.subr.bf16.mxu0 0
      %5323 = vmatpush1.bf16.msra.mxu0 0
      %5324 = vmatprep.subr.bf16.mxu0 0
      %5325 = vmatpush1.bf16.msra.mxu0 0
      %5326 = vmatprep.subr.bf16.mxu0 0
      %5327 = vmatpush1.bf16.msra.mxu0 0
      %5328 = vmatprep.subr.bf16.mxu0 0
      %5329 = vmatpush1.bf16.msra.mxu0 0
      %5330 = vmatprep.subr.bf16.mxu0 0
      %5331 = vmatpush1.bf16.msra.mxu0 0
      %5332 = vmatprep.subr.bf16.mxu0 0
      %5333 = vmatpush1.bf16.msra.mxu0 0
      %5334 = vmatprep.subr.bf16.mxu0 0
      %5335 = vmatpush1.bf16.msra.mxu0 0
      %5336 = vmatprep.mubr.bf16.mxu0 0
      %5337 = vmatmul.mubr.bf16.gmra.mrb[0].mxu0 %v5232
      %v5338 = vpop.f32.mrb[0].mxu0
      %v5339 = vadd.f32 0.0, %v5338
      %v5340 = vpop.f32.mrb[0].mxu0
      %v5341 = vpop.f32.mrb[0].mxu0
      %v5342 = vadd.f32 0.0, %v5341
      %v5343 = vpop.f32.mrb[0].mxu0
      %5344 = vmatprep.mubr.bf16.mxu0 0
      %5345 = vmatmul.mubr.bf16.gmra.mrb[0].mxu0 %v5233
      %v5346 = vpop.f32.mrb[0].mxu0
      %v5347 = vadd.f32 0.0, %v5346
      %v5348 = vpop.f32.mrb[0].mxu0
      %v5349 = vpop.f32.mrb[0].mxu0
      %v5350 = vadd.f32 0.0, %v5349
      %v5351 = vpop.f32.mrb[0].mxu0
      %5352 = vmatprep.mubr.bf16.mxu0 0
      %5353 = vmatmul.mubr.bf16.gmra.mrb[0].mxu0 %v5234
      %v5354 = vpop.f32.mrb[0].mxu0
      %v5355 = vadd.f32 0.0, %v5354
      %v5356 = vpop.f32.mrb[0].mxu0
      %v5357 = vpop.f32.mrb[0].mxu0
      %v5358 = vadd.f32 0.0, %v5357
      %v5359 = vpop.f32.mrb[0].mxu0
      %5360 = vmatprep.mubr.bf16.mxu0 0
      %5361 = vmatmul.mubr.bf16.gmra.mrb[0].mxu0 %v5235
      %v5362 = vpop.f32.mrb[0].mxu0
      %v5363 = vadd.f32 0.0, %v5362
      %v5364 = vpop.f32.mrb[0].mxu0
      %v5365 = vpop.f32.mrb[0].mxu0
      %v5366 = vadd.f32 0.0, %v5365
      %v5367 = vpop.f32.mrb[0].mxu0
      %5368 = vmatprep.mubr.bf16.mxu0 0
      %5369 = vmatmul.mubr.bf16.gmra.mrb[0].mxu0 %v5236
      %v5370 = vpop.f32.mrb[0].mxu0
      %v5371 = vadd.f32 0.0, %v5370
      %v5372 = vpop.f32.mrb[0].mxu0
      %v5373 = vpop.f32.mrb[0].mxu0
      %v5374 = vadd.f32 0.0, %v5373
      %v5375 = vpop.f32.mrb[0].mxu0
      %5376 = vmatprep.mubr.bf16.mxu0 0
      %5377 = vmatmul.mubr.bf16.gmra.mrb[0].mxu0 %v5237
      %v5378 = vpop.f32.mrb[0].mxu0
      %v5379 = vadd.f32 0.0, %v5378
      %v5380 = vpop.f32.mrb[0].mxu0
      %v5381 = vpop.f32.mrb[0].mxu0
      %v5382 = vadd.f32 0.0, %v5381
      %v5383 = vpop.f32.mrb[0].mxu0
      %5384 = vmatprep.mubr.bf16.mxu0 0
      %5385 = vmatmul.mubr.bf16.gmra.mrb[0].mxu0 %v5238
      %v5386 = vpop.f32.mrb[0].mxu0
      %v5387 = vadd.f32 0.0, %v5386
      %v5388 = vpop.f32.mrb[0].mxu0
      %v5389 = vpop.f32.mrb[0].mxu0
      %v5390 = vadd.f32 0.0, %v5389
      %v5391 = vpop.f32.mrb[0].mxu0
      %5392 = vmatprep.mubr.bf16.mxu0 0
      %5393 = vmatmul.mubr.bf16.gmra.mrb[0].mxu0 %v5239
      %v5394 = vpop.f32.mrb[0].mxu0
      %v5395 = vadd.f32 0.0, %v5394
      %v5396 = vpop.f32.mrb[0].mxu0
      %v5397 = vpop.f32.mrb[0].mxu0
      %v5398 = vadd.f32 0.0, %v5397
      %v5399 = vpop.f32.mrb[0].mxu0
      %5400 = vmatprep.mubr.bf16.mxu0 0
      %5401 = vmatmul.mubr.bf16.gmra.mrb[0].mxu0 %v5240
      %v5402 = vpop.f32.mrb[0].mxu0
      %v5403 = vadd.f32 0.0, %v5402
      %v5404 = vpop.f32.mrb[0].mxu0
      %v5405 = vpop.f32.mrb[0].mxu0
      %v5406 = vadd.f32 0.0, %v5405
      %v5407 = vpop.f32.mrb[0].mxu0
      %5408 = vmatprep.mubr.bf16.mxu0 0
      %5409 = vmatmul.mubr.bf16.gmra.mrb[0].mxu0 %v5241
      %v5410 = vpop.f32.mrb[0].mxu0
      %v5411 = vadd.f32 0.0, %v5410
      %v5412 = vpop.f32.mrb[0].mxu0
      %v5413 = vpop.f32.mrb[0].mxu0
      %v5414 = vadd.f32 0.0, %v5413
      %v5415 = vpop.f32.mrb[0].mxu0
      %5416 = vmatprep.mubr.bf16.mxu0 0
      %5417 = vmatmul.mubr.bf16.gmra.mrb[0].mxu0 %v5242
      %v5418 = vpop.f32.mrb[0].mxu0
      %v5419 = vadd.f32 0.0, %v5418
      %v5420 = vpop.f32.mrb[0].mxu0
      %v5421 = vpop.f32.mrb[0].mxu0
      %v5422 = vadd.f32 0.0, %v5421
      %v5423 = vpop.f32.mrb[0].mxu0
      %5424 = vmatprep.mubr.bf16.mxu0 0
      %5425 = vmatmul.mubr.bf16.gmra.mrb[0].mxu0 %v5243
      %v5426 = vpop.f32.mrb[0].mxu0
      %v5427 = vadd.f32 0.0, %v5426
      %v5428 = vpop.f32.mrb[0].mxu0
      %v5429 = vpop.f32.mrb[0].mxu0
      %v5430 = vadd.f32 0.0, %v5429
      %v5431 = vpop.f32.mrb[0].mxu0
      %5432 = vdwg.mxu0
      %v5433 = vadd.f32 %v5192, %v5339
      %v5434 = vadd.f32 %v5193, %v5342
      %v5435 = vadd.f32 %v5194, %v5347
      %v5436 = vadd.f32 %v5195, %v5350
      %v5437 = vadd.f32 %v5196, %v5355
      %v5438 = vadd.f32 %v5197, %v5358
      %v5439 = vadd.f32 %v5198, %v5363
      %v5440 = vadd.f32 %v5199, %v5366
      %v5441 = vadd.f32 %v5200, %v5371
      %v5442 = vadd.f32 %v5201, %v5374
      %v5443 = vadd.f32 %v5202, %v5379
      %v5444 = vadd.f32 %v5203, %v5382
      %v5445 = vadd.f32 %v5204, %v5387
      %v5446 = vadd.f32 %v5205, %v5390
      %v5447 = vadd.f32 %v5206, %v5395
      %v5448 = vadd.f32 %v5207, %v5398
      %v5449 = vadd.f32 %v5208, %v5403
      %v5450 = vadd.f32 %v5209, %v5406
      %v5451 = vadd.f32 %v5210, %v5411
      %v5452 = vadd.f32 %v5211, %v5414
      %v5453 = vadd.f32 %v5212, %v5419
      %v5454 = vadd.f32 %v5213, %v5422
      %v5455 = vadd.f32 %v5214, %v5427
      %v5456 = vadd.f32 %v5215, %v5430
      %v5457 = vld [vmem:[%s246 + $0x70] sm:$0xf]
      %v5458 = vld [vmem:[%s246 + $0x74] sm:$0xf]
      %v5459 = vld [vmem:[%s246 + $0x78] sm:$0xf]
      %v5460 = vld [vmem:[%s246 + $0x7c] sm:$0xf]
      %v5461 = vld [vmem:[%s246 + $0x80] sm:$0xf]
      %v5462 = vld [vmem:[%s246 + $0x84] sm:$0xf]
      %v5463 = vld [vmem:[%s246 + $0x88] sm:$0xf]
      %v5464 = vld [vmem:[%s246 + $0x8c] sm:$0xf]
      %v5465 = vld [vmem:[%s246 + $0x90] sm:$0xf]
      %v5466 = vld [vmem:[%s246 + $0x94] sm:$0xf]
      %v5467 = vld [vmem:[%s246 + $0x98] sm:$0xf]
      %v5468 = vld [vmem:[%s246 + $0x9c] sm:$0xf]
      %v5469 = vld [vmem:[%s246 + $0xa0] sm:$0xf]
      %v5470 = vld [vmem:[%s246 + $0xa4] sm:$0xf]
      %v5471 = vld [vmem:[%s246 + $0xa8] sm:$0xf]
      %v5472 = vld [vmem:[%s246 + $0xac] sm:$0xf]
      %v5473 = vld [vmem:[%s246 + $0xb0] sm:$0xf]
      %v5474 = vld [vmem:[%s246 + $0xb4] sm:$0xf]
      %v5475 = vld [vmem:[%s246 + $0xb8] sm:$0xf]
      %v5476 = vld [vmem:[%s246 + $0xbc] sm:$0xf]
      %v5477 = vld [vmem:[%s246 + $0xc0] sm:$0xf]
      %v5478 = vld [vmem:[%s246 + $0xc4] sm:$0xf]
      %v5479 = vld [vmem:[%s246 + $0xc8] sm:$0xf]
      %v5480 = vld [vmem:[%s246 + $0xcc] sm:$0xf]
      %v5481 = vld [vmem:[%s246 + $0xd0] sm:$0x1]
      %v5482 = vld [vmem:[%s2031] sm:$0xf]
      %v5483 = vld [vmem:[%s2031 + $0x4] sm:$0xf]
      %v5484 = vld [vmem:[%s2031 + $0x8] sm:$0xf]
      %v5485 = vld [vmem:[%s2031 + $0xc] sm:$0xf]
      %v5486 = vld [vmem:[%s2031 + $0x10] sm:$0xf]
      %v5487 = vld [vmem:[%s2031 + $0x14] sm:$0xf]
      %v5488 = vld [vmem:[%s2031 + $0x18] sm:$0xf]
      %v5489 = vld [vmem:[%s2031 + $0x1c] sm:$0xf]
      %v5490 = vld [vmem:[%s2031 + $0x20] sm:$0xf]
      %v5491 = vld [vmem:[%s2031 + $0x24] sm:$0xf]
      %v5492 = vld [vmem:[%s2031 + $0x28] sm:$0xf]
      %v5493 = vld [vmem:[%s2031 + $0x2c] sm:$0xf]
      %v5494 = vld [vmem:[%s2031 + $0x30] sm:$0xf]
      %v5495 = vld [vmem:[%s2031 + $0x34] sm:$0xf]
      %v5496 = vld [vmem:[%s2031 + $0x38] sm:$0xf]
      %v5497 = vld [vmem:[%s2031 + $0x3c] sm:$0xf]
      %v5523 = vunpack.c.l.b16 %v5457
      %v5524 = vunpack.c.l.b16 %v5458
      %v5525 = vunpack.c.l.b16 %v5459
      %v5526 = vunpack.c.l.b16 %v5460
      %v5527 = vunpack.c.l.b16 %v5461
      %v5528 = vunpack.c.l.b16 %v5462
      %v5529 = vunpack.c.l.b16 %v5463
      %v5530 = vunpack.c.l.b16 %v5464
      %v5531 = vunpack.c.l.b16 %v5465
      %v5532 = vunpack.c.l.b16 %v5466
      %v5533 = vunpack.c.l.b16 %v5467
      %v5534 = vunpack.c.l.b16 %v5468
      %v5535 = vunpack.c.l.b16 %v5469
      %v5536 = vunpack.c.l.b16 %v5470
      %v5537 = vunpack.c.l.b16 %v5471
      %v5538 = vunpack.c.l.b16 %v5472
      %v5539 = vunpack.c.l.b16 %v5473
      %v5540 = vunpack.c.l.b16 %v5474
      %v5541 = vunpack.c.l.b16 %v5475
      %v5542 = vunpack.c.l.b16 %v5476
      %v5543 = vunpack.c.l.b16 %v5477
      %v5544 = vunpack.c.l.b16 %v5478
      %v5545 = vunpack.c.l.b16 %v5479
      %v5546 = vunpack.c.l.b16 %v5480
      %v5547 = vunpack.c.l.b16 %v5481
      %v5548 = vpack.c.b16 %v5524, %v5523
      %v5549 = vpack.c.b16 %v5526, %v5525
      %v5550 = vpack.c.b16 %v5528, %v5527
      %v5551 = vpack.c.b16 %v5530, %v5529
      %v5552 = vpack.c.b16 %v5532, %v5531
      %v5553 = vpack.c.b16 %v5534, %v5533
      %v5554 = vpack.c.b16 %v5536, %v5535
      %v5555 = vpack.c.b16 %v5538, %v5537
      %v5556 = vpack.c.b16 %v5540, %v5539
      %v5557 = vpack.c.b16 %v5542, %v5541
      %v5558 = vpack.c.b16 %v5544, %v5543
      %v5559 = vpack.c.b16 %v5546, %v5545
      %v5560 = vpack.c.b16 %v5547, %v5547
      %v5562 = vshrl.u32 %v5548, 16
      %v5564 = vshll.u32 %v5548, 16
      %v5566 = vrot.slane %v5564, 1
      %v5567 = vor.u32 %v5562, %v5566
      %v5569 = vshll.u32 %v5549, 16
      %v5571 = vrot.slane %v5569, 1
      %v5572 = vsel %vm1016, %v5567, %v5571
      %v5573 = vshrl.u32 %v5549, 16
      %v5575 = vor.u32 %v5573, %v5571
      %v5577 = vshll.u32 %v5550, 16
      %v5579 = vrot.slane %v5577, 1
      %v5580 = vsel %vm1016, %v5575, %v5579
      %v5581 = vshrl.u32 %v5550, 16
      %v5583 = vor.u32 %v5581, %v5579
      %v5585 = vshll.u32 %v5551, 16
      %v5587 = vrot.slane %v5585, 1
      %v5588 = vsel %vm1016, %v5583, %v5587
      %v5589 = vshrl.u32 %v5551, 16
      %v5591 = vor.u32 %v5589, %v5587
      %v5593 = vshll.u32 %v5552, 16
      %v5595 = vrot.slane %v5593, 1
      %v5596 = vsel %vm1016, %v5591, %v5595
      %v5597 = vshrl.u32 %v5552, 16
      %v5599 = vor.u32 %v5597, %v5595
      %v5601 = vshll.u32 %v5553, 16
      %v5603 = vrot.slane %v5601, 1
      %v5604 = vsel %vm1016, %v5599, %v5603
      %v5605 = vshrl.u32 %v5553, 16
      %v5607 = vor.u32 %v5605, %v5603
      %v5609 = vshll.u32 %v5554, 16
      %v5611 = vrot.slane %v5609, 1
      %v5612 = vsel %vm1016, %v5607, %v5611
      %v5613 = vshrl.u32 %v5554, 16
      %v5615 = vor.u32 %v5613, %v5611
      %v5617 = vshll.u32 %v5555, 16
      %v5619 = vrot.slane %v5617, 1
      %v5620 = vsel %vm1016, %v5615, %v5619
      %v5621 = vshrl.u32 %v5555, 16
      %v5623 = vor.u32 %v5621, %v5619
      %v5625 = vshll.u32 %v5556, 16
      %v5627 = vrot.slane %v5625, 1
      %v5628 = vsel %vm1016, %v5623, %v5627
      %v5629 = vshrl.u32 %v5556, 16
      %v5631 = vor.u32 %v5629, %v5627
      %v5633 = vshll.u32 %v5557, 16
      %v5635 = vrot.slane %v5633, 1
      %v5636 = vsel %vm1016, %v5631, %v5635
      %v5637 = vshrl.u32 %v5557, 16
      %v5639 = vor.u32 %v5637, %v5635
      %v5641 = vshll.u32 %v5558, 16
      %v5643 = vrot.slane %v5641, 1
      %v5644 = vsel %vm1016, %v5639, %v5643
      %v5645 = vshrl.u32 %v5558, 16
      %v5647 = vor.u32 %v5645, %v5643
      %v5649 = vshll.u32 %v5559, 16
      %v5651 = vrot.slane %v5649, 1
      %v5652 = vsel %vm1016, %v5647, %v5651
      %v5653 = vshrl.u32 %v5559, 16
      %v5655 = vor.u32 %v5653, %v5651
      %v5657 = vshll.u32 %v5560, 16
      %v5659 = vrot.slane %v5657, 1
      %v5660 = vsel %vm1016, %v5655, %v5659
      %v5689 = vunpack.c.l.b16 %v5482
      %v5690 = vunpack.c.l.b16 %v5483
      %v5691 = vunpack.c.l.b16 %v5484
      %v5692 = vunpack.c.l.b16 %v5485
      %v5693 = vunpack.c.l.b16 %v5486
      %v5694 = vunpack.c.l.b16 %v5487
      %v5695 = vunpack.c.l.b16 %v5488
      %v5696 = vunpack.c.l.b16 %v5489
      %v5697 = vunpack.c.l.b16 %v5490
      %v5698 = vunpack.c.l.b16 %v5491
      %v5699 = vunpack.c.l.b16 %v5492
      %v5700 = vunpack.c.l.b16 %v5493
      %v5701 = vunpack.c.l.b16 %v5494
      %v5702 = vunpack.c.l.b16 %v5495
      %v5703 = vunpack.c.l.b16 %v5496
      %v5704 = vunpack.c.l.b16 %v5497
      %v5705 = vpack.c.b16 %v5690, %v5689
      %v5706 = vpack.c.b16 %v5692, %v5691
      %v5707 = vpack.c.b16 %v5694, %v5693
      %v5708 = vpack.c.b16 %v5696, %v5695
      %v5709 = vpack.c.b16 %v5698, %v5697
      %v5710 = vpack.c.b16 %v5700, %v5699
      %v5711 = vpack.c.b16 %v5702, %v5701
      %v5712 = vpack.c.b16 %v5704, %v5703
      %5721 = vmatprep.subr.bf16.mxu0 0
      %5722 = vmatpush1.bf16.msra.mxu0 %v5705
      %5723 = vmatprep.subr.bf16.mxu0 0
      %5724 = vmatpush1.bf16.msra.mxu0 %v5706
      %5725 = vmatprep.subr.bf16.mxu0 0
      %5726 = vmatpush1.bf16.msra.mxu0 %v5707
      %5727 = vmatprep.subr.bf16.mxu0 0
      %5728 = vmatpush1.bf16.msra.mxu0 %v5708
      %5729 = vmatprep.subr.bf16.mxu0 0
      %5730 = vmatpush1.bf16.msra.mxu0 %v5709
      %5731 = vmatprep.subr.bf16.mxu0 0
      %5732 = vmatpush1.bf16.msra.mxu0 %v5710
      %5733 = vmatprep.subr.bf16.mxu0 0
      %5734 = vmatpush1.bf16.msra.mxu0 %v5711
      %5735 = vmatprep.subr.bf16.mxu0 0
      %5736 = vmatpush1.bf16.msra.mxu0 %v5712
      %5737 = vmatprep.subr.bf16.mxu0 0
      %5738 = vmatpush1.bf16.msra.mxu0 0
      %5739 = vmatprep.subr.bf16.mxu0 0
      %5740 = vmatpush1.bf16.msra.mxu0 0
      %5741 = vmatprep.subr.bf16.mxu0 0
      %5742 = vmatpush1.bf16.msra.mxu0 0
      %5743 = vmatprep.subr.bf16.mxu0 0
      %5744 = vmatpush1.bf16.msra.mxu0 0
      %5745 = vmatprep.subr.bf16.mxu0 0
      %5746 = vmatpush1.bf16.msra.mxu0 0
      %5747 = vmatprep.subr.bf16.mxu0 0
      %5748 = vmatpush1.bf16.msra.mxu0 0
      %5749 = vmatprep.subr.bf16.mxu0 0
      %5750 = vmatpush1.bf16.msra.mxu0 0
      %5751 = vmatprep.subr.bf16.mxu0 0
      %5752 = vmatpush1.bf16.msra.mxu0 0
      %5753 = vmatprep.mubr.bf16.mxu0 0
      %5754 = vmatmul.mubr.bf16.gmra.mrb[0].mxu0 %v5572
      %v5755 = vpop.f32.mrb[0].mxu0
      %v5756 = vadd.f32 0.0, %v5755
      %v5757 = vpop.f32.mrb[0].mxu0
      %v5758 = vpop.f32.mrb[0].mxu0
      %v5759 = vadd.f32 0.0, %v5758
      %v5760 = vpop.f32.mrb[0].mxu0
      %5761 = vmatprep.mubr.bf16.mxu0 0
      %5762 = vmatmul.mubr.bf16.gmra.mrb[0].mxu0 %v5580
      %v5763 = vpop.f32.mrb[0].mxu0
      %v5764 = vadd.f32 0.0, %v5763
      %v5765 = vpop.f32.mrb[0].mxu0
      %v5766 = vpop.f32.mrb[0].mxu0
      %v5767 = vadd.f32 0.0, %v5766
      %v5768 = vpop.f32.mrb[0].mxu0
      %5769 = vmatprep.mubr.bf16.mxu0 0
      %5770 = vmatmul.mubr.bf16.gmra.mrb[0].mxu0 %v5588
      %v5771 = vpop.f32.mrb[0].mxu0
      %v5772 = vadd.f32 0.0, %v5771
      %v5773 = vpop.f32.mrb[0].mxu0
      %v5774 = vpop.f32.mrb[0].mxu0
      %v5775 = vadd.f32 0.0, %v5774
      %v5776 = vpop.f32.mrb[0].mxu0
      %5777 = vmatprep.mubr.bf16.mxu0 0
      %5778 = vmatmul.mubr.bf16.gmra.mrb[0].mxu0 %v5596
      %v5779 = vpop.f32.mrb[0].mxu0
      %v5780 = vadd.f32 0.0, %v5779
      %v5781 = vpop.f32.mrb[0].mxu0
      %v5782 = vpop.f32.mrb[0].mxu0
      %v5783 = vadd.f32 0.0, %v5782
      %v5784 = vpop.f32.mrb[0].mxu0
      %5785 = vmatprep.mubr.bf16.mxu0 0
      %5786 = vmatmul.mubr.bf16.gmra.mrb[0].mxu0 %v5604
      %v5787 = vpop.f32.mrb[0].mxu0
      %v5788 = vadd.f32 0.0, %v5787
      %v5789 = vpop.f32.mrb[0].mxu0
      %v5790 = vpop.f32.mrb[0].mxu0
      %v5791 = vadd.f32 0.0, %v5790
      %v5792 = vpop.f32.mrb[0].mxu0
      %5793 = vmatprep.mubr.bf16.mxu0 0
      %5794 = vmatmul.mubr.bf16.gmra.mrb[0].mxu0 %v5612
      %v5795 = vpop.f32.mrb[0].mxu0
      %v5796 = vadd.f32 0.0, %v5795
      %v5797 = vpop.f32.mrb[0].mxu0
      %v5798 = vpop.f32.mrb[0].mxu0
      %v5799 = vadd.f32 0.0, %v5798
      %v5800 = vpop.f32.mrb[0].mxu0
      %5801 = vmatprep.mubr.bf16.mxu0 0
      %5802 = vmatmul.mubr.bf16.gmra.mrb[0].mxu0 %v5620
      %v5803 = vpop.f32.mrb[0].mxu0
      %v5804 = vadd.f32 0.0, %v5803
      %v5805 = vpop.f32.mrb[0].mxu0
      %v5806 = vpop.f32.mrb[0].mxu0
      %v5807 = vadd.f32 0.0, %v5806
      %v5808 = vpop.f32.mrb[0].mxu0
      %5809 = vmatprep.mubr.bf16.mxu0 0
      %5810 = vmatmul.mubr.bf16.gmra.mrb[0].mxu0 %v5628
      %v5811 = vpop.f32.mrb[0].mxu0
      %v5812 = vadd.f32 0.0, %v5811
      %v5813 = vpop.f32.mrb[0].mxu0
      %v5814 = vpop.f32.mrb[0].mxu0
      %v5815 = vadd.f32 0.0, %v5814
      %v5816 = vpop.f32.mrb[0].mxu0
      %5817 = vmatprep.mubr.bf16.mxu0 0
      %5818 = vmatmul.mubr.bf16.gmra.mrb[0].mxu0 %v5636
      %v5819 = vpop.f32.mrb[0].mxu0
      %v5820 = vadd.f32 0.0, %v5819
      %v5821 = vpop.f32.mrb[0].mxu0
      %v5822 = vpop.f32.mrb[0].mxu0
      %v5823 = vadd.f32 0.0, %v5822
      %v5824 = vpop.f32.mrb[0].mxu0
      %5825 = vmatprep.mubr.bf16.mxu0 0
      %5826 = vmatmul.mubr.bf16.gmra.mrb[0].mxu0 %v5644
      %v5827 = vpop.f32.mrb[0].mxu0
      %v5828 = vadd.f32 0.0, %v5827
      %v5829 = vpop.f32.mrb[0].mxu0
      %v5830 = vpop.f32.mrb[0].mxu0
      %v5831 = vadd.f32 0.0, %v5830
      %v5832 = vpop.f32.mrb[0].mxu0
      %5833 = vmatprep.mubr.bf16.mxu0 0
      %5834 = vmatmul.mubr.bf16.gmra.mrb[0].mxu0 %v5652
      %v5835 = vpop.f32.mrb[0].mxu0
      %v5836 = vadd.f32 0.0, %v5835
      %v5837 = vpop.f32.mrb[0].mxu0
      %v5838 = vpop.f32.mrb[0].mxu0
      %v5839 = vadd.f32 0.0, %v5838
      %v5840 = vpop.f32.mrb[0].mxu0
      %5841 = vmatprep.mubr.bf16.mxu0 0
      %5842 = vmatmul.mubr.bf16.gmra.mrb[0].mxu0 %v5660
      %v5843 = vpop.f32.mrb[0].mxu0
      %v5844 = vadd.f32 0.0, %v5843
      %v5845 = vpop.f32.mrb[0].mxu0
      %v5846 = vpop.f32.mrb[0].mxu0
      %v5847 = vadd.f32 0.0, %v5846
      %v5848 = vpop.f32.mrb[0].mxu0
      %5849 = vdwg.mxu0
      %v5850 = vadd.f32 %v5433, %v5756
      %v5851 = vadd.f32 %v5434, %v5759
      %v5852 = vadd.f32 %v5435, %v5764
      %v5853 = vadd.f32 %v5436, %v5767
      %v5854 = vadd.f32 %v5437, %v5772
      %v5855 = vadd.f32 %v5438, %v5775
      %v5856 = vadd.f32 %v5439, %v5780
      %v5857 = vadd.f32 %v5440, %v5783
      %v5858 = vadd.f32 %v5441, %v5788
      %v5859 = vadd.f32 %v5442, %v5791
      %v5860 = vadd.f32 %v5443, %v5796
      %v5861 = vadd.f32 %v5444, %v5799
      %v5862 = vadd.f32 %v5445, %v5804
      %v5863 = vadd.f32 %v5446, %v5807
      %v5864 = vadd.f32 %v5447, %v5812
      %v5865 = vadd.f32 %v5448, %v5815
      %v5866 = vadd.f32 %v5449, %v5820
      %v5867 = vadd.f32 %v5450, %v5823
      %v5868 = vadd.f32 %v5451, %v5828
      %v5869 = vadd.f32 %v5452, %v5831
      %v5870 = vadd.f32 %v5453, %v5836
      %v5871 = vadd.f32 %v5454, %v5839
      %v5872 = vadd.f32 %v5455, %v5844
      %v5873 = vadd.f32 %v5456, %v5847
      %v5874 = vld [vmem:[%s246 + $0x78] sm:$0x8]
      %v5875 = vld [vmem:[%s246 + $0x7c] sm:$0xf]
      %v5876 = vld [vmem:[%s246 + $0x80] sm:$0xf]
      %v5877 = vld [vmem:[%s246 + $0x84] sm:$0xf]
      %v5878 = vld [vmem:[%s246 + $0x88] sm:$0xf]
      %v5879 = vld [vmem:[%s246 + $0x8c] sm:$0xf]
      %v5880 = vld [vmem:[%s246 + $0x90] sm:$0xf]
      %v5881 = vld [vmem:[%s246 + $0x94] sm:$0xf]
      %v5882 = vld [vmem:[%s246 + $0x98] sm:$0xf]
      %v5883 = vld [vmem:[%s246 + $0x9c] sm:$0xf]
      %v5884 = vld [vmem:[%s246 + $0xa0] sm:$0xf]
      %v5885 = vld [vmem:[%s246 + $0xa4] sm:$0xf]
      %v5886 = vld [vmem:[%s246 + $0xa8] sm:$0xf]
      %v5887 = vld [vmem:[%s246 + $0xac] sm:$0xf]
      %v5888 = vld [vmem:[%s246 + $0xb0] sm:$0xf]
      %v5889 = vld [vmem:[%s246 + $0xb4] sm:$0xf]
      %v5890 = vld [vmem:[%s246 + $0xb8] sm:$0xf]
      %v5891 = vld [vmem:[%s246 + $0xbc] sm:$0xf]
      %v5892 = vld [vmem:[%s246 + $0xc0] sm:$0xf]
      %v5893 = vld [vmem:[%s246 + $0xc4] sm:$0xf]
      %v5894 = vld [vmem:[%s246 + $0xc8] sm:$0xf]
      %v5895 = vld [vmem:[%s246 + $0xcc] sm:$0xf]
      %v5896 = vld [vmem:[%s246 + $0xd0] sm:$0xf]
      %v5897 = vld [vmem:[%s246 + $0xd4] sm:$0xf]
      %v5898 = vld [vmem:[%s246 + $0xd8] sm:$0xf]
      %v5899 = vld [vmem:[%s2449] sm:$0xf]
      %v5900 = vld [vmem:[%s2449 + $0x4] sm:$0xf]
      %v5901 = vld [vmem:[%s2449 + $0x8] sm:$0xf]
      %v5902 = vld [vmem:[%s2449 + $0xc] sm:$0xf]
      %v5903 = vld [vmem:[%s2449 + $0x10] sm:$0xf]
      %v5904 = vld [vmem:[%s2449 + $0x14] sm:$0xf]
      %v5905 = vld [vmem:[%s2449 + $0x18] sm:$0xf]
      %v5906 = vld [vmem:[%s2449 + $0x1c] sm:$0xf]
      %v5907 = vld [vmem:[%s2449 + $0x20] sm:$0xf]
      %v5908 = vld [vmem:[%s2449 + $0x24] sm:$0xf]
      %v5909 = vld [vmem:[%s2449 + $0x28] sm:$0xf]
      %v5910 = vld [vmem:[%s2449 + $0x2c] sm:$0xf]
      %v5911 = vld [vmem:[%s2449 + $0x30] sm:$0xf]
      %v5912 = vld [vmem:[%s2449 + $0x34] sm:$0xf]
      %v5913 = vld [vmem:[%s2449 + $0x38] sm:$0xf]
      %v5914 = vld [vmem:[%s2449 + $0x3c] sm:$0xf]
      %v5940 = vunpack.c.l.b16 %v5874
      %v5941 = vunpack.c.l.b16 %v5875
      %v5942 = vunpack.c.l.b16 %v5876
      %v5943 = vunpack.c.l.b16 %v5877
      %v5944 = vunpack.c.l.b16 %v5878
      %v5945 = vunpack.c.l.b16 %v5879
      %v5946 = vunpack.c.l.b16 %v5880
      %v5947 = vunpack.c.l.b16 %v5881
      %v5948 = vunpack.c.l.b16 %v5882
      %v5949 = vunpack.c.l.b16 %v5883
      %v5950 = vunpack.c.l.b16 %v5884
      %v5951 = vunpack.c.l.b16 %v5885
      %v5952 = vunpack.c.l.b16 %v5886
      %v5953 = vunpack.c.l.b16 %v5887
      %v5954 = vunpack.c.l.b16 %v5888
      %v5955 = vunpack.c.l.b16 %v5889
      %v5956 = vunpack.c.l.b16 %v5890
      %v5957 = vunpack.c.l.b16 %v5891
      %v5958 = vunpack.c.l.b16 %v5892
      %v5959 = vunpack.c.l.b16 %v5893
      %v5960 = vunpack.c.l.b16 %v5894
      %v5961 = vunpack.c.l.b16 %v5895
      %v5962 = vunpack.c.l.b16 %v5896
      %v5963 = vunpack.c.l.b16 %v5897
      %v5964 = vunpack.c.l.b16 %v5898
      %v5965 = vpack.c.b16 %v5941, %v5940
      %v5966 = vpack.c.b16 %v5943, %v5942
      %v5967 = vpack.c.b16 %v5945, %v5944
      %v5968 = vpack.c.b16 %v5947, %v5946
      %v5969 = vpack.c.b16 %v5949, %v5948
      %v5970 = vpack.c.b16 %v5951, %v5950
      %v5971 = vpack.c.b16 %v5953, %v5952
      %v5972 = vpack.c.b16 %v5955, %v5954
      %v5973 = vpack.c.b16 %v5957, %v5956
      %v5974 = vpack.c.b16 %v5959, %v5958
      %v5975 = vpack.c.b16 %v5961, %v5960
      %v5976 = vpack.c.b16 %v5963, %v5962
      %v5977 = vpack.c.b16 %v5964, %v5964
      %v5979 = vshrl.u32 %v5965, 16
      %v5981 = vrot.slane %v5979, 3
      %v5982 = vshll.u32 %v5965, 16
      %v5984 = vrot.slane %v5982, 4
      %v5985 = vor.u32 %v5981, %v5984
      %v5987 = vshrl.u32 %v5966, 16
      %v5989 = vrot.slane %v5987, 3
      %v5990 = vshll.u32 %v5966, 16
      %v5992 = vrot.slane %v5990, 4
      %v5993 = vor.u32 %v5989, %v5992
      %v5994 = vsel %vm605, %v5985, %v5993
      %v5996 = vshrl.u32 %v5967, 16
      %v5998 = vrot.slane %v5996, 3
      %v5999 = vshll.u32 %v5967, 16
      %v6001 = vrot.slane %v5999, 4
      %v6002 = vor.u32 %v5998, %v6001
      %v6003 = vsel %vm605, %v5993, %v6002
      %v6005 = vshrl.u32 %v5968, 16
      %v6007 = vrot.slane %v6005, 3
      %v6008 = vshll.u32 %v5968, 16
      %v6010 = vrot.slane %v6008, 4
      %v6011 = vor.u32 %v6007, %v6010
      %v6012 = vsel %vm605, %v6002, %v6011
      %v6014 = vshrl.u32 %v5969, 16
      %v6016 = vrot.slane %v6014, 3
      %v6017 = vshll.u32 %v5969, 16
      %v6019 = vrot.slane %v6017, 4
      %v6020 = vor.u32 %v6016, %v6019
      %v6021 = vsel %vm605, %v6011, %v6020
      %v6023 = vshrl.u32 %v5970, 16
      %v6025 = vrot.slane %v6023, 3
      %v6026 = vshll.u32 %v5970, 16
      %v6028 = vrot.slane %v6026, 4
      %v6029 = vor.u32 %v6025, %v6028
      %v6030 = vsel %vm605, %v6020, %v6029
      %v6032 = vshrl.u32 %v5971, 16
      %v6034 = vrot.slane %v6032, 3
      %v6035 = vshll.u32 %v5971, 16
      %v6037 = vrot.slane %v6035, 4
      %v6038 = vor.u32 %v6034, %v6037
      %v6039 = vsel %vm605, %v6029, %v6038
      %v6041 = vshrl.u32 %v5972, 16
      %v6043 = vrot.slane %v6041, 3
      %v6044 = vshll.u32 %v5972, 16
      %v6046 = vrot.slane %v6044, 4
      %v6047 = vor.u32 %v6043, %v6046
      %v6048 = vsel %vm605, %v6038, %v6047
      %v6050 = vshrl.u32 %v5973, 16
      %v6052 = vrot.slane %v6050, 3
      %v6053 = vshll.u32 %v5973, 16
      %v6055 = vrot.slane %v6053, 4
      %v6056 = vor.u32 %v6052, %v6055
      %v6057 = vsel %vm605, %v6047, %v6056
      %v6059 = vshrl.u32 %v5974, 16
      %v6061 = vrot.slane %v6059, 3
      %v6062 = vshll.u32 %v5974, 16
      %v6064 = vrot.slane %v6062, 4
      %v6065 = vor.u32 %v6061, %v6064
      %v6066 = vsel %vm605, %v6056, %v6065
      %v6068 = vshrl.u32 %v5975, 16
      %v6070 = vrot.slane %v6068, 3
      %v6071 = vshll.u32 %v5975, 16
      %v6073 = vrot.slane %v6071, 4
      %v6074 = vor.u32 %v6070, %v6073
      %v6075 = vsel %vm605, %v6065, %v6074
      %v6077 = vshrl.u32 %v5976, 16
      %v6079 = vrot.slane %v6077, 3
      %v6080 = vshll.u32 %v5976, 16
      %v6082 = vrot.slane %v6080, 4
      %v6083 = vor.u32 %v6079, %v6082
      %v6084 = vsel %vm605, %v6074, %v6083
      %v6086 = vshrl.u32 %v5977, 16
      %v6088 = vrot.slane %v6086, 3
      %v6089 = vshll.u32 %v5977, 16
      %v6091 = vrot.slane %v6089, 4
      %v6092 = vor.u32 %v6088, %v6091
      %v6093 = vsel %vm605, %v6083, %v6092
      %v6122 = vunpack.c.l.b16 %v5899
      %v6123 = vunpack.c.l.b16 %v5900
      %v6124 = vunpack.c.l.b16 %v5901
      %v6125 = vunpack.c.l.b16 %v5902
      %v6126 = vunpack.c.l.b16 %v5903
      %v6127 = vunpack.c.l.b16 %v5904
      %v6128 = vunpack.c.l.b16 %v5905
      %v6129 = vunpack.c.l.b16 %v5906
      %v6130 = vunpack.c.l.b16 %v5907
      %v6131 = vunpack.c.l.b16 %v5908
      %v6132 = vunpack.c.l.b16 %v5909
      %v6133 = vunpack.c.l.b16 %v5910
      %v6134 = vunpack.c.l.b16 %v5911
      %v6135 = vunpack.c.l.b16 %v5912
      %v6136 = vunpack.c.l.b16 %v5913
      %v6137 = vunpack.c.l.b16 %v5914
      %v6138 = vpack.c.b16 %v6123, %v6122
      %v6139 = vpack.c.b16 %v6125, %v6124
      %v6140 = vpack.c.b16 %v6127, %v6126
      %v6141 = vpack.c.b16 %v6129, %v6128
      %v6142 = vpack.c.b16 %v6131, %v6130
      %v6143 = vpack.c.b16 %v6133, %v6132
      %v6144 = vpack.c.b16 %v6135, %v6134
      %v6145 = vpack.c.b16 %v6137, %v6136
      %6154 = vmatprep.subr.bf16.mxu0 0
      %6155 = vmatpush1.bf16.msra.mxu0 %v6138
      %6156 = vmatprep.subr.bf16.mxu0 0
      %6157 = vmatpush1.bf16.msra.mxu0 %v6139
      %6158 = vmatprep.subr.bf16.mxu0 0
      %6159 = vmatpush1.bf16.msra.mxu0 %v6140
      %6160 = vmatprep.subr.bf16.mxu0 0
      %6161 = vmatpush1.bf16.msra.mxu0 %v6141
      %6162 = vmatprep.subr.bf16.mxu0 0
      %6163 = vmatpush1.bf16.msra.mxu0 %v6142
      %6164 = vmatprep.subr.bf16.mxu0 0
      %6165 = vmatpush1.bf16.msra.mxu0 %v6143
      %6166 = vmatprep.subr.bf16.mxu0 0
      %6167 = vmatpush1.bf16.msra.mxu0 %v6144
      %6168 = vmatprep.subr.bf16.mxu0 0
      %6169 = vmatpush1.bf16.msra.mxu0 %v6145
      %6170 = vmatprep.subr.bf16.mxu0 0
      %6171 = vmatpush1.bf16.msra.mxu0 0
      %6172 = vmatprep.subr.bf16.mxu0 0
      %6173 = vmatpush1.bf16.msra.mxu0 0
      %6174 = vmatprep.subr.bf16.mxu0 0
      %6175 = vmatpush1.bf16.msra.mxu0 0
      %6176 = vmatprep.subr.bf16.mxu0 0
      %6177 = vmatpush1.bf16.msra.mxu0 0
      %6178 = vmatprep.subr.bf16.mxu0 0
      %6179 = vmatpush1.bf16.msra.mxu0 0
      %6180 = vmatprep.subr.bf16.mxu0 0
      %6181 = vmatpush1.bf16.msra.mxu0 0
      %6182 = vmatprep.subr.bf16.mxu0 0
      %6183 = vmatpush1.bf16.msra.mxu0 0
      %6184 = vmatprep.subr.bf16.mxu0 0
      %6185 = vmatpush1.bf16.msra.mxu0 0
      %6186 = vmatprep.mubr.bf16.mxu0 0
      %6187 = vmatmul.mubr.bf16.gmra.mrb[0].mxu0 %v5994
      %v6188 = vpop.f32.mrb[0].mxu0
      %v6189 = vadd.f32 0.0, %v6188
      %v6190 = vpop.f32.mrb[0].mxu0
      %v6191 = vpop.f32.mrb[0].mxu0
      %v6192 = vadd.f32 0.0, %v6191
      %v6193 = vpop.f32.mrb[0].mxu0
      %6194 = vmatprep.mubr.bf16.mxu0 0
      %6195 = vmatmul.mubr.bf16.gmra.mrb[0].mxu0 %v6003
      %v6196 = vpop.f32.mrb[0].mxu0
      %v6197 = vadd.f32 0.0, %v6196
      %v6198 = vpop.f32.mrb[0].mxu0
      %v6199 = vpop.f32.mrb[0].mxu0
      %v6200 = vadd.f32 0.0, %v6199
      %v6201 = vpop.f32.mrb[0].mxu0
      %6202 = vmatprep.mubr.bf16.mxu0 0
      %6203 = vmatmul.mubr.bf16.gmra.mrb[0].mxu0 %v6012
      %v6204 = vpop.f32.mrb[0].mxu0
      %v6205 = vadd.f32 0.0, %v6204
      %v6206 = vpop.f32.mrb[0].mxu0
      %v6207 = vpop.f32.mrb[0].mxu0
      %v6208 = vadd.f32 0.0, %v6207
      %v6209 = vpop.f32.mrb[0].mxu0
      %6210 = vmatprep.mubr.bf16.mxu0 0
      %6211 = vmatmul.mubr.bf16.gmra.mrb[0].mxu0 %v6021
      %v6212 = vpop.f32.mrb[0].mxu0
      %v6213 = vadd.f32 0.0, %v6212
      %v6214 = vpop.f32.mrb[0].mxu0
      %v6215 = vpop.f32.mrb[0].mxu0
      %v6216 = vadd.f32 0.0, %v6215
      %v6217 = vpop.f32.mrb[0].mxu0
      %6218 = vmatprep.mubr.bf16.mxu0 0
      %6219 = vmatmul.mubr.bf16.gmra.mrb[0].mxu0 %v6030
      %v6220 = vpop.f32.mrb[0].mxu0
      %v6221 = vadd.f32 0.0, %v6220
      %v6222 = vpop.f32.mrb[0].mxu0
      %v6223 = vpop.f32.mrb[0].mxu0
      %v6224 = vadd.f32 0.0, %v6223
      %v6225 = vpop.f32.mrb[0].mxu0
      %6226 = vmatprep.mubr.bf16.mxu0 0
      %6227 = vmatmul.mubr.bf16.gmra.mrb[0].mxu0 %v6039
      %v6228 = vpop.f32.mrb[0].mxu0
      %v6229 = vadd.f32 0.0, %v6228
      %v6230 = vpop.f32.mrb[0].mxu0
      %v6231 = vpop.f32.mrb[0].mxu0
      %v6232 = vadd.f32 0.0, %v6231
      %v6233 = vpop.f32.mrb[0].mxu0
      %6234 = vmatprep.mubr.bf16.mxu0 0
      %6235 = vmatmul.mubr.bf16.gmra.mrb[0].mxu0 %v6048
      %v6236 = vpop.f32.mrb[0].mxu0
      %v6237 = vadd.f32 0.0, %v6236
      %v6238 = vpop.f32.mrb[0].mxu0
      %v6239 = vpop.f32.mrb[0].mxu0
      %v6240 = vadd.f32 0.0, %v6239
      %v6241 = vpop.f32.mrb[0].mxu0
      %6242 = vmatprep.mubr.bf16.mxu0 0
      %6243 = vmatmul.mubr.bf16.gmra.mrb[0].mxu0 %v6057
      %v6244 = vpop.f32.mrb[0].mxu0
      %v6245 = vadd.f32 0.0, %v6244
      %v6246 = vpop.f32.mrb[0].mxu0
      %v6247 = vpop.f32.mrb[0].mxu0
      %v6248 = vadd.f32 0.0, %v6247
      %v6249 = vpop.f32.mrb[0].mxu0
      %6250 = vmatprep.mubr.bf16.mxu0 0
      %6251 = vmatmul.mubr.bf16.gmra.mrb[0].mxu0 %v6066
      %v6252 = vpop.f32.mrb[0].mxu0
      %v6253 = vadd.f32 0.0, %v6252
      %v6254 = vpop.f32.mrb[0].mxu0
      %v6255 = vpop.f32.mrb[0].mxu0
      %v6256 = vadd.f32 0.0, %v6255
      %v6257 = vpop.f32.mrb[0].mxu0
      %6258 = vmatprep.mubr.bf16.mxu0 0
      %6259 = vmatmul.mubr.bf16.gmra.mrb[0].mxu0 %v6075
      %v6260 = vpop.f32.mrb[0].mxu0
      %v6261 = vadd.f32 0.0, %v6260
      %v6262 = vpop.f32.mrb[0].mxu0
      %v6263 = vpop.f32.mrb[0].mxu0
      %v6264 = vadd.f32 0.0, %v6263
      %v6265 = vpop.f32.mrb[0].mxu0
      %6266 = vmatprep.mubr.bf16.mxu0 0
      %6267 = vmatmul.mubr.bf16.gmra.mrb[0].mxu0 %v6084
      %v6268 = vpop.f32.mrb[0].mxu0
      %v6269 = vadd.f32 0.0, %v6268
      %v6270 = vpop.f32.mrb[0].mxu0
      %v6271 = vpop.f32.mrb[0].mxu0
      %v6272 = vadd.f32 0.0, %v6271
      %v6273 = vpop.f32.mrb[0].mxu0
      %6274 = vmatprep.mubr.bf16.mxu0 0
      %6275 = vmatmul.mubr.bf16.gmra.mrb[0].mxu0 %v6093
      %v6276 = vpop.f32.mrb[0].mxu0
      %v6277 = vadd.f32 0.0, %v6276
      %v6278 = vpop.f32.mrb[0].mxu0
      %v6279 = vpop.f32.mrb[0].mxu0
      %v6280 = vadd.f32 0.0, %v6279
      %v6281 = vpop.f32.mrb[0].mxu0
      %6282 = vdwg.mxu0
      %v6283 = vadd.f32 %v5850, %v6189
      %v6284 = vadd.f32 %v5851, %v6192
      %v6285 = vadd.f32 %v5852, %v6197
      %v6286 = vadd.f32 %v5853, %v6200
      %v6287 = vadd.f32 %v5854, %v6205
      %v6288 = vadd.f32 %v5855, %v6208
      %v6289 = vadd.f32 %v5856, %v6213
      %v6290 = vadd.f32 %v5857, %v6216
      %v6291 = vadd.f32 %v5858, %v6221
      %v6292 = vadd.f32 %v5859, %v6224
      %v6293 = vadd.f32 %v5860, %v6229
      %v6294 = vadd.f32 %v5861, %v6232
      %v6295 = vadd.f32 %v5862, %v6237
      %v6296 = vadd.f32 %v5863, %v6240
      %v6297 = vadd.f32 %v5864, %v6245
      %v6298 = vadd.f32 %v5865, %v6248
      %v6299 = vadd.f32 %v5866, %v6253
      %v6300 = vadd.f32 %v5867, %v6256
      %v6301 = vadd.f32 %v5868, %v6261
      %v6302 = vadd.f32 %v5869, %v6264
      %v6303 = vadd.f32 %v5870, %v6269
      %v6304 = vadd.f32 %v5871, %v6272
      %v6305 = vadd.f32 %v5872, %v6277
      %v6306 = vadd.f32 %v5873, %v6280
      %v6307 = vld [vmem:[%s2858] sm:$0xf]
      %v6308 = vld [vmem:[%s2858 + $0x4] sm:$0xf]
      %v6309 = vld [vmem:[%s2858 + $0x8] sm:$0xf]
      %v6310 = vld [vmem:[%s2858 + $0xc] sm:$0xf]
      %v6311 = vld [vmem:[%s2858 + $0x10] sm:$0xf]
      %v6312 = vld [vmem:[%s2858 + $0x14] sm:$0xf]
      %v6313 = vld [vmem:[%s2858 + $0x18] sm:$0xf]
      %v6314 = vld [vmem:[%s2858 + $0x1c] sm:$0xf]
      %v6315 = vld [vmem:[%s2858 + $0x20] sm:$0xf]
      %v6316 = vld [vmem:[%s2858 + $0x24] sm:$0xf]
      %v6317 = vld [vmem:[%s2858 + $0x28] sm:$0xf]
      %v6318 = vld [vmem:[%s2858 + $0x2c] sm:$0xf]
      %v6319 = vld [vmem:[%s2858 + $0x30] sm:$0xf]
      %v6320 = vld [vmem:[%s2858 + $0x34] sm:$0xf]
      %v6321 = vld [vmem:[%s2858 + $0x38] sm:$0xf]
      %v6322 = vld [vmem:[%s2858 + $0x3c] sm:$0xf]
      %v6323 = vpack.c.b16 %v5942, %v5941
      %v6324 = vpack.c.b16 %v5944, %v5943
      %v6325 = vpack.c.b16 %v5946, %v5945
      %v6326 = vpack.c.b16 %v5948, %v5947
      %v6327 = vpack.c.b16 %v5950, %v5949
      %v6328 = vpack.c.b16 %v5952, %v5951
      %v6329 = vpack.c.b16 %v5954, %v5953
      %v6330 = vpack.c.b16 %v5956, %v5955
      %v6331 = vpack.c.b16 %v5958, %v5957
      %v6332 = vpack.c.b16 %v5960, %v5959
      %v6333 = vpack.c.b16 %v5962, %v5961
      %v6334 = vpack.c.b16 %v5964, %v5963
      %v6363 = vunpack.c.l.b16 %v6307
      %v6364 = vunpack.c.l.b16 %v6308
      %v6365 = vunpack.c.l.b16 %v6309
      %v6366 = vunpack.c.l.b16 %v6310
      %v6367 = vunpack.c.l.b16 %v6311
      %v6368 = vunpack.c.l.b16 %v6312
      %v6369 = vunpack.c.l.b16 %v6313
      %v6370 = vunpack.c.l.b16 %v6314
      %v6371 = vunpack.c.l.b16 %v6315
      %v6372 = vunpack.c.l.b16 %v6316
      %v6373 = vunpack.c.l.b16 %v6317
      %v6374 = vunpack.c.l.b16 %v6318
      %v6375 = vunpack.c.l.b16 %v6319
      %v6376 = vunpack.c.l.b16 %v6320
      %v6377 = vunpack.c.l.b16 %v6321
      %v6378 = vunpack.c.l.b16 %v6322
      %v6379 = vpack.c.b16 %v6364, %v6363
      %v6380 = vpack.c.b16 %v6366, %v6365
      %v6381 = vpack.c.b16 %v6368, %v6367
      %v6382 = vpack.c.b16 %v6370, %v6369
      %v6383 = vpack.c.b16 %v6372, %v6371
      %v6384 = vpack.c.b16 %v6374, %v6373
      %v6385 = vpack.c.b16 %v6376, %v6375
      %v6386 = vpack.c.b16 %v6378, %v6377
      %6395 = vmatprep.subr.bf16.mxu0 0
      %6396 = vmatpush1.bf16.msra.mxu0 %v6379
      %6397 = vmatprep.subr.bf16.mxu0 0
      %6398 = vmatpush1.bf16.msra.mxu0 %v6380
      %6399 = vmatprep.subr.bf16.mxu0 0
      %6400 = vmatpush1.bf16.msra.mxu0 %v6381
      %6401 = vmatprep.subr.bf16.mxu0 0
      %6402 = vmatpush1.bf16.msra.mxu0 %v6382
      %6403 = vmatprep.subr.bf16.mxu0 0
      %6404 = vmatpush1.bf16.msra.mxu0 %v6383
      %6405 = vmatprep.subr.bf16.mxu0 0
      %6406 = vmatpush1.bf16.msra.mxu0 %v6384
      %6407 = vmatprep.subr.bf16.mxu0 0
      %6408 = vmatpush1.bf16.msra.mxu0 %v6385
      %6409 = vmatprep.subr.bf16.mxu0 0
      %6410 = vmatpush1.bf16.msra.mxu0 %v6386
      %6411 = vmatprep.subr.bf16.mxu0 0
      %6412 = vmatpush1.bf16.msra.mxu0 0
      %6413 = vmatprep.subr.bf16.mxu0 0
      %6414 = vmatpush1.bf16.msra.mxu0 0
      %6415 = vmatprep.subr.bf16.mxu0 0
      %6416 = vmatpush1.bf16.msra.mxu0 0
      %6417 = vmatprep.subr.bf16.mxu0 0
      %6418 = vmatpush1.bf16.msra.mxu0 0
      %6419 = vmatprep.subr.bf16.mxu0 0
      %6420 = vmatpush1.bf16.msra.mxu0 0
      %6421 = vmatprep.subr.bf16.mxu0 0
      %6422 = vmatpush1.bf16.msra.mxu0 0
      %6423 = vmatprep.subr.bf16.mxu0 0
      %6424 = vmatpush1.bf16.msra.mxu0 0
      %6425 = vmatprep.subr.bf16.mxu0 0
      %6426 = vmatpush1.bf16.msra.mxu0 0
      %6427 = vmatprep.mubr.bf16.mxu0 0
      %6428 = vmatmul.mubr.bf16.gmra.mrb[0].mxu0 %v6323
      %v6429 = vpop.f32.mrb[0].mxu0
      %v6430 = vadd.f32 0.0, %v6429
      %v6431 = vpop.f32.mrb[0].mxu0
      %v6432 = vpop.f32.mrb[0].mxu0
      %v6433 = vadd.f32 0.0, %v6432
      %v6434 = vpop.f32.mrb[0].mxu0
      %6435 = vmatprep.mubr.bf16.mxu0 0
      %6436 = vmatmul.mubr.bf16.gmra.mrb[0].mxu0 %v6324
      %v6437 = vpop.f32.mrb[0].mxu0
      %v6438 = vadd.f32 0.0, %v6437
      %v6439 = vpop.f32.mrb[0].mxu0
      %v6440 = vpop.f32.mrb[0].mxu0
      %v6441 = vadd.f32 0.0, %v6440
      %v6442 = vpop.f32.mrb[0].mxu0
      %6443 = vmatprep.mubr.bf16.mxu0 0
      %6444 = vmatmul.mubr.bf16.gmra.mrb[0].mxu0 %v6325
      %v6445 = vpop.f32.mrb[0].mxu0
      %v6446 = vadd.f32 0.0, %v6445
      %v6447 = vpop.f32.mrb[0].mxu0
      %v6448 = vpop.f32.mrb[0].mxu0
      %v6449 = vadd.f32 0.0, %v6448
      %v6450 = vpop.f32.mrb[0].mxu0
      %6451 = vmatprep.mubr.bf16.mxu0 0
      %6452 = vmatmul.mubr.bf16.gmra.mrb[0].mxu0 %v6326
      %v6453 = vpop.f32.mrb[0].mxu0
      %v6454 = vadd.f32 0.0, %v6453
      %v6455 = vpop.f32.mrb[0].mxu0
      %v6456 = vpop.f32.mrb[0].mxu0
      %v6457 = vadd.f32 0.0, %v6456
      %v6458 = vpop.f32.mrb[0].mxu0
      %6459 = vmatprep.mubr.bf16.mxu0 0
      %6460 = vmatmul.mubr.bf16.gmra.mrb[0].mxu0 %v6327
      %v6461 = vpop.f32.mrb[0].mxu0
      %v6462 = vadd.f32 0.0, %v6461
      %v6463 = vpop.f32.mrb[0].mxu0
      %v6464 = vpop.f32.mrb[0].mxu0
      %v6465 = vadd.f32 0.0, %v6464
      %v6466 = vpop.f32.mrb[0].mxu0
      %6467 = vmatprep.mubr.bf16.mxu0 0
      %6468 = vmatmul.mubr.bf16.gmra.mrb[0].mxu0 %v6328
      %v6469 = vpop.f32.mrb[0].mxu0
      %v6470 = vadd.f32 0.0, %v6469
      %v6471 = vpop.f32.mrb[0].mxu0
      %v6472 = vpop.f32.mrb[0].mxu0
      %v6473 = vadd.f32 0.0, %v6472
      %v6474 = vpop.f32.mrb[0].mxu0
      %6475 = vmatprep.mubr.bf16.mxu0 0
      %6476 = vmatmul.mubr.bf16.gmra.mrb[0].mxu0 %v6329
      %v6477 = vpop.f32.mrb[0].mxu0
      %v6478 = vadd.f32 0.0, %v6477
      %v6479 = vpop.f32.mrb[0].mxu0
      %v6480 = vpop.f32.mrb[0].mxu0
      %v6481 = vadd.f32 0.0, %v6480
      %v6482 = vpop.f32.mrb[0].mxu0
      %6483 = vmatprep.mubr.bf16.mxu0 0
      %6484 = vmatmul.mubr.bf16.gmra.mrb[0].mxu0 %v6330
      %v6485 = vpop.f32.mrb[0].mxu0
      %v6486 = vadd.f32 0.0, %v6485
      %v6487 = vpop.f32.mrb[0].mxu0
      %v6488 = vpop.f32.mrb[0].mxu0
      %v6489 = vadd.f32 0.0, %v6488
      %v6490 = vpop.f32.mrb[0].mxu0
      %6491 = vmatprep.mubr.bf16.mxu0 0
      %6492 = vmatmul.mubr.bf16.gmra.mrb[0].mxu0 %v6331
      %v6493 = vpop.f32.mrb[0].mxu0
      %v6494 = vadd.f32 0.0, %v6493
      %v6495 = vpop.f32.mrb[0].mxu0
      %v6496 = vpop.f32.mrb[0].mxu0
      %v6497 = vadd.f32 0.0, %v6496
      %v6498 = vpop.f32.mrb[0].mxu0
      %6499 = vmatprep.mubr.bf16.mxu0 0
      %6500 = vmatmul.mubr.bf16.gmra.mrb[0].mxu0 %v6332
      %v6501 = vpop.f32.mrb[0].mxu0
      %v6502 = vadd.f32 0.0, %v6501
      %v6503 = vpop.f32.mrb[0].mxu0
      %v6504 = vpop.f32.mrb[0].mxu0
      %v6505 = vadd.f32 0.0, %v6504
      %v6506 = vpop.f32.mrb[0].mxu0
      %6507 = vmatprep.mubr.bf16.mxu0 0
      %6508 = vmatmul.mubr.bf16.gmra.mrb[0].mxu0 %v6333
      %v6509 = vpop.f32.mrb[0].mxu0
      %v6510 = vadd.f32 0.0, %v6509
      %v6511 = vpop.f32.mrb[0].mxu0
      %v6512 = vpop.f32.mrb[0].mxu0
      %v6513 = vadd.f32 0.0, %v6512
      %v6514 = vpop.f32.mrb[0].mxu0
      %6515 = vmatprep.mubr.bf16.mxu0 0
      %6516 = vmatmul.mubr.bf16.gmra.mrb[0].mxu0 %v6334
      %v6517 = vpop.f32.mrb[0].mxu0
      %v6518 = vadd.f32 0.0, %v6517
      %v6519 = vpop.f32.mrb[0].mxu0
      %v6520 = vpop.f32.mrb[0].mxu0
      %v6521 = vadd.f32 0.0, %v6520
      %v6522 = vpop.f32.mrb[0].mxu0
      %6523 = vdwg.mxu0
      %v6524 = vadd.f32 %v6283, %v6430
      %v6525 = vadd.f32 %v6284, %v6433
      %v6526 = vadd.f32 %v6285, %v6438
      %v6527 = vadd.f32 %v6286, %v6441
      %v6528 = vadd.f32 %v6287, %v6446
      %v6529 = vadd.f32 %v6288, %v6449
      %v6530 = vadd.f32 %v6289, %v6454
      %v6531 = vadd.f32 %v6290, %v6457
      %v6532 = vadd.f32 %v6291, %v6462
      %v6533 = vadd.f32 %v6292, %v6465
      %v6534 = vadd.f32 %v6293, %v6470
      %v6535 = vadd.f32 %v6294, %v6473
      %v6536 = vadd.f32 %v6295, %v6478
      %v6537 = vadd.f32 %v6296, %v6481
      %v6538 = vadd.f32 %v6297, %v6486
      %v6539 = vadd.f32 %v6298, %v6489
      %v6540 = vadd.f32 %v6299, %v6494
      %v6541 = vadd.f32 %v6300, %v6497
      %v6542 = vadd.f32 %v6301, %v6502
      %v6543 = vadd.f32 %v6302, %v6505
      %v6544 = vadd.f32 %v6303, %v6510
      %v6545 = vadd.f32 %v6304, %v6513
      %v6546 = vadd.f32 %v6305, %v6518
      %v6547 = vadd.f32 %v6306, %v6521
      %v6548 = vld [vmem:[%s246 + $0x7c] sm:$0xf]
      %v6549 = vld [vmem:[%s246 + $0x80] sm:$0xf]
      %v6550 = vld [vmem:[%s246 + $0x84] sm:$0xf]
      %v6551 = vld [vmem:[%s246 + $0x88] sm:$0xf]
      %v6552 = vld [vmem:[%s246 + $0x8c] sm:$0xf]
      %v6553 = vld [vmem:[%s246 + $0x90] sm:$0xf]
      %v6554 = vld [vmem:[%s246 + $0x94] sm:$0xf]
      %v6555 = vld [vmem:[%s246 + $0x98] sm:$0xf]
      %v6556 = vld [vmem:[%s246 + $0x9c] sm:$0xf]
      %v6557 = vld [vmem:[%s246 + $0xa0] sm:$0xf]
      %v6558 = vld [vmem:[%s246 + $0xa4] sm:$0xf]
      %v6559 = vld [vmem:[%s246 + $0xa8] sm:$0xf]
      %v6560 = vld [vmem:[%s246 + $0xac] sm:$0xf]
      %v6561 = vld [vmem:[%s246 + $0xb0] sm:$0xf]
      %v6562 = vld [vmem:[%s246 + $0xb4] sm:$0xf]
      %v6563 = vld [vmem:[%s246 + $0xb8] sm:$0xf]
      %v6564 = vld [vmem:[%s246 + $0xbc] sm:$0xf]
      %v6565 = vld [vmem:[%s246 + $0xc0] sm:$0xf]
      %v6566 = vld [vmem:[%s246 + $0xc4] sm:$0xf]
      %v6567 = vld [vmem:[%s246 + $0xc8] sm:$0xf]
      %v6568 = vld [vmem:[%s246 + $0xcc] sm:$0xf]
      %v6569 = vld [vmem:[%s246 + $0xd0] sm:$0xf]
      %v6570 = vld [vmem:[%s246 + $0xd4] sm:$0xf]
      %v6571 = vld [vmem:[%s246 + $0xd8] sm:$0xf]
      %v6572 = vld [vmem:[%s246 + $0xdc] sm:$0x1]
      %v6573 = vld [vmem:[%s3125] sm:$0xf]
      %v6574 = vld [vmem:[%s3125 + $0x4] sm:$0xf]
      %v6575 = vld [vmem:[%s3125 + $0x8] sm:$0xf]
      %v6576 = vld [vmem:[%s3125 + $0xc] sm:$0xf]
      %v6577 = vld [vmem:[%s3125 + $0x10] sm:$0xf]
      %v6578 = vld [vmem:[%s3125 + $0x14] sm:$0xf]
      %v6579 = vld [vmem:[%s3125 + $0x18] sm:$0xf]
      %v6580 = vld [vmem:[%s3125 + $0x1c] sm:$0xf]
      %v6581 = vld [vmem:[%s3125 + $0x20] sm:$0xf]
      %v6582 = vld [vmem:[%s3125 + $0x24] sm:$0xf]
      %v6583 = vld [vmem:[%s3125 + $0x28] sm:$0xf]
      %v6584 = vld [vmem:[%s3125 + $0x2c] sm:$0xf]
      %v6585 = vld [vmem:[%s3125 + $0x30] sm:$0xf]
      %v6586 = vld [vmem:[%s3125 + $0x34] sm:$0xf]
      %v6587 = vld [vmem:[%s3125 + $0x38] sm:$0xf]
      %v6588 = vld [vmem:[%s3125 + $0x3c] sm:$0xf]
      %v6614 = vunpack.c.l.b16 %v6548
      %v6615 = vunpack.c.l.b16 %v6549
      %v6616 = vunpack.c.l.b16 %v6550
      %v6617 = vunpack.c.l.b16 %v6551
      %v6618 = vunpack.c.l.b16 %v6552
      %v6619 = vunpack.c.l.b16 %v6553
      %v6620 = vunpack.c.l.b16 %v6554
      %v6621 = vunpack.c.l.b16 %v6555
      %v6622 = vunpack.c.l.b16 %v6556
      %v6623 = vunpack.c.l.b16 %v6557
      %v6624 = vunpack.c.l.b16 %v6558
      %v6625 = vunpack.c.l.b16 %v6559
      %v6626 = vunpack.c.l.b16 %v6560
      %v6627 = vunpack.c.l.b16 %v6561
      %v6628 = vunpack.c.l.b16 %v6562
      %v6629 = vunpack.c.l.b16 %v6563
      %v6630 = vunpack.c.l.b16 %v6564
      %v6631 = vunpack.c.l.b16 %v6565
      %v6632 = vunpack.c.l.b16 %v6566
      %v6633 = vunpack.c.l.b16 %v6567
      %v6634 = vunpack.c.l.b16 %v6568
      %v6635 = vunpack.c.l.b16 %v6569
      %v6636 = vunpack.c.l.b16 %v6570
      %v6637 = vunpack.c.l.b16 %v6571
      %v6638 = vunpack.c.l.b16 %v6572
      %v6639 = vpack.c.b16 %v6615, %v6614
      %v6640 = vpack.c.b16 %v6617, %v6616
      %v6641 = vpack.c.b16 %v6619, %v6618
      %v6642 = vpack.c.b16 %v6621, %v6620
      %v6643 = vpack.c.b16 %v6623, %v6622
      %v6644 = vpack.c.b16 %v6625, %v6624
      %v6645 = vpack.c.b16 %v6627, %v6626
      %v6646 = vpack.c.b16 %v6629, %v6628
      %v6647 = vpack.c.b16 %v6631, %v6630
      %v6648 = vpack.c.b16 %v6633, %v6632
      %v6649 = vpack.c.b16 %v6635, %v6634
      %v6650 = vpack.c.b16 %v6637, %v6636
      %v6651 = vpack.c.b16 %v6638, %v6638
      %v6653 = vshrl.u32 %v6639, 16
      %v6655 = vshll.u32 %v6639, 16
      %v6657 = vrot.slane %v6655, 1
      %v6658 = vor.u32 %v6653, %v6657
      %v6660 = vshll.u32 %v6640, 16
      %v6662 = vrot.slane %v6660, 1
      %v6663 = vsel %vm1016, %v6658, %v6662
      %v6664 = vshrl.u32 %v6640, 16
      %v6666 = vor.u32 %v6664, %v6662
      %v6668 = vshll.u32 %v6641, 16
      %v6670 = vrot.slane %v6668, 1
      %v6671 = vsel %vm1016, %v6666, %v6670
      %v6672 = vshrl.u32 %v6641, 16
      %v6674 = vor.u32 %v6672, %v6670
      %v6676 = vshll.u32 %v6642, 16
      %v6678 = vrot.slane %v6676, 1
      %v6679 = vsel %vm1016, %v6674, %v6678
      %v6680 = vshrl.u32 %v6642, 16
      %v6682 = vor.u32 %v6680, %v6678
      %v6684 = vshll.u32 %v6643, 16
      %v6686 = vrot.slane %v6684, 1
      %v6687 = vsel %vm1016, %v6682, %v6686
      %v6688 = vshrl.u32 %v6643, 16
      %v6690 = vor.u32 %v6688, %v6686
      %v6692 = vshll.u32 %v6644, 16
      %v6694 = vrot.slane %v6692, 1
      %v6695 = vsel %vm1016, %v6690, %v6694
      %v6696 = vshrl.u32 %v6644, 16
      %v6698 = vor.u32 %v6696, %v6694
      %v6700 = vshll.u32 %v6645, 16
      %v6702 = vrot.slane %v6700, 1
      %v6703 = vsel %vm1016, %v6698, %v6702
      %v6704 = vshrl.u32 %v6645, 16
      %v6706 = vor.u32 %v6704, %v6702
      %v6708 = vshll.u32 %v6646, 16
      %v6710 = vrot.slane %v6708, 1
      %v6711 = vsel %vm1016, %v6706, %v6710
      %v6712 = vshrl.u32 %v6646, 16
      %v6714 = vor.u32 %v6712, %v6710
      %v6716 = vshll.u32 %v6647, 16
      %v6718 = vrot.slane %v6716, 1
      %v6719 = vsel %vm1016, %v6714, %v6718
      %v6720 = vshrl.u32 %v6647, 16
      %v6722 = vor.u32 %v6720, %v6718
      %v6724 = vshll.u32 %v6648, 16
      %v6726 = vrot.slane %v6724, 1
      %v6727 = vsel %vm1016, %v6722, %v6726
      %v6728 = vshrl.u32 %v6648, 16
      %v6730 = vor.u32 %v6728, %v6726
      %v6732 = vshll.u32 %v6649, 16
      %v6734 = vrot.slane %v6732, 1
      %v6735 = vsel %vm1016, %v6730, %v6734
      %v6736 = vshrl.u32 %v6649, 16
      %v6738 = vor.u32 %v6736, %v6734
      %v6740 = vshll.u32 %v6650, 16
      %v6742 = vrot.slane %v6740, 1
      %v6743 = vsel %vm1016, %v6738, %v6742
      %v6744 = vshrl.u32 %v6650, 16
      %v6746 = vor.u32 %v6744, %v6742
      %v6748 = vshll.u32 %v6651, 16
      %v6750 = vrot.slane %v6748, 1
      %v6751 = vsel %vm1016, %v6746, %v6750
      %v6780 = vunpack.c.l.b16 %v6573
      %v6781 = vunpack.c.l.b16 %v6574
      %v6782 = vunpack.c.l.b16 %v6575
      %v6783 = vunpack.c.l.b16 %v6576
      %v6784 = vunpack.c.l.b16 %v6577
      %v6785 = vunpack.c.l.b16 %v6578
      %v6786 = vunpack.c.l.b16 %v6579
      %v6787 = vunpack.c.l.b16 %v6580
      %v6788 = vunpack.c.l.b16 %v6581
      %v6789 = vunpack.c.l.b16 %v6582
      %v6790 = vunpack.c.l.b16 %v6583
      %v6791 = vunpack.c.l.b16 %v6584
      %v6792 = vunpack.c.l.b16 %v6585
      %v6793 = vunpack.c.l.b16 %v6586
      %v6794 = vunpack.c.l.b16 %v6587
      %v6795 = vunpack.c.l.b16 %v6588
      %v6796 = vpack.c.b16 %v6781, %v6780
      %v6797 = vpack.c.b16 %v6783, %v6782
      %v6798 = vpack.c.b16 %v6785, %v6784
      %v6799 = vpack.c.b16 %v6787, %v6786
      %v6800 = vpack.c.b16 %v6789, %v6788
      %v6801 = vpack.c.b16 %v6791, %v6790
      %v6802 = vpack.c.b16 %v6793, %v6792
      %v6803 = vpack.c.b16 %v6795, %v6794
      %6812 = vmatprep.subr.bf16.mxu0 0
      %6813 = vmatpush1.bf16.msra.mxu0 %v6796
      %6814 = vmatprep.subr.bf16.mxu0 0
      %6815 = vmatpush1.bf16.msra.mxu0 %v6797
      %6816 = vmatprep.subr.bf16.mxu0 0
      %6817 = vmatpush1.bf16.msra.mxu0 %v6798
      %6818 = vmatprep.subr.bf16.mxu0 0
      %6819 = vmatpush1.bf16.msra.mxu0 %v6799
      %6820 = vmatprep.subr.bf16.mxu0 0
      %6821 = vmatpush1.bf16.msra.mxu0 %v6800
      %6822 = vmatprep.subr.bf16.mxu0 0
      %6823 = vmatpush1.bf16.msra.mxu0 %v6801
      %6824 = vmatprep.subr.bf16.mxu0 0
      %6825 = vmatpush1.bf16.msra.mxu0 %v6802
      %6826 = vmatprep.subr.bf16.mxu0 0
      %6827 = vmatpush1.bf16.msra.mxu0 %v6803
      %6828 = vmatprep.subr.bf16.mxu0 0
      %6829 = vmatpush1.bf16.msra.mxu0 0
      %6830 = vmatprep.subr.bf16.mxu0 0
      %6831 = vmatpush1.bf16.msra.mxu0 0
      %6832 = vmatprep.subr.bf16.mxu0 0
      %6833 = vmatpush1.bf16.msra.mxu0 0
      %6834 = vmatprep.subr.bf16.mxu0 0
      %6835 = vmatpush1.bf16.msra.mxu0 0
      %6836 = vmatprep.subr.bf16.mxu0 0
      %6837 = vmatpush1.bf16.msra.mxu0 0
      %6838 = vmatprep.subr.bf16.mxu0 0
      %6839 = vmatpush1.bf16.msra.mxu0 0
      %6840 = vmatprep.subr.bf16.mxu0 0
      %6841 = vmatpush1.bf16.msra.mxu0 0
      %6842 = vmatprep.subr.bf16.mxu0 0
      %6843 = vmatpush1.bf16.msra.mxu0 0
      %6844 = vmatprep.mubr.bf16.mxu0 0
      %6845 = vmatmul.mubr.bf16.gmra.mrb[0].mxu0 %v6663
      %v6846 = vpop.f32.mrb[0].mxu0
      %v6847 = vadd.f32 0.0, %v6846
      %v6848 = vpop.f32.mrb[0].mxu0
      %v6849 = vpop.f32.mrb[0].mxu0
      %v6850 = vadd.f32 0.0, %v6849
      %v6851 = vpop.f32.mrb[0].mxu0
      %6852 = vmatprep.mubr.bf16.mxu0 0
      %6853 = vmatmul.mubr.bf16.gmra.mrb[0].mxu0 %v6671
      %v6854 = vpop.f32.mrb[0].mxu0
      %v6855 = vadd.f32 0.0, %v6854
      %v6856 = vpop.f32.mrb[0].mxu0
      %v6857 = vpop.f32.mrb[0].mxu0
      %v6858 = vadd.f32 0.0, %v6857
      %v6859 = vpop.f32.mrb[0].mxu0
      %6860 = vmatprep.mubr.bf16.mxu0 0
      %6861 = vmatmul.mubr.bf16.gmra.mrb[0].mxu0 %v6679
      %v6862 = vpop.f32.mrb[0].mxu0
      %v6863 = vadd.f32 0.0, %v6862
      %v6864 = vpop.f32.mrb[0].mxu0
      %v6865 = vpop.f32.mrb[0].mxu0
      %v6866 = vadd.f32 0.0, %v6865
      %v6867 = vpop.f32.mrb[0].mxu0
      %6868 = vmatprep.mubr.bf16.mxu0 0
      %6869 = vmatmul.mubr.bf16.gmra.mrb[0].mxu0 %v6687
      %v6870 = vpop.f32.mrb[0].mxu0
      %v6871 = vadd.f32 0.0, %v6870
      %v6872 = vpop.f32.mrb[0].mxu0
      %v6873 = vpop.f32.mrb[0].mxu0
      %v6874 = vadd.f32 0.0, %v6873
      %v6875 = vpop.f32.mrb[0].mxu0
      %6876 = vmatprep.mubr.bf16.mxu0 0
      %6877 = vmatmul.mubr.bf16.gmra.mrb[0].mxu0 %v6695
      %v6878 = vpop.f32.mrb[0].mxu0
      %v6879 = vadd.f32 0.0, %v6878
      %v6880 = vpop.f32.mrb[0].mxu0
      %v6881 = vpop.f32.mrb[0].mxu0
      %v6882 = vadd.f32 0.0, %v6881
      %v6883 = vpop.f32.mrb[0].mxu0
      %6884 = vmatprep.mubr.bf16.mxu0 0
      %6885 = vmatmul.mubr.bf16.gmra.mrb[0].mxu0 %v6703
      %v6886 = vpop.f32.mrb[0].mxu0
      %v6887 = vadd.f32 0.0, %v6886
      %v6888 = vpop.f32.mrb[0].mxu0
      %v6889 = vpop.f32.mrb[0].mxu0
      %v6890 = vadd.f32 0.0, %v6889
      %v6891 = vpop.f32.mrb[0].mxu0
      %6892 = vmatprep.mubr.bf16.mxu0 0
      %6893 = vmatmul.mubr.bf16.gmra.mrb[0].mxu0 %v6711
      %v6894 = vpop.f32.mrb[0].mxu0
      %v6895 = vadd.f32 0.0, %v6894
      %v6896 = vpop.f32.mrb[0].mxu0
      %v6897 = vpop.f32.mrb[0].mxu0
      %v6898 = vadd.f32 0.0, %v6897
      %v6899 = vpop.f32.mrb[0].mxu0
      %6900 = vmatprep.mubr.bf16.mxu0 0
      %6901 = vmatmul.mubr.bf16.gmra.mrb[0].mxu0 %v6719
      %v6902 = vpop.f32.mrb[0].mxu0
      %v6903 = vadd.f32 0.0, %v6902
      %v6904 = vpop.f32.mrb[0].mxu0
      %v6905 = vpop.f32.mrb[0].mxu0
      %v6906 = vadd.f32 0.0, %v6905
      %v6907 = vpop.f32.mrb[0].mxu0
      %6908 = vmatprep.mubr.bf16.mxu0 0
      %6909 = vmatmul.mubr.bf16.gmra.mrb[0].mxu0 %v6727
      %v6910 = vpop.f32.mrb[0].mxu0
      %v6911 = vadd.f32 0.0, %v6910
      %v6912 = vpop.f32.mrb[0].mxu0
      %v6913 = vpop.f32.mrb[0].mxu0
      %v6914 = vadd.f32 0.0, %v6913
      %v6915 = vpop.f32.mrb[0].mxu0
      %6916 = vmatprep.mubr.bf16.mxu0 0
      %6917 = vmatmul.mubr.bf16.gmra.mrb[0].mxu0 %v6735
      %v6918 = vpop.f32.mrb[0].mxu0
      %v6919 = vadd.f32 0.0, %v6918
      %v6920 = vpop.f32.mrb[0].mxu0
      %v6921 = vpop.f32.mrb[0].mxu0
      %v6922 = vadd.f32 0.0, %v6921
      %v6923 = vpop.f32.mrb[0].mxu0
      %6924 = vmatprep.mubr.bf16.mxu0 0
      %6925 = vmatmul.mubr.bf16.gmra.mrb[0].mxu0 %v6743
      %v6926 = vpop.f32.mrb[0].mxu0
      %v6927 = vadd.f32 0.0, %v6926
      %v6928 = vpop.f32.mrb[0].mxu0
      %v6929 = vpop.f32.mrb[0].mxu0
      %v6930 = vadd.f32 0.0, %v6929
      %v6931 = vpop.f32.mrb[0].mxu0
      %6932 = vmatprep.mubr.bf16.mxu0 0
      %6933 = vmatmul.mubr.bf16.gmra.mrb[0].mxu0 %v6751
      %v6934 = vpop.f32.mrb[0].mxu0
      %v6935 = vadd.f32 0.0, %v6934
      %v6936 = vpop.f32.mrb[0].mxu0
      %v6937 = vpop.f32.mrb[0].mxu0
      %v6938 = vadd.f32 0.0, %v6937
      %v6939 = vpop.f32.mrb[0].mxu0
      %6940 = vdwg.mxu0
      %v6941 = vadd.f32 %v6524, %v6847
      %v6942 = vadd.f32 %v6525, %v6850
      %v6943 = vadd.f32 %v6526, %v6855
      %v6944 = vadd.f32 %v6527, %v6858
      %v6945 = vadd.f32 %v6528, %v6863
      %v6946 = vadd.f32 %v6529, %v6866
      %v6947 = vadd.f32 %v6530, %v6871
      %v6948 = vadd.f32 %v6531, %v6874
      %v6949 = vadd.f32 %v6532, %v6879
      %v6950 = vadd.f32 %v6533, %v6882
      %v6951 = vadd.f32 %v6534, %v6887
      %v6952 = vadd.f32 %v6535, %v6890
      %v6953 = vadd.f32 %v6536, %v6895
      %v6954 = vadd.f32 %v6537, %v6898
      %v6955 = vadd.f32 %v6538, %v6903
      %v6956 = vadd.f32 %v6539, %v6906
      %v6957 = vadd.f32 %v6540, %v6911
      %v6958 = vadd.f32 %v6541, %v6914
      %v6959 = vadd.f32 %v6542, %v6919
      %v6960 = vadd.f32 %v6543, %v6922
      %v6961 = vadd.f32 %v6544, %v6927
      %v6962 = vadd.f32 %v6545, %v6930
      %v6963 = vadd.f32 %v6546, %v6935
      %v6964 = vadd.f32 %v6547, %v6938
      %v6965 = vadd.f32 %v6941, %v3522
      %v6966 = vadd.f32 %v6942, %v3522
      %v6967 = vadd.f32 %v6943, %v3522
      %v6968 = vadd.f32 %v6944, %v3522
      %v6969 = vadd.f32 %v6945, %v3522
      %v6970 = vadd.f32 %v6946, %v3522
      %v6971 = vadd.f32 %v6947, %v3522
      %v6972 = vadd.f32 %v6948, %v3522
      %v6973 = vadd.f32 %v6949, %v3522
      %v6974 = vadd.f32 %v6950, %v3522
      %v6975 = vadd.f32 %v6951, %v3522
      %v6976 = vadd.f32 %v6952, %v3522
      %v6977 = vadd.f32 %v6953, %v3522
      %v6978 = vadd.f32 %v6954, %v3522
      %v6979 = vadd.f32 %v6955, %v3522
      %v6980 = vadd.f32 %v6956, %v3522
      %v6981 = vadd.f32 %v6957, %v3522
      %v6982 = vadd.f32 %v6958, %v3522
      %v6983 = vadd.f32 %v6959, %v3522
      %v6984 = vadd.f32 %v6960, %v3522
      %v6985 = vadd.f32 %v6961, %v3522
      %v6986 = vadd.f32 %v6962, %v3522
      %v6987 = vadd.f32 %v6963, %v3522
      %v6988 = vadd.f32 %v6964, %v3522
      %v6989 = vmax.f32 %v6965, 0.0
      %v6990 = vmax.f32 %v6966, 0.0
      %v6991 = vmax.f32 %v6967, 0.0
      %v6992 = vmax.f32 %v6968, 0.0
      %v6993 = vmax.f32 %v6969, 0.0
      %v6994 = vmax.f32 %v6970, 0.0
      %v6995 = vmax.f32 %v6971, 0.0
      %v6996 = vmax.f32 %v6972, 0.0
      %v6997 = vmax.f32 %v6973, 0.0
      %v6998 = vmax.f32 %v6974, 0.0
      %v6999 = vmax.f32 %v6975, 0.0
      %v7000 = vmax.f32 %v6976, 0.0
      %v7001 = vmax.f32 %v6977, 0.0
      %v7002 = vmax.f32 %v6978, 0.0
      %v7003 = vmax.f32 %v6979, 0.0
      %v7004 = vmax.f32 %v6980, 0.0
      %v7005 = vmax.f32 %v6981, 0.0
      %v7006 = vmax.f32 %v6982, 0.0
      %v7007 = vmax.f32 %v6983, 0.0
      %v7008 = vmax.f32 %v6984, 0.0
      %v7009 = vmax.f32 %v6985, 0.0
      %v7010 = vmax.f32 %v6986, 0.0
      %v7011 = vmax.f32 %v6987, 0.0
      %v7012 = vmax.f32 %v6988, 0.0
      %v7013 = vmul.f32 %v6989, %v3575
      %v7014 = vmul.f32 %v6990, %v3580
      %v7015 = vmul.f32 %v6991, %v3585
      %v7016 = vmul.f32 %v6992, %v3590
      %v7017 = vmul.f32 %v6993, %v3595
      %v7018 = vmul.f32 %v6994, %v3600
      %v7019 = vmul.f32 %v6995, %v3605
      %v7020 = vmul.f32 %v6996, %v3610
      %v7021 = vmul.f32 %v6997, %v3615
      %v7022 = vmul.f32 %v6998, %v3620
      %v7023 = vmul.f32 %v6999, %v3625
      %v7024 = vmul.f32 %v7000, %v3630
      %v7025 = vmul.f32 %v7001, %v3635
      %v7026 = vmul.f32 %v7002, %v3640
      %v7027 = vmul.f32 %v7003, %v3645
      %v7028 = vmul.f32 %v7004, %v3650
      %v7029 = vmul.f32 %v7005, %v3655
      %v7030 = vmul.f32 %v7006, %v3660
      %v7031 = vmul.f32 %v7007, %v3665
      %v7032 = vmul.f32 %v7008, %v3670
      %v7033 = vmul.f32 %v7009, %v3675
      %v7034 = vmul.f32 %v7010, %v3680
      %v7035 = vmul.f32 %v7011, %v3685
      %v7036 = vmul.f32 %v7012, %v3690
      %v7037 = vpack.c.bf16 %v7014, %v7013
      %v7038 = vpack.c.bf16 %v7016, %v7015
      %v7039 = vpack.c.bf16 %v7018, %v7017
      %v7040 = vpack.c.bf16 %v7020, %v7019
      %v7041 = vpack.c.bf16 %v7022, %v7021
      %v7042 = vpack.c.bf16 %v7024, %v7023
      %v7043 = vpack.c.bf16 %v7026, %v7025
      %v7044 = vpack.c.bf16 %v7028, %v7027
      %v7045 = vpack.c.bf16 %v7030, %v7029
      %v7046 = vpack.c.bf16 %v7032, %v7031
      %v7047 = vpack.c.bf16 %v7034, %v7033
      %v7048 = vpack.c.bf16 %v7036, %v7035
      %7049 = vst [vmem:[#allocation2 + $0x70] sm:$0xff] %v7037
      %7050 = vst [vmem:[#allocation2 + $0x78] sm:$0xff] %v7038
      %7051 = vst [vmem:[#allocation2 + $0x80] sm:$0xff] %v7039
      %7052 = vst [vmem:[#allocation2 + $0x88] sm:$0xff] %v7040
      %7053 = vst [vmem:[#allocation2 + $0x90] sm:$0xff] %v7041
      %7054 = vst [vmem:[#allocation2 + $0x98] sm:$0xff] %v7042
      %7055 = vst [vmem:[#allocation2 + $0xa0] sm:$0xff] %v7043
      %7056 = vst [vmem:[#allocation2 + $0xa8] sm:$0xff] %v7044
      %7057 = vst [vmem:[#allocation2 + $0xb0] sm:$0xff] %v7045
      %7058 = vst [vmem:[#allocation2 + $0xb8] sm:$0xff] %v7046
      %7059 = vst [vmem:[#allocation2 + $0xc0] sm:$0xff] %v7047
      %7060 = vst [vmem:[#allocation2 + $0xc8] sm:$0xff] %v7048
      %v7061 = vld [vmem:[#allocation2] sm:$0xf8]
      %v7062 = vld [vmem:[#allocation2 + $0x8] sm:$0xff]
      %v7063 = vld [vmem:[#allocation2 + $0x10] sm:$0xff]
      %v7064 = vld [vmem:[#allocation2 + $0x18] sm:$0xff]
      %v7065 = vld [vmem:[#allocation2 + $0x20] sm:$0xff]
      %v7066 = vld [vmem:[#allocation2 + $0x28] sm:$0xff]
      %v7067 = vld [vmem:[#allocation2 + $0x30] sm:$0xff]
      %v7068 = vld [vmem:[#allocation2 + $0x38] sm:$0xff]
      %v7069 = vld [vmem:[#allocation2 + $0x40] sm:$0xff]
      %v7070 = vld [vmem:[#allocation2 + $0x48] sm:$0xff]
      %v7071 = vld [vmem:[#allocation2 + $0x50] sm:$0xff]
      %v7072 = vld [vmem:[#allocation2 + $0x58] sm:$0xff]
      %v7073 = vld [vmem:[#allocation2 + $0x60] sm:$0xf]
      %v7074 = vld [vmem:[%s4] sm:$0xf]
      %v7075 = vld [vmem:[%s4 + $0x4] sm:$0xf]
      %v7076 = vld [vmem:[%s4 + $0x8] sm:$0xf]
      %v7077 = vld [vmem:[%s4 + $0xc] sm:$0xf]
      %v7078 = vld [vmem:[%s4 + $0x10] sm:$0xf]
      %v7079 = vld [vmem:[%s4 + $0x14] sm:$0xf]
      %v7080 = vld [vmem:[%s4 + $0x18] sm:$0xf]
      %v7081 = vld [vmem:[%s4 + $0x1c] sm:$0xf]
      %v7082 = vld [vmem:[%s4 + $0x20] sm:$0xf]
      %v7083 = vld [vmem:[%s4 + $0x24] sm:$0xf]
      %v7084 = vld [vmem:[%s4 + $0x28] sm:$0xf]
      %v7085 = vld [vmem:[%s4 + $0x2c] sm:$0xf]
      %v7086 = vld [vmem:[%s4 + $0x30] sm:$0xf]
      %v7087 = vld [vmem:[%s4 + $0x34] sm:$0xf]
      %v7088 = vld [vmem:[%s4 + $0x38] sm:$0xf]
      %v7089 = vld [vmem:[%s4 + $0x3c] sm:$0xf]
      %v7090 = vld [vmem:[#allocation2] sm:$0xf0]
      %s7091 = scalar_lea.vmem %s4, 64
      %v7092 = vld [vmem:[%s7091] sm:$0xf]
      %v7093 = vld [vmem:[%s7091 + $0x4] sm:$0xf]
      %v7094 = vld [vmem:[%s7091 + $0x8] sm:$0xf]
      %v7095 = vld [vmem:[%s7091 + $0xc] sm:$0xf]
      %v7096 = vld [vmem:[%s7091 + $0x10] sm:$0xf]
      %v7097 = vld [vmem:[%s7091 + $0x14] sm:$0xf]
      %v7098 = vld [vmem:[%s7091 + $0x18] sm:$0xf]
      %v7099 = vld [vmem:[%s7091 + $0x1c] sm:$0xf]
      %v7100 = vld [vmem:[%s7091 + $0x20] sm:$0xf]
      %v7101 = vld [vmem:[%s7091 + $0x24] sm:$0xf]
      %v7102 = vld [vmem:[%s7091 + $0x28] sm:$0xf]
      %v7103 = vld [vmem:[%s7091 + $0x2c] sm:$0xf]
      %v7104 = vld [vmem:[%s7091 + $0x30] sm:$0xf]
      %v7105 = vld [vmem:[%s7091 + $0x34] sm:$0xf]
      %v7106 = vld [vmem:[%s7091 + $0x38] sm:$0xf]
      %v7107 = vld [vmem:[%s7091 + $0x3c] sm:$0xf]
      %vm7121 = vcmask 1043456
      %v7122 = vrot.slane %v7090, 4
      %v7123 = vrot.slane %v7062, 4
      %v7124 = vsel %vm7121, %v7122, %v7123
      %v7125 = vrot.slane %v7063, 4
      %v7126 = vsel %vm7121, %v7123, %v7125
      %v7127 = vrot.slane %v7064, 4
      %v7128 = vsel %vm7121, %v7125, %v7127
      %v7129 = vrot.slane %v7065, 4
      %v7130 = vsel %vm7121, %v7127, %v7129
      %v7131 = vrot.slane %v7066, 4
      %v7132 = vsel %vm7121, %v7129, %v7131
      %v7133 = vrot.slane %v7067, 4
      %v7134 = vsel %vm7121, %v7131, %v7133
      %v7135 = vrot.slane %v7068, 4
      %v7136 = vsel %vm7121, %v7133, %v7135
      %v7137 = vrot.slane %v7069, 4
      %v7138 = vsel %vm7121, %v7135, %v7137
      %v7139 = vrot.slane %v7070, 4
      %v7140 = vsel %vm7121, %v7137, %v7139
      %v7141 = vrot.slane %v7071, 4
      %v7142 = vsel %vm7121, %v7139, %v7141
      %v7143 = vrot.slane %v7072, 4
      %v7144 = vsel %vm7121, %v7141, %v7143
      %v7145 = vrot.slane %v7073, 4
      %v7146 = vsel %vm7121, %v7143, %v7145
      %v7175 = vunpack.c.l.b16 %v7092
      %v7176 = vunpack.c.l.b16 %v7093
      %v7177 = vunpack.c.l.b16 %v7094
      %v7178 = vunpack.c.l.b16 %v7095
      %v7179 = vunpack.c.l.b16 %v7096
      %v7180 = vunpack.c.l.b16 %v7097
      %v7181 = vunpack.c.l.b16 %v7098
      %v7182 = vunpack.c.l.b16 %v7099
      %v7183 = vunpack.c.l.b16 %v7100
      %v7184 = vunpack.c.l.b16 %v7101
      %v7185 = vunpack.c.l.b16 %v7102
      %v7186 = vunpack.c.l.b16 %v7103
      %v7187 = vunpack.c.l.b16 %v7104
      %v7188 = vunpack.c.l.b16 %v7105
      %v7189 = vunpack.c.l.b16 %v7106
      %v7190 = vunpack.c.l.b16 %v7107
      %v7191 = vpack.c.b16 %v7176, %v7175
      %v7192 = vpack.c.b16 %v7178, %v7177
      %v7193 = vpack.c.b16 %v7180, %v7179
      %v7194 = vpack.c.b16 %v7182, %v7181
      %v7195 = vpack.c.b16 %v7184, %v7183
      %v7196 = vpack.c.b16 %v7186, %v7185
      %v7197 = vpack.c.b16 %v7188, %v7187
      %v7198 = vpack.c.b16 %v7190, %v7189
      %7207 = vmatprep.subr.bf16.mxu0 0
      %7208 = vmatpush1.bf16.msra.mxu0 %v7191
      %7209 = vmatprep.subr.bf16.mxu0 0
      %7210 = vmatpush1.bf16.msra.mxu0 %v7192
      %7211 = vmatprep.subr.bf16.mxu0 0
      %7212 = vmatpush1.bf16.msra.mxu0 %v7193
      %7213 = vmatprep.subr.bf16.mxu0 0
      %7214 = vmatpush1.bf16.msra.mxu0 %v7194
      %7215 = vmatprep.subr.bf16.mxu0 0
      %7216 = vmatpush1.bf16.msra.mxu0 %v7195
      %7217 = vmatprep.subr.bf16.mxu0 0
      %7218 = vmatpush1.bf16.msra.mxu0 %v7196
      %7219 = vmatprep.subr.bf16.mxu0 0
      %7220 = vmatpush1.bf16.msra.mxu0 %v7197
      %7221 = vmatprep.subr.bf16.mxu0 0
      %7222 = vmatpush1.bf16.msra.mxu0 %v7198
      %7223 = vmatprep.subr.bf16.mxu0 0
      %7224 = vmatpush1.bf16.msra.mxu0 0
      %7225 = vmatprep.subr.bf16.mxu0 0
      %7226 = vmatpush1.bf16.msra.mxu0 0
      %7227 = vmatprep.subr.bf16.mxu0 0
      %7228 = vmatpush1.bf16.msra.mxu0 0
      %7229 = vmatprep.subr.bf16.mxu0 0
      %7230 = vmatpush1.bf16.msra.mxu0 0
      %7231 = vmatprep.subr.bf16.mxu0 0
      %7232 = vmatpush1.bf16.msra.mxu0 0
      %7233 = vmatprep.subr.bf16.mxu0 0
      %7234 = vmatpush1.bf16.msra.mxu0 0
      %7235 = vmatprep.subr.bf16.mxu0 0
      %7236 = vmatpush1.bf16.msra.mxu0 0
      %7237 = vmatprep.subr.bf16.mxu0 0
      %7238 = vmatpush1.bf16.msra.mxu0 0
      %7239 = vmatprep.mubr.bf16.mxu0 0
      %7240 = vmatmul.mubr.bf16.gmra.mrb[0].mxu0 %v7124
      %v7241 = vpop.f32.mrb[0].mxu0
      %v7242 = vadd.f32 0.0, %v7241
      %v7243 = vpop.f32.mrb[0].mxu0
      %v7244 = vpop.f32.mrb[0].mxu0
      %v7245 = vadd.f32 0.0, %v7244
      %v7246 = vpop.f32.mrb[0].mxu0
      %7247 = vmatprep.mubr.bf16.mxu0 0
      %7248 = vmatmul.mubr.bf16.gmra.mrb[0].mxu0 %v7126
      %v7249 = vpop.f32.mrb[0].mxu0
      %v7250 = vadd.f32 0.0, %v7249
      %v7251 = vpop.f32.mrb[0].mxu0
      %v7252 = vpop.f32.mrb[0].mxu0
      %v7253 = vadd.f32 0.0, %v7252
      %v7254 = vpop.f32.mrb[0].mxu0
      %7255 = vmatprep.mubr.bf16.mxu0 0
      %7256 = vmatmul.mubr.bf16.gmra.mrb[0].mxu0 %v7128
      %v7257 = vpop.f32.mrb[0].mxu0
      %v7258 = vadd.f32 0.0, %v7257
      %v7259 = vpop.f32.mrb[0].mxu0
      %v7260 = vpop.f32.mrb[0].mxu0
      %v7261 = vadd.f32 0.0, %v7260
      %v7262 = vpop.f32.mrb[0].mxu0
      %7263 = vmatprep.mubr.bf16.mxu0 0
      %7264 = vmatmul.mubr.bf16.gmra.mrb[0].mxu0 %v7130
      %v7265 = vpop.f32.mrb[0].mxu0
      %v7266 = vadd.f32 0.0, %v7265
      %v7267 = vpop.f32.mrb[0].mxu0
      %v7268 = vpop.f32.mrb[0].mxu0
      %v7269 = vadd.f32 0.0, %v7268
      %v7270 = vpop.f32.mrb[0].mxu0
      %7271 = vmatprep.mubr.bf16.mxu0 0
      %7272 = vmatmul.mubr.bf16.gmra.mrb[0].mxu0 %v7132
      %v7273 = vpop.f32.mrb[0].mxu0
      %v7274 = vadd.f32 0.0, %v7273
      %v7275 = vpop.f32.mrb[0].mxu0
      %v7276 = vpop.f32.mrb[0].mxu0
      %v7277 = vadd.f32 0.0, %v7276
      %v7278 = vpop.f32.mrb[0].mxu0
      %7279 = vmatprep.mubr.bf16.mxu0 0
      %7280 = vmatmul.mubr.bf16.gmra.mrb[0].mxu0 %v7134
      %v7281 = vpop.f32.mrb[0].mxu0
      %v7282 = vadd.f32 0.0, %v7281
      %v7283 = vpop.f32.mrb[0].mxu0
      %v7284 = vpop.f32.mrb[0].mxu0
      %v7285 = vadd.f32 0.0, %v7284
      %v7286 = vpop.f32.mrb[0].mxu0
      %7287 = vmatprep.mubr.bf16.mxu0 0
      %7288 = vmatmul.mubr.bf16.gmra.mrb[0].mxu0 %v7136
      %v7289 = vpop.f32.mrb[0].mxu0
      %v7290 = vadd.f32 0.0, %v7289
      %v7291 = vpop.f32.mrb[0].mxu0
      %v7292 = vpop.f32.mrb[0].mxu0
      %v7293 = vadd.f32 0.0, %v7292
      %v7294 = vpop.f32.mrb[0].mxu0
      %7295 = vmatprep.mubr.bf16.mxu0 0
      %7296 = vmatmul.mubr.bf16.gmra.mrb[0].mxu0 %v7138
      %v7297 = vpop.f32.mrb[0].mxu0
      %v7298 = vadd.f32 0.0, %v7297
      %v7299 = vpop.f32.mrb[0].mxu0
      %v7300 = vpop.f32.mrb[0].mxu0
      %v7301 = vadd.f32 0.0, %v7300
      %v7302 = vpop.f32.mrb[0].mxu0
      %7303 = vmatprep.mubr.bf16.mxu0 0
      %7304 = vmatmul.mubr.bf16.gmra.mrb[0].mxu0 %v7140
      %v7305 = vpop.f32.mrb[0].mxu0
      %v7306 = vadd.f32 0.0, %v7305
      %v7307 = vpop.f32.mrb[0].mxu0
      %v7308 = vpop.f32.mrb[0].mxu0
      %v7309 = vadd.f32 0.0, %v7308
      %v7310 = vpop.f32.mrb[0].mxu0
      %7311 = vmatprep.mubr.bf16.mxu0 0
      %7312 = vmatmul.mubr.bf16.gmra.mrb[0].mxu0 %v7142
      %v7313 = vpop.f32.mrb[0].mxu0
      %v7314 = vadd.f32 0.0, %v7313
      %v7315 = vpop.f32.mrb[0].mxu0
      %v7316 = vpop.f32.mrb[0].mxu0
      %v7317 = vadd.f32 0.0, %v7316
      %v7318 = vpop.f32.mrb[0].mxu0
      %7319 = vmatprep.mubr.bf16.mxu0 0
      %7320 = vmatmul.mubr.bf16.gmra.mrb[0].mxu0 %v7144
      %v7321 = vpop.f32.mrb[0].mxu0
      %v7322 = vadd.f32 0.0, %v7321
      %v7323 = vpop.f32.mrb[0].mxu0
      %v7324 = vpop.f32.mrb[0].mxu0
      %v7325 = vadd.f32 0.0, %v7324
      %v7326 = vpop.f32.mrb[0].mxu0
      %7327 = vmatprep.mubr.bf16.mxu0 0
      %7328 = vmatmul.mubr.bf16.gmra.mrb[0].mxu0 %v7146
      %v7329 = vpop.f32.mrb[0].mxu0
      %v7330 = vadd.f32 0.0, %v7329
      %v7331 = vpop.f32.mrb[0].mxu0
      %v7332 = vpop.f32.mrb[0].mxu0
      %v7333 = vadd.f32 0.0, %v7332
      %v7334 = vpop.f32.mrb[0].mxu0
      %7335 = vdwg.mxu0
      %v7337 = vshrl.u32 %v7061, 16
      %v7339 = vrot.slane %v7337, 3
      %v7340 = vshll.u32 %v7061, 16
      %v7342 = vrot.slane %v7340, 4
      %v7343 = vor.u32 %v7339, %v7342
      %v7345 = vshrl.u32 %v7062, 16
      %v7347 = vrot.slane %v7345, 3
      %v7348 = vshll.u32 %v7062, 16
      %v7350 = vrot.slane %v7348, 4
      %v7351 = vor.u32 %v7347, %v7350
      %v7352 = vsel %vm605, %v7343, %v7351
      %v7354 = vshrl.u32 %v7063, 16
      %v7356 = vrot.slane %v7354, 3
      %v7357 = vshll.u32 %v7063, 16
      %v7359 = vrot.slane %v7357, 4
      %v7360 = vor.u32 %v7356, %v7359
      %v7361 = vsel %vm605, %v7351, %v7360
      %v7363 = vshrl.u32 %v7064, 16
      %v7365 = vrot.slane %v7363, 3
      %v7366 = vshll.u32 %v7064, 16
      %v7368 = vrot.slane %v7366, 4
      %v7369 = vor.u32 %v7365, %v7368
      %v7370 = vsel %vm605, %v7360, %v7369
      %v7372 = vshrl.u32 %v7065, 16
      %v7374 = vrot.slane %v7372, 3
      %v7375 = vshll.u32 %v7065, 16
      %v7377 = vrot.slane %v7375, 4
      %v7378 = vor.u32 %v7374, %v7377
      %v7379 = vsel %vm605, %v7369, %v7378
      %v7381 = vshrl.u32 %v7066, 16
      %v7383 = vrot.slane %v7381, 3
      %v7384 = vshll.u32 %v7066, 16
      %v7386 = vrot.slane %v7384, 4
      %v7387 = vor.u32 %v7383, %v7386
      %v7388 = vsel %vm605, %v7378, %v7387
      %v7390 = vshrl.u32 %v7067, 16
      %v7392 = vrot.slane %v7390, 3
      %v7393 = vshll.u32 %v7067, 16
      %v7395 = vrot.slane %v7393, 4
      %v7396 = vor.u32 %v7392, %v7395
      %v7397 = vsel %vm605, %v7387, %v7396
      %v7399 = vshrl.u32 %v7068, 16
      %v7401 = vrot.slane %v7399, 3
      %v7402 = vshll.u32 %v7068, 16
      %v7404 = vrot.slane %v7402, 4
      %v7405 = vor.u32 %v7401, %v7404
      %v7406 = vsel %vm605, %v7396, %v7405
      %v7408 = vshrl.u32 %v7069, 16
      %v7410 = vrot.slane %v7408, 3
      %v7411 = vshll.u32 %v7069, 16
      %v7413 = vrot.slane %v7411, 4
      %v7414 = vor.u32 %v7410, %v7413
      %v7415 = vsel %vm605, %v7405, %v7414
      %v7417 = vshrl.u32 %v7070, 16
      %v7419 = vrot.slane %v7417, 3
      %v7420 = vshll.u32 %v7070, 16
      %v7422 = vrot.slane %v7420, 4
      %v7423 = vor.u32 %v7419, %v7422
      %v7424 = vsel %vm605, %v7414, %v7423
      %v7426 = vshrl.u32 %v7071, 16
      %v7428 = vrot.slane %v7426, 3
      %v7429 = vshll.u32 %v7071, 16
      %v7431 = vrot.slane %v7429, 4
      %v7432 = vor.u32 %v7428, %v7431
      %v7433 = vsel %vm605, %v7423, %v7432
      %v7435 = vshrl.u32 %v7072, 16
      %v7437 = vrot.slane %v7435, 3
      %v7438 = vshll.u32 %v7072, 16
      %v7440 = vrot.slane %v7438, 4
      %v7441 = vor.u32 %v7437, %v7440
      %v7442 = vsel %vm605, %v7432, %v7441
      %v7444 = vshrl.u32 %v7073, 16
      %v7446 = vrot.slane %v7444, 3
      %v7447 = vshll.u32 %v7073, 16
      %v7449 = vrot.slane %v7447, 4
      %v7450 = vor.u32 %v7446, %v7449
      %v7451 = vsel %vm605, %v7441, %v7450
      %v7480 = vunpack.c.l.b16 %v7074
      %v7481 = vunpack.c.l.b16 %v7075
      %v7482 = vunpack.c.l.b16 %v7076
      %v7483 = vunpack.c.l.b16 %v7077
      %v7484 = vunpack.c.l.b16 %v7078
      %v7485 = vunpack.c.l.b16 %v7079
      %v7486 = vunpack.c.l.b16 %v7080
      %v7487 = vunpack.c.l.b16 %v7081
      %v7488 = vunpack.c.l.b16 %v7082
      %v7489 = vunpack.c.l.b16 %v7083
      %v7490 = vunpack.c.l.b16 %v7084
      %v7491 = vunpack.c.l.b16 %v7085
      %v7492 = vunpack.c.l.b16 %v7086
      %v7493 = vunpack.c.l.b16 %v7087
      %v7494 = vunpack.c.l.b16 %v7088
      %v7495 = vunpack.c.l.b16 %v7089
      %v7496 = vpack.c.b16 %v7481, %v7480
      %v7497 = vpack.c.b16 %v7483, %v7482
      %v7498 = vpack.c.b16 %v7485, %v7484
      %v7499 = vpack.c.b16 %v7487, %v7486
      %v7500 = vpack.c.b16 %v7489, %v7488
      %v7501 = vpack.c.b16 %v7491, %v7490
      %v7502 = vpack.c.b16 %v7493, %v7492
      %v7503 = vpack.c.b16 %v7495, %v7494
      %7512 = vmatprep.subr.bf16.mxu0 0
      %7513 = vmatpush1.bf16.msra.mxu0 %v7496
      %7514 = vmatprep.subr.bf16.mxu0 0
      %7515 = vmatpush1.bf16.msra.mxu0 %v7497
      %7516 = vmatprep.subr.bf16.mxu0 0
      %7517 = vmatpush1.bf16.msra.mxu0 %v7498
      %7518 = vmatprep.subr.bf16.mxu0 0
      %7519 = vmatpush1.bf16.msra.mxu0 %v7499
      %7520 = vmatprep.subr.bf16.mxu0 0
      %7521 = vmatpush1.bf16.msra.mxu0 %v7500
      %7522 = vmatprep.subr.bf16.mxu0 0
      %7523 = vmatpush1.bf16.msra.mxu0 %v7501
      %7524 = vmatprep.subr.bf16.mxu0 0
      %7525 = vmatpush1.bf16.msra.mxu0 %v7502
      %7526 = vmatprep.subr.bf16.mxu0 0
      %7527 = vmatpush1.bf16.msra.mxu0 %v7503
      %7528 = vmatprep.subr.bf16.mxu0 0
      %7529 = vmatpush1.bf16.msra.mxu0 0
      %7530 = vmatprep.subr.bf16.mxu0 0
      %7531 = vmatpush1.bf16.msra.mxu0 0
      %7532 = vmatprep.subr.bf16.mxu0 0
      %7533 = vmatpush1.bf16.msra.mxu0 0
      %7534 = vmatprep.subr.bf16.mxu0 0
      %7535 = vmatpush1.bf16.msra.mxu0 0
      %7536 = vmatprep.subr.bf16.mxu0 0
      %7537 = vmatpush1.bf16.msra.mxu0 0
      %7538 = vmatprep.subr.bf16.mxu0 0
      %7539 = vmatpush1.bf16.msra.mxu0 0
      %7540 = vmatprep.subr.bf16.mxu0 0
      %7541 = vmatpush1.bf16.msra.mxu0 0
      %7542 = vmatprep.subr.bf16.mxu0 0
      %7543 = vmatpush1.bf16.msra.mxu0 0
      %7544 = vmatprep.mubr.bf16.mxu0 0
      %7545 = vmatmul.mubr.bf16.gmra.mrb[0].mxu0 %v7352
      %v7546 = vpop.f32.mrb[0].mxu0
      %v7547 = vadd.f32 %v7242, %v7546
      %v7548 = vpop.f32.mrb[0].mxu0
      %v7549 = vpop.f32.mrb[0].mxu0
      %v7550 = vadd.f32 %v7245, %v7549
      %v7551 = vpop.f32.mrb[0].mxu0
      %7552 = vmatprep.mubr.bf16.mxu0 0
      %7553 = vmatmul.mubr.bf16.gmra.mrb[0].mxu0 %v7361
      %v7554 = vpop.f32.mrb[0].mxu0
      %v7555 = vadd.f32 %v7250, %v7554
      %v7556 = vpop.f32.mrb[0].mxu0
      %v7557 = vpop.f32.mrb[0].mxu0
      %v7558 = vadd.f32 %v7253, %v7557
      %v7559 = vpop.f32.mrb[0].mxu0
      %7560 = vmatprep.mubr.bf16.mxu0 0
      %7561 = vmatmul.mubr.bf16.gmra.mrb[0].mxu0 %v7370
      %v7562 = vpop.f32.mrb[0].mxu0
      %v7563 = vadd.f32 %v7258, %v7562
      %v7564 = vpop.f32.mrb[0].mxu0
      %v7565 = vpop.f32.mrb[0].mxu0
      %v7566 = vadd.f32 %v7261, %v7565
      %v7567 = vpop.f32.mrb[0].mxu0
      %7568 = vmatprep.mubr.bf16.mxu0 0
      %7569 = vmatmul.mubr.bf16.gmra.mrb[0].mxu0 %v7379
      %v7570 = vpop.f32.mrb[0].mxu0
      %v7571 = vadd.f32 %v7266, %v7570
      %v7572 = vpop.f32.mrb[0].mxu0
      %v7573 = vpop.f32.mrb[0].mxu0
      %v7574 = vadd.f32 %v7269, %v7573
      %v7575 = vpop.f32.mrb[0].mxu0
      %7576 = vmatprep.mubr.bf16.mxu0 0
      %7577 = vmatmul.mubr.bf16.gmra.mrb[0].mxu0 %v7388
      %v7578 = vpop.f32.mrb[0].mxu0
      %v7579 = vadd.f32 %v7274, %v7578
      %v7580 = vpop.f32.mrb[0].mxu0
      %v7581 = vpop.f32.mrb[0].mxu0
      %v7582 = vadd.f32 %v7277, %v7581
      %v7583 = vpop.f32.mrb[0].mxu0
      %7584 = vmatprep.mubr.bf16.mxu0 0
      %7585 = vmatmul.mubr.bf16.gmra.mrb[0].mxu0 %v7397
      %v7586 = vpop.f32.mrb[0].mxu0
      %v7587 = vadd.f32 %v7282, %v7586
      %v7588 = vpop.f32.mrb[0].mxu0
      %v7589 = vpop.f32.mrb[0].mxu0
      %v7590 = vadd.f32 %v7285, %v7589
      %v7591 = vpop.f32.mrb[0].mxu0
      %7592 = vmatprep.mubr.bf16.mxu0 0
      %7593 = vmatmul.mubr.bf16.gmra.mrb[0].mxu0 %v7406
      %v7594 = vpop.f32.mrb[0].mxu0
      %v7595 = vadd.f32 %v7290, %v7594
      %v7596 = vpop.f32.mrb[0].mxu0
      %v7597 = vpop.f32.mrb[0].mxu0
      %v7598 = vadd.f32 %v7293, %v7597
      %v7599 = vpop.f32.mrb[0].mxu0
      %7600 = vmatprep.mubr.bf16.mxu0 0
      %7601 = vmatmul.mubr.bf16.gmra.mrb[0].mxu0 %v7415
      %v7602 = vpop.f32.mrb[0].mxu0
      %v7603 = vadd.f32 %v7298, %v7602
      %v7604 = vpop.f32.mrb[0].mxu0
      %v7605 = vpop.f32.mrb[0].mxu0
      %v7606 = vadd.f32 %v7301, %v7605
      %v7607 = vpop.f32.mrb[0].mxu0
      %7608 = vmatprep.mubr.bf16.mxu0 0
      %7609 = vmatmul.mubr.bf16.gmra.mrb[0].mxu0 %v7424
      %v7610 = vpop.f32.mrb[0].mxu0
      %v7611 = vadd.f32 %v7306, %v7610
      %v7612 = vpop.f32.mrb[0].mxu0
      %v7613 = vpop.f32.mrb[0].mxu0
      %v7614 = vadd.f32 %v7309, %v7613
      %v7615 = vpop.f32.mrb[0].mxu0
      %7616 = vmatprep.mubr.bf16.mxu0 0
      %7617 = vmatmul.mubr.bf16.gmra.mrb[0].mxu0 %v7433
      %v7618 = vpop.f32.mrb[0].mxu0
      %v7619 = vadd.f32 %v7314, %v7618
      %v7620 = vpop.f32.mrb[0].mxu0
      %v7621 = vpop.f32.mrb[0].mxu0
      %v7622 = vadd.f32 %v7317, %v7621
      %v7623 = vpop.f32.mrb[0].mxu0
      %7624 = vmatprep.mubr.bf16.mxu0 0
      %7625 = vmatmul.mubr.bf16.gmra.mrb[0].mxu0 %v7442
      %v7626 = vpop.f32.mrb[0].mxu0
      %v7627 = vadd.f32 %v7322, %v7626
      %v7628 = vpop.f32.mrb[0].mxu0
      %v7629 = vpop.f32.mrb[0].mxu0
      %v7630 = vadd.f32 %v7325, %v7629
      %v7631 = vpop.f32.mrb[0].mxu0
      %7632 = vmatprep.mubr.bf16.mxu0 0
      %7633 = vmatmul.mubr.bf16.gmra.mrb[0].mxu0 %v7451
      %v7634 = vpop.f32.mrb[0].mxu0
      %v7635 = vadd.f32 %v7330, %v7634
      %v7636 = vpop.f32.mrb[0].mxu0
      %v7637 = vpop.f32.mrb[0].mxu0
      %v7638 = vadd.f32 %v7333, %v7637
      %v7639 = vpop.f32.mrb[0].mxu0
      %7640 = vdwg.mxu0
      %v7641 = vld [vmem:[#allocation2 + $0x60] sm:$0x1f]
      %s7642 = scalar_lea.vmem %s4, 128
      %v7643 = vld [vmem:[%s7642] sm:$0xf]
      %v7644 = vld [vmem:[%s7642 + $0x4] sm:$0xf]
      %v7645 = vld [vmem:[%s7642 + $0x8] sm:$0xf]
      %v7646 = vld [vmem:[%s7642 + $0xc] sm:$0xf]
      %v7647 = vld [vmem:[%s7642 + $0x10] sm:$0xf]
      %v7648 = vld [vmem:[%s7642 + $0x14] sm:$0xf]
      %v7649 = vld [vmem:[%s7642 + $0x18] sm:$0xf]
      %v7650 = vld [vmem:[%s7642 + $0x1c] sm:$0xf]
      %v7651 = vld [vmem:[%s7642 + $0x20] sm:$0xf]
      %v7652 = vld [vmem:[%s7642 + $0x24] sm:$0xf]
      %v7653 = vld [vmem:[%s7642 + $0x28] sm:$0xf]
      %v7654 = vld [vmem:[%s7642 + $0x2c] sm:$0xf]
      %v7655 = vld [vmem:[%s7642 + $0x30] sm:$0xf]
      %v7656 = vld [vmem:[%s7642 + $0x34] sm:$0xf]
      %v7657 = vld [vmem:[%s7642 + $0x38] sm:$0xf]
      %v7658 = vld [vmem:[%s7642 + $0x3c] sm:$0xf]
      %vm7659 = vsmask.f32 3328
      %v7661 = vshrl.u32 %v7090, 16
      %v7663 = vrot.slane %v7661, 4
      %v7664 = vshll.u32 %v7090, 16
      %v7666 = vrot.slane %v7664, 5
      %v7667 = vor.u32 %v7663, %v7666
      %v7668 = vrot.slane %v7345, 4
      %v7669 = vrot.slane %v7348, 5
      %v7670 = vor.u32 %v7668, %v7669
      %v7671 = vsel %vm7659, %v7667, %v7670
      %v7672 = vrot.slane %v7354, 4
      %v7673 = vrot.slane %v7357, 5
      %v7674 = vor.u32 %v7672, %v7673
      %v7675 = vsel %vm7659, %v7670, %v7674
      %v7676 = vrot.slane %v7363, 4
      %v7677 = vrot.slane %v7366, 5
      %v7678 = vor.u32 %v7676, %v7677
      %v7679 = vsel %vm7659, %v7674, %v7678
      %v7680 = vrot.slane %v7372, 4
      %v7681 = vrot.slane %v7375, 5
      %v7682 = vor.u32 %v7680, %v7681
      %v7683 = vsel %vm7659, %v7678, %v7682
      %v7684 = vrot.slane %v7381, 4
      %v7685 = vrot.slane %v7384, 5
      %v7686 = vor.u32 %v7684, %v7685
      %v7687 = vsel %vm7659, %v7682, %v7686
      %v7688 = vrot.slane %v7390, 4
      %v7689 = vrot.slane %v7393, 5
      %v7690 = vor.u32 %v7688, %v7689
      %v7691 = vsel %vm7659, %v7686, %v7690
      %v7692 = vrot.slane %v7399, 4
      %v7693 = vrot.slane %v7402, 5
      %v7694 = vor.u32 %v7692, %v7693
      %v7695 = vsel %vm7659, %v7690, %v7694
      %v7696 = vrot.slane %v7408, 4
      %v7697 = vrot.slane %v7411, 5
      %v7698 = vor.u32 %v7696, %v7697
      %v7699 = vsel %vm7659, %v7694, %v7698
      %v7700 = vrot.slane %v7417, 4
      %v7701 = vrot.slane %v7420, 5
      %v7702 = vor.u32 %v7700, %v7701
      %v7703 = vsel %vm7659, %v7698, %v7702
      %v7704 = vrot.slane %v7426, 4
      %v7705 = vrot.slane %v7429, 5
      %v7706 = vor.u32 %v7704, %v7705
      %v7707 = vsel %vm7659, %v7702, %v7706
      %v7708 = vrot.slane %v7435, 4
      %v7709 = vrot.slane %v7438, 5
      %v7710 = vor.u32 %v7708, %v7709
      %v7711 = vsel %vm7659, %v7706, %v7710
      %v7713 = vshrl.u32 %v7641, 16
      %v7715 = vrot.slane %v7713, 4
      %v7716 = vshll.u32 %v7641, 16
      %v7718 = vrot.slane %v7716, 5
      %v7719 = vor.u32 %v7715, %v7718
      %v7720 = vsel %vm7659, %v7710, %v7719
      %v7749 = vunpack.c.l.b16 %v7643
      %v7750 = vunpack.c.l.b16 %v7644
      %v7751 = vunpack.c.l.b16 %v7645
      %v7752 = vunpack.c.l.b16 %v7646
      %v7753 = vunpack.c.l.b16 %v7647
      %v7754 = vunpack.c.l.b16 %v7648
      %v7755 = vunpack.c.l.b16 %v7649
      %v7756 = vunpack.c.l.b16 %v7650
      %v7757 = vunpack.c.l.b16 %v7651
      %v7758 = vunpack.c.l.b16 %v7652
      %v7759 = vunpack.c.l.b16 %v7653
      %v7760 = vunpack.c.l.b16 %v7654
      %v7761 = vunpack.c.l.b16 %v7655
      %v7762 = vunpack.c.l.b16 %v7656
      %v7763 = vunpack.c.l.b16 %v7657
      %v7764 = vunpack.c.l.b16 %v7658
      %v7765 = vpack.c.b16 %v7750, %v7749
      %v7766 = vpack.c.b16 %v7752, %v7751
      %v7767 = vpack.c.b16 %v7754, %v7753
      %v7768 = vpack.c.b16 %v7756, %v7755
      %v7769 = vpack.c.b16 %v7758, %v7757
      %v7770 = vpack.c.b16 %v7760, %v7759
      %v7771 = vpack.c.b16 %v7762, %v7761
      %v7772 = vpack.c.b16 %v7764, %v7763
      %7781 = vmatprep.subr.bf16.mxu0 0
      %7782 = vmatpush1.bf16.msra.mxu0 %v7765
      %7783 = vmatprep.subr.bf16.mxu0 0
      %7784 = vmatpush1.bf16.msra.mxu0 %v7766
      %7785 = vmatprep.subr.bf16.mxu0 0
      %7786 = vmatpush1.bf16.msra.mxu0 %v7767
      %7787 = vmatprep.subr.bf16.mxu0 0
      %7788 = vmatpush1.bf16.msra.mxu0 %v7768
      %7789 = vmatprep.subr.bf16.mxu0 0
      %7790 = vmatpush1.bf16.msra.mxu0 %v7769
      %7791 = vmatprep.subr.bf16.mxu0 0
      %7792 = vmatpush1.bf16.msra.mxu0 %v7770
      %7793 = vmatprep.subr.bf16.mxu0 0
      %7794 = vmatpush1.bf16.msra.mxu0 %v7771
      %7795 = vmatprep.subr.bf16.mxu0 0
      %7796 = vmatpush1.bf16.msra.mxu0 %v7772
      %7797 = vmatprep.subr.bf16.mxu0 0
      %7798 = vmatpush1.bf16.msra.mxu0 0
      %7799 = vmatprep.subr.bf16.mxu0 0
      %7800 = vmatpush1.bf16.msra.mxu0 0
      %7801 = vmatprep.subr.bf16.mxu0 0
      %7802 = vmatpush1.bf16.msra.mxu0 0
      %7803 = vmatprep.subr.bf16.mxu0 0
      %7804 = vmatpush1.bf16.msra.mxu0 0
      %7805 = vmatprep.subr.bf16.mxu0 0
      %7806 = vmatpush1.bf16.msra.mxu0 0
      %7807 = vmatprep.subr.bf16.mxu0 0
      %7808 = vmatpush1.bf16.msra.mxu0 0
      %7809 = vmatprep.subr.bf16.mxu0 0
      %7810 = vmatpush1.bf16.msra.mxu0 0
      %7811 = vmatprep.subr.bf16.mxu0 0
      %7812 = vmatpush1.bf16.msra.mxu0 0
      %7813 = vmatprep.mubr.bf16.mxu0 0
      %7814 = vmatmul.mubr.bf16.gmra.mrb[0].mxu0 %v7671
      %v7815 = vpop.f32.mrb[0].mxu0
      %v7816 = vadd.f32 0.0, %v7815
      %v7817 = vpop.f32.mrb[0].mxu0
      %v7818 = vpop.f32.mrb[0].mxu0
      %v7819 = vadd.f32 0.0, %v7818
      %v7820 = vpop.f32.mrb[0].mxu0
      %7821 = vmatprep.mubr.bf16.mxu0 0
      %7822 = vmatmul.mubr.bf16.gmra.mrb[0].mxu0 %v7675
      %v7823 = vpop.f32.mrb[0].mxu0
      %v7824 = vadd.f32 0.0, %v7823
      %v7825 = vpop.f32.mrb[0].mxu0
      %v7826 = vpop.f32.mrb[0].mxu0
      %v7827 = vadd.f32 0.0, %v7826
      %v7828 = vpop.f32.mrb[0].mxu0
      %7829 = vmatprep.mubr.bf16.mxu0 0
      %7830 = vmatmul.mubr.bf16.gmra.mrb[0].mxu0 %v7679
      %v7831 = vpop.f32.mrb[0].mxu0
      %v7832 = vadd.f32 0.0, %v7831
      %v7833 = vpop.f32.mrb[0].mxu0
      %v7834 = vpop.f32.mrb[0].mxu0
      %v7835 = vadd.f32 0.0, %v7834
      %v7836 = vpop.f32.mrb[0].mxu0
      %7837 = vmatprep.mubr.bf16.mxu0 0
      %7838 = vmatmul.mubr.bf16.gmra.mrb[0].mxu0 %v7683
      %v7839 = vpop.f32.mrb[0].mxu0
      %v7840 = vadd.f32 0.0, %v7839
      %v7841 = vpop.f32.mrb[0].mxu0
      %v7842 = vpop.f32.mrb[0].mxu0
      %v7843 = vadd.f32 0.0, %v7842
      %v7844 = vpop.f32.mrb[0].mxu0
      %7845 = vmatprep.mubr.bf16.mxu0 0
      %7846 = vmatmul.mubr.bf16.gmra.mrb[0].mxu0 %v7687
      %v7847 = vpop.f32.mrb[0].mxu0
      %v7848 = vadd.f32 0.0, %v7847
      %v7849 = vpop.f32.mrb[0].mxu0
      %v7850 = vpop.f32.mrb[0].mxu0
      %v7851 = vadd.f32 0.0, %v7850
      %v7852 = vpop.f32.mrb[0].mxu0
      %7853 = vmatprep.mubr.bf16.mxu0 0
      %7854 = vmatmul.mubr.bf16.gmra.mrb[0].mxu0 %v7691
      %v7855 = vpop.f32.mrb[0].mxu0
      %v7856 = vadd.f32 0.0, %v7855
      %v7857 = vpop.f32.mrb[0].mxu0
      %v7858 = vpop.f32.mrb[0].mxu0
      %v7859 = vadd.f32 0.0, %v7858
      %v7860 = vpop.f32.mrb[0].mxu0
      %7861 = vmatprep.mubr.bf16.mxu0 0
      %7862 = vmatmul.mubr.bf16.gmra.mrb[0].mxu0 %v7695
      %v7863 = vpop.f32.mrb[0].mxu0
      %v7864 = vadd.f32 0.0, %v7863
      %v7865 = vpop.f32.mrb[0].mxu0
      %v7866 = vpop.f32.mrb[0].mxu0
      %v7867 = vadd.f32 0.0, %v7866
      %v7868 = vpop.f32.mrb[0].mxu0
      %7869 = vmatprep.mubr.bf16.mxu0 0
      %7870 = vmatmul.mubr.bf16.gmra.mrb[0].mxu0 %v7699
      %v7871 = vpop.f32.mrb[0].mxu0
      %v7872 = vadd.f32 0.0, %v7871
      %v7873 = vpop.f32.mrb[0].mxu0
      %v7874 = vpop.f32.mrb[0].mxu0
      %v7875 = vadd.f32 0.0, %v7874
      %v7876 = vpop.f32.mrb[0].mxu0
      %7877 = vmatprep.mubr.bf16.mxu0 0
      %7878 = vmatmul.mubr.bf16.gmra.mrb[0].mxu0 %v7703
      %v7879 = vpop.f32.mrb[0].mxu0
      %v7880 = vadd.f32 0.0, %v7879
      %v7881 = vpop.f32.mrb[0].mxu0
      %v7882 = vpop.f32.mrb[0].mxu0
      %v7883 = vadd.f32 0.0, %v7882
      %v7884 = vpop.f32.mrb[0].mxu0
      %7885 = vmatprep.mubr.bf16.mxu0 0
      %7886 = vmatmul.mubr.bf16.gmra.mrb[0].mxu0 %v7707
      %v7887 = vpop.f32.mrb[0].mxu0
      %v7888 = vadd.f32 0.0, %v7887
      %v7889 = vpop.f32.mrb[0].mxu0
      %v7890 = vpop.f32.mrb[0].mxu0
      %v7891 = vadd.f32 0.0, %v7890
      %v7892 = vpop.f32.mrb[0].mxu0
      %7893 = vmatprep.mubr.bf16.mxu0 0
      %7894 = vmatmul.mubr.bf16.gmra.mrb[0].mxu0 %v7711
      %v7895 = vpop.f32.mrb[0].mxu0
      %v7896 = vadd.f32 0.0, %v7895
      %v7897 = vpop.f32.mrb[0].mxu0
      %v7898 = vpop.f32.mrb[0].mxu0
      %v7899 = vadd.f32 0.0, %v7898
      %v7900 = vpop.f32.mrb[0].mxu0
      %7901 = vmatprep.mubr.bf16.mxu0 0
      %7902 = vmatmul.mubr.bf16.gmra.mrb[0].mxu0 %v7720
      %v7903 = vpop.f32.mrb[0].mxu0
      %v7904 = vadd.f32 0.0, %v7903
      %v7905 = vpop.f32.mrb[0].mxu0
      %v7906 = vpop.f32.mrb[0].mxu0
      %v7907 = vadd.f32 0.0, %v7906
      %v7908 = vpop.f32.mrb[0].mxu0
      %7909 = vdwg.mxu0
      %v7910 = vadd.f32 %v7547, %v7816
      %v7911 = vadd.f32 %v7550, %v7819
      %v7912 = vadd.f32 %v7555, %v7824
      %v7913 = vadd.f32 %v7558, %v7827
      %v7914 = vadd.f32 %v7563, %v7832
      %v7915 = vadd.f32 %v7566, %v7835
      %v7916 = vadd.f32 %v7571, %v7840
      %v7917 = vadd.f32 %v7574, %v7843
      %v7918 = vadd.f32 %v7579, %v7848
      %v7919 = vadd.f32 %v7582, %v7851
      %v7920 = vadd.f32 %v7587, %v7856
      %v7921 = vadd.f32 %v7590, %v7859
      %v7922 = vadd.f32 %v7595, %v7864
      %v7923 = vadd.f32 %v7598, %v7867
      %v7924 = vadd.f32 %v7603, %v7872
      %v7925 = vadd.f32 %v7606, %v7875
      %v7926 = vadd.f32 %v7611, %v7880
      %v7927 = vadd.f32 %v7614, %v7883
      %v7928 = vadd.f32 %v7619, %v7888
      %v7929 = vadd.f32 %v7622, %v7891
      %v7930 = vadd.f32 %v7627, %v7896
      %v7931 = vadd.f32 %v7630, %v7899
      %v7932 = vadd.f32 %v7635, %v7904
      %v7933 = vadd.f32 %v7638, %v7907
      %v7934 = vld [vmem:[#allocation2 + $0x8] sm:$0x80]
      %v7935 = vld [vmem:[#allocation2 + $0x10] sm:$0xff]
      %v7936 = vld [vmem:[#allocation2 + $0x18] sm:$0xff]
      %v7937 = vld [vmem:[#allocation2 + $0x20] sm:$0xff]
      %v7938 = vld [vmem:[#allocation2 + $0x28] sm:$0xff]
      %v7939 = vld [vmem:[#allocation2 + $0x30] sm:$0xff]
      %v7940 = vld [vmem:[#allocation2 + $0x38] sm:$0xff]
      %v7941 = vld [vmem:[#allocation2 + $0x40] sm:$0xff]
      %v7942 = vld [vmem:[#allocation2 + $0x48] sm:$0xff]
      %v7943 = vld [vmem:[#allocation2 + $0x50] sm:$0xff]
      %v7944 = vld [vmem:[#allocation2 + $0x58] sm:$0xff]
      %v7945 = vld [vmem:[#allocation2 + $0x60] sm:$0xff]
      %v7946 = vld [vmem:[#allocation2 + $0x68] sm:$0xff]
      %s7947 = scalar_lea.vmem %s4, 192
      %v7948 = vld [vmem:[%s7947] sm:$0xf]
      %v7949 = vld [vmem:[%s7947 + $0x4] sm:$0xf]
      %v7950 = vld [vmem:[%s7947 + $0x8] sm:$0xf]
      %v7951 = vld [vmem:[%s7947 + $0xc] sm:$0xf]
      %v7952 = vld [vmem:[%s7947 + $0x10] sm:$0xf]
      %v7953 = vld [vmem:[%s7947 + $0x14] sm:$0xf]
      %v7954 = vld [vmem:[%s7947 + $0x18] sm:$0xf]
      %v7955 = vld [vmem:[%s7947 + $0x1c] sm:$0xf]
      %v7956 = vld [vmem:[%s7947 + $0x20] sm:$0xf]
      %v7957 = vld [vmem:[%s7947 + $0x24] sm:$0xf]
      %v7958 = vld [vmem:[%s7947 + $0x28] sm:$0xf]
      %v7959 = vld [vmem:[%s7947 + $0x2c] sm:$0xf]
      %v7960 = vld [vmem:[%s7947 + $0x30] sm:$0xf]
      %v7961 = vld [vmem:[%s7947 + $0x34] sm:$0xf]
      %v7962 = vld [vmem:[%s7947 + $0x38] sm:$0xf]
      %v7963 = vld [vmem:[%s7947 + $0x3c] sm:$0xf]
      %vm7964 = vsmask.f32 256
      %v7966 = vshrl.u32 %v7934, 16
      %v7968 = vrot.slane %v7966, 7
      %v7970 = vshrl.u32 %v7935, 16
      %v7972 = vrot.slane %v7970, 7
      %v7973 = vshll.u32 %v7935, 16
      %v7975 = vor.u32 %v7972, %v7973
      %v7976 = vsel %vm7964, %v7968, %v7975
      %v7978 = vshrl.u32 %v7936, 16
      %v7980 = vrot.slane %v7978, 7
      %v7981 = vshll.u32 %v7936, 16
      %v7983 = vor.u32 %v7980, %v7981
      %v7984 = vsel %vm7964, %v7972, %v7983
      %v7986 = vshrl.u32 %v7937, 16
      %v7988 = vrot.slane %v7986, 7
      %v7989 = vshll.u32 %v7937, 16
      %v7991 = vor.u32 %v7988, %v7989
      %v7992 = vsel %vm7964, %v7980, %v7991
      %v7994 = vshrl.u32 %v7938, 16
      %v7996 = vrot.slane %v7994, 7
      %v7997 = vshll.u32 %v7938, 16
      %v7999 = vor.u32 %v7996, %v7997
      %v8000 = vsel %vm7964, %v7988, %v7999
      %v8002 = vshrl.u32 %v7939, 16
      %v8004 = vrot.slane %v8002, 7
      %v8005 = vshll.u32 %v7939, 16
      %v8007 = vor.u32 %v8004, %v8005
      %v8008 = vsel %vm7964, %v7996, %v8007
      %v8010 = vshrl.u32 %v7940, 16
      %v8012 = vrot.slane %v8010, 7
      %v8013 = vshll.u32 %v7940, 16
      %v8015 = vor.u32 %v8012, %v8013
      %v8016 = vsel %vm7964, %v8004, %v8015
      %v8018 = vshrl.u32 %v7941, 16
      %v8020 = vrot.slane %v8018, 7
      %v8021 = vshll.u32 %v7941, 16
      %v8023 = vor.u32 %v8020, %v8021
      %v8024 = vsel %vm7964, %v8012, %v8023
      %v8026 = vshrl.u32 %v7942, 16
      %v8028 = vrot.slane %v8026, 7
      %v8029 = vshll.u32 %v7942, 16
      %v8031 = vor.u32 %v8028, %v8029
      %v8032 = vsel %vm7964, %v8020, %v8031
      %v8034 = vshrl.u32 %v7943, 16
      %v8036 = vrot.slane %v8034, 7
      %v8037 = vshll.u32 %v7943, 16
      %v8039 = vor.u32 %v8036, %v8037
      %v8040 = vsel %vm7964, %v8028, %v8039
      %v8042 = vshrl.u32 %v7944, 16
      %v8044 = vrot.slane %v8042, 7
      %v8045 = vshll.u32 %v7944, 16
      %v8047 = vor.u32 %v8044, %v8045
      %v8048 = vsel %vm7964, %v8036, %v8047
      %v8050 = vshrl.u32 %v7945, 16
      %v8052 = vrot.slane %v8050, 7
      %v8053 = vshll.u32 %v7945, 16
      %v8055 = vor.u32 %v8052, %v8053
      %v8056 = vsel %vm7964, %v8044, %v8055
      %v8058 = vshrl.u32 %v7946, 16
      %v8060 = vrot.slane %v8058, 7
      %v8061 = vshll.u32 %v7946, 16
      %v8063 = vor.u32 %v8060, %v8061
      %v8064 = vsel %vm7964, %v8052, %v8063
      %v8093 = vunpack.c.l.b16 %v7948
      %v8094 = vunpack.c.l.b16 %v7949
      %v8095 = vunpack.c.l.b16 %v7950
      %v8096 = vunpack.c.l.b16 %v7951
      %v8097 = vunpack.c.l.b16 %v7952
      %v8098 = vunpack.c.l.b16 %v7953
      %v8099 = vunpack.c.l.b16 %v7954
      %v8100 = vunpack.c.l.b16 %v7955
      %v8101 = vunpack.c.l.b16 %v7956
      %v8102 = vunpack.c.l.b16 %v7957
      %v8103 = vunpack.c.l.b16 %v7958
      %v8104 = vunpack.c.l.b16 %v7959
      %v8105 = vunpack.c.l.b16 %v7960
      %v8106 = vunpack.c.l.b16 %v7961
      %v8107 = vunpack.c.l.b16 %v7962
      %v8108 = vunpack.c.l.b16 %v7963
      %v8109 = vpack.c.b16 %v8094, %v8093
      %v8110 = vpack.c.b16 %v8096, %v8095
      %v8111 = vpack.c.b16 %v8098, %v8097
      %v8112 = vpack.c.b16 %v8100, %v8099
      %v8113 = vpack.c.b16 %v8102, %v8101
      %v8114 = vpack.c.b16 %v8104, %v8103
      %v8115 = vpack.c.b16 %v8106, %v8105
      %v8116 = vpack.c.b16 %v8108, %v8107
      %8125 = vmatprep.subr.bf16.mxu0 0
      %8126 = vmatpush1.bf16.msra.mxu0 %v8109
      %8127 = vmatprep.subr.bf16.mxu0 0
      %8128 = vmatpush1.bf16.msra.mxu0 %v8110
      %8129 = vmatprep.subr.bf16.mxu0 0
      %8130 = vmatpush1.bf16.msra.mxu0 %v8111
      %8131 = vmatprep.subr.bf16.mxu0 0
      %8132 = vmatpush1.bf16.msra.mxu0 %v8112
      %8133 = vmatprep.subr.bf16.mxu0 0
      %8134 = vmatpush1.bf16.msra.mxu0 %v8113
      %8135 = vmatprep.subr.bf16.mxu0 0
      %8136 = vmatpush1.bf16.msra.mxu0 %v8114
      %8137 = vmatprep.subr.bf16.mxu0 0
      %8138 = vmatpush1.bf16.msra.mxu0 %v8115
      %8139 = vmatprep.subr.bf16.mxu0 0
      %8140 = vmatpush1.bf16.msra.mxu0 %v8116
      %8141 = vmatprep.subr.bf16.mxu0 0
      %8142 = vmatpush1.bf16.msra.mxu0 0
      %8143 = vmatprep.subr.bf16.mxu0 0
      %8144 = vmatpush1.bf16.msra.mxu0 0
      %8145 = vmatprep.subr.bf16.mxu0 0
      %8146 = vmatpush1.bf16.msra.mxu0 0
      %8147 = vmatprep.subr.bf16.mxu0 0
      %8148 = vmatpush1.bf16.msra.mxu0 0
      %8149 = vmatprep.subr.bf16.mxu0 0
      %8150 = vmatpush1.bf16.msra.mxu0 0
      %8151 = vmatprep.subr.bf16.mxu0 0
      %8152 = vmatpush1.bf16.msra.mxu0 0
      %8153 = vmatprep.subr.bf16.mxu0 0
      %8154 = vmatpush1.bf16.msra.mxu0 0
      %8155 = vmatprep.subr.bf16.mxu0 0
      %8156 = vmatpush1.bf16.msra.mxu0 0
      %8157 = vmatprep.mubr.bf16.mxu0 0
      %8158 = vmatmul.mubr.bf16.gmra.mrb[0].mxu0 %v7976
      %v8159 = vpop.f32.mrb[0].mxu0
      %v8160 = vadd.f32 0.0, %v8159
      %v8161 = vpop.f32.mrb[0].mxu0
      %v8162 = vpop.f32.mrb[0].mxu0
      %v8163 = vadd.f32 0.0, %v8162
      %v8164 = vpop.f32.mrb[0].mxu0
      %8165 = vmatprep.mubr.bf16.mxu0 0
      %8166 = vmatmul.mubr.bf16.gmra.mrb[0].mxu0 %v7984
      %v8167 = vpop.f32.mrb[0].mxu0
      %v8168 = vadd.f32 0.0, %v8167
      %v8169 = vpop.f32.mrb[0].mxu0
      %v8170 = vpop.f32.mrb[0].mxu0
      %v8171 = vadd.f32 0.0, %v8170
      %v8172 = vpop.f32.mrb[0].mxu0
      %8173 = vmatprep.mubr.bf16.mxu0 0
      %8174 = vmatmul.mubr.bf16.gmra.mrb[0].mxu0 %v7992
      %v8175 = vpop.f32.mrb[0].mxu0
      %v8176 = vadd.f32 0.0, %v8175
      %v8177 = vpop.f32.mrb[0].mxu0
      %v8178 = vpop.f32.mrb[0].mxu0
      %v8179 = vadd.f32 0.0, %v8178
      %v8180 = vpop.f32.mrb[0].mxu0
      %8181 = vmatprep.mubr.bf16.mxu0 0
      %8182 = vmatmul.mubr.bf16.gmra.mrb[0].mxu0 %v8000
      %v8183 = vpop.f32.mrb[0].mxu0
      %v8184 = vadd.f32 0.0, %v8183
      %v8185 = vpop.f32.mrb[0].mxu0
      %v8186 = vpop.f32.mrb[0].mxu0
      %v8187 = vadd.f32 0.0, %v8186
      %v8188 = vpop.f32.mrb[0].mxu0
      %8189 = vmatprep.mubr.bf16.mxu0 0
      %8190 = vmatmul.mubr.bf16.gmra.mrb[0].mxu0 %v8008
      %v8191 = vpop.f32.mrb[0].mxu0
      %v8192 = vadd.f32 0.0, %v8191
      %v8193 = vpop.f32.mrb[0].mxu0
      %v8194 = vpop.f32.mrb[0].mxu0
      %v8195 = vadd.f32 0.0, %v8194
      %v8196 = vpop.f32.mrb[0].mxu0
      %8197 = vmatprep.mubr.bf16.mxu0 0
      %8198 = vmatmul.mubr.bf16.gmra.mrb[0].mxu0 %v8016
      %v8199 = vpop.f32.mrb[0].mxu0
      %v8200 = vadd.f32 0.0, %v8199
      %v8201 = vpop.f32.mrb[0].mxu0
      %v8202 = vpop.f32.mrb[0].mxu0
      %v8203 = vadd.f32 0.0, %v8202
      %v8204 = vpop.f32.mrb[0].mxu0
      %8205 = vmatprep.mubr.bf16.mxu0 0
      %8206 = vmatmul.mubr.bf16.gmra.mrb[0].mxu0 %v8024
      %v8207 = vpop.f32.mrb[0].mxu0
      %v8208 = vadd.f32 0.0, %v8207
      %v8209 = vpop.f32.mrb[0].mxu0
      %v8210 = vpop.f32.mrb[0].mxu0
      %v8211 = vadd.f32 0.0, %v8210
      %v8212 = vpop.f32.mrb[0].mxu0
      %8213 = vmatprep.mubr.bf16.mxu0 0
      %8214 = vmatmul.mubr.bf16.gmra.mrb[0].mxu0 %v8032
      %v8215 = vpop.f32.mrb[0].mxu0
      %v8216 = vadd.f32 0.0, %v8215
      %v8217 = vpop.f32.mrb[0].mxu0
      %v8218 = vpop.f32.mrb[0].mxu0
      %v8219 = vadd.f32 0.0, %v8218
      %v8220 = vpop.f32.mrb[0].mxu0
      %8221 = vmatprep.mubr.bf16.mxu0 0
      %8222 = vmatmul.mubr.bf16.gmra.mrb[0].mxu0 %v8040
      %v8223 = vpop.f32.mrb[0].mxu0
      %v8224 = vadd.f32 0.0, %v8223
      %v8225 = vpop.f32.mrb[0].mxu0
      %v8226 = vpop.f32.mrb[0].mxu0
      %v8227 = vadd.f32 0.0, %v8226
      %v8228 = vpop.f32.mrb[0].mxu0
      %8229 = vmatprep.mubr.bf16.mxu0 0
      %8230 = vmatmul.mubr.bf16.gmra.mrb[0].mxu0 %v8048
      %v8231 = vpop.f32.mrb[0].mxu0
      %v8232 = vadd.f32 0.0, %v8231
      %v8233 = vpop.f32.mrb[0].mxu0
      %v8234 = vpop.f32.mrb[0].mxu0
      %v8235 = vadd.f32 0.0, %v8234
      %v8236 = vpop.f32.mrb[0].mxu0
      %8237 = vmatprep.mubr.bf16.mxu0 0
      %8238 = vmatmul.mubr.bf16.gmra.mrb[0].mxu0 %v8056
      %v8239 = vpop.f32.mrb[0].mxu0
      %v8240 = vadd.f32 0.0, %v8239
      %v8241 = vpop.f32.mrb[0].mxu0
      %v8242 = vpop.f32.mrb[0].mxu0
      %v8243 = vadd.f32 0.0, %v8242
      %v8244 = vpop.f32.mrb[0].mxu0
      %8245 = vmatprep.mubr.bf16.mxu0 0
      %8246 = vmatmul.mubr.bf16.gmra.mrb[0].mxu0 %v8064
      %v8247 = vpop.f32.mrb[0].mxu0
      %v8248 = vadd.f32 0.0, %v8247
      %v8249 = vpop.f32.mrb[0].mxu0
      %v8250 = vpop.f32.mrb[0].mxu0
      %v8251 = vadd.f32 0.0, %v8250
      %v8252 = vpop.f32.mrb[0].mxu0
      %8253 = vdwg.mxu0
      %v8254 = vadd.f32 %v7910, %v8160
      %v8255 = vadd.f32 %v7911, %v8163
      %v8256 = vadd.f32 %v7912, %v8168
      %v8257 = vadd.f32 %v7913, %v8171
      %v8258 = vadd.f32 %v7914, %v8176
      %v8259 = vadd.f32 %v7915, %v8179
      %v8260 = vadd.f32 %v7916, %v8184
      %v8261 = vadd.f32 %v7917, %v8187
      %v8262 = vadd.f32 %v7918, %v8192
      %v8263 = vadd.f32 %v7919, %v8195
      %v8264 = vadd.f32 %v7920, %v8200
      %v8265 = vadd.f32 %v7921, %v8203
      %v8266 = vadd.f32 %v7922, %v8208
      %v8267 = vadd.f32 %v7923, %v8211
      %v8268 = vadd.f32 %v7924, %v8216
      %v8269 = vadd.f32 %v7925, %v8219
      %v8270 = vadd.f32 %v7926, %v8224
      %v8271 = vadd.f32 %v7927, %v8227
      %v8272 = vadd.f32 %v7928, %v8232
      %v8273 = vadd.f32 %v7929, %v8235
      %v8274 = vadd.f32 %v7930, %v8240
      %v8275 = vadd.f32 %v7931, %v8243
      %v8276 = vadd.f32 %v7932, %v8248
      %v8277 = vadd.f32 %v7933, %v8251
      %s8278 = scalar_lea.vmem %s4, 256
      %v8279 = vld [vmem:[%s8278] sm:$0xf]
      %v8280 = vld [vmem:[%s8278 + $0x4] sm:$0xf]
      %v8281 = vld [vmem:[%s8278 + $0x8] sm:$0xf]
      %v8282 = vld [vmem:[%s8278 + $0xc] sm:$0xf]
      %v8283 = vld [vmem:[%s8278 + $0x10] sm:$0xf]
      %v8284 = vld [vmem:[%s8278 + $0x14] sm:$0xf]
      %v8285 = vld [vmem:[%s8278 + $0x18] sm:$0xf]
      %v8286 = vld [vmem:[%s8278 + $0x1c] sm:$0xf]
      %v8287 = vld [vmem:[%s8278 + $0x20] sm:$0xf]
      %v8288 = vld [vmem:[%s8278 + $0x24] sm:$0xf]
      %v8289 = vld [vmem:[%s8278 + $0x28] sm:$0xf]
      %v8290 = vld [vmem:[%s8278 + $0x2c] sm:$0xf]
      %v8291 = vld [vmem:[%s8278 + $0x30] sm:$0xf]
      %v8292 = vld [vmem:[%s8278 + $0x34] sm:$0xf]
      %v8293 = vld [vmem:[%s8278 + $0x38] sm:$0xf]
      %v8294 = vld [vmem:[%s8278 + $0x3c] sm:$0xf]
      %v8311 = vunpack.c.l.b16 %v8279
      %v8312 = vunpack.c.l.b16 %v8280
      %v8313 = vunpack.c.l.b16 %v8281
      %v8314 = vunpack.c.l.b16 %v8282
      %v8315 = vunpack.c.l.b16 %v8283
      %v8316 = vunpack.c.l.b16 %v8284
      %v8317 = vunpack.c.l.b16 %v8285
      %v8318 = vunpack.c.l.b16 %v8286
      %v8319 = vunpack.c.l.b16 %v8287
      %v8320 = vunpack.c.l.b16 %v8288
      %v8321 = vunpack.c.l.b16 %v8289
      %v8322 = vunpack.c.l.b16 %v8290
      %v8323 = vunpack.c.l.b16 %v8291
      %v8324 = vunpack.c.l.b16 %v8292
      %v8325 = vunpack.c.l.b16 %v8293
      %v8326 = vunpack.c.l.b16 %v8294
      %v8327 = vpack.c.b16 %v8312, %v8311
      %v8328 = vpack.c.b16 %v8314, %v8313
      %v8329 = vpack.c.b16 %v8316, %v8315
      %v8330 = vpack.c.b16 %v8318, %v8317
      %v8331 = vpack.c.b16 %v8320, %v8319
      %v8332 = vpack.c.b16 %v8322, %v8321
      %v8333 = vpack.c.b16 %v8324, %v8323
      %v8334 = vpack.c.b16 %v8326, %v8325
      %8343 = vmatprep.subr.bf16.mxu0 0
      %8344 = vmatpush1.bf16.msra.mxu0 %v8327
      %8345 = vmatprep.subr.bf16.mxu0 0
      %8346 = vmatpush1.bf16.msra.mxu0 %v8328
      %8347 = vmatprep.subr.bf16.mxu0 0
      %8348 = vmatpush1.bf16.msra.mxu0 %v8329
      %8349 = vmatprep.subr.bf16.mxu0 0
      %8350 = vmatpush1.bf16.msra.mxu0 %v8330
      %8351 = vmatprep.subr.bf16.mxu0 0
      %8352 = vmatpush1.bf16.msra.mxu0 %v8331
      %8353 = vmatprep.subr.bf16.mxu0 0
      %8354 = vmatpush1.bf16.msra.mxu0 %v8332
      %8355 = vmatprep.subr.bf16.mxu0 0
      %8356 = vmatpush1.bf16.msra.mxu0 %v8333
      %8357 = vmatprep.subr.bf16.mxu0 0
      %8358 = vmatpush1.bf16.msra.mxu0 %v8334
      %8359 = vmatprep.subr.bf16.mxu0 0
      %8360 = vmatpush1.bf16.msra.mxu0 0
      %8361 = vmatprep.subr.bf16.mxu0 0
      %8362 = vmatpush1.bf16.msra.mxu0 0
      %8363 = vmatprep.subr.bf16.mxu0 0
      %8364 = vmatpush1.bf16.msra.mxu0 0
      %8365 = vmatprep.subr.bf16.mxu0 0
      %8366 = vmatpush1.bf16.msra.mxu0 0
      %8367 = vmatprep.subr.bf16.mxu0 0
      %8368 = vmatpush1.bf16.msra.mxu0 0
      %8369 = vmatprep.subr.bf16.mxu0 0
      %8370 = vmatpush1.bf16.msra.mxu0 0
      %8371 = vmatprep.subr.bf16.mxu0 0
      %8372 = vmatpush1.bf16.msra.mxu0 0
      %8373 = vmatprep.subr.bf16.mxu0 0
      %8374 = vmatpush1.bf16.msra.mxu0 0
      %8375 = vmatprep.mubr.bf16.mxu0 0
      %8376 = vmatmul.mubr.bf16.gmra.mrb[0].mxu0 %v7935
      %v8377 = vpop.f32.mrb[0].mxu0
      %v8378 = vadd.f32 0.0, %v8377
      %v8379 = vpop.f32.mrb[0].mxu0
      %v8380 = vpop.f32.mrb[0].mxu0
      %v8381 = vadd.f32 0.0, %v8380
      %v8382 = vpop.f32.mrb[0].mxu0
      %8383 = vmatprep.mubr.bf16.mxu0 0
      %8384 = vmatmul.mubr.bf16.gmra.mrb[0].mxu0 %v7936
      %v8385 = vpop.f32.mrb[0].mxu0
      %v8386 = vadd.f32 0.0, %v8385
      %v8387 = vpop.f32.mrb[0].mxu0
      %v8388 = vpop.f32.mrb[0].mxu0
      %v8389 = vadd.f32 0.0, %v8388
      %v8390 = vpop.f32.mrb[0].mxu0
      %8391 = vmatprep.mubr.bf16.mxu0 0
      %8392 = vmatmul.mubr.bf16.gmra.mrb[0].mxu0 %v7937
      %v8393 = vpop.f32.mrb[0].mxu0
      %v8394 = vadd.f32 0.0, %v8393
      %v8395 = vpop.f32.mrb[0].mxu0
      %v8396 = vpop.f32.mrb[0].mxu0
      %v8397 = vadd.f32 0.0, %v8396
      %v8398 = vpop.f32.mrb[0].mxu0
      %8399 = vmatprep.mubr.bf16.mxu0 0
      %8400 = vmatmul.mubr.bf16.gmra.mrb[0].mxu0 %v7938
      %v8401 = vpop.f32.mrb[0].mxu0
      %v8402 = vadd.f32 0.0, %v8401
      %v8403 = vpop.f32.mrb[0].mxu0
      %v8404 = vpop.f32.mrb[0].mxu0
      %v8405 = vadd.f32 0.0, %v8404
      %v8406 = vpop.f32.mrb[0].mxu0
      %8407 = vmatprep.mubr.bf16.mxu0 0
      %8408 = vmatmul.mubr.bf16.gmra.mrb[0].mxu0 %v7939
      %v8409 = vpop.f32.mrb[0].mxu0
      %v8410 = vadd.f32 0.0, %v8409
      %v8411 = vpop.f32.mrb[0].mxu0
      %v8412 = vpop.f32.mrb[0].mxu0
      %v8413 = vadd.f32 0.0, %v8412
      %v8414 = vpop.f32.mrb[0].mxu0
      %8415 = vmatprep.mubr.bf16.mxu0 0
      %8416 = vmatmul.mubr.bf16.gmra.mrb[0].mxu0 %v7940
      %v8417 = vpop.f32.mrb[0].mxu0
      %v8418 = vadd.f32 0.0, %v8417
      %v8419 = vpop.f32.mrb[0].mxu0
      %v8420 = vpop.f32.mrb[0].mxu0
      %v8421 = vadd.f32 0.0, %v8420
      %v8422 = vpop.f32.mrb[0].mxu0
      %8423 = vmatprep.mubr.bf16.mxu0 0
      %8424 = vmatmul.mubr.bf16.gmra.mrb[0].mxu0 %v7941
      %v8425 = vpop.f32.mrb[0].mxu0
      %v8426 = vadd.f32 0.0, %v8425
      %v8427 = vpop.f32.mrb[0].mxu0
      %v8428 = vpop.f32.mrb[0].mxu0
      %v8429 = vadd.f32 0.0, %v8428
      %v8430 = vpop.f32.mrb[0].mxu0
      %8431 = vmatprep.mubr.bf16.mxu0 0
      %8432 = vmatmul.mubr.bf16.gmra.mrb[0].mxu0 %v7942
      %v8433 = vpop.f32.mrb[0].mxu0
      %v8434 = vadd.f32 0.0, %v8433
      %v8435 = vpop.f32.mrb[0].mxu0
      %v8436 = vpop.f32.mrb[0].mxu0
      %v8437 = vadd.f32 0.0, %v8436
      %v8438 = vpop.f32.mrb[0].mxu0
      %8439 = vmatprep.mubr.bf16.mxu0 0
      %8440 = vmatmul.mubr.bf16.gmra.mrb[0].mxu0 %v7943
      %v8441 = vpop.f32.mrb[0].mxu0
      %v8442 = vadd.f32 0.0, %v8441
      %v8443 = vpop.f32.mrb[0].mxu0
      %v8444 = vpop.f32.mrb[0].mxu0
      %v8445 = vadd.f32 0.0, %v8444
      %v8446 = vpop.f32.mrb[0].mxu0
      %8447 = vmatprep.mubr.bf16.mxu0 0
      %8448 = vmatmul.mubr.bf16.gmra.mrb[0].mxu0 %v7944
      %v8449 = vpop.f32.mrb[0].mxu0
      %v8450 = vadd.f32 0.0, %v8449
      %v8451 = vpop.f32.mrb[0].mxu0
      %v8452 = vpop.f32.mrb[0].mxu0
      %v8453 = vadd.f32 0.0, %v8452
      %v8454 = vpop.f32.mrb[0].mxu0
      %8455 = vmatprep.mubr.bf16.mxu0 0
      %8456 = vmatmul.mubr.bf16.gmra.mrb[0].mxu0 %v7945
      %v8457 = vpop.f32.mrb[0].mxu0
      %v8458 = vadd.f32 0.0, %v8457
      %v8459 = vpop.f32.mrb[0].mxu0
      %v8460 = vpop.f32.mrb[0].mxu0
      %v8461 = vadd.f32 0.0, %v8460
      %v8462 = vpop.f32.mrb[0].mxu0
      %8463 = vmatprep.mubr.bf16.mxu0 0
      %8464 = vmatmul.mubr.bf16.gmra.mrb[0].mxu0 %v7946
      %v8465 = vpop.f32.mrb[0].mxu0
      %v8466 = vadd.f32 0.0, %v8465
      %v8467 = vpop.f32.mrb[0].mxu0
      %v8468 = vpop.f32.mrb[0].mxu0
      %v8469 = vadd.f32 0.0, %v8468
      %v8470 = vpop.f32.mrb[0].mxu0
      %8471 = vdwg.mxu0
      %v8472 = vadd.f32 %v8254, %v8378
      %v8473 = vadd.f32 %v8255, %v8381
      %v8474 = vadd.f32 %v8256, %v8386
      %v8475 = vadd.f32 %v8257, %v8389
      %v8476 = vadd.f32 %v8258, %v8394
      %v8477 = vadd.f32 %v8259, %v8397
      %v8478 = vadd.f32 %v8260, %v8402
      %v8479 = vadd.f32 %v8261, %v8405
      %v8480 = vadd.f32 %v8262, %v8410
      %v8481 = vadd.f32 %v8263, %v8413
      %v8482 = vadd.f32 %v8264, %v8418
      %v8483 = vadd.f32 %v8265, %v8421
      %v8484 = vadd.f32 %v8266, %v8426
      %v8485 = vadd.f32 %v8267, %v8429
      %v8486 = vadd.f32 %v8268, %v8434
      %v8487 = vadd.f32 %v8269, %v8437
      %v8488 = vadd.f32 %v8270, %v8442
      %v8489 = vadd.f32 %v8271, %v8445
      %v8490 = vadd.f32 %v8272, %v8450
      %v8491 = vadd.f32 %v8273, %v8453
      %v8492 = vadd.f32 %v8274, %v8458
      %v8493 = vadd.f32 %v8275, %v8461
      %v8494 = vadd.f32 %v8276, %v8466
      %v8495 = vadd.f32 %v8277, %v8469
      %v8496 = vld [vmem:[#allocation2 + $0x10] sm:$0xff]
      %v8497 = vld [vmem:[#allocation2 + $0x18] sm:$0xff]
      %v8498 = vld [vmem:[#allocation2 + $0x20] sm:$0xff]
      %v8499 = vld [vmem:[#allocation2 + $0x28] sm:$0xff]
      %v8500 = vld [vmem:[#allocation2 + $0x30] sm:$0xff]
      %v8501 = vld [vmem:[#allocation2 + $0x38] sm:$0xff]
      %v8502 = vld [vmem:[#allocation2 + $0x40] sm:$0xff]
      %v8503 = vld [vmem:[#allocation2 + $0x48] sm:$0xff]
      %v8504 = vld [vmem:[#allocation2 + $0x50] sm:$0xff]
      %v8505 = vld [vmem:[#allocation2 + $0x58] sm:$0xff]
      %v8506 = vld [vmem:[#allocation2 + $0x60] sm:$0xff]
      %v8507 = vld [vmem:[#allocation2 + $0x68] sm:$0xff]
      %v8508 = vld [vmem:[#allocation2 + $0x70] sm:$0x1]
      %s8509 = scalar_lea.vmem %s4, 320
      %v8510 = vld [vmem:[%s8509] sm:$0xf]
      %v8511 = vld [vmem:[%s8509 + $0x4] sm:$0xf]
      %v8512 = vld [vmem:[%s8509 + $0x8] sm:$0xf]
      %v8513 = vld [vmem:[%s8509 + $0xc] sm:$0xf]
      %v8514 = vld [vmem:[%s8509 + $0x10] sm:$0xf]
      %v8515 = vld [vmem:[%s8509 + $0x14] sm:$0xf]
      %v8516 = vld [vmem:[%s8509 + $0x18] sm:$0xf]
      %v8517 = vld [vmem:[%s8509 + $0x1c] sm:$0xf]
      %v8518 = vld [vmem:[%s8509 + $0x20] sm:$0xf]
      %v8519 = vld [vmem:[%s8509 + $0x24] sm:$0xf]
      %v8520 = vld [vmem:[%s8509 + $0x28] sm:$0xf]
      %v8521 = vld [vmem:[%s8509 + $0x2c] sm:$0xf]
      %v8522 = vld [vmem:[%s8509 + $0x30] sm:$0xf]
      %v8523 = vld [vmem:[%s8509 + $0x34] sm:$0xf]
      %v8524 = vld [vmem:[%s8509 + $0x38] sm:$0xf]
      %v8525 = vld [vmem:[%s8509 + $0x3c] sm:$0xf]
      %v8527 = vshrl.u32 %v8496, 16
      %v8529 = vshll.u32 %v8496, 16
      %v8531 = vrot.slane %v8529, 1
      %v8532 = vor.u32 %v8527, %v8531
      %v8534 = vshll.u32 %v8497, 16
      %v8536 = vrot.slane %v8534, 1
      %v8537 = vsel %vm1016, %v8532, %v8536
      %v8538 = vshrl.u32 %v8497, 16
      %v8540 = vor.u32 %v8538, %v8536
      %v8542 = vshll.u32 %v8498, 16
      %v8544 = vrot.slane %v8542, 1
      %v8545 = vsel %vm1016, %v8540, %v8544
      %v8546 = vshrl.u32 %v8498, 16
      %v8548 = vor.u32 %v8546, %v8544
      %v8550 = vshll.u32 %v8499, 16
      %v8552 = vrot.slane %v8550, 1
      %v8553 = vsel %vm1016, %v8548, %v8552
      %v8554 = vshrl.u32 %v8499, 16
      %v8556 = vor.u32 %v8554, %v8552
      %v8558 = vshll.u32 %v8500, 16
      %v8560 = vrot.slane %v8558, 1
      %v8561 = vsel %vm1016, %v8556, %v8560
      %v8562 = vshrl.u32 %v8500, 16
      %v8564 = vor.u32 %v8562, %v8560
      %v8566 = vshll.u32 %v8501, 16
      %v8568 = vrot.slane %v8566, 1
      %v8569 = vsel %vm1016, %v8564, %v8568
      %v8570 = vshrl.u32 %v8501, 16
      %v8572 = vor.u32 %v8570, %v8568
      %v8574 = vshll.u32 %v8502, 16
      %v8576 = vrot.slane %v8574, 1
      %v8577 = vsel %vm1016, %v8572, %v8576
      %v8578 = vshrl.u32 %v8502, 16
      %v8580 = vor.u32 %v8578, %v8576
      %v8582 = vshll.u32 %v8503, 16
      %v8584 = vrot.slane %v8582, 1
      %v8585 = vsel %vm1016, %v8580, %v8584
      %v8586 = vshrl.u32 %v8503, 16
      %v8588 = vor.u32 %v8586, %v8584
      %v8590 = vshll.u32 %v8504, 16
      %v8592 = vrot.slane %v8590, 1
      %v8593 = vsel %vm1016, %v8588, %v8592
      %v8594 = vshrl.u32 %v8504, 16
      %v8596 = vor.u32 %v8594, %v8592
      %v8598 = vshll.u32 %v8505, 16
      %v8600 = vrot.slane %v8598, 1
      %v8601 = vsel %vm1016, %v8596, %v8600
      %v8602 = vshrl.u32 %v8505, 16
      %v8604 = vor.u32 %v8602, %v8600
      %v8606 = vshll.u32 %v8506, 16
      %v8608 = vrot.slane %v8606, 1
      %v8609 = vsel %vm1016, %v8604, %v8608
      %v8610 = vshrl.u32 %v8506, 16
      %v8612 = vor.u32 %v8610, %v8608
      %v8614 = vshll.u32 %v8507, 16
      %v8616 = vrot.slane %v8614, 1
      %v8617 = vsel %vm1016, %v8612, %v8616
      %v8618 = vshrl.u32 %v8507, 16
      %v8620 = vor.u32 %v8618, %v8616
      %v8622 = vshll.u32 %v8508, 16
      %v8624 = vrot.slane %v8622, 1
      %v8625 = vsel %vm1016, %v8620, %v8624
      %v8654 = vunpack.c.l.b16 %v8510
      %v8655 = vunpack.c.l.b16 %v8511
      %v8656 = vunpack.c.l.b16 %v8512
      %v8657 = vunpack.c.l.b16 %v8513
      %v8658 = vunpack.c.l.b16 %v8514
      %v8659 = vunpack.c.l.b16 %v8515
      %v8660 = vunpack.c.l.b16 %v8516
      %v8661 = vunpack.c.l.b16 %v8517
      %v8662 = vunpack.c.l.b16 %v8518
      %v8663 = vunpack.c.l.b16 %v8519
      %v8664 = vunpack.c.l.b16 %v8520
      %v8665 = vunpack.c.l.b16 %v8521
      %v8666 = vunpack.c.l.b16 %v8522
      %v8667 = vunpack.c.l.b16 %v8523
      %v8668 = vunpack.c.l.b16 %v8524
      %v8669 = vunpack.c.l.b16 %v8525
      %v8670 = vpack.c.b16 %v8655, %v8654
      %v8671 = vpack.c.b16 %v8657, %v8656
      %v8672 = vpack.c.b16 %v8659, %v8658
      %v8673 = vpack.c.b16 %v8661, %v8660
      %v8674 = vpack.c.b16 %v8663, %v8662
      %v8675 = vpack.c.b16 %v8665, %v8664
      %v8676 = vpack.c.b16 %v8667, %v8666
      %v8677 = vpack.c.b16 %v8669, %v8668
      %8686 = vmatprep.subr.bf16.mxu0 0
      %8687 = vmatpush1.bf16.msra.mxu0 %v8670
      %8688 = vmatprep.subr.bf16.mxu0 0
      %8689 = vmatpush1.bf16.msra.mxu0 %v8671
      %8690 = vmatprep.subr.bf16.mxu0 0
      %8691 = vmatpush1.bf16.msra.mxu0 %v8672
      %8692 = vmatprep.subr.bf16.mxu0 0
      %8693 = vmatpush1.bf16.msra.mxu0 %v8673
      %8694 = vmatprep.subr.bf16.mxu0 0
      %8695 = vmatpush1.bf16.msra.mxu0 %v8674
      %8696 = vmatprep.subr.bf16.mxu0 0
      %8697 = vmatpush1.bf16.msra.mxu0 %v8675
      %8698 = vmatprep.subr.bf16.mxu0 0
      %8699 = vmatpush1.bf16.msra.mxu0 %v8676
      %8700 = vmatprep.subr.bf16.mxu0 0
      %8701 = vmatpush1.bf16.msra.mxu0 %v8677
      %8702 = vmatprep.subr.bf16.mxu0 0
      %8703 = vmatpush1.bf16.msra.mxu0 0
      %8704 = vmatprep.subr.bf16.mxu0 0
      %8705 = vmatpush1.bf16.msra.mxu0 0
      %8706 = vmatprep.subr.bf16.mxu0 0
      %8707 = vmatpush1.bf16.msra.mxu0 0
      %8708 = vmatprep.subr.bf16.mxu0 0
      %8709 = vmatpush1.bf16.msra.mxu0 0
      %8710 = vmatprep.subr.bf16.mxu0 0
      %8711 = vmatpush1.bf16.msra.mxu0 0
      %8712 = vmatprep.subr.bf16.mxu0 0
      %8713 = vmatpush1.bf16.msra.mxu0 0
      %8714 = vmatprep.subr.bf16.mxu0 0
      %8715 = vmatpush1.bf16.msra.mxu0 0
      %8716 = vmatprep.subr.bf16.mxu0 0
      %8717 = vmatpush1.bf16.msra.mxu0 0
      %8718 = vmatprep.mubr.bf16.mxu0 0
      %8719 = vmatmul.mubr.bf16.gmra.mrb[0].mxu0 %v8537
      %v8720 = vpop.f32.mrb[0].mxu0
      %v8721 = vadd.f32 0.0, %v8720
      %v8722 = vpop.f32.mrb[0].mxu0
      %v8723 = vpop.f32.mrb[0].mxu0
      %v8724 = vadd.f32 0.0, %v8723
      %v8725 = vpop.f32.mrb[0].mxu0
      %8726 = vmatprep.mubr.bf16.mxu0 0
      %8727 = vmatmul.mubr.bf16.gmra.mrb[0].mxu0 %v8545
      %v8728 = vpop.f32.mrb[0].mxu0
      %v8729 = vadd.f32 0.0, %v8728
      %v8730 = vpop.f32.mrb[0].mxu0
      %v8731 = vpop.f32.mrb[0].mxu0
      %v8732 = vadd.f32 0.0, %v8731
      %v8733 = vpop.f32.mrb[0].mxu0
      %8734 = vmatprep.mubr.bf16.mxu0 0
      %8735 = vmatmul.mubr.bf16.gmra.mrb[0].mxu0 %v8553
      %v8736 = vpop.f32.mrb[0].mxu0
      %v8737 = vadd.f32 0.0, %v8736
      %v8738 = vpop.f32.mrb[0].mxu0
      %v8739 = vpop.f32.mrb[0].mxu0
      %v8740 = vadd.f32 0.0, %v8739
      %v8741 = vpop.f32.mrb[0].mxu0
      %8742 = vmatprep.mubr.bf16.mxu0 0
      %8743 = vmatmul.mubr.bf16.gmra.mrb[0].mxu0 %v8561
      %v8744 = vpop.f32.mrb[0].mxu0
      %v8745 = vadd.f32 0.0, %v8744
      %v8746 = vpop.f32.mrb[0].mxu0
      %v8747 = vpop.f32.mrb[0].mxu0
      %v8748 = vadd.f32 0.0, %v8747
      %v8749 = vpop.f32.mrb[0].mxu0
      %8750 = vmatprep.mubr.bf16.mxu0 0
      %8751 = vmatmul.mubr.bf16.gmra.mrb[0].mxu0 %v8569
      %v8752 = vpop.f32.mrb[0].mxu0
      %v8753 = vadd.f32 0.0, %v8752
      %v8754 = vpop.f32.mrb[0].mxu0
      %v8755 = vpop.f32.mrb[0].mxu0
      %v8756 = vadd.f32 0.0, %v8755
      %v8757 = vpop.f32.mrb[0].mxu0
      %8758 = vmatprep.mubr.bf16.mxu0 0
      %8759 = vmatmul.mubr.bf16.gmra.mrb[0].mxu0 %v8577
      %v8760 = vpop.f32.mrb[0].mxu0
      %v8761 = vadd.f32 0.0, %v8760
      %v8762 = vpop.f32.mrb[0].mxu0
      %v8763 = vpop.f32.mrb[0].mxu0
      %v8764 = vadd.f32 0.0, %v8763
      %v8765 = vpop.f32.mrb[0].mxu0
      %8766 = vmatprep.mubr.bf16.mxu0 0
      %8767 = vmatmul.mubr.bf16.gmra.mrb[0].mxu0 %v8585
      %v8768 = vpop.f32.mrb[0].mxu0
      %v8769 = vadd.f32 0.0, %v8768
      %v8770 = vpop.f32.mrb[0].mxu0
      %v8771 = vpop.f32.mrb[0].mxu0
      %v8772 = vadd.f32 0.0, %v8771
      %v8773 = vpop.f32.mrb[0].mxu0
      %8774 = vmatprep.mubr.bf16.mxu0 0
      %8775 = vmatmul.mubr.bf16.gmra.mrb[0].mxu0 %v8593
      %v8776 = vpop.f32.mrb[0].mxu0
      %v8777 = vadd.f32 0.0, %v8776
      %v8778 = vpop.f32.mrb[0].mxu0
      %v8779 = vpop.f32.mrb[0].mxu0
      %v8780 = vadd.f32 0.0, %v8779
      %v8781 = vpop.f32.mrb[0].mxu0
      %8782 = vmatprep.mubr.bf16.mxu0 0
      %8783 = vmatmul.mubr.bf16.gmra.mrb[0].mxu0 %v8601
      %v8784 = vpop.f32.mrb[0].mxu0
      %v8785 = vadd.f32 0.0, %v8784
      %v8786 = vpop.f32.mrb[0].mxu0
      %v8787 = vpop.f32.mrb[0].mxu0
      %v8788 = vadd.f32 0.0, %v8787
      %v8789 = vpop.f32.mrb[0].mxu0
      %8790 = vmatprep.mubr.bf16.mxu0 0
      %8791 = vmatmul.mubr.bf16.gmra.mrb[0].mxu0 %v8609
      %v8792 = vpop.f32.mrb[0].mxu0
      %v8793 = vadd.f32 0.0, %v8792
      %v8794 = vpop.f32.mrb[0].mxu0
      %v8795 = vpop.f32.mrb[0].mxu0
      %v8796 = vadd.f32 0.0, %v8795
      %v8797 = vpop.f32.mrb[0].mxu0
      %8798 = vmatprep.mubr.bf16.mxu0 0
      %8799 = vmatmul.mubr.bf16.gmra.mrb[0].mxu0 %v8617
      %v8800 = vpop.f32.mrb[0].mxu0
      %v8801 = vadd.f32 0.0, %v8800
      %v8802 = vpop.f32.mrb[0].mxu0
      %v8803 = vpop.f32.mrb[0].mxu0
      %v8804 = vadd.f32 0.0, %v8803
      %v8805 = vpop.f32.mrb[0].mxu0
      %8806 = vmatprep.mubr.bf16.mxu0 0
      %8807 = vmatmul.mubr.bf16.gmra.mrb[0].mxu0 %v8625
      %v8808 = vpop.f32.mrb[0].mxu0
      %v8809 = vadd.f32 0.0, %v8808
      %v8810 = vpop.f32.mrb[0].mxu0
      %v8811 = vpop.f32.mrb[0].mxu0
      %v8812 = vadd.f32 0.0, %v8811
      %v8813 = vpop.f32.mrb[0].mxu0
      %8814 = vdwg.mxu0
      %v8815 = vadd.f32 %v8472, %v8721
      %v8816 = vadd.f32 %v8473, %v8724
      %v8817 = vadd.f32 %v8474, %v8729
      %v8818 = vadd.f32 %v8475, %v8732
      %v8819 = vadd.f32 %v8476, %v8737
      %v8820 = vadd.f32 %v8477, %v8740
      %v8821 = vadd.f32 %v8478, %v8745
      %v8822 = vadd.f32 %v8479, %v8748
      %v8823 = vadd.f32 %v8480, %v8753
      %v8824 = vadd.f32 %v8481, %v8756
      %v8825 = vadd.f32 %v8482, %v8761
      %v8826 = vadd.f32 %v8483, %v8764
      %v8827 = vadd.f32 %v8484, %v8769
      %v8828 = vadd.f32 %v8485, %v8772
      %v8829 = vadd.f32 %v8486, %v8777
      %v8830 = vadd.f32 %v8487, %v8780
      %v8831 = vadd.f32 %v8488, %v8785
      %v8832 = vadd.f32 %v8489, %v8788
      %v8833 = vadd.f32 %v8490, %v8793
      %v8834 = vadd.f32 %v8491, %v8796
      %v8835 = vadd.f32 %v8492, %v8801
      %v8836 = vadd.f32 %v8493, %v8804
      %v8837 = vadd.f32 %v8494, %v8809
      %v8838 = vadd.f32 %v8495, %v8812
      %v8839 = vld [vmem:[#allocation2 + $0x18] sm:$0xf8]
      %v8840 = vld [vmem:[#allocation2 + $0x20] sm:$0xff]
      %v8841 = vld [vmem:[#allocation2 + $0x28] sm:$0xff]
      %v8842 = vld [vmem:[#allocation2 + $0x30] sm:$0xff]
      %v8843 = vld [vmem:[#allocation2 + $0x38] sm:$0xff]
      %v8844 = vld [vmem:[#allocation2 + $0x40] sm:$0xff]
      %v8845 = vld [vmem:[#allocation2 + $0x48] sm:$0xff]
      %v8846 = vld [vmem:[#allocation2 + $0x50] sm:$0xff]
      %v8847 = vld [vmem:[#allocation2 + $0x58] sm:$0xff]
      %v8848 = vld [vmem:[#allocation2 + $0x60] sm:$0xff]
      %v8849 = vld [vmem:[#allocation2 + $0x68] sm:$0xff]
      %v8850 = vld [vmem:[#allocation2 + $0x70] sm:$0xff]
      %v8851 = vld [vmem:[#allocation2 + $0x78] sm:$0xf]
      %s8852 = scalar_lea.vmem %s4, 384
      %v8853 = vld [vmem:[%s8852] sm:$0xf]
      %v8854 = vld [vmem:[%s8852 + $0x4] sm:$0xf]
      %v8855 = vld [vmem:[%s8852 + $0x8] sm:$0xf]
      %v8856 = vld [vmem:[%s8852 + $0xc] sm:$0xf]
      %v8857 = vld [vmem:[%s8852 + $0x10] sm:$0xf]
      %v8858 = vld [vmem:[%s8852 + $0x14] sm:$0xf]
      %v8859 = vld [vmem:[%s8852 + $0x18] sm:$0xf]
      %v8860 = vld [vmem:[%s8852 + $0x1c] sm:$0xf]
      %v8861 = vld [vmem:[%s8852 + $0x20] sm:$0xf]
      %v8862 = vld [vmem:[%s8852 + $0x24] sm:$0xf]
      %v8863 = vld [vmem:[%s8852 + $0x28] sm:$0xf]
      %v8864 = vld [vmem:[%s8852 + $0x2c] sm:$0xf]
      %v8865 = vld [vmem:[%s8852 + $0x30] sm:$0xf]
      %v8866 = vld [vmem:[%s8852 + $0x34] sm:$0xf]
      %v8867 = vld [vmem:[%s8852 + $0x38] sm:$0xf]
      %v8868 = vld [vmem:[%s8852 + $0x3c] sm:$0xf]
      %v8870 = vshrl.u32 %v8839, 16
      %v8872 = vrot.slane %v8870, 3
      %v8873 = vshll.u32 %v8839, 16
      %v8875 = vrot.slane %v8873, 4
      %v8876 = vor.u32 %v8872, %v8875
      %v8878 = vshrl.u32 %v8840, 16
      %v8880 = vrot.slane %v8878, 3
      %v8881 = vshll.u32 %v8840, 16
      %v8883 = vrot.slane %v8881, 4
      %v8884 = vor.u32 %v8880, %v8883
      %v8885 = vsel %vm605, %v8876, %v8884
      %v8887 = vshrl.u32 %v8841, 16
      %v8889 = vrot.slane %v8887, 3
      %v8890 = vshll.u32 %v8841, 16
      %v8892 = vrot.slane %v8890, 4
      %v8893 = vor.u32 %v8889, %v8892
      %v8894 = vsel %vm605, %v8884, %v8893
      %v8896 = vshrl.u32 %v8842, 16
      %v8898 = vrot.slane %v8896, 3
      %v8899 = vshll.u32 %v8842, 16
      %v8901 = vrot.slane %v8899, 4
      %v8902 = vor.u32 %v8898, %v8901
      %v8903 = vsel %vm605, %v8893, %v8902
      %v8905 = vshrl.u32 %v8843, 16
      %v8907 = vrot.slane %v8905, 3
      %v8908 = vshll.u32 %v8843, 16
      %v8910 = vrot.slane %v8908, 4
      %v8911 = vor.u32 %v8907, %v8910
      %v8912 = vsel %vm605, %v8902, %v8911
      %v8914 = vshrl.u32 %v8844, 16
      %v8916 = vrot.slane %v8914, 3
      %v8917 = vshll.u32 %v8844, 16
      %v8919 = vrot.slane %v8917, 4
      %v8920 = vor.u32 %v8916, %v8919
      %v8921 = vsel %vm605, %v8911, %v8920
      %v8923 = vshrl.u32 %v8845, 16
      %v8925 = vrot.slane %v8923, 3
      %v8926 = vshll.u32 %v8845, 16
      %v8928 = vrot.slane %v8926, 4
      %v8929 = vor.u32 %v8925, %v8928
      %v8930 = vsel %vm605, %v8920, %v8929
      %v8932 = vshrl.u32 %v8846, 16
      %v8934 = vrot.slane %v8932, 3
      %v8935 = vshll.u32 %v8846, 16
      %v8937 = vrot.slane %v8935, 4
      %v8938 = vor.u32 %v8934, %v8937
      %v8939 = vsel %vm605, %v8929, %v8938
      %v8941 = vshrl.u32 %v8847, 16
      %v8943 = vrot.slane %v8941, 3
      %v8944 = vshll.u32 %v8847, 16
      %v8946 = vrot.slane %v8944, 4
      %v8947 = vor.u32 %v8943, %v8946
      %v8948 = vsel %vm605, %v8938, %v8947
      %v8950 = vshrl.u32 %v8848, 16
      %v8952 = vrot.slane %v8950, 3
      %v8953 = vshll.u32 %v8848, 16
      %v8955 = vrot.slane %v8953, 4
      %v8956 = vor.u32 %v8952, %v8955
      %v8957 = vsel %vm605, %v8947, %v8956
      %v8959 = vshrl.u32 %v8849, 16
      %v8961 = vrot.slane %v8959, 3
      %v8962 = vshll.u32 %v8849, 16
      %v8964 = vrot.slane %v8962, 4
      %v8965 = vor.u32 %v8961, %v8964
      %v8966 = vsel %vm605, %v8956, %v8965
      %v8968 = vshrl.u32 %v8850, 16
      %v8970 = vrot.slane %v8968, 3
      %v8971 = vshll.u32 %v8850, 16
      %v8973 = vrot.slane %v8971, 4
      %v8974 = vor.u32 %v8970, %v8973
      %v8975 = vsel %vm605, %v8965, %v8974
      %v8977 = vshrl.u32 %v8851, 16
      %v8979 = vrot.slane %v8977, 3
      %v8980 = vshll.u32 %v8851, 16
      %v8982 = vrot.slane %v8980, 4
      %v8983 = vor.u32 %v8979, %v8982
      %v8984 = vsel %vm605, %v8974, %v8983
      %v9013 = vunpack.c.l.b16 %v8853
      %v9014 = vunpack.c.l.b16 %v8854
      %v9015 = vunpack.c.l.b16 %v8855
      %v9016 = vunpack.c.l.b16 %v8856
      %v9017 = vunpack.c.l.b16 %v8857
      %v9018 = vunpack.c.l.b16 %v8858
      %v9019 = vunpack.c.l.b16 %v8859
      %v9020 = vunpack.c.l.b16 %v8860
      %v9021 = vunpack.c.l.b16 %v8861
      %v9022 = vunpack.c.l.b16 %v8862
      %v9023 = vunpack.c.l.b16 %v8863
      %v9024 = vunpack.c.l.b16 %v8864
      %v9025 = vunpack.c.l.b16 %v8865
      %v9026 = vunpack.c.l.b16 %v8866
      %v9027 = vunpack.c.l.b16 %v8867
      %v9028 = vunpack.c.l.b16 %v8868
      %v9029 = vpack.c.b16 %v9014, %v9013
      %v9030 = vpack.c.b16 %v9016, %v9015
      %v9031 = vpack.c.b16 %v9018, %v9017
      %v9032 = vpack.c.b16 %v9020, %v9019
      %v9033 = vpack.c.b16 %v9022, %v9021
      %v9034 = vpack.c.b16 %v9024, %v9023
      %v9035 = vpack.c.b16 %v9026, %v9025
      %v9036 = vpack.c.b16 %v9028, %v9027
      %9045 = vmatprep.subr.bf16.mxu0 0
      %9046 = vmatpush1.bf16.msra.mxu0 %v9029
      %9047 = vmatprep.subr.bf16.mxu0 0
      %9048 = vmatpush1.bf16.msra.mxu0 %v9030
      %9049 = vmatprep.subr.bf16.mxu0 0
      %9050 = vmatpush1.bf16.msra.mxu0 %v9031
      %9051 = vmatprep.subr.bf16.mxu0 0
      %9052 = vmatpush1.bf16.msra.mxu0 %v9032
      %9053 = vmatprep.subr.bf16.mxu0 0
      %9054 = vmatpush1.bf16.msra.mxu0 %v9033
      %9055 = vmatprep.subr.bf16.mxu0 0
      %9056 = vmatpush1.bf16.msra.mxu0 %v9034
      %9057 = vmatprep.subr.bf16.mxu0 0
      %9058 = vmatpush1.bf16.msra.mxu0 %v9035
      %9059 = vmatprep.subr.bf16.mxu0 0
      %9060 = vmatpush1.bf16.msra.mxu0 %v9036
      %9061 = vmatprep.subr.bf16.mxu0 0
      %9062 = vmatpush1.bf16.msra.mxu0 0
      %9063 = vmatprep.subr.bf16.mxu0 0
      %9064 = vmatpush1.bf16.msra.mxu0 0
      %9065 = vmatprep.subr.bf16.mxu0 0
      %9066 = vmatpush1.bf16.msra.mxu0 0
      %9067 = vmatprep.subr.bf16.mxu0 0
      %9068 = vmatpush1.bf16.msra.mxu0 0
      %9069 = vmatprep.subr.bf16.mxu0 0
      %9070 = vmatpush1.bf16.msra.mxu0 0
      %9071 = vmatprep.subr.bf16.mxu0 0
      %9072 = vmatpush1.bf16.msra.mxu0 0
      %9073 = vmatprep.subr.bf16.mxu0 0
      %9074 = vmatpush1.bf16.msra.mxu0 0
      %9075 = vmatprep.subr.bf16.mxu0 0
      %9076 = vmatpush1.bf16.msra.mxu0 0
      %9077 = vmatprep.mubr.bf16.mxu0 0
      %9078 = vmatmul.mubr.bf16.gmra.mrb[0].mxu0 %v8885
      %v9079 = vpop.f32.mrb[0].mxu0
      %v9080 = vadd.f32 0.0, %v9079
      %v9081 = vpop.f32.mrb[0].mxu0
      %v9082 = vpop.f32.mrb[0].mxu0
      %v9083 = vadd.f32 0.0, %v9082
      %v9084 = vpop.f32.mrb[0].mxu0
      %9085 = vmatprep.mubr.bf16.mxu0 0
      %9086 = vmatmul.mubr.bf16.gmra.mrb[0].mxu0 %v8894
      %v9087 = vpop.f32.mrb[0].mxu0
      %v9088 = vadd.f32 0.0, %v9087
      %v9089 = vpop.f32.mrb[0].mxu0
      %v9090 = vpop.f32.mrb[0].mxu0
      %v9091 = vadd.f32 0.0, %v9090
      %v9092 = vpop.f32.mrb[0].mxu0
      %9093 = vmatprep.mubr.bf16.mxu0 0
      %9094 = vmatmul.mubr.bf16.gmra.mrb[0].mxu0 %v8903
      %v9095 = vpop.f32.mrb[0].mxu0
      %v9096 = vadd.f32 0.0, %v9095
      %v9097 = vpop.f32.mrb[0].mxu0
      %v9098 = vpop.f32.mrb[0].mxu0
      %v9099 = vadd.f32 0.0, %v9098
      %v9100 = vpop.f32.mrb[0].mxu0
      %9101 = vmatprep.mubr.bf16.mxu0 0
      %9102 = vmatmul.mubr.bf16.gmra.mrb[0].mxu0 %v8912
      %v9103 = vpop.f32.mrb[0].mxu0
      %v9104 = vadd.f32 0.0, %v9103
      %v9105 = vpop.f32.mrb[0].mxu0
      %v9106 = vpop.f32.mrb[0].mxu0
      %v9107 = vadd.f32 0.0, %v9106
      %v9108 = vpop.f32.mrb[0].mxu0
      %9109 = vmatprep.mubr.bf16.mxu0 0
      %9110 = vmatmul.mubr.bf16.gmra.mrb[0].mxu0 %v8921
      %v9111 = vpop.f32.mrb[0].mxu0
      %v9112 = vadd.f32 0.0, %v9111
      %v9113 = vpop.f32.mrb[0].mxu0
      %v9114 = vpop.f32.mrb[0].mxu0
      %v9115 = vadd.f32 0.0, %v9114
      %v9116 = vpop.f32.mrb[0].mxu0
      %9117 = vmatprep.mubr.bf16.mxu0 0
      %9118 = vmatmul.mubr.bf16.gmra.mrb[0].mxu0 %v8930
      %v9119 = vpop.f32.mrb[0].mxu0
      %v9120 = vadd.f32 0.0, %v9119
      %v9121 = vpop.f32.mrb[0].mxu0
      %v9122 = vpop.f32.mrb[0].mxu0
      %v9123 = vadd.f32 0.0, %v9122
      %v9124 = vpop.f32.mrb[0].mxu0
      %9125 = vmatprep.mubr.bf16.mxu0 0
      %9126 = vmatmul.mubr.bf16.gmra.mrb[0].mxu0 %v8939
      %v9127 = vpop.f32.mrb[0].mxu0
      %v9128 = vadd.f32 0.0, %v9127
      %v9129 = vpop.f32.mrb[0].mxu0
      %v9130 = vpop.f32.mrb[0].mxu0
      %v9131 = vadd.f32 0.0, %v9130
      %v9132 = vpop.f32.mrb[0].mxu0
      %9133 = vmatprep.mubr.bf16.mxu0 0
      %9134 = vmatmul.mubr.bf16.gmra.mrb[0].mxu0 %v8948
      %v9135 = vpop.f32.mrb[0].mxu0
      %v9136 = vadd.f32 0.0, %v9135
      %v9137 = vpop.f32.mrb[0].mxu0
      %v9138 = vpop.f32.mrb[0].mxu0
      %v9139 = vadd.f32 0.0, %v9138
      %v9140 = vpop.f32.mrb[0].mxu0
      %9141 = vmatprep.mubr.bf16.mxu0 0
      %9142 = vmatmul.mubr.bf16.gmra.mrb[0].mxu0 %v8957
      %v9143 = vpop.f32.mrb[0].mxu0
      %v9144 = vadd.f32 0.0, %v9143
      %v9145 = vpop.f32.mrb[0].mxu0
      %v9146 = vpop.f32.mrb[0].mxu0
      %v9147 = vadd.f32 0.0, %v9146
      %v9148 = vpop.f32.mrb[0].mxu0
      %9149 = vmatprep.mubr.bf16.mxu0 0
      %9150 = vmatmul.mubr.bf16.gmra.mrb[0].mxu0 %v8966
      %v9151 = vpop.f32.mrb[0].mxu0
      %v9152 = vadd.f32 0.0, %v9151
      %v9153 = vpop.f32.mrb[0].mxu0
      %v9154 = vpop.f32.mrb[0].mxu0
      %v9155 = vadd.f32 0.0, %v9154
      %v9156 = vpop.f32.mrb[0].mxu0
      %9157 = vmatprep.mubr.bf16.mxu0 0
      %9158 = vmatmul.mubr.bf16.gmra.mrb[0].mxu0 %v8975
      %v9159 = vpop.f32.mrb[0].mxu0
      %v9160 = vadd.f32 0.0, %v9159
      %v9161 = vpop.f32.mrb[0].mxu0
      %v9162 = vpop.f32.mrb[0].mxu0
      %v9163 = vadd.f32 0.0, %v9162
      %v9164 = vpop.f32.mrb[0].mxu0
      %9165 = vmatprep.mubr.bf16.mxu0 0
      %9166 = vmatmul.mubr.bf16.gmra.mrb[0].mxu0 %v8984
      %v9167 = vpop.f32.mrb[0].mxu0
      %v9168 = vadd.f32 0.0, %v9167
      %v9169 = vpop.f32.mrb[0].mxu0
      %v9170 = vpop.f32.mrb[0].mxu0
      %v9171 = vadd.f32 0.0, %v9170
      %v9172 = vpop.f32.mrb[0].mxu0
      %9173 = vdwg.mxu0
      %v9174 = vadd.f32 %v8815, %v9080
      %v9175 = vadd.f32 %v8816, %v9083
      %v9176 = vadd.f32 %v8817, %v9088
      %v9177 = vadd.f32 %v8818, %v9091
      %v9178 = vadd.f32 %v8819, %v9096
      %v9179 = vadd.f32 %v8820, %v9099
      %v9180 = vadd.f32 %v8821, %v9104
      %v9181 = vadd.f32 %v8822, %v9107
      %v9182 = vadd.f32 %v8823, %v9112
      %v9183 = vadd.f32 %v8824, %v9115
      %v9184 = vadd.f32 %v8825, %v9120
      %v9185 = vadd.f32 %v8826, %v9123
      %v9186 = vadd.f32 %v8827, %v9128
      %v9187 = vadd.f32 %v8828, %v9131
      %v9188 = vadd.f32 %v8829, %v9136
      %v9189 = vadd.f32 %v8830, %v9139
      %v9190 = vadd.f32 %v8831, %v9144
      %v9191 = vadd.f32 %v8832, %v9147
      %v9192 = vadd.f32 %v8833, %v9152
      %v9193 = vadd.f32 %v8834, %v9155
      %v9194 = vadd.f32 %v8835, %v9160
      %v9195 = vadd.f32 %v8836, %v9163
      %v9196 = vadd.f32 %v8837, %v9168
      %v9197 = vadd.f32 %v8838, %v9171
      %v9198 = vld [vmem:[#allocation2 + $0x18] sm:$0xf0]
      %s9199 = scalar_lea.vmem %s4, 448
      %v9200 = vld [vmem:[%s9199] sm:$0xf]
      %v9201 = vld [vmem:[%s9199 + $0x4] sm:$0xf]
      %v9202 = vld [vmem:[%s9199 + $0x8] sm:$0xf]
      %v9203 = vld [vmem:[%s9199 + $0xc] sm:$0xf]
      %v9204 = vld [vmem:[%s9199 + $0x10] sm:$0xf]
      %v9205 = vld [vmem:[%s9199 + $0x14] sm:$0xf]
      %v9206 = vld [vmem:[%s9199 + $0x18] sm:$0xf]
      %v9207 = vld [vmem:[%s9199 + $0x1c] sm:$0xf]
      %v9208 = vld [vmem:[%s9199 + $0x20] sm:$0xf]
      %v9209 = vld [vmem:[%s9199 + $0x24] sm:$0xf]
      %v9210 = vld [vmem:[%s9199 + $0x28] sm:$0xf]
      %v9211 = vld [vmem:[%s9199 + $0x2c] sm:$0xf]
      %v9212 = vld [vmem:[%s9199 + $0x30] sm:$0xf]
      %v9213 = vld [vmem:[%s9199 + $0x34] sm:$0xf]
      %v9214 = vld [vmem:[%s9199 + $0x38] sm:$0xf]
      %v9215 = vld [vmem:[%s9199 + $0x3c] sm:$0xf]
      %v9229 = vrot.slane %v9198, 4
      %v9230 = vrot.slane %v8840, 4
      %v9231 = vsel %vm7121, %v9229, %v9230
      %v9232 = vrot.slane %v8841, 4
      %v9233 = vsel %vm7121, %v9230, %v9232
      %v9234 = vrot.slane %v8842, 4
      %v9235 = vsel %vm7121, %v9232, %v9234
      %v9236 = vrot.slane %v8843, 4
      %v9237 = vsel %vm7121, %v9234, %v9236
      %v9238 = vrot.slane %v8844, 4
      %v9239 = vsel %vm7121, %v9236, %v9238
      %v9240 = vrot.slane %v8845, 4
      %v9241 = vsel %vm7121, %v9238, %v9240
      %v9242 = vrot.slane %v8846, 4
      %v9243 = vsel %vm7121, %v9240, %v9242
      %v9244 = vrot.slane %v8847, 4
      %v9245 = vsel %vm7121, %v9242, %v9244
      %v9246 = vrot.slane %v8848, 4
      %v9247 = vsel %vm7121, %v9244, %v9246
      %v9248 = vrot.slane %v8849, 4
      %v9249 = vsel %vm7121, %v9246, %v9248
      %v9250 = vrot.slane %v8850, 4
      %v9251 = vsel %vm7121, %v9248, %v9250
      %v9252 = vrot.slane %v8851, 4
      %v9253 = vsel %vm7121, %v9250, %v9252
      %v9282 = vunpack.c.l.b16 %v9200
      %v9283 = vunpack.c.l.b16 %v9201
      %v9284 = vunpack.c.l.b16 %v9202
      %v9285 = vunpack.c.l.b16 %v9203
      %v9286 = vunpack.c.l.b16 %v9204
      %v9287 = vunpack.c.l.b16 %v9205
      %v9288 = vunpack.c.l.b16 %v9206
      %v9289 = vunpack.c.l.b16 %v9207
      %v9290 = vunpack.c.l.b16 %v9208
      %v9291 = vunpack.c.l.b16 %v9209
      %v9292 = vunpack.c.l.b16 %v9210
      %v9293 = vunpack.c.l.b16 %v9211
      %v9294 = vunpack.c.l.b16 %v9212
      %v9295 = vunpack.c.l.b16 %v9213
      %v9296 = vunpack.c.l.b16 %v9214
      %v9297 = vunpack.c.l.b16 %v9215
      %v9298 = vpack.c.b16 %v9283, %v9282
      %v9299 = vpack.c.b16 %v9285, %v9284
      %v9300 = vpack.c.b16 %v9287, %v9286
      %v9301 = vpack.c.b16 %v9289, %v9288
      %v9302 = vpack.c.b16 %v9291, %v9290
      %v9303 = vpack.c.b16 %v9293, %v9292
      %v9304 = vpack.c.b16 %v9295, %v9294
      %v9305 = vpack.c.b16 %v9297, %v9296
      %9314 = vmatprep.subr.bf16.mxu0 0
      %9315 = vmatpush1.bf16.msra.mxu0 %v9298
      %9316 = vmatprep.subr.bf16.mxu0 0
      %9317 = vmatpush1.bf16.msra.mxu0 %v9299
      %9318 = vmatprep.subr.bf16.mxu0 0
      %9319 = vmatpush1.bf16.msra.mxu0 %v9300
      %9320 = vmatprep.subr.bf16.mxu0 0
      %9321 = vmatpush1.bf16.msra.mxu0 %v9301
      %9322 = vmatprep.subr.bf16.mxu0 0
      %9323 = vmatpush1.bf16.msra.mxu0 %v9302
      %9324 = vmatprep.subr.bf16.mxu0 0
      %9325 = vmatpush1.bf16.msra.mxu0 %v9303
      %9326 = vmatprep.subr.bf16.mxu0 0
      %9327 = vmatpush1.bf16.msra.mxu0 %v9304
      %9328 = vmatprep.subr.bf16.mxu0 0
      %9329 = vmatpush1.bf16.msra.mxu0 %v9305
      %9330 = vmatprep.subr.bf16.mxu0 0
      %9331 = vmatpush1.bf16.msra.mxu0 0
      %9332 = vmatprep.subr.bf16.mxu0 0
      %9333 = vmatpush1.bf16.msra.mxu0 0
      %9334 = vmatprep.subr.bf16.mxu0 0
      %9335 = vmatpush1.bf16.msra.mxu0 0
      %9336 = vmatprep.subr.bf16.mxu0 0
      %9337 = vmatpush1.bf16.msra.mxu0 0
      %9338 = vmatprep.subr.bf16.mxu0 0
      %9339 = vmatpush1.bf16.msra.mxu0 0
      %9340 = vmatprep.subr.bf16.mxu0 0
      %9341 = vmatpush1.bf16.msra.mxu0 0
      %9342 = vmatprep.subr.bf16.mxu0 0
      %9343 = vmatpush1.bf16.msra.mxu0 0
      %9344 = vmatprep.subr.bf16.mxu0 0
      %9345 = vmatpush1.bf16.msra.mxu0 0
      %9346 = vmatprep.mubr.bf16.mxu0 0
      %9347 = vmatmul.mubr.bf16.gmra.mrb[0].mxu0 %v9231
      %v9348 = vpop.f32.mrb[0].mxu0
      %v9349 = vadd.f32 0.0, %v9348
      %v9350 = vpop.f32.mrb[0].mxu0
      %v9351 = vpop.f32.mrb[0].mxu0
      %v9352 = vadd.f32 0.0, %v9351
      %v9353 = vpop.f32.mrb[0].mxu0
      %9354 = vmatprep.mubr.bf16.mxu0 0
      %9355 = vmatmul.mubr.bf16.gmra.mrb[0].mxu0 %v9233
      %v9356 = vpop.f32.mrb[0].mxu0
      %v9357 = vadd.f32 0.0, %v9356
      %v9358 = vpop.f32.mrb[0].mxu0
      %v9359 = vpop.f32.mrb[0].mxu0
      %v9360 = vadd.f32 0.0, %v9359
      %v9361 = vpop.f32.mrb[0].mxu0
      %9362 = vmatprep.mubr.bf16.mxu0 0
      %9363 = vmatmul.mubr.bf16.gmra.mrb[0].mxu0 %v9235
      %v9364 = vpop.f32.mrb[0].mxu0
      %v9365 = vadd.f32 0.0, %v9364
      %v9366 = vpop.f32.mrb[0].mxu0
      %v9367 = vpop.f32.mrb[0].mxu0
      %v9368 = vadd.f32 0.0, %v9367
      %v9369 = vpop.f32.mrb[0].mxu0
      %9370 = vmatprep.mubr.bf16.mxu0 0
      %9371 = vmatmul.mubr.bf16.gmra.mrb[0].mxu0 %v9237
      %v9372 = vpop.f32.mrb[0].mxu0
      %v9373 = vadd.f32 0.0, %v9372
      %v9374 = vpop.f32.mrb[0].mxu0
      %v9375 = vpop.f32.mrb[0].mxu0
      %v9376 = vadd.f32 0.0, %v9375
      %v9377 = vpop.f32.mrb[0].mxu0
      %9378 = vmatprep.mubr.bf16.mxu0 0
      %9379 = vmatmul.mubr.bf16.gmra.mrb[0].mxu0 %v9239
      %v9380 = vpop.f32.mrb[0].mxu0
      %v9381 = vadd.f32 0.0, %v9380
      %v9382 = vpop.f32.mrb[0].mxu0
      %v9383 = vpop.f32.mrb[0].mxu0
      %v9384 = vadd.f32 0.0, %v9383
      %v9385 = vpop.f32.mrb[0].mxu0
      %9386 = vmatprep.mubr.bf16.mxu0 0
      %9387 = vmatmul.mubr.bf16.gmra.mrb[0].mxu0 %v9241
      %v9388 = vpop.f32.mrb[0].mxu0
      %v9389 = vadd.f32 0.0, %v9388
      %v9390 = vpop.f32.mrb[0].mxu0
      %v9391 = vpop.f32.mrb[0].mxu0
      %v9392 = vadd.f32 0.0, %v9391
      %v9393 = vpop.f32.mrb[0].mxu0
      %9394 = vmatprep.mubr.bf16.mxu0 0
      %9395 = vmatmul.mubr.bf16.gmra.mrb[0].mxu0 %v9243
      %v9396 = vpop.f32.mrb[0].mxu0
      %v9397 = vadd.f32 0.0, %v9396
      %v9398 = vpop.f32.mrb[0].mxu0
      %v9399 = vpop.f32.mrb[0].mxu0
      %v9400 = vadd.f32 0.0, %v9399
      %v9401 = vpop.f32.mrb[0].mxu0
      %9402 = vmatprep.mubr.bf16.mxu0 0
      %9403 = vmatmul.mubr.bf16.gmra.mrb[0].mxu0 %v9245
      %v9404 = vpop.f32.mrb[0].mxu0
      %v9405 = vadd.f32 0.0, %v9404
      %v9406 = vpop.f32.mrb[0].mxu0
      %v9407 = vpop.f32.mrb[0].mxu0
      %v9408 = vadd.f32 0.0, %v9407
      %v9409 = vpop.f32.mrb[0].mxu0
      %9410 = vmatprep.mubr.bf16.mxu0 0
      %9411 = vmatmul.mubr.bf16.gmra.mrb[0].mxu0 %v9247
      %v9412 = vpop.f32.mrb[0].mxu0
      %v9413 = vadd.f32 0.0, %v9412
      %v9414 = vpop.f32.mrb[0].mxu0
      %v9415 = vpop.f32.mrb[0].mxu0
      %v9416 = vadd.f32 0.0, %v9415
      %v9417 = vpop.f32.mrb[0].mxu0
      %9418 = vmatprep.mubr.bf16.mxu0 0
      %9419 = vmatmul.mubr.bf16.gmra.mrb[0].mxu0 %v9249
      %v9420 = vpop.f32.mrb[0].mxu0
      %v9421 = vadd.f32 0.0, %v9420
      %v9422 = vpop.f32.mrb[0].mxu0
      %v9423 = vpop.f32.mrb[0].mxu0
      %v9424 = vadd.f32 0.0, %v9423
      %v9425 = vpop.f32.mrb[0].mxu0
      %9426 = vmatprep.mubr.bf16.mxu0 0
      %9427 = vmatmul.mubr.bf16.gmra.mrb[0].mxu0 %v9251
      %v9428 = vpop.f32.mrb[0].mxu0
      %v9429 = vadd.f32 0.0, %v9428
      %v9430 = vpop.f32.mrb[0].mxu0
      %v9431 = vpop.f32.mrb[0].mxu0
      %v9432 = vadd.f32 0.0, %v9431
      %v9433 = vpop.f32.mrb[0].mxu0
      %9434 = vmatprep.mubr.bf16.mxu0 0
      %9435 = vmatmul.mubr.bf16.gmra.mrb[0].mxu0 %v9253
      %v9436 = vpop.f32.mrb[0].mxu0
      %v9437 = vadd.f32 0.0, %v9436
      %v9438 = vpop.f32.mrb[0].mxu0
      %v9439 = vpop.f32.mrb[0].mxu0
      %v9440 = vadd.f32 0.0, %v9439
      %v9441 = vpop.f32.mrb[0].mxu0
      %9442 = vdwg.mxu0
      %v9443 = vadd.f32 %v9174, %v9349
      %v9444 = vadd.f32 %v9175, %v9352
      %v9445 = vadd.f32 %v9176, %v9357
      %v9446 = vadd.f32 %v9177, %v9360
      %v9447 = vadd.f32 %v9178, %v9365
      %v9448 = vadd.f32 %v9179, %v9368
      %v9449 = vadd.f32 %v9180, %v9373
      %v9450 = vadd.f32 %v9181, %v9376
      %v9451 = vadd.f32 %v9182, %v9381
      %v9452 = vadd.f32 %v9183, %v9384
      %v9453 = vadd.f32 %v9184, %v9389
      %v9454 = vadd.f32 %v9185, %v9392
      %v9455 = vadd.f32 %v9186, %v9397
      %v9456 = vadd.f32 %v9187, %v9400
      %v9457 = vadd.f32 %v9188, %v9405
      %v9458 = vadd.f32 %v9189, %v9408
      %v9459 = vadd.f32 %v9190, %v9413
      %v9460 = vadd.f32 %v9191, %v9416
      %v9461 = vadd.f32 %v9192, %v9421
      %v9462 = vadd.f32 %v9193, %v9424
      %v9463 = vadd.f32 %v9194, %v9429
      %v9464 = vadd.f32 %v9195, %v9432
      %v9465 = vadd.f32 %v9196, %v9437
      %v9466 = vadd.f32 %v9197, %v9440
      %v9467 = vld [vmem:[#allocation2 + $0x78] sm:$0x1f]
      %s9468 = scalar_lea.vmem %s4, 512
      %v9469 = vld [vmem:[%s9468] sm:$0xf]
      %v9470 = vld [vmem:[%s9468 + $0x4] sm:$0xf]
      %v9471 = vld [vmem:[%s9468 + $0x8] sm:$0xf]
      %v9472 = vld [vmem:[%s9468 + $0xc] sm:$0xf]
      %v9473 = vld [vmem:[%s9468 + $0x10] sm:$0xf]
      %v9474 = vld [vmem:[%s9468 + $0x14] sm:$0xf]
      %v9475 = vld [vmem:[%s9468 + $0x18] sm:$0xf]
      %v9476 = vld [vmem:[%s9468 + $0x1c] sm:$0xf]
      %v9477 = vld [vmem:[%s9468 + $0x20] sm:$0xf]
      %v9478 = vld [vmem:[%s9468 + $0x24] sm:$0xf]
      %v9479 = vld [vmem:[%s9468 + $0x28] sm:$0xf]
      %v9480 = vld [vmem:[%s9468 + $0x2c] sm:$0xf]
      %v9481 = vld [vmem:[%s9468 + $0x30] sm:$0xf]
      %v9482 = vld [vmem:[%s9468 + $0x34] sm:$0xf]
      %v9483 = vld [vmem:[%s9468 + $0x38] sm:$0xf]
      %v9484 = vld [vmem:[%s9468 + $0x3c] sm:$0xf]
      %v9486 = vshrl.u32 %v9198, 16
      %v9488 = vrot.slane %v9486, 4
      %v9489 = vshll.u32 %v9198, 16
      %v9491 = vrot.slane %v9489, 5
      %v9492 = vor.u32 %v9488, %v9491
      %v9493 = vrot.slane %v8878, 4
      %v9494 = vrot.slane %v8881, 5
      %v9495 = vor.u32 %v9493, %v9494
      %v9496 = vsel %vm7659, %v9492, %v9495
      %v9497 = vrot.slane %v8887, 4
      %v9498 = vrot.slane %v8890, 5
      %v9499 = vor.u32 %v9497, %v9498
      %v9500 = vsel %vm7659, %v9495, %v9499
      %v9501 = vrot.slane %v8896, 4
      %v9502 = vrot.slane %v8899, 5
      %v9503 = vor.u32 %v9501, %v9502
      %v9504 = vsel %vm7659, %v9499, %v9503
      %v9505 = vrot.slane %v8905, 4
      %v9506 = vrot.slane %v8908, 5
      %v9507 = vor.u32 %v9505, %v9506
      %v9508 = vsel %vm7659, %v9503, %v9507
      %v9509 = vrot.slane %v8914, 4
      %v9510 = vrot.slane %v8917, 5
      %v9511 = vor.u32 %v9509, %v9510
      %v9512 = vsel %vm7659, %v9507, %v9511
      %v9513 = vrot.slane %v8923, 4
      %v9514 = vrot.slane %v8926, 5
      %v9515 = vor.u32 %v9513, %v9514
      %v9516 = vsel %vm7659, %v9511, %v9515
      %v9517 = vrot.slane %v8932, 4
      %v9518 = vrot.slane %v8935, 5
      %v9519 = vor.u32 %v9517, %v9518
      %v9520 = vsel %vm7659, %v9515, %v9519
      %v9521 = vrot.slane %v8941, 4
      %v9522 = vrot.slane %v8944, 5
      %v9523 = vor.u32 %v9521, %v9522
      %v9524 = vsel %vm7659, %v9519, %v9523
      %v9525 = vrot.slane %v8950, 4
      %v9526 = vrot.slane %v8953, 5
      %v9527 = vor.u32 %v9525, %v9526
      %v9528 = vsel %vm7659, %v9523, %v9527
      %v9529 = vrot.slane %v8959, 4
      %v9530 = vrot.slane %v8962, 5
      %v9531 = vor.u32 %v9529, %v9530
      %v9532 = vsel %vm7659, %v9527, %v9531
      %v9533 = vrot.slane %v8968, 4
      %v9534 = vrot.slane %v8971, 5
      %v9535 = vor.u32 %v9533, %v9534
      %v9536 = vsel %vm7659, %v9531, %v9535
      %v9538 = vshrl.u32 %v9467, 16
      %v9540 = vrot.slane %v9538, 4
      %v9541 = vshll.u32 %v9467, 16
      %v9543 = vrot.slane %v9541, 5
      %v9544 = vor.u32 %v9540, %v9543
      %v9545 = vsel %vm7659, %v9535, %v9544
      %v9574 = vunpack.c.l.b16 %v9469
      %v9575 = vunpack.c.l.b16 %v9470
      %v9576 = vunpack.c.l.b16 %v9471
      %v9577 = vunpack.c.l.b16 %v9472
      %v9578 = vunpack.c.l.b16 %v9473
      %v9579 = vunpack.c.l.b16 %v9474
      %v9580 = vunpack.c.l.b16 %v9475
      %v9581 = vunpack.c.l.b16 %v9476
      %v9582 = vunpack.c.l.b16 %v9477
      %v9583 = vunpack.c.l.b16 %v9478
      %v9584 = vunpack.c.l.b16 %v9479
      %v9585 = vunpack.c.l.b16 %v9480
      %v9586 = vunpack.c.l.b16 %v9481
      %v9587 = vunpack.c.l.b16 %v9482
      %v9588 = vunpack.c.l.b16 %v9483
      %v9589 = vunpack.c.l.b16 %v9484
      %v9590 = vpack.c.b16 %v9575, %v9574
      %v9591 = vpack.c.b16 %v9577, %v9576
      %v9592 = vpack.c.b16 %v9579, %v9578
      %v9593 = vpack.c.b16 %v9581, %v9580
      %v9594 = vpack.c.b16 %v9583, %v9582
      %v9595 = vpack.c.b16 %v9585, %v9584
      %v9596 = vpack.c.b16 %v9587, %v9586
      %v9597 = vpack.c.b16 %v9589, %v9588
      %9606 = vmatprep.subr.bf16.mxu0 0
      %9607 = vmatpush1.bf16.msra.mxu0 %v9590
      %9608 = vmatprep.subr.bf16.mxu0 0
      %9609 = vmatpush1.bf16.msra.mxu0 %v9591
      %9610 = vmatprep.subr.bf16.mxu0 0
      %9611 = vmatpush1.bf16.msra.mxu0 %v9592
      %9612 = vmatprep.subr.bf16.mxu0 0
      %9613 = vmatpush1.bf16.msra.mxu0 %v9593
      %9614 = vmatprep.subr.bf16.mxu0 0
      %9615 = vmatpush1.bf16.msra.mxu0 %v9594
      %9616 = vmatprep.subr.bf16.mxu0 0
      %9617 = vmatpush1.bf16.msra.mxu0 %v9595
      %9618 = vmatprep.subr.bf16.mxu0 0
      %9619 = vmatpush1.bf16.msra.mxu0 %v9596
      %9620 = vmatprep.subr.bf16.mxu0 0
      %9621 = vmatpush1.bf16.msra.mxu0 %v9597
      %9622 = vmatprep.subr.bf16.mxu0 0
      %9623 = vmatpush1.bf16.msra.mxu0 0
      %9624 = vmatprep.subr.bf16.mxu0 0
      %9625 = vmatpush1.bf16.msra.mxu0 0
      %9626 = vmatprep.subr.bf16.mxu0 0
      %9627 = vmatpush1.bf16.msra.mxu0 0
      %9628 = vmatprep.subr.bf16.mxu0 0
      %9629 = vmatpush1.bf16.msra.mxu0 0
      %9630 = vmatprep.subr.bf16.mxu0 0
      %9631 = vmatpush1.bf16.msra.mxu0 0
      %9632 = vmatprep.subr.bf16.mxu0 0
      %9633 = vmatpush1.bf16.msra.mxu0 0
      %9634 = vmatprep.subr.bf16.mxu0 0
      %9635 = vmatpush1.bf16.msra.mxu0 0
      %9636 = vmatprep.subr.bf16.mxu0 0
      %9637 = vmatpush1.bf16.msra.mxu0 0
      %9638 = vmatprep.mubr.bf16.mxu0 0
      %9639 = vmatmul.mubr.bf16.gmra.mrb[0].mxu0 %v9496
      %v9640 = vpop.f32.mrb[0].mxu0
      %v9641 = vadd.f32 0.0, %v9640
      %v9642 = vpop.f32.mrb[0].mxu0
      %v9643 = vpop.f32.mrb[0].mxu0
      %v9644 = vadd.f32 0.0, %v9643
      %v9645 = vpop.f32.mrb[0].mxu0
      %9646 = vmatprep.mubr.bf16.mxu0 0
      %9647 = vmatmul.mubr.bf16.gmra.mrb[0].mxu0 %v9500
      %v9648 = vpop.f32.mrb[0].mxu0
      %v9649 = vadd.f32 0.0, %v9648
      %v9650 = vpop.f32.mrb[0].mxu0
      %v9651 = vpop.f32.mrb[0].mxu0
      %v9652 = vadd.f32 0.0, %v9651
      %v9653 = vpop.f32.mrb[0].mxu0
      %9654 = vmatprep.mubr.bf16.mxu0 0
      %9655 = vmatmul.mubr.bf16.gmra.mrb[0].mxu0 %v9504
      %v9656 = vpop.f32.mrb[0].mxu0
      %v9657 = vadd.f32 0.0, %v9656
      %v9658 = vpop.f32.mrb[0].mxu0
      %v9659 = vpop.f32.mrb[0].mxu0
      %v9660 = vadd.f32 0.0, %v9659
      %v9661 = vpop.f32.mrb[0].mxu0
      %9662 = vmatprep.mubr.bf16.mxu0 0
      %9663 = vmatmul.mubr.bf16.gmra.mrb[0].mxu0 %v9508
      %v9664 = vpop.f32.mrb[0].mxu0
      %v9665 = vadd.f32 0.0, %v9664
      %v9666 = vpop.f32.mrb[0].mxu0
      %v9667 = vpop.f32.mrb[0].mxu0
      %v9668 = vadd.f32 0.0, %v9667
      %v9669 = vpop.f32.mrb[0].mxu0
      %9670 = vmatprep.mubr.bf16.mxu0 0
      %9671 = vmatmul.mubr.bf16.gmra.mrb[0].mxu0 %v9512
      %v9672 = vpop.f32.mrb[0].mxu0
      %v9673 = vadd.f32 0.0, %v9672
      %v9674 = vpop.f32.mrb[0].mxu0
      %v9675 = vpop.f32.mrb[0].mxu0
      %v9676 = vadd.f32 0.0, %v9675
      %v9677 = vpop.f32.mrb[0].mxu0
      %9678 = vmatprep.mubr.bf16.mxu0 0
      %9679 = vmatmul.mubr.bf16.gmra.mrb[0].mxu0 %v9516
      %v9680 = vpop.f32.mrb[0].mxu0
      %v9681 = vadd.f32 0.0, %v9680
      %v9682 = vpop.f32.mrb[0].mxu0
      %v9683 = vpop.f32.mrb[0].mxu0
      %v9684 = vadd.f32 0.0, %v9683
      %v9685 = vpop.f32.mrb[0].mxu0
      %9686 = vmatprep.mubr.bf16.mxu0 0
      %9687 = vmatmul.mubr.bf16.gmra.mrb[0].mxu0 %v9520
      %v9688 = vpop.f32.mrb[0].mxu0
      %v9689 = vadd.f32 0.0, %v9688
      %v9690 = vpop.f32.mrb[0].mxu0
      %v9691 = vpop.f32.mrb[0].mxu0
      %v9692 = vadd.f32 0.0, %v9691
      %v9693 = vpop.f32.mrb[0].mxu0
      %9694 = vmatprep.mubr.bf16.mxu0 0
      %9695 = vmatmul.mubr.bf16.gmra.mrb[0].mxu0 %v9524
      %v9696 = vpop.f32.mrb[0].mxu0
      %v9697 = vadd.f32 0.0, %v9696
      %v9698 = vpop.f32.mrb[0].mxu0
      %v9699 = vpop.f32.mrb[0].mxu0
      %v9700 = vadd.f32 0.0, %v9699
      %v9701 = vpop.f32.mrb[0].mxu0
      %9702 = vmatprep.mubr.bf16.mxu0 0
      %9703 = vmatmul.mubr.bf16.gmra.mrb[0].mxu0 %v9528
      %v9704 = vpop.f32.mrb[0].mxu0
      %v9705 = vadd.f32 0.0, %v9704
      %v9706 = vpop.f32.mrb[0].mxu0
      %v9707 = vpop.f32.mrb[0].mxu0
      %v9708 = vadd.f32 0.0, %v9707
      %v9709 = vpop.f32.mrb[0].mxu0
      %9710 = vmatprep.mubr.bf16.mxu0 0
      %9711 = vmatmul.mubr.bf16.gmra.mrb[0].mxu0 %v9532
      %v9712 = vpop.f32.mrb[0].mxu0
      %v9713 = vadd.f32 0.0, %v9712
      %v9714 = vpop.f32.mrb[0].mxu0
      %v9715 = vpop.f32.mrb[0].mxu0
      %v9716 = vadd.f32 0.0, %v9715
      %v9717 = vpop.f32.mrb[0].mxu0
      %9718 = vmatprep.mubr.bf16.mxu0 0
      %9719 = vmatmul.mubr.bf16.gmra.mrb[0].mxu0 %v9536
      %v9720 = vpop.f32.mrb[0].mxu0
      %v9721 = vadd.f32 0.0, %v9720
      %v9722 = vpop.f32.mrb[0].mxu0
      %v9723 = vpop.f32.mrb[0].mxu0
      %v9724 = vadd.f32 0.0, %v9723
      %v9725 = vpop.f32.mrb[0].mxu0
      %9726 = vmatprep.mubr.bf16.mxu0 0
      %9727 = vmatmul.mubr.bf16.gmra.mrb[0].mxu0 %v9545
      %v9728 = vpop.f32.mrb[0].mxu0
      %v9729 = vadd.f32 0.0, %v9728
      %v9730 = vpop.f32.mrb[0].mxu0
      %v9731 = vpop.f32.mrb[0].mxu0
      %v9732 = vadd.f32 0.0, %v9731
      %v9733 = vpop.f32.mrb[0].mxu0
      %9734 = vdwg.mxu0
      %v9735 = vadd.f32 %v9443, %v9641
      %v9736 = vadd.f32 %v9444, %v9644
      %v9737 = vadd.f32 %v9445, %v9649
      %v9738 = vadd.f32 %v9446, %v9652
      %v9739 = vadd.f32 %v9447, %v9657
      %v9740 = vadd.f32 %v9448, %v9660
      %v9741 = vadd.f32 %v9449, %v9665
      %v9742 = vadd.f32 %v9450, %v9668
      %v9743 = vadd.f32 %v9451, %v9673
      %v9744 = vadd.f32 %v9452, %v9676
      %v9745 = vadd.f32 %v9453, %v9681
      %v9746 = vadd.f32 %v9454, %v9684
      %v9747 = vadd.f32 %v9455, %v9689
      %v9748 = vadd.f32 %v9456, %v9692
      %v9749 = vadd.f32 %v9457, %v9697
      %v9750 = vadd.f32 %v9458, %v9700
      %v9751 = vadd.f32 %v9459, %v9705
      %v9752 = vadd.f32 %v9460, %v9708
      %v9753 = vadd.f32 %v9461, %v9713
      %v9754 = vadd.f32 %v9462, %v9716
      %v9755 = vadd.f32 %v9463, %v9721
      %v9756 = vadd.f32 %v9464, %v9724
      %v9757 = vadd.f32 %v9465, %v9729
      %v9758 = vadd.f32 %v9466, %v9732
      %v9759 = vld [vmem:[%s246 + $0x10] sm:$0xf]
      %v9760 = vld [vmem:[%s246 + $0x14] sm:$0xf]
      %v9761 = vld [vmem:[%s246 + $0x18] sm:$0xf]
      %v9762 = vld [vmem:[%s246 + $0x1c] sm:$0xf]
      %v9763 = vld [vmem:[%s246 + $0x20] sm:$0xf]
      %v9764 = vld [vmem:[%s246 + $0x24] sm:$0xf]
      %v9765 = vld [vmem:[%s246 + $0x28] sm:$0xf]
      %v9766 = vld [vmem:[%s246 + $0x2c] sm:$0xf]
      %v9767 = vld [vmem:[%s246 + $0x30] sm:$0xf]
      %v9768 = vld [vmem:[%s246 + $0x34] sm:$0xf]
      %v9769 = vld [vmem:[%s246 + $0x38] sm:$0xf]
      %v9770 = vld [vmem:[%s246 + $0x3c] sm:$0xf]
      %v9771 = vld [vmem:[%s246 + $0x40] sm:$0xf]
      %v9772 = vld [vmem:[%s246 + $0x44] sm:$0xf]
      %v9773 = vld [vmem:[%s246 + $0x48] sm:$0xf]
      %v9774 = vld [vmem:[%s246 + $0x4c] sm:$0xf]
      %v9775 = vld [vmem:[%s246 + $0x50] sm:$0xf]
      %v9776 = vld [vmem:[%s246 + $0x54] sm:$0xf]
      %v9777 = vld [vmem:[%s246 + $0x58] sm:$0xf]
      %v9778 = vld [vmem:[%s246 + $0x5c] sm:$0xf]
      %v9779 = vld [vmem:[%s246 + $0x60] sm:$0xf]
      %v9780 = vld [vmem:[%s246 + $0x64] sm:$0xf]
      %v9781 = vld [vmem:[%s246 + $0x68] sm:$0xf]
      %v9782 = vld [vmem:[%s246 + $0x6c] sm:$0xf]
      %v9783 = vunpack.c.l.bf16 %v9759
      %v9784 = vunpack.c.l.bf16 %v9760
      %v9785 = vunpack.c.l.bf16 %v9761
      %v9786 = vunpack.c.l.bf16 %v9762
      %v9787 = vunpack.c.l.bf16 %v9763
      %v9788 = vunpack.c.l.bf16 %v9764
      %v9789 = vunpack.c.l.bf16 %v9765
      %v9790 = vunpack.c.l.bf16 %v9766
      %v9791 = vunpack.c.l.bf16 %v9767
      %v9792 = vunpack.c.l.bf16 %v9768
      %v9793 = vunpack.c.l.bf16 %v9769
      %v9794 = vunpack.c.l.bf16 %v9770
      %v9795 = vunpack.c.l.bf16 %v9771
      %v9796 = vunpack.c.l.bf16 %v9772
      %v9797 = vunpack.c.l.bf16 %v9773
      %v9798 = vunpack.c.l.bf16 %v9774
      %v9799 = vunpack.c.l.bf16 %v9775
      %v9800 = vunpack.c.l.bf16 %v9776
      %v9801 = vunpack.c.l.bf16 %v9777
      %v9802 = vunpack.c.l.bf16 %v9778
      %v9803 = vunpack.c.l.bf16 %v9779
      %v9804 = vunpack.c.l.bf16 %v9780
      %v9805 = vunpack.c.l.bf16 %v9781
      %v9806 = vunpack.c.l.bf16 %v9782
      %v9808 = vlaneseq
      %v9809 = vshrl.u32 %v9808, 7
      %v9810 = vsub.s32 0, %v9809
      %v9811 = vrot.slane %v258, %v9810
      %v9813 = vadd.f32 %v9735, %v9811
      %v9814 = vadd.f32 %v9736, %v9811
      %v9815 = vadd.f32 %v9737, %v9811
      %v9816 = vadd.f32 %v9738, %v9811
      %v9817 = vadd.f32 %v9739, %v9811
      %v9818 = vadd.f32 %v9740, %v9811
      %v9819 = vadd.f32 %v9741, %v9811
      %v9820 = vadd.f32 %v9742, %v9811
      %v9821 = vadd.f32 %v9743, %v9811
      %v9822 = vadd.f32 %v9744, %v9811
      %v9823 = vadd.f32 %v9745, %v9811
      %v9824 = vadd.f32 %v9746, %v9811
      %v9825 = vadd.f32 %v9747, %v9811
      %v9826 = vadd.f32 %v9748, %v9811
      %v9827 = vadd.f32 %v9749, %v9811
      %v9828 = vadd.f32 %v9750, %v9811
      %v9829 = vadd.f32 %v9751, %v9811
      %v9830 = vadd.f32 %v9752, %v9811
      %v9831 = vadd.f32 %v9753, %v9811
      %v9832 = vadd.f32 %v9754, %v9811
      %v9833 = vadd.f32 %v9755, %v9811
      %v9834 = vadd.f32 %v9756, %v9811
      %v9835 = vadd.f32 %v9757, %v9811
      %v9836 = vadd.f32 %v9758, %v9811
      %v9837 = vadd.f32 %v9813, %v9783
      %v9838 = vadd.f32 %v9814, %v9784
      %v9839 = vadd.f32 %v9815, %v9785
      %v9840 = vadd.f32 %v9816, %v9786
      %v9841 = vadd.f32 %v9817, %v9787
      %v9842 = vadd.f32 %v9818, %v9788
      %v9843 = vadd.f32 %v9819, %v9789
      %v9844 = vadd.f32 %v9820, %v9790
      %v9845 = vadd.f32 %v9821, %v9791
      %v9846 = vadd.f32 %v9822, %v9792
      %v9847 = vadd.f32 %v9823, %v9793
      %v9848 = vadd.f32 %v9824, %v9794
      %v9849 = vadd.f32 %v9825, %v9795
      %v9850 = vadd.f32 %v9826, %v9796
      %v9851 = vadd.f32 %v9827, %v9797
      %v9852 = vadd.f32 %v9828, %v9798
      %v9853 = vadd.f32 %v9829, %v9799
      %v9854 = vadd.f32 %v9830, %v9800
      %v9855 = vadd.f32 %v9831, %v9801
      %v9856 = vadd.f32 %v9832, %v9802
      %v9857 = vadd.f32 %v9833, %v9803
      %v9858 = vadd.f32 %v9834, %v9804
      %v9859 = vadd.f32 %v9835, %v9805
      %v9860 = vadd.f32 %v9836, %v9806
      %v9861 = vmax.f32 %v9837, 0.0
      %v9862 = vmax.f32 %v9838, 0.0
      %v9863 = vmax.f32 %v9839, 0.0
      %v9864 = vmax.f32 %v9840, 0.0
      %v9865 = vmax.f32 %v9841, 0.0
      %v9866 = vmax.f32 %v9842, 0.0
      %v9867 = vmax.f32 %v9843, 0.0
      %v9868 = vmax.f32 %v9844, 0.0
      %v9869 = vmax.f32 %v9845, 0.0
      %v9870 = vmax.f32 %v9846, 0.0
      %v9871 = vmax.f32 %v9847, 0.0
      %v9872 = vmax.f32 %v9848, 0.0
      %v9873 = vmax.f32 %v9849, 0.0
      %v9874 = vmax.f32 %v9850, 0.0
      %v9875 = vmax.f32 %v9851, 0.0
      %v9876 = vmax.f32 %v9852, 0.0
      %v9877 = vmax.f32 %v9853, 0.0
      %v9878 = vmax.f32 %v9854, 0.0
      %v9879 = vmax.f32 %v9855, 0.0
      %v9880 = vmax.f32 %v9856, 0.0
      %v9881 = vmax.f32 %v9857, 0.0
      %v9882 = vmax.f32 %v9858, 0.0
      %v9883 = vmax.f32 %v9859, 0.0
      %v9884 = vmax.f32 %v9860, 0.0
      %9885 = vst [vmem:[%s251] sm:$0xff] %v9861
      %9886 = vst [vmem:[%s251 + $0x8] sm:$0xff] %v9862
      %9887 = vst [vmem:[%s251 + $0x10] sm:$0xff] %v9863
      %9888 = vst [vmem:[%s251 + $0x18] sm:$0xff] %v9864
      %9889 = vst [vmem:[%s251 + $0x20] sm:$0xff] %v9865
      %9890 = vst [vmem:[%s251 + $0x28] sm:$0xff] %v9866
      %9891 = vst [vmem:[%s251 + $0x30] sm:$0xff] %v9867
      %9892 = vst [vmem:[%s251 + $0x38] sm:$0xff] %v9868
      %9893 = vst [vmem:[%s251 + $0x40] sm:$0xff] %v9869
      %9894 = vst [vmem:[%s251 + $0x48] sm:$0xff] %v9870
      %9895 = vst [vmem:[%s251 + $0x50] sm:$0xff] %v9871
      %9896 = vst [vmem:[%s251 + $0x58] sm:$0xff] %v9872
      %9897 = vst [vmem:[%s251 + $0x60] sm:$0xff] %v9873
      %9898 = vst [vmem:[%s251 + $0x68] sm:$0xff] %v9874
      %9899 = vst [vmem:[%s251 + $0x70] sm:$0xff] %v9875
      %9900 = vst [vmem:[%s251 + $0x78] sm:$0xff] %v9876
      %9901 = vst [vmem:[%s251 + $0x80] sm:$0xff] %v9877
      %9902 = vst [vmem:[%s251 + $0x88] sm:$0xff] %v9878
      %9903 = vst [vmem:[%s251 + $0x90] sm:$0xff] %v9879
      %9904 = vst [vmem:[%s251 + $0x98] sm:$0xff] %v9880
      %9905 = vst [vmem:[%s251 + $0xa0] sm:$0xff] %v9881
      %9906 = vst [vmem:[%s251 + $0xa8] sm:$0xff] %v9882
      %9907 = vst [vmem:[%s251 + $0xb0] sm:$0xff] %v9883
      %9908 = vst [vmem:[%s251 + $0xb8] sm:$0xff] %v9884
      %v9909 = vld [vmem:[#allocation2 + $0x60] sm:$0xf8]
      %v9910 = vld [vmem:[#allocation2 + $0x68] sm:$0xff]
      %v9911 = vld [vmem:[#allocation2 + $0x70] sm:$0xff]
      %v9912 = vld [vmem:[#allocation2 + $0x78] sm:$0xff]
      %v9913 = vld [vmem:[#allocation2 + $0x80] sm:$0xff]
      %v9914 = vld [vmem:[#allocation2 + $0x88] sm:$0xff]
      %v9915 = vld [vmem:[#allocation2 + $0x90] sm:$0xff]
      %v9916 = vld [vmem:[#allocation2 + $0x98] sm:$0xff]
      %v9917 = vld [vmem:[#allocation2 + $0xa0] sm:$0xff]
      %v9918 = vld [vmem:[#allocation2 + $0xa8] sm:$0xff]
      %v9919 = vld [vmem:[#allocation2 + $0xb0] sm:$0xff]
      %v9920 = vld [vmem:[#allocation2 + $0xb8] sm:$0xff]
      %v9921 = vld [vmem:[#allocation2 + $0xc0] sm:$0xf]
      %v9922 = vld [vmem:[%s4] sm:$0xf]
      %v9923 = vld [vmem:[%s4 + $0x4] sm:$0xf]
      %v9924 = vld [vmem:[%s4 + $0x8] sm:$0xf]
      %v9925 = vld [vmem:[%s4 + $0xc] sm:$0xf]
      %v9926 = vld [vmem:[%s4 + $0x10] sm:$0xf]
      %v9927 = vld [vmem:[%s4 + $0x14] sm:$0xf]
      %v9928 = vld [vmem:[%s4 + $0x18] sm:$0xf]
      %v9929 = vld [vmem:[%s4 + $0x1c] sm:$0xf]
      %v9930 = vld [vmem:[%s4 + $0x20] sm:$0xf]
      %v9931 = vld [vmem:[%s4 + $0x24] sm:$0xf]
      %v9932 = vld [vmem:[%s4 + $0x28] sm:$0xf]
      %v9933 = vld [vmem:[%s4 + $0x2c] sm:$0xf]
      %v9934 = vld [vmem:[%s4 + $0x30] sm:$0xf]
      %v9935 = vld [vmem:[%s4 + $0x34] sm:$0xf]
      %v9936 = vld [vmem:[%s4 + $0x38] sm:$0xf]
      %v9937 = vld [vmem:[%s4 + $0x3c] sm:$0xf]
      %v9938 = vld [vmem:[#allocation2 + $0x60] sm:$0xf0]
      %v9939 = vld [vmem:[%s7091] sm:$0xf]
      %v9940 = vld [vmem:[%s7091 + $0x4] sm:$0xf]
      %v9941 = vld [vmem:[%s7091 + $0x8] sm:$0xf]
      %v9942 = vld [vmem:[%s7091 + $0xc] sm:$0xf]
      %v9943 = vld [vmem:[%s7091 + $0x10] sm:$0xf]
      %v9944 = vld [vmem:[%s7091 + $0x14] sm:$0xf]
      %v9945 = vld [vmem:[%s7091 + $0x18] sm:$0xf]
      %v9946 = vld [vmem:[%s7091 + $0x1c] sm:$0xf]
      %v9947 = vld [vmem:[%s7091 + $0x20] sm:$0xf]
      %v9948 = vld [vmem:[%s7091 + $0x24] sm:$0xf]
      %v9949 = vld [vmem:[%s7091 + $0x28] sm:$0xf]
      %v9950 = vld [vmem:[%s7091 + $0x2c] sm:$0xf]
      %v9951 = vld [vmem:[%s7091 + $0x30] sm:$0xf]
      %v9952 = vld [vmem:[%s7091 + $0x34] sm:$0xf]
      %v9953 = vld [vmem:[%s7091 + $0x38] sm:$0xf]
      %v9954 = vld [vmem:[%s7091 + $0x3c] sm:$0xf]
      %v9968 = vrot.slane %v9938, 4
      %v9969 = vrot.slane %v9910, 4
      %v9970 = vsel %vm7121, %v9968, %v9969
      %v9971 = vrot.slane %v9911, 4
      %v9972 = vsel %vm7121, %v9969, %v9971
      %v9973 = vrot.slane %v9912, 4
      %v9974 = vsel %vm7121, %v9971, %v9973
      %v9975 = vrot.slane %v9913, 4
      %v9976 = vsel %vm7121, %v9973, %v9975
      %v9977 = vrot.slane %v9914, 4
      %v9978 = vsel %vm7121, %v9975, %v9977
      %v9979 = vrot.slane %v9915, 4
      %v9980 = vsel %vm7121, %v9977, %v9979
      %v9981 = vrot.slane %v9916, 4
      %v9982 = vsel %vm7121, %v9979, %v9981
      %v9983 = vrot.slane %v9917, 4
      %v9984 = vsel %vm7121, %v9981, %v9983
      %v9985 = vrot.slane %v9918, 4
      %v9986 = vsel %vm7121, %v9983, %v9985
      %v9987 = vrot.slane %v9919, 4
      %v9988 = vsel %vm7121, %v9985, %v9987
      %v9989 = vrot.slane %v9920, 4
      %v9990 = vsel %vm7121, %v9987, %v9989
      %v9991 = vrot.slane %v9921, 4
      %v9992 = vsel %vm7121, %v9989, %v9991
      %v10021 = vunpack.c.l.b16 %v9939
      %v10022 = vunpack.c.l.b16 %v9940
      %v10023 = vunpack.c.l.b16 %v9941
      %v10024 = vunpack.c.l.b16 %v9942
      %v10025 = vunpack.c.l.b16 %v9943
      %v10026 = vunpack.c.l.b16 %v9944
      %v10027 = vunpack.c.l.b16 %v9945
      %v10028 = vunpack.c.l.b16 %v9946
      %v10029 = vunpack.c.l.b16 %v9947
      %v10030 = vunpack.c.l.b16 %v9948
      %v10031 = vunpack.c.l.b16 %v9949
      %v10032 = vunpack.c.l.b16 %v9950
      %v10033 = vunpack.c.l.b16 %v9951
      %v10034 = vunpack.c.l.b16 %v9952
      %v10035 = vunpack.c.l.b16 %v9953
      %v10036 = vunpack.c.l.b16 %v9954
      %v10037 = vpack.c.b16 %v10022, %v10021
      %v10038 = vpack.c.b16 %v10024, %v10023
      %v10039 = vpack.c.b16 %v10026, %v10025
      %v10040 = vpack.c.b16 %v10028, %v10027
      %v10041 = vpack.c.b16 %v10030, %v10029
      %v10042 = vpack.c.b16 %v10032, %v10031
      %v10043 = vpack.c.b16 %v10034, %v10033
      %v10044 = vpack.c.b16 %v10036, %v10035
      %10053 = vmatprep.subr.bf16.mxu0 0
      %10054 = vmatpush1.bf16.msra.mxu0 %v10037
      %10055 = vmatprep.subr.bf16.mxu0 0
      %10056 = vmatpush1.bf16.msra.mxu0 %v10038
      %10057 = vmatprep.subr.bf16.mxu0 0
      %10058 = vmatpush1.bf16.msra.mxu0 %v10039
      %10059 = vmatprep.subr.bf16.mxu0 0
      %10060 = vmatpush1.bf16.msra.mxu0 %v10040
      %10061 = vmatprep.subr.bf16.mxu0 0
      %10062 = vmatpush1.bf16.msra.mxu0 %v10041
      %10063 = vmatprep.subr.bf16.mxu0 0
      %10064 = vmatpush1.bf16.msra.mxu0 %v10042
      %10065 = vmatprep.subr.bf16.mxu0 0
      %10066 = vmatpush1.bf16.msra.mxu0 %v10043
      %10067 = vmatprep.subr.bf16.mxu0 0
      %10068 = vmatpush1.bf16.msra.mxu0 %v10044
      %10069 = vmatprep.subr.bf16.mxu0 0
      %10070 = vmatpush1.bf16.msra.mxu0 0
      %10071 = vmatprep.subr.bf16.mxu0 0
      %10072 = vmatpush1.bf16.msra.mxu0 0
      %10073 = vmatprep.subr.bf16.mxu0 0
      %10074 = vmatpush1.bf16.msra.mxu0 0
      %10075 = vmatprep.subr.bf16.mxu0 0
      %10076 = vmatpush1.bf16.msra.mxu0 0
      %10077 = vmatprep.subr.bf16.mxu0 0
      %10078 = vmatpush1.bf16.msra.mxu0 0
      %10079 = vmatprep.subr.bf16.mxu0 0
      %10080 = vmatpush1.bf16.msra.mxu0 0
      %10081 = vmatprep.subr.bf16.mxu0 0
      %10082 = vmatpush1.bf16.msra.mxu0 0
      %10083 = vmatprep.subr.bf16.mxu0 0
      %10084 = vmatpush1.bf16.msra.mxu0 0
      %10085 = vmatprep.mubr.bf16.mxu0 0
      %10086 = vmatmul.mubr.bf16.gmra.mrb[0].mxu0 %v9970
      %v10087 = vpop.f32.mrb[0].mxu0
      %v10088 = vadd.f32 0.0, %v10087
      %v10089 = vpop.f32.mrb[0].mxu0
      %v10090 = vpop.f32.mrb[0].mxu0
      %v10091 = vadd.f32 0.0, %v10090
      %v10092 = vpop.f32.mrb[0].mxu0
      %10093 = vmatprep.mubr.bf16.mxu0 0
      %10094 = vmatmul.mubr.bf16.gmra.mrb[0].mxu0 %v9972
      %v10095 = vpop.f32.mrb[0].mxu0
      %v10096 = vadd.f32 0.0, %v10095
      %v10097 = vpop.f32.mrb[0].mxu0
      %v10098 = vpop.f32.mrb[0].mxu0
      %v10099 = vadd.f32 0.0, %v10098
      %v10100 = vpop.f32.mrb[0].mxu0
      %10101 = vmatprep.mubr.bf16.mxu0 0
      %10102 = vmatmul.mubr.bf16.gmra.mrb[0].mxu0 %v9974
      %v10103 = vpop.f32.mrb[0].mxu0
      %v10104 = vadd.f32 0.0, %v10103
      %v10105 = vpop.f32.mrb[0].mxu0
      %v10106 = vpop.f32.mrb[0].mxu0
      %v10107 = vadd.f32 0.0, %v10106
      %v10108 = vpop.f32.mrb[0].mxu0
      %10109 = vmatprep.mubr.bf16.mxu0 0
      %10110 = vmatmul.mubr.bf16.gmra.mrb[0].mxu0 %v9976
      %v10111 = vpop.f32.mrb[0].mxu0
      %v10112 = vadd.f32 0.0, %v10111
      %v10113 = vpop.f32.mrb[0].mxu0
      %v10114 = vpop.f32.mrb[0].mxu0
      %v10115 = vadd.f32 0.0, %v10114
      %v10116 = vpop.f32.mrb[0].mxu0
      %10117 = vmatprep.mubr.bf16.mxu0 0
      %10118 = vmatmul.mubr.bf16.gmra.mrb[0].mxu0 %v9978
      %v10119 = vpop.f32.mrb[0].mxu0
      %v10120 = vadd.f32 0.0, %v10119
      %v10121 = vpop.f32.mrb[0].mxu0
      %v10122 = vpop.f32.mrb[0].mxu0
      %v10123 = vadd.f32 0.0, %v10122
      %v10124 = vpop.f32.mrb[0].mxu0
      %10125 = vmatprep.mubr.bf16.mxu0 0
      %10126 = vmatmul.mubr.bf16.gmra.mrb[0].mxu0 %v9980
      %v10127 = vpop.f32.mrb[0].mxu0
      %v10128 = vadd.f32 0.0, %v10127
      %v10129 = vpop.f32.mrb[0].mxu0
      %v10130 = vpop.f32.mrb[0].mxu0
      %v10131 = vadd.f32 0.0, %v10130
      %v10132 = vpop.f32.mrb[0].mxu0
      %10133 = vmatprep.mubr.bf16.mxu0 0
      %10134 = vmatmul.mubr.bf16.gmra.mrb[0].mxu0 %v9982
      %v10135 = vpop.f32.mrb[0].mxu0
      %v10136 = vadd.f32 0.0, %v10135
      %v10137 = vpop.f32.mrb[0].mxu0
      %v10138 = vpop.f32.mrb[0].mxu0
      %v10139 = vadd.f32 0.0, %v10138
      %v10140 = vpop.f32.mrb[0].mxu0
      %10141 = vmatprep.mubr.bf16.mxu0 0
      %10142 = vmatmul.mubr.bf16.gmra.mrb[0].mxu0 %v9984
      %v10143 = vpop.f32.mrb[0].mxu0
      %v10144 = vadd.f32 0.0, %v10143
      %v10145 = vpop.f32.mrb[0].mxu0
      %v10146 = vpop.f32.mrb[0].mxu0
      %v10147 = vadd.f32 0.0, %v10146
      %v10148 = vpop.f32.mrb[0].mxu0
      %10149 = vmatprep.mubr.bf16.mxu0 0
      %10150 = vmatmul.mubr.bf16.gmra.mrb[0].mxu0 %v9986
      %v10151 = vpop.f32.mrb[0].mxu0
      %v10152 = vadd.f32 0.0, %v10151
      %v10153 = vpop.f32.mrb[0].mxu0
      %v10154 = vpop.f32.mrb[0].mxu0
      %v10155 = vadd.f32 0.0, %v10154
      %v10156 = vpop.f32.mrb[0].mxu0
      %10157 = vmatprep.mubr.bf16.mxu0 0
      %10158 = vmatmul.mubr.bf16.gmra.mrb[0].mxu0 %v9988
      %v10159 = vpop.f32.mrb[0].mxu0
      %v10160 = vadd.f32 0.0, %v10159
      %v10161 = vpop.f32.mrb[0].mxu0
      %v10162 = vpop.f32.mrb[0].mxu0
      %v10163 = vadd.f32 0.0, %v10162
      %v10164 = vpop.f32.mrb[0].mxu0
      %10165 = vmatprep.mubr.bf16.mxu0 0
      %10166 = vmatmul.mubr.bf16.gmra.mrb[0].mxu0 %v9990
      %v10167 = vpop.f32.mrb[0].mxu0
      %v10168 = vadd.f32 0.0, %v10167
      %v10169 = vpop.f32.mrb[0].mxu0
      %v10170 = vpop.f32.mrb[0].mxu0
      %v10171 = vadd.f32 0.0, %v10170
      %v10172 = vpop.f32.mrb[0].mxu0
      %10173 = vmatprep.mubr.bf16.mxu0 0
      %10174 = vmatmul.mubr.bf16.gmra.mrb[0].mxu0 %v9992
      %v10175 = vpop.f32.mrb[0].mxu0
      %v10176 = vadd.f32 0.0, %v10175
      %v10177 = vpop.f32.mrb[0].mxu0
      %v10178 = vpop.f32.mrb[0].mxu0
      %v10179 = vadd.f32 0.0, %v10178
      %v10180 = vpop.f32.mrb[0].mxu0
      %10181 = vdwg.mxu0
      %v10183 = vshrl.u32 %v9909, 16
      %v10185 = vrot.slane %v10183, 3
      %v10186 = vshll.u32 %v9909, 16
      %v10188 = vrot.slane %v10186, 4
      %v10189 = vor.u32 %v10185, %v10188
      %v10191 = vshrl.u32 %v9910, 16
      %v10193 = vrot.slane %v10191, 3
      %v10194 = vshll.u32 %v9910, 16
      %v10196 = vrot.slane %v10194, 4
      %v10197 = vor.u32 %v10193, %v10196
      %v10198 = vsel %vm605, %v10189, %v10197
      %v10200 = vshrl.u32 %v9911, 16
      %v10202 = vrot.slane %v10200, 3
      %v10203 = vshll.u32 %v9911, 16
      %v10205 = vrot.slane %v10203, 4
      %v10206 = vor.u32 %v10202, %v10205
      %v10207 = vsel %vm605, %v10197, %v10206
      %v10209 = vshrl.u32 %v9912, 16
      %v10211 = vrot.slane %v10209, 3
      %v10212 = vshll.u32 %v9912, 16
      %v10214 = vrot.slane %v10212, 4
      %v10215 = vor.u32 %v10211, %v10214
      %v10216 = vsel %vm605, %v10206, %v10215
      %v10218 = vshrl.u32 %v9913, 16
      %v10220 = vrot.slane %v10218, 3
      %v10221 = vshll.u32 %v9913, 16
      %v10223 = vrot.slane %v10221, 4
      %v10224 = vor.u32 %v10220, %v10223
      %v10225 = vsel %vm605, %v10215, %v10224
      %v10227 = vshrl.u32 %v9914, 16
      %v10229 = vrot.slane %v10227, 3
      %v10230 = vshll.u32 %v9914, 16
      %v10232 = vrot.slane %v10230, 4
      %v10233 = vor.u32 %v10229, %v10232
      %v10234 = vsel %vm605, %v10224, %v10233
      %v10236 = vshrl.u32 %v9915, 16
      %v10238 = vrot.slane %v10236, 3
      %v10239 = vshll.u32 %v9915, 16
      %v10241 = vrot.slane %v10239, 4
      %v10242 = vor.u32 %v10238, %v10241
      %v10243 = vsel %vm605, %v10233, %v10242
      %v10245 = vshrl.u32 %v9916, 16
      %v10247 = vrot.slane %v10245, 3
      %v10248 = vshll.u32 %v9916, 16
      %v10250 = vrot.slane %v10248, 4
      %v10251 = vor.u32 %v10247, %v10250
      %v10252 = vsel %vm605, %v10242, %v10251
      %v10254 = vshrl.u32 %v9917, 16
      %v10256 = vrot.slane %v10254, 3
      %v10257 = vshll.u32 %v9917, 16
      %v10259 = vrot.slane %v10257, 4
      %v10260 = vor.u32 %v10256, %v10259
      %v10261 = vsel %vm605, %v10251, %v10260
      %v10263 = vshrl.u32 %v9918, 16
      %v10265 = vrot.slane %v10263, 3
      %v10266 = vshll.u32 %v9918, 16
      %v10268 = vrot.slane %v10266, 4
      %v10269 = vor.u32 %v10265, %v10268
      %v10270 = vsel %vm605, %v10260, %v10269
      %v10272 = vshrl.u32 %v9919, 16
      %v10274 = vrot.slane %v10272, 3
      %v10275 = vshll.u32 %v9919, 16
      %v10277 = vrot.slane %v10275, 4
      %v10278 = vor.u32 %v10274, %v10277
      %v10279 = vsel %vm605, %v10269, %v10278
      %v10281 = vshrl.u32 %v9920, 16
      %v10283 = vrot.slane %v10281, 3
      %v10284 = vshll.u32 %v9920, 16
      %v10286 = vrot.slane %v10284, 4
      %v10287 = vor.u32 %v10283, %v10286
      %v10288 = vsel %vm605, %v10278, %v10287
      %v10290 = vshrl.u32 %v9921, 16
      %v10292 = vrot.slane %v10290, 3
      %v10293 = vshll.u32 %v9921, 16
      %v10295 = vrot.slane %v10293, 4
      %v10296 = vor.u32 %v10292, %v10295
      %v10297 = vsel %vm605, %v10287, %v10296
      %v10326 = vunpack.c.l.b16 %v9922
      %v10327 = vunpack.c.l.b16 %v9923
      %v10328 = vunpack.c.l.b16 %v9924
      %v10329 = vunpack.c.l.b16 %v9925
      %v10330 = vunpack.c.l.b16 %v9926
      %v10331 = vunpack.c.l.b16 %v9927
      %v10332 = vunpack.c.l.b16 %v9928
      %v10333 = vunpack.c.l.b16 %v9929
      %v10334 = vunpack.c.l.b16 %v9930
      %v10335 = vunpack.c.l.b16 %v9931
      %v10336 = vunpack.c.l.b16 %v9932
      %v10337 = vunpack.c.l.b16 %v9933
      %v10338 = vunpack.c.l.b16 %v9934
      %v10339 = vunpack.c.l.b16 %v9935
      %v10340 = vunpack.c.l.b16 %v9936
      %v10341 = vunpack.c.l.b16 %v9937
      %v10342 = vpack.c.b16 %v10327, %v10326
      %v10343 = vpack.c.b16 %v10329, %v10328
      %v10344 = vpack.c.b16 %v10331, %v10330
      %v10345 = vpack.c.b16 %v10333, %v10332
      %v10346 = vpack.c.b16 %v10335, %v10334
      %v10347 = vpack.c.b16 %v10337, %v10336
      %v10348 = vpack.c.b16 %v10339, %v10338
      %v10349 = vpack.c.b16 %v10341, %v10340
      %10358 = vmatprep.subr.bf16.mxu0 0
      %10359 = vmatpush1.bf16.msra.mxu0 %v10342
      %10360 = vmatprep.subr.bf16.mxu0 0
      %10361 = vmatpush1.bf16.msra.mxu0 %v10343
      %10362 = vmatprep.subr.bf16.mxu0 0
      %10363 = vmatpush1.bf16.msra.mxu0 %v10344
      %10364 = vmatprep.subr.bf16.mxu0 0
      %10365 = vmatpush1.bf16.msra.mxu0 %v10345
      %10366 = vmatprep.subr.bf16.mxu0 0
      %10367 = vmatpush1.bf16.msra.mxu0 %v10346
      %10368 = vmatprep.subr.bf16.mxu0 0
      %10369 = vmatpush1.bf16.msra.mxu0 %v10347
      %10370 = vmatprep.subr.bf16.mxu0 0
      %10371 = vmatpush1.bf16.msra.mxu0 %v10348
      %10372 = vmatprep.subr.bf16.mxu0 0
      %10373 = vmatpush1.bf16.msra.mxu0 %v10349
      %10374 = vmatprep.subr.bf16.mxu0 0
      %10375 = vmatpush1.bf16.msra.mxu0 0
      %10376 = vmatprep.subr.bf16.mxu0 0
      %10377 = vmatpush1.bf16.msra.mxu0 0
      %10378 = vmatprep.subr.bf16.mxu0 0
      %10379 = vmatpush1.bf16.msra.mxu0 0
      %10380 = vmatprep.subr.bf16.mxu0 0
      %10381 = vmatpush1.bf16.msra.mxu0 0
      %10382 = vmatprep.subr.bf16.mxu0 0
      %10383 = vmatpush1.bf16.msra.mxu0 0
      %10384 = vmatprep.subr.bf16.mxu0 0
      %10385 = vmatpush1.bf16.msra.mxu0 0
      %10386 = vmatprep.subr.bf16.mxu0 0
      %10387 = vmatpush1.bf16.msra.mxu0 0
      %10388 = vmatprep.subr.bf16.mxu0 0
      %10389 = vmatpush1.bf16.msra.mxu0 0
      %10390 = vmatprep.mubr.bf16.mxu0 0
      %10391 = vmatmul.mubr.bf16.gmra.mrb[0].mxu0 %v10198
      %v10392 = vpop.f32.mrb[0].mxu0
      %v10393 = vadd.f32 %v10088, %v10392
      %v10394 = vpop.f32.mrb[0].mxu0
      %v10395 = vpop.f32.mrb[0].mxu0
      %v10396 = vadd.f32 %v10091, %v10395
      %v10397 = vpop.f32.mrb[0].mxu0
      %10398 = vmatprep.mubr.bf16.mxu0 0
      %10399 = vmatmul.mubr.bf16.gmra.mrb[0].mxu0 %v10207
      %v10400 = vpop.f32.mrb[0].mxu0
      %v10401 = vadd.f32 %v10096, %v10400
      %v10402 = vpop.f32.mrb[0].mxu0
      %v10403 = vpop.f32.mrb[0].mxu0
      %v10404 = vadd.f32 %v10099, %v10403
      %v10405 = vpop.f32.mrb[0].mxu0
      %10406 = vmatprep.mubr.bf16.mxu0 0
      %10407 = vmatmul.mubr.bf16.gmra.mrb[0].mxu0 %v10216
      %v10408 = vpop.f32.mrb[0].mxu0
      %v10409 = vadd.f32 %v10104, %v10408
      %v10410 = vpop.f32.mrb[0].mxu0
      %v10411 = vpop.f32.mrb[0].mxu0
      %v10412 = vadd.f32 %v10107, %v10411
      %v10413 = vpop.f32.mrb[0].mxu0
      %10414 = vmatprep.mubr.bf16.mxu0 0
      %10415 = vmatmul.mubr.bf16.gmra.mrb[0].mxu0 %v10225
      %v10416 = vpop.f32.mrb[0].mxu0
      %v10417 = vadd.f32 %v10112, %v10416
      %v10418 = vpop.f32.mrb[0].mxu0
      %v10419 = vpop.f32.mrb[0].mxu0
      %v10420 = vadd.f32 %v10115, %v10419
      %v10421 = vpop.f32.mrb[0].mxu0
      %10422 = vmatprep.mubr.bf16.mxu0 0
      %10423 = vmatmul.mubr.bf16.gmra.mrb[0].mxu0 %v10234
      %v10424 = vpop.f32.mrb[0].mxu0
      %v10425 = vadd.f32 %v10120, %v10424
      %v10426 = vpop.f32.mrb[0].mxu0
      %v10427 = vpop.f32.mrb[0].mxu0
      %v10428 = vadd.f32 %v10123, %v10427
      %v10429 = vpop.f32.mrb[0].mxu0
      %10430 = vmatprep.mubr.bf16.mxu0 0
      %10431 = vmatmul.mubr.bf16.gmra.mrb[0].mxu0 %v10243
      %v10432 = vpop.f32.mrb[0].mxu0
      %v10433 = vadd.f32 %v10128, %v10432
      %v10434 = vpop.f32.mrb[0].mxu0
      %v10435 = vpop.f32.mrb[0].mxu0
      %v10436 = vadd.f32 %v10131, %v10435
      %v10437 = vpop.f32.mrb[0].mxu0
      %10438 = vmatprep.mubr.bf16.mxu0 0
      %10439 = vmatmul.mubr.bf16.gmra.mrb[0].mxu0 %v10252
      %v10440 = vpop.f32.mrb[0].mxu0
      %v10441 = vadd.f32 %v10136, %v10440
      %v10442 = vpop.f32.mrb[0].mxu0
      %v10443 = vpop.f32.mrb[0].mxu0
      %v10444 = vadd.f32 %v10139, %v10443
      %v10445 = vpop.f32.mrb[0].mxu0
      %10446 = vmatprep.mubr.bf16.mxu0 0
      %10447 = vmatmul.mubr.bf16.gmra.mrb[0].mxu0 %v10261
      %v10448 = vpop.f32.mrb[0].mxu0
      %v10449 = vadd.f32 %v10144, %v10448
      %v10450 = vpop.f32.mrb[0].mxu0
      %v10451 = vpop.f32.mrb[0].mxu0
      %v10452 = vadd.f32 %v10147, %v10451
      %v10453 = vpop.f32.mrb[0].mxu0
      %10454 = vmatprep.mubr.bf16.mxu0 0
      %10455 = vmatmul.mubr.bf16.gmra.mrb[0].mxu0 %v10270
      %v10456 = vpop.f32.mrb[0].mxu0
      %v10457 = vadd.f32 %v10152, %v10456
      %v10458 = vpop.f32.mrb[0].mxu0
      %v10459 = vpop.f32.mrb[0].mxu0
      %v10460 = vadd.f32 %v10155, %v10459
      %v10461 = vpop.f32.mrb[0].mxu0
      %10462 = vmatprep.mubr.bf16.mxu0 0
      %10463 = vmatmul.mubr.bf16.gmra.mrb[0].mxu0 %v10279
      %v10464 = vpop.f32.mrb[0].mxu0
      %v10465 = vadd.f32 %v10160, %v10464
      %v10466 = vpop.f32.mrb[0].mxu0
      %v10467 = vpop.f32.mrb[0].mxu0
      %v10468 = vadd.f32 %v10163, %v10467
      %v10469 = vpop.f32.mrb[0].mxu0
      %10470 = vmatprep.mubr.bf16.mxu0 0
      %10471 = vmatmul.mubr.bf16.gmra.mrb[0].mxu0 %v10288
      %v10472 = vpop.f32.mrb[0].mxu0
      %v10473 = vadd.f32 %v10168, %v10472
      %v10474 = vpop.f32.mrb[0].mxu0
      %v10475 = vpop.f32.mrb[0].mxu0
      %v10476 = vadd.f32 %v10171, %v10475
      %v10477 = vpop.f32.mrb[0].mxu0
      %10478 = vmatprep.mubr.bf16.mxu0 0
      %10479 = vmatmul.mubr.bf16.gmra.mrb[0].mxu0 %v10297
      %v10480 = vpop.f32.mrb[0].mxu0
      %v10481 = vadd.f32 %v10176, %v10480
      %v10482 = vpop.f32.mrb[0].mxu0
      %v10483 = vpop.f32.mrb[0].mxu0
      %v10484 = vadd.f32 %v10179, %v10483
      %v10485 = vpop.f32.mrb[0].mxu0
      %10486 = vdwg.mxu0
      %v10487 = vld [vmem:[#allocation2 + $0xc0] sm:$0x1f]
      %v10488 = vld [vmem:[%s7642] sm:$0xf]
      %v10489 = vld [vmem:[%s7642 + $0x4] sm:$0xf]
      %v10490 = vld [vmem:[%s7642 + $0x8] sm:$0xf]
      %v10491 = vld [vmem:[%s7642 + $0xc] sm:$0xf]
      %v10492 = vld [vmem:[%s7642 + $0x10] sm:$0xf]
      %v10493 = vld [vmem:[%s7642 + $0x14] sm:$0xf]
      %v10494 = vld [vmem:[%s7642 + $0x18] sm:$0xf]
      %v10495 = vld [vmem:[%s7642 + $0x1c] sm:$0xf]
      %v10496 = vld [vmem:[%s7642 + $0x20] sm:$0xf]
      %v10497 = vld [vmem:[%s7642 + $0x24] sm:$0xf]
      %v10498 = vld [vmem:[%s7642 + $0x28] sm:$0xf]
      %v10499 = vld [vmem:[%s7642 + $0x2c] sm:$0xf]
      %v10500 = vld [vmem:[%s7642 + $0x30] sm:$0xf]
      %v10501 = vld [vmem:[%s7642 + $0x34] sm:$0xf]
      %v10502 = vld [vmem:[%s7642 + $0x38] sm:$0xf]
      %v10503 = vld [vmem:[%s7642 + $0x3c] sm:$0xf]
      %v10505 = vshrl.u32 %v9938, 16
      %v10507 = vrot.slane %v10505, 4
      %v10508 = vshll.u32 %v9938, 16
      %v10510 = vrot.slane %v10508, 5
      %v10511 = vor.u32 %v10507, %v10510
      %v10512 = vrot.slane %v10191, 4
      %v10513 = vrot.slane %v10194, 5
      %v10514 = vor.u32 %v10512, %v10513
      %v10515 = vsel %vm7659, %v10511, %v10514
      %v10516 = vrot.slane %v10200, 4
      %v10517 = vrot.slane %v10203, 5
      %v10518 = vor.u32 %v10516, %v10517
      %v10519 = vsel %vm7659, %v10514, %v10518
      %v10520 = vrot.slane %v10209, 4
      %v10521 = vrot.slane %v10212, 5
      %v10522 = vor.u32 %v10520, %v10521
      %v10523 = vsel %vm7659, %v10518, %v10522
      %v10524 = vrot.slane %v10218, 4
      %v10525 = vrot.slane %v10221, 5
      %v10526 = vor.u32 %v10524, %v10525
      %v10527 = vsel %vm7659, %v10522, %v10526
      %v10528 = vrot.slane %v10227, 4
      %v10529 = vrot.slane %v10230, 5
      %v10530 = vor.u32 %v10528, %v10529
      %v10531 = vsel %vm7659, %v10526, %v10530
      %v10532 = vrot.slane %v10236, 4
      %v10533 = vrot.slane %v10239, 5
      %v10534 = vor.u32 %v10532, %v10533
      %v10535 = vsel %vm7659, %v10530, %v10534
      %v10536 = vrot.slane %v10245, 4
      %v10537 = vrot.slane %v10248, 5
      %v10538 = vor.u32 %v10536, %v10537
      %v10539 = vsel %vm7659, %v10534, %v10538
      %v10540 = vrot.slane %v10254, 4
      %v10541 = vrot.slane %v10257, 5
      %v10542 = vor.u32 %v10540, %v10541
      %v10543 = vsel %vm7659, %v10538, %v10542
      %v10544 = vrot.slane %v10263, 4
      %v10545 = vrot.slane %v10266, 5
      %v10546 = vor.u32 %v10544, %v10545
      %v10547 = vsel %vm7659, %v10542, %v10546
      %v10548 = vrot.slane %v10272, 4
      %v10549 = vrot.slane %v10275, 5
      %v10550 = vor.u32 %v10548, %v10549
      %v10551 = vsel %vm7659, %v10546, %v10550
      %v10552 = vrot.slane %v10281, 4
      %v10553 = vrot.slane %v10284, 5
      %v10554 = vor.u32 %v10552, %v10553
      %v10555 = vsel %vm7659, %v10550, %v10554
      %v10557 = vshrl.u32 %v10487, 16
      %v10559 = vrot.slane %v10557, 4
      %v10560 = vshll.u32 %v10487, 16
      %v10562 = vrot.slane %v10560, 5
      %v10563 = vor.u32 %v10559, %v10562
      %v10564 = vsel %vm7659, %v10554, %v10563
      %v10593 = vunpack.c.l.b16 %v10488
      %v10594 = vunpack.c.l.b16 %v10489
      %v10595 = vunpack.c.l.b16 %v10490
      %v10596 = vunpack.c.l.b16 %v10491
      %v10597 = vunpack.c.l.b16 %v10492
      %v10598 = vunpack.c.l.b16 %v10493
      %v10599 = vunpack.c.l.b16 %v10494
      %v10600 = vunpack.c.l.b16 %v10495
      %v10601 = vunpack.c.l.b16 %v10496
      %v10602 = vunpack.c.l.b16 %v10497
      %v10603 = vunpack.c.l.b16 %v10498
      %v10604 = vunpack.c.l.b16 %v10499
      %v10605 = vunpack.c.l.b16 %v10500
      %v10606 = vunpack.c.l.b16 %v10501
      %v10607 = vunpack.c.l.b16 %v10502
      %v10608 = vunpack.c.l.b16 %v10503
      %v10609 = vpack.c.b16 %v10594, %v10593
      %v10610 = vpack.c.b16 %v10596, %v10595
      %v10611 = vpack.c.b16 %v10598, %v10597
      %v10612 = vpack.c.b16 %v10600, %v10599
      %v10613 = vpack.c.b16 %v10602, %v10601
      %v10614 = vpack.c.b16 %v10604, %v10603
      %v10615 = vpack.c.b16 %v10606, %v10605
      %v10616 = vpack.c.b16 %v10608, %v10607
      %10625 = vmatprep.subr.bf16.mxu0 0
      %10626 = vmatpush1.bf16.msra.mxu0 %v10609
      %10627 = vmatprep.subr.bf16.mxu0 0
      %10628 = vmatpush1.bf16.msra.mxu0 %v10610
      %10629 = vmatprep.subr.bf16.mxu0 0
      %10630 = vmatpush1.bf16.msra.mxu0 %v10611
      %10631 = vmatprep.subr.bf16.mxu0 0
      %10632 = vmatpush1.bf16.msra.mxu0 %v10612
      %10633 = vmatprep.subr.bf16.mxu0 0
      %10634 = vmatpush1.bf16.msra.mxu0 %v10613
      %10635 = vmatprep.subr.bf16.mxu0 0
      %10636 = vmatpush1.bf16.msra.mxu0 %v10614
      %10637 = vmatprep.subr.bf16.mxu0 0
      %10638 = vmatpush1.bf16.msra.mxu0 %v10615
      %10639 = vmatprep.subr.bf16.mxu0 0
      %10640 = vmatpush1.bf16.msra.mxu0 %v10616
      %10641 = vmatprep.subr.bf16.mxu0 0
      %10642 = vmatpush1.bf16.msra.mxu0 0
      %10643 = vmatprep.subr.bf16.mxu0 0
      %10644 = vmatpush1.bf16.msra.mxu0 0
      %10645 = vmatprep.subr.bf16.mxu0 0
      %10646 = vmatpush1.bf16.msra.mxu0 0
      %10647 = vmatprep.subr.bf16.mxu0 0
      %10648 = vmatpush1.bf16.msra.mxu0 0
      %10649 = vmatprep.subr.bf16.mxu0 0
      %10650 = vmatpush1.bf16.msra.mxu0 0
      %10651 = vmatprep.subr.bf16.mxu0 0
      %10652 = vmatpush1.bf16.msra.mxu0 0
      %10653 = vmatprep.subr.bf16.mxu0 0
      %10654 = vmatpush1.bf16.msra.mxu0 0
      %10655 = vmatprep.subr.bf16.mxu0 0
      %10656 = vmatpush1.bf16.msra.mxu0 0
      %10657 = vmatprep.mubr.bf16.mxu0 0
      %10658 = vmatmul.mubr.bf16.gmra.mrb[0].mxu0 %v10515
      %v10659 = vpop.f32.mrb[0].mxu0
      %v10660 = vadd.f32 0.0, %v10659
      %v10661 = vpop.f32.mrb[0].mxu0
      %v10662 = vpop.f32.mrb[0].mxu0
      %v10663 = vadd.f32 0.0, %v10662
      %v10664 = vpop.f32.mrb[0].mxu0
      %10665 = vmatprep.mubr.bf16.mxu0 0
      %10666 = vmatmul.mubr.bf16.gmra.mrb[0].mxu0 %v10519
      %v10667 = vpop.f32.mrb[0].mxu0
      %v10668 = vadd.f32 0.0, %v10667
      %v10669 = vpop.f32.mrb[0].mxu0
      %v10670 = vpop.f32.mrb[0].mxu0
      %v10671 = vadd.f32 0.0, %v10670
      %v10672 = vpop.f32.mrb[0].mxu0
      %10673 = vmatprep.mubr.bf16.mxu0 0
      %10674 = vmatmul.mubr.bf16.gmra.mrb[0].mxu0 %v10523
      %v10675 = vpop.f32.mrb[0].mxu0
      %v10676 = vadd.f32 0.0, %v10675
      %v10677 = vpop.f32.mrb[0].mxu0
      %v10678 = vpop.f32.mrb[0].mxu0
      %v10679 = vadd.f32 0.0, %v10678
      %v10680 = vpop.f32.mrb[0].mxu0
      %10681 = vmatprep.mubr.bf16.mxu0 0
      %10682 = vmatmul.mubr.bf16.gmra.mrb[0].mxu0 %v10527
      %v10683 = vpop.f32.mrb[0].mxu0
      %v10684 = vadd.f32 0.0, %v10683
      %v10685 = vpop.f32.mrb[0].mxu0
      %v10686 = vpop.f32.mrb[0].mxu0
      %v10687 = vadd.f32 0.0, %v10686
      %v10688 = vpop.f32.mrb[0].mxu0
      %10689 = vmatprep.mubr.bf16.mxu0 0
      %10690 = vmatmul.mubr.bf16.gmra.mrb[0].mxu0 %v10531
      %v10691 = vpop.f32.mrb[0].mxu0
      %v10692 = vadd.f32 0.0, %v10691
      %v10693 = vpop.f32.mrb[0].mxu0
      %v10694 = vpop.f32.mrb[0].mxu0
      %v10695 = vadd.f32 0.0, %v10694
      %v10696 = vpop.f32.mrb[0].mxu0
      %10697 = vmatprep.mubr.bf16.mxu0 0
      %10698 = vmatmul.mubr.bf16.gmra.mrb[0].mxu0 %v10535
      %v10699 = vpop.f32.mrb[0].mxu0
      %v10700 = vadd.f32 0.0, %v10699
      %v10701 = vpop.f32.mrb[0].mxu0
      %v10702 = vpop.f32.mrb[0].mxu0
      %v10703 = vadd.f32 0.0, %v10702
      %v10704 = vpop.f32.mrb[0].mxu0
      %10705 = vmatprep.mubr.bf16.mxu0 0
      %10706 = vmatmul.mubr.bf16.gmra.mrb[0].mxu0 %v10539
      %v10707 = vpop.f32.mrb[0].mxu0
      %v10708 = vadd.f32 0.0, %v10707
      %v10709 = vpop.f32.mrb[0].mxu0
      %v10710 = vpop.f32.mrb[0].mxu0
      %v10711 = vadd.f32 0.0, %v10710
      %v10712 = vpop.f32.mrb[0].mxu0
      %10713 = vmatprep.mubr.bf16.mxu0 0
      %10714 = vmatmul.mubr.bf16.gmra.mrb[0].mxu0 %v10543
      %v10715 = vpop.f32.mrb[0].mxu0
      %v10716 = vadd.f32 0.0, %v10715
      %v10717 = vpop.f32.mrb[0].mxu0
      %v10718 = vpop.f32.mrb[0].mxu0
      %v10719 = vadd.f32 0.0, %v10718
      %v10720 = vpop.f32.mrb[0].mxu0
      %10721 = vmatprep.mubr.bf16.mxu0 0
      %10722 = vmatmul.mubr.bf16.gmra.mrb[0].mxu0 %v10547
      %v10723 = vpop.f32.mrb[0].mxu0
      %v10724 = vadd.f32 0.0, %v10723
      %v10725 = vpop.f32.mrb[0].mxu0
      %v10726 = vpop.f32.mrb[0].mxu0
      %v10727 = vadd.f32 0.0, %v10726
      %v10728 = vpop.f32.mrb[0].mxu0
      %10729 = vmatprep.mubr.bf16.mxu0 0
      %10730 = vmatmul.mubr.bf16.gmra.mrb[0].mxu0 %v10551
      %v10731 = vpop.f32.mrb[0].mxu0
      %v10732 = vadd.f32 0.0, %v10731
      %v10733 = vpop.f32.mrb[0].mxu0
      %v10734 = vpop.f32.mrb[0].mxu0
      %v10735 = vadd.f32 0.0, %v10734
      %v10736 = vpop.f32.mrb[0].mxu0
      %10737 = vmatprep.mubr.bf16.mxu0 0
      %10738 = vmatmul.mubr.bf16.gmra.mrb[0].mxu0 %v10555
      %v10739 = vpop.f32.mrb[0].mxu0
      %v10740 = vadd.f32 0.0, %v10739
      %v10741 = vpop.f32.mrb[0].mxu0
      %v10742 = vpop.f32.mrb[0].mxu0
      %v10743 = vadd.f32 0.0, %v10742
      %v10744 = vpop.f32.mrb[0].mxu0
      %10745 = vmatprep.mubr.bf16.mxu0 0
      %10746 = vmatmul.mubr.bf16.gmra.mrb[0].mxu0 %v10564
      %v10747 = vpop.f32.mrb[0].mxu0
      %v10748 = vadd.f32 0.0, %v10747
      %v10749 = vpop.f32.mrb[0].mxu0
      %v10750 = vpop.f32.mrb[0].mxu0
      %v10751 = vadd.f32 0.0, %v10750
      %v10752 = vpop.f32.mrb[0].mxu0
      %10753 = vdwg.mxu0
      %v10754 = vadd.f32 %v10393, %v10660
      %v10755 = vadd.f32 %v10396, %v10663
      %v10756 = vadd.f32 %v10401, %v10668
      %v10757 = vadd.f32 %v10404, %v10671
      %v10758 = vadd.f32 %v10409, %v10676
      %v10759 = vadd.f32 %v10412, %v10679
      %v10760 = vadd.f32 %v10417, %v10684
      %v10761 = vadd.f32 %v10420, %v10687
      %v10762 = vadd.f32 %v10425, %v10692
      %v10763 = vadd.f32 %v10428, %v10695
      %v10764 = vadd.f32 %v10433, %v10700
      %v10765 = vadd.f32 %v10436, %v10703
      %v10766 = vadd.f32 %v10441, %v10708
      %v10767 = vadd.f32 %v10444, %v10711
      %v10768 = vadd.f32 %v10449, %v10716
      %v10769 = vadd.f32 %v10452, %v10719
      %v10770 = vadd.f32 %v10457, %v10724
      %v10771 = vadd.f32 %v10460, %v10727
      %v10772 = vadd.f32 %v10465, %v10732
      %v10773 = vadd.f32 %v10468, %v10735
      %v10774 = vadd.f32 %v10473, %v10740
      %v10775 = vadd.f32 %v10476, %v10743
      %v10776 = vadd.f32 %v10481, %v10748
      %v10777 = vadd.f32 %v10484, %v10751
      %v10778 = vld [vmem:[#allocation2 + $0x68] sm:$0x80]
      %v10779 = vld [vmem:[#allocation2 + $0x70] sm:$0xff]
      %v10780 = vld [vmem:[#allocation2 + $0x78] sm:$0xff]
      %v10781 = vld [vmem:[#allocation2 + $0x80] sm:$0xff]
      %v10782 = vld [vmem:[#allocation2 + $0x88] sm:$0xff]
      %v10783 = vld [vmem:[#allocation2 + $0x90] sm:$0xff]
      %v10784 = vld [vmem:[#allocation2 + $0x98] sm:$0xff]
      %v10785 = vld [vmem:[#allocation2 + $0xa0] sm:$0xff]
      %v10786 = vld [vmem:[#allocation2 + $0xa8] sm:$0xff]
      %v10787 = vld [vmem:[#allocation2 + $0xb0] sm:$0xff]
      %v10788 = vld [vmem:[#allocation2 + $0xb8] sm:$0xff]
      %v10789 = vld [vmem:[#allocation2 + $0xc0] sm:$0xff]
      %v10790 = vld [vmem:[#allocation2 + $0xc8] sm:$0xff]
      %v10791 = vld [vmem:[%s7947] sm:$0xf]
      %v10792 = vld [vmem:[%s7947 + $0x4] sm:$0xf]
      %v10793 = vld [vmem:[%s7947 + $0x8] sm:$0xf]
      %v10794 = vld [vmem:[%s7947 + $0xc] sm:$0xf]
      %v10795 = vld [vmem:[%s7947 + $0x10] sm:$0xf]
      %v10796 = vld [vmem:[%s7947 + $0x14] sm:$0xf]
      %v10797 = vld [vmem:[%s7947 + $0x18] sm:$0xf]
      %v10798 = vld [vmem:[%s7947 + $0x1c] sm:$0xf]
      %v10799 = vld [vmem:[%s7947 + $0x20] sm:$0xf]
      %v10800 = vld [vmem:[%s7947 + $0x24] sm:$0xf]
      %v10801 = vld [vmem:[%s7947 + $0x28] sm:$0xf]
      %v10802 = vld [vmem:[%s7947 + $0x2c] sm:$0xf]
      %v10803 = vld [vmem:[%s7947 + $0x30] sm:$0xf]
      %v10804 = vld [vmem:[%s7947 + $0x34] sm:$0xf]
      %v10805 = vld [vmem:[%s7947 + $0x38] sm:$0xf]
      %v10806 = vld [vmem:[%s7947 + $0x3c] sm:$0xf]
      %v10808 = vshrl.u32 %v10778, 16
      %v10810 = vrot.slane %v10808, 7
      %v10812 = vshrl.u32 %v10779, 16
      %v10814 = vrot.slane %v10812, 7
      %v10815 = vshll.u32 %v10779, 16
      %v10817 = vor.u32 %v10814, %v10815
      %v10818 = vsel %vm7964, %v10810, %v10817
      %v10820 = vshrl.u32 %v10780, 16
      %v10822 = vrot.slane %v10820, 7
      %v10823 = vshll.u32 %v10780, 16
      %v10825 = vor.u32 %v10822, %v10823
      %v10826 = vsel %vm7964, %v10814, %v10825
      %v10828 = vshrl.u32 %v10781, 16
      %v10830 = vrot.slane %v10828, 7
      %v10831 = vshll.u32 %v10781, 16
      %v10833 = vor.u32 %v10830, %v10831
      %v10834 = vsel %vm7964, %v10822, %v10833
      %v10836 = vshrl.u32 %v10782, 16
      %v10838 = vrot.slane %v10836, 7
      %v10839 = vshll.u32 %v10782, 16
      %v10841 = vor.u32 %v10838, %v10839
      %v10842 = vsel %vm7964, %v10830, %v10841
      %v10844 = vshrl.u32 %v10783, 16
      %v10846 = vrot.slane %v10844, 7
      %v10847 = vshll.u32 %v10783, 16
      %v10849 = vor.u32 %v10846, %v10847
      %v10850 = vsel %vm7964, %v10838, %v10849
      %v10852 = vshrl.u32 %v10784, 16
      %v10854 = vrot.slane %v10852, 7
      %v10855 = vshll.u32 %v10784, 16
      %v10857 = vor.u32 %v10854, %v10855
      %v10858 = vsel %vm7964, %v10846, %v10857
      %v10860 = vshrl.u32 %v10785, 16
      %v10862 = vrot.slane %v10860, 7
      %v10863 = vshll.u32 %v10785, 16
      %v10865 = vor.u32 %v10862, %v10863
      %v10866 = vsel %vm7964, %v10854, %v10865
      %v10868 = vshrl.u32 %v10786, 16
      %v10870 = vrot.slane %v10868, 7
      %v10871 = vshll.u32 %v10786, 16
      %v10873 = vor.u32 %v10870, %v10871
      %v10874 = vsel %vm7964, %v10862, %v10873
      %v10876 = vshrl.u32 %v10787, 16
      %v10878 = vrot.slane %v10876, 7
      %v10879 = vshll.u32 %v10787, 16
      %v10881 = vor.u32 %v10878, %v10879
      %v10882 = vsel %vm7964, %v10870, %v10881
      %v10884 = vshrl.u32 %v10788, 16
      %v10886 = vrot.slane %v10884, 7
      %v10887 = vshll.u32 %v10788, 16
      %v10889 = vor.u32 %v10886, %v10887
      %v10890 = vsel %vm7964, %v10878, %v10889
      %v10892 = vshrl.u32 %v10789, 16
      %v10894 = vrot.slane %v10892, 7
      %v10895 = vshll.u32 %v10789, 16
      %v10897 = vor.u32 %v10894, %v10895
      %v10898 = vsel %vm7964, %v10886, %v10897
      %v10900 = vshrl.u32 %v10790, 16
      %v10902 = vrot.slane %v10900, 7
      %v10903 = vshll.u32 %v10790, 16
      %v10905 = vor.u32 %v10902, %v10903
      %v10906 = vsel %vm7964, %v10894, %v10905
      %v10935 = vunpack.c.l.b16 %v10791
      %v10936 = vunpack.c.l.b16 %v10792
      %v10937 = vunpack.c.l.b16 %v10793
      %v10938 = vunpack.c.l.b16 %v10794
      %v10939 = vunpack.c.l.b16 %v10795
      %v10940 = vunpack.c.l.b16 %v10796
      %v10941 = vunpack.c.l.b16 %v10797
      %v10942 = vunpack.c.l.b16 %v10798
      %v10943 = vunpack.c.l.b16 %v10799
      %v10944 = vunpack.c.l.b16 %v10800
      %v10945 = vunpack.c.l.b16 %v10801
      %v10946 = vunpack.c.l.b16 %v10802
      %v10947 = vunpack.c.l.b16 %v10803
      %v10948 = vunpack.c.l.b16 %v10804
      %v10949 = vunpack.c.l.b16 %v10805
      %v10950 = vunpack.c.l.b16 %v10806
      %v10951 = vpack.c.b16 %v10936, %v10935
      %v10952 = vpack.c.b16 %v10938, %v10937
      %v10953 = vpack.c.b16 %v10940, %v10939
      %v10954 = vpack.c.b16 %v10942, %v10941
      %v10955 = vpack.c.b16 %v10944, %v10943
      %v10956 = vpack.c.b16 %v10946, %v10945
      %v10957 = vpack.c.b16 %v10948, %v10947
      %v10958 = vpack.c.b16 %v10950, %v10949
      %10967 = vmatprep.subr.bf16.mxu0 0
      %10968 = vmatpush1.bf16.msra.mxu0 %v10951
      %10969 = vmatprep.subr.bf16.mxu0 0
      %10970 = vmatpush1.bf16.msra.mxu0 %v10952
      %10971 = vmatprep.subr.bf16.mxu0 0
      %10972 = vmatpush1.bf16.msra.mxu0 %v10953
      %10973 = vmatprep.subr.bf16.mxu0 0
      %10974 = vmatpush1.bf16.msra.mxu0 %v10954
      %10975 = vmatprep.subr.bf16.mxu0 0
      %10976 = vmatpush1.bf16.msra.mxu0 %v10955
      %10977 = vmatprep.subr.bf16.mxu0 0
      %10978 = vmatpush1.bf16.msra.mxu0 %v10956
      %10979 = vmatprep.subr.bf16.mxu0 0
      %10980 = vmatpush1.bf16.msra.mxu0 %v10957
      %10981 = vmatprep.subr.bf16.mxu0 0
      %10982 = vmatpush1.bf16.msra.mxu0 %v10958
      %10983 = vmatprep.subr.bf16.mxu0 0
      %10984 = vmatpush1.bf16.msra.mxu0 0
      %10985 = vmatprep.subr.bf16.mxu0 0
      %10986 = vmatpush1.bf16.msra.mxu0 0
      %10987 = vmatprep.subr.bf16.mxu0 0
      %10988 = vmatpush1.bf16.msra.mxu0 0
      %10989 = vmatprep.subr.bf16.mxu0 0
      %10990 = vmatpush1.bf16.msra.mxu0 0
      %10991 = vmatprep.subr.bf16.mxu0 0
      %10992 = vmatpush1.bf16.msra.mxu0 0
      %10993 = vmatprep.subr.bf16.mxu0 0
      %10994 = vmatpush1.bf16.msra.mxu0 0
      %10995 = vmatprep.subr.bf16.mxu0 0
      %10996 = vmatpush1.bf16.msra.mxu0 0
      %10997 = vmatprep.subr.bf16.mxu0 0
      %10998 = vmatpush1.bf16.msra.mxu0 0
      %10999 = vmatprep.mubr.bf16.mxu0 0
      %11000 = vmatmul.mubr.bf16.gmra.mrb[0].mxu0 %v10818
      %v11001 = vpop.f32.mrb[0].mxu0
      %v11002 = vadd.f32 0.0, %v11001
      %v11003 = vpop.f32.mrb[0].mxu0
      %v11004 = vpop.f32.mrb[0].mxu0
      %v11005 = vadd.f32 0.0, %v11004
      %v11006 = vpop.f32.mrb[0].mxu0
      %11007 = vmatprep.mubr.bf16.mxu0 0
      %11008 = vmatmul.mubr.bf16.gmra.mrb[0].mxu0 %v10826
      %v11009 = vpop.f32.mrb[0].mxu0
      %v11010 = vadd.f32 0.0, %v11009
      %v11011 = vpop.f32.mrb[0].mxu0
      %v11012 = vpop.f32.mrb[0].mxu0
      %v11013 = vadd.f32 0.0, %v11012
      %v11014 = vpop.f32.mrb[0].mxu0
      %11015 = vmatprep.mubr.bf16.mxu0 0
      %11016 = vmatmul.mubr.bf16.gmra.mrb[0].mxu0 %v10834
      %v11017 = vpop.f32.mrb[0].mxu0
      %v11018 = vadd.f32 0.0, %v11017
      %v11019 = vpop.f32.mrb[0].mxu0
      %v11020 = vpop.f32.mrb[0].mxu0
      %v11021 = vadd.f32 0.0, %v11020
      %v11022 = vpop.f32.mrb[0].mxu0
      %11023 = vmatprep.mubr.bf16.mxu0 0
      %11024 = vmatmul.mubr.bf16.gmra.mrb[0].mxu0 %v10842
      %v11025 = vpop.f32.mrb[0].mxu0
      %v11026 = vadd.f32 0.0, %v11025
      %v11027 = vpop.f32.mrb[0].mxu0
      %v11028 = vpop.f32.mrb[0].mxu0
      %v11029 = vadd.f32 0.0, %v11028
      %v11030 = vpop.f32.mrb[0].mxu0
      %11031 = vmatprep.mubr.bf16.mxu0 0
      %11032 = vmatmul.mubr.bf16.gmra.mrb[0].mxu0 %v10850
      %v11033 = vpop.f32.mrb[0].mxu0
      %v11034 = vadd.f32 0.0, %v11033
      %v11035 = vpop.f32.mrb[0].mxu0
      %v11036 = vpop.f32.mrb[0].mxu0
      %v11037 = vadd.f32 0.0, %v11036
      %v11038 = vpop.f32.mrb[0].mxu0
      %11039 = vmatprep.mubr.bf16.mxu0 0
      %11040 = vmatmul.mubr.bf16.gmra.mrb[0].mxu0 %v10858
      %v11041 = vpop.f32.mrb[0].mxu0
      %v11042 = vadd.f32 0.0, %v11041
      %v11043 = vpop.f32.mrb[0].mxu0
      %v11044 = vpop.f32.mrb[0].mxu0
      %v11045 = vadd.f32 0.0, %v11044
      %v11046 = vpop.f32.mrb[0].mxu0
      %11047 = vmatprep.mubr.bf16.mxu0 0
      %11048 = vmatmul.mubr.bf16.gmra.mrb[0].mxu0 %v10866
      %v11049 = vpop.f32.mrb[0].mxu0
      %v11050 = vadd.f32 0.0, %v11049
      %v11051 = vpop.f32.mrb[0].mxu0
      %v11052 = vpop.f32.mrb[0].mxu0
      %v11053 = vadd.f32 0.0, %v11052
      %v11054 = vpop.f32.mrb[0].mxu0
      %11055 = vmatprep.mubr.bf16.mxu0 0
      %11056 = vmatmul.mubr.bf16.gmra.mrb[0].mxu0 %v10874
      %v11057 = vpop.f32.mrb[0].mxu0
      %v11058 = vadd.f32 0.0, %v11057
      %v11059 = vpop.f32.mrb[0].mxu0
      %v11060 = vpop.f32.mrb[0].mxu0
      %v11061 = vadd.f32 0.0, %v11060
      %v11062 = vpop.f32.mrb[0].mxu0
      %11063 = vmatprep.mubr.bf16.mxu0 0
      %11064 = vmatmul.mubr.bf16.gmra.mrb[0].mxu0 %v10882
      %v11065 = vpop.f32.mrb[0].mxu0
      %v11066 = vadd.f32 0.0, %v11065
      %v11067 = vpop.f32.mrb[0].mxu0
      %v11068 = vpop.f32.mrb[0].mxu0
      %v11069 = vadd.f32 0.0, %v11068
      %v11070 = vpop.f32.mrb[0].mxu0
      %11071 = vmatprep.mubr.bf16.mxu0 0
      %11072 = vmatmul.mubr.bf16.gmra.mrb[0].mxu0 %v10890
      %v11073 = vpop.f32.mrb[0].mxu0
      %v11074 = vadd.f32 0.0, %v11073
      %v11075 = vpop.f32.mrb[0].mxu0
      %v11076 = vpop.f32.mrb[0].mxu0
      %v11077 = vadd.f32 0.0, %v11076
      %v11078 = vpop.f32.mrb[0].mxu0
      %11079 = vmatprep.mubr.bf16.mxu0 0
      %11080 = vmatmul.mubr.bf16.gmra.mrb[0].mxu0 %v10898
      %v11081 = vpop.f32.mrb[0].mxu0
      %v11082 = vadd.f32 0.0, %v11081
      %v11083 = vpop.f32.mrb[0].mxu0
      %v11084 = vpop.f32.mrb[0].mxu0
      %v11085 = vadd.f32 0.0, %v11084
      %v11086 = vpop.f32.mrb[0].mxu0
      %11087 = vmatprep.mubr.bf16.mxu0 0
      %11088 = vmatmul.mubr.bf16.gmra.mrb[0].mxu0 %v10906
      %v11089 = vpop.f32.mrb[0].mxu0
      %v11090 = vadd.f32 0.0, %v11089
      %v11091 = vpop.f32.mrb[0].mxu0
      %v11092 = vpop.f32.mrb[0].mxu0
      %v11093 = vadd.f32 0.0, %v11092
      %v11094 = vpop.f32.mrb[0].mxu0
      %11095 = vdwg.mxu0
      %v11096 = vadd.f32 %v10754, %v11002
      %v11097 = vadd.f32 %v10755, %v11005
      %v11098 = vadd.f32 %v10756, %v11010
      %v11099 = vadd.f32 %v10757, %v11013
      %v11100 = vadd.f32 %v10758, %v11018
      %v11101 = vadd.f32 %v10759, %v11021
      %v11102 = vadd.f32 %v10760, %v11026
      %v11103 = vadd.f32 %v10761, %v11029
      %v11104 = vadd.f32 %v10762, %v11034
      %v11105 = vadd.f32 %v10763, %v11037
      %v11106 = vadd.f32 %v10764, %v11042
      %v11107 = vadd.f32 %v10765, %v11045
      %v11108 = vadd.f32 %v10766, %v11050
      %v11109 = vadd.f32 %v10767, %v11053
      %v11110 = vadd.f32 %v10768, %v11058
      %v11111 = vadd.f32 %v10769, %v11061
      %v11112 = vadd.f32 %v10770, %v11066
      %v11113 = vadd.f32 %v10771, %v11069
      %v11114 = vadd.f32 %v10772, %v11074
      %v11115 = vadd.f32 %v10773, %v11077
      %v11116 = vadd.f32 %v10774, %v11082
      %v11117 = vadd.f32 %v10775, %v11085
      %v11118 = vadd.f32 %v10776, %v11090
      %v11119 = vadd.f32 %v10777, %v11093
      %v11120 = vld [vmem:[%s8278] sm:$0xf]
      %v11121 = vld [vmem:[%s8278 + $0x4] sm:$0xf]
      %v11122 = vld [vmem:[%s8278 + $0x8] sm:$0xf]
      %v11123 = vld [vmem:[%s8278 + $0xc] sm:$0xf]
      %v11124 = vld [vmem:[%s8278 + $0x10] sm:$0xf]
      %v11125 = vld [vmem:[%s8278 + $0x14] sm:$0xf]
      %v11126 = vld [vmem:[%s8278 + $0x18] sm:$0xf]
      %v11127 = vld [vmem:[%s8278 + $0x1c] sm:$0xf]
      %v11128 = vld [vmem:[%s8278 + $0x20] sm:$0xf]
      %v11129 = vld [vmem:[%s8278 + $0x24] sm:$0xf]
      %v11130 = vld [vmem:[%s8278 + $0x28] sm:$0xf]
      %v11131 = vld [vmem:[%s8278 + $0x2c] sm:$0xf]
      %v11132 = vld [vmem:[%s8278 + $0x30] sm:$0xf]
      %v11133 = vld [vmem:[%s8278 + $0x34] sm:$0xf]
      %v11134 = vld [vmem:[%s8278 + $0x38] sm:$0xf]
      %v11135 = vld [vmem:[%s8278 + $0x3c] sm:$0xf]
      %v11152 = vunpack.c.l.b16 %v11120
      %v11153 = vunpack.c.l.b16 %v11121
      %v11154 = vunpack.c.l.b16 %v11122
      %v11155 = vunpack.c.l.b16 %v11123
      %v11156 = vunpack.c.l.b16 %v11124
      %v11157 = vunpack.c.l.b16 %v11125
      %v11158 = vunpack.c.l.b16 %v11126
      %v11159 = vunpack.c.l.b16 %v11127
      %v11160 = vunpack.c.l.b16 %v11128
      %v11161 = vunpack.c.l.b16 %v11129
      %v11162 = vunpack.c.l.b16 %v11130
      %v11163 = vunpack.c.l.b16 %v11131
      %v11164 = vunpack.c.l.b16 %v11132
      %v11165 = vunpack.c.l.b16 %v11133
      %v11166 = vunpack.c.l.b16 %v11134
      %v11167 = vunpack.c.l.b16 %v11135
      %v11168 = vpack.c.b16 %v11153, %v11152
      %v11169 = vpack.c.b16 %v11155, %v11154
      %v11170 = vpack.c.b16 %v11157, %v11156
      %v11171 = vpack.c.b16 %v11159, %v11158
      %v11172 = vpack.c.b16 %v11161, %v11160
      %v11173 = vpack.c.b16 %v11163, %v11162
      %v11174 = vpack.c.b16 %v11165, %v11164
      %v11175 = vpack.c.b16 %v11167, %v11166
      %11184 = vmatprep.subr.bf16.mxu0 0
      %11185 = vmatpush1.bf16.msra.mxu0 %v11168
      %11186 = vmatprep.subr.bf16.mxu0 0
      %11187 = vmatpush1.bf16.msra.mxu0 %v11169
      %11188 = vmatprep.subr.bf16.mxu0 0
      %11189 = vmatpush1.bf16.msra.mxu0 %v11170
      %11190 = vmatprep.subr.bf16.mxu0 0
      %11191 = vmatpush1.bf16.msra.mxu0 %v11171
      %11192 = vmatprep.subr.bf16.mxu0 0
      %11193 = vmatpush1.bf16.msra.mxu0 %v11172
      %11194 = vmatprep.subr.bf16.mxu0 0
      %11195 = vmatpush1.bf16.msra.mxu0 %v11173
      %11196 = vmatprep.subr.bf16.mxu0 0
      %11197 = vmatpush1.bf16.msra.mxu0 %v11174
      %11198 = vmatprep.subr.bf16.mxu0 0
      %11199 = vmatpush1.bf16.msra.mxu0 %v11175
      %11200 = vmatprep.subr.bf16.mxu0 0
      %11201 = vmatpush1.bf16.msra.mxu0 0
      %11202 = vmatprep.subr.bf16.mxu0 0
      %11203 = vmatpush1.bf16.msra.mxu0 0
      %11204 = vmatprep.subr.bf16.mxu0 0
      %11205 = vmatpush1.bf16.msra.mxu0 0
      %11206 = vmatprep.subr.bf16.mxu0 0
      %11207 = vmatpush1.bf16.msra.mxu0 0
      %11208 = vmatprep.subr.bf16.mxu0 0
      %11209 = vmatpush1.bf16.msra.mxu0 0
      %11210 = vmatprep.subr.bf16.mxu0 0
      %11211 = vmatpush1.bf16.msra.mxu0 0
      %11212 = vmatprep.subr.bf16.mxu0 0
      %11213 = vmatpush1.bf16.msra.mxu0 0
      %11214 = vmatprep.subr.bf16.mxu0 0
      %11215 = vmatpush1.bf16.msra.mxu0 0
      %11216 = vmatprep.mubr.bf16.mxu0 0
      %11217 = vmatmul.mubr.bf16.gmra.mrb[0].mxu0 %v10779
      %v11218 = vpop.f32.mrb[0].mxu0
      %v11219 = vadd.f32 0.0, %v11218
      %v11220 = vpop.f32.mrb[0].mxu0
      %v11221 = vpop.f32.mrb[0].mxu0
      %v11222 = vadd.f32 0.0, %v11221
      %v11223 = vpop.f32.mrb[0].mxu0
      %11224 = vmatprep.mubr.bf16.mxu0 0
      %11225 = vmatmul.mubr.bf16.gmra.mrb[0].mxu0 %v10780
      %v11226 = vpop.f32.mrb[0].mxu0
      %v11227 = vadd.f32 0.0, %v11226
      %v11228 = vpop.f32.mrb[0].mxu0
      %v11229 = vpop.f32.mrb[0].mxu0
      %v11230 = vadd.f32 0.0, %v11229
      %v11231 = vpop.f32.mrb[0].mxu0
      %11232 = vmatprep.mubr.bf16.mxu0 0
      %11233 = vmatmul.mubr.bf16.gmra.mrb[0].mxu0 %v10781
      %v11234 = vpop.f32.mrb[0].mxu0
      %v11235 = vadd.f32 0.0, %v11234
      %v11236 = vpop.f32.mrb[0].mxu0
      %v11237 = vpop.f32.mrb[0].mxu0
      %v11238 = vadd.f32 0.0, %v11237
      %v11239 = vpop.f32.mrb[0].mxu0
      %11240 = vmatprep.mubr.bf16.mxu0 0
      %11241 = vmatmul.mubr.bf16.gmra.mrb[0].mxu0 %v10782
      %v11242 = vpop.f32.mrb[0].mxu0
      %v11243 = vadd.f32 0.0, %v11242
      %v11244 = vpop.f32.mrb[0].mxu0
      %v11245 = vpop.f32.mrb[0].mxu0
      %v11246 = vadd.f32 0.0, %v11245
      %v11247 = vpop.f32.mrb[0].mxu0
      %11248 = vmatprep.mubr.bf16.mxu0 0
      %11249 = vmatmul.mubr.bf16.gmra.mrb[0].mxu0 %v10783
      %v11250 = vpop.f32.mrb[0].mxu0
      %v11251 = vadd.f32 0.0, %v11250
      %v11252 = vpop.f32.mrb[0].mxu0
      %v11253 = vpop.f32.mrb[0].mxu0
      %v11254 = vadd.f32 0.0, %v11253
      %v11255 = vpop.f32.mrb[0].mxu0
      %11256 = vmatprep.mubr.bf16.mxu0 0
      %11257 = vmatmul.mubr.bf16.gmra.mrb[0].mxu0 %v10784
      %v11258 = vpop.f32.mrb[0].mxu0
      %v11259 = vadd.f32 0.0, %v11258
      %v11260 = vpop.f32.mrb[0].mxu0
      %v11261 = vpop.f32.mrb[0].mxu0
      %v11262 = vadd.f32 0.0, %v11261
      %v11263 = vpop.f32.mrb[0].mxu0
      %11264 = vmatprep.mubr.bf16.mxu0 0
      %11265 = vmatmul.mubr.bf16.gmra.mrb[0].mxu0 %v10785
      %v11266 = vpop.f32.mrb[0].mxu0
      %v11267 = vadd.f32 0.0, %v11266
      %v11268 = vpop.f32.mrb[0].mxu0
      %v11269 = vpop.f32.mrb[0].mxu0
      %v11270 = vadd.f32 0.0, %v11269
      %v11271 = vpop.f32.mrb[0].mxu0
      %11272 = vmatprep.mubr.bf16.mxu0 0
      %11273 = vmatmul.mubr.bf16.gmra.mrb[0].mxu0 %v10786
      %v11274 = vpop.f32.mrb[0].mxu0
      %v11275 = vadd.f32 0.0, %v11274
      %v11276 = vpop.f32.mrb[0].mxu0
      %v11277 = vpop.f32.mrb[0].mxu0
      %v11278 = vadd.f32 0.0, %v11277
      %v11279 = vpop.f32.mrb[0].mxu0
      %11280 = vmatprep.mubr.bf16.mxu0 0
      %11281 = vmatmul.mubr.bf16.gmra.mrb[0].mxu0 %v10787
      %v11282 = vpop.f32.mrb[0].mxu0
      %v11283 = vadd.f32 0.0, %v11282
      %v11284 = vpop.f32.mrb[0].mxu0
      %v11285 = vpop.f32.mrb[0].mxu0
      %v11286 = vadd.f32 0.0, %v11285
      %v11287 = vpop.f32.mrb[0].mxu0
      %11288 = vmatprep.mubr.bf16.mxu0 0
      %11289 = vmatmul.mubr.bf16.gmra.mrb[0].mxu0 %v10788
      %v11290 = vpop.f32.mrb[0].mxu0
      %v11291 = vadd.f32 0.0, %v11290
      %v11292 = vpop.f32.mrb[0].mxu0
      %v11293 = vpop.f32.mrb[0].mxu0
      %v11294 = vadd.f32 0.0, %v11293
      %v11295 = vpop.f32.mrb[0].mxu0
      %11296 = vmatprep.mubr.bf16.mxu0 0
      %11297 = vmatmul.mubr.bf16.gmra.mrb[0].mxu0 %v10789
      %v11298 = vpop.f32.mrb[0].mxu0
      %v11299 = vadd.f32 0.0, %v11298
      %v11300 = vpop.f32.mrb[0].mxu0
      %v11301 = vpop.f32.mrb[0].mxu0
      %v11302 = vadd.f32 0.0, %v11301
      %v11303 = vpop.f32.mrb[0].mxu0
      %11304 = vmatprep.mubr.bf16.mxu0 0
      %11305 = vmatmul.mubr.bf16.gmra.mrb[0].mxu0 %v10790
      %v11306 = vpop.f32.mrb[0].mxu0
      %v11307 = vadd.f32 0.0, %v11306
      %v11308 = vpop.f32.mrb[0].mxu0
      %v11309 = vpop.f32.mrb[0].mxu0
      %v11310 = vadd.f32 0.0, %v11309
      %v11311 = vpop.f32.mrb[0].mxu0
      %11312 = vdwg.mxu0
      %v11313 = vadd.f32 %v11096, %v11219
      %v11314 = vadd.f32 %v11097, %v11222
      %v11315 = vadd.f32 %v11098, %v11227
      %v11316 = vadd.f32 %v11099, %v11230
      %v11317 = vadd.f32 %v11100, %v11235
      %v11318 = vadd.f32 %v11101, %v11238
      %v11319 = vadd.f32 %v11102, %v11243
      %v11320 = vadd.f32 %v11103, %v11246
      %v11321 = vadd.f32 %v11104, %v11251
      %v11322 = vadd.f32 %v11105, %v11254
      %v11323 = vadd.f32 %v11106, %v11259
      %v11324 = vadd.f32 %v11107, %v11262
      %v11325 = vadd.f32 %v11108, %v11267
      %v11326 = vadd.f32 %v11109, %v11270
      %v11327 = vadd.f32 %v11110, %v11275
      %v11328 = vadd.f32 %v11111, %v11278
      %v11329 = vadd.f32 %v11112, %v11283
      %v11330 = vadd.f32 %v11113, %v11286
      %v11331 = vadd.f32 %v11114, %v11291
      %v11332 = vadd.f32 %v11115, %v11294
      %v11333 = vadd.f32 %v11116, %v11299
      %v11334 = vadd.f32 %v11117, %v11302
      %v11335 = vadd.f32 %v11118, %v11307
      %v11336 = vadd.f32 %v11119, %v11310
      %v11337 = vld [vmem:[#allocation2 + $0x70] sm:$0xff]
      %v11338 = vld [vmem:[#allocation2 + $0x78] sm:$0xff]
      %v11339 = vld [vmem:[#allocation2 + $0x80] sm:$0xff]
      %v11340 = vld [vmem:[#allocation2 + $0x88] sm:$0xff]
      %v11341 = vld [vmem:[#allocation2 + $0x90] sm:$0xff]
      %v11342 = vld [vmem:[#allocation2 + $0x98] sm:$0xff]
      %v11343 = vld [vmem:[#allocation2 + $0xa0] sm:$0xff]
      %v11344 = vld [vmem:[#allocation2 + $0xa8] sm:$0xff]
      %v11345 = vld [vmem:[#allocation2 + $0xb0] sm:$0xff]
      %v11346 = vld [vmem:[#allocation2 + $0xb8] sm:$0xff]
      %v11347 = vld [vmem:[#allocation2 + $0xc0] sm:$0xff]
      %v11348 = vld [vmem:[#allocation2 + $0xc8] sm:$0xff]
      %v11349 = vld [vmem:[#allocation2 + $0xd0] sm:$0x1]
      %v11350 = vld [vmem:[%s8509] sm:$0xf]
      %v11351 = vld [vmem:[%s8509 + $0x4] sm:$0xf]
      %v11352 = vld [vmem:[%s8509 + $0x8] sm:$0xf]
      %v11353 = vld [vmem:[%s8509 + $0xc] sm:$0xf]
      %v11354 = vld [vmem:[%s8509 + $0x10] sm:$0xf]
      %v11355 = vld [vmem:[%s8509 + $0x14] sm:$0xf]
      %v11356 = vld [vmem:[%s8509 + $0x18] sm:$0xf]
      %v11357 = vld [vmem:[%s8509 + $0x1c] sm:$0xf]
      %v11358 = vld [vmem:[%s8509 + $0x20] sm:$0xf]
      %v11359 = vld [vmem:[%s8509 + $0x24] sm:$0xf]
      %v11360 = vld [vmem:[%s8509 + $0x28] sm:$0xf]
      %v11361 = vld [vmem:[%s8509 + $0x2c] sm:$0xf]
      %v11362 = vld [vmem:[%s8509 + $0x30] sm:$0xf]
      %v11363 = vld [vmem:[%s8509 + $0x34] sm:$0xf]
      %v11364 = vld [vmem:[%s8509 + $0x38] sm:$0xf]
      %v11365 = vld [vmem:[%s8509 + $0x3c] sm:$0xf]
      %v11367 = vshrl.u32 %v11337, 16
      %v11369 = vshll.u32 %v11337, 16
      %v11371 = vrot.slane %v11369, 1
      %v11372 = vor.u32 %v11367, %v11371
      %v11374 = vshll.u32 %v11338, 16
      %v11376 = vrot.slane %v11374, 1
      %v11377 = vsel %vm1016, %v11372, %v11376
      %v11378 = vshrl.u32 %v11338, 16
      %v11380 = vor.u32 %v11378, %v11376
      %v11382 = vshll.u32 %v11339, 16
      %v11384 = vrot.slane %v11382, 1
      %v11385 = vsel %vm1016, %v11380, %v11384
      %v11386 = vshrl.u32 %v11339, 16
      %v11388 = vor.u32 %v11386, %v11384
      %v11390 = vshll.u32 %v11340, 16
      %v11392 = vrot.slane %v11390, 1
      %v11393 = vsel %vm1016, %v11388, %v11392
      %v11394 = vshrl.u32 %v11340, 16
      %v11396 = vor.u32 %v11394, %v11392
      %v11398 = vshll.u32 %v11341, 16
      %v11400 = vrot.slane %v11398, 1
      %v11401 = vsel %vm1016, %v11396, %v11400
      %v11402 = vshrl.u32 %v11341, 16
      %v11404 = vor.u32 %v11402, %v11400
      %v11406 = vshll.u32 %v11342, 16
      %v11408 = vrot.slane %v11406, 1
      %v11409 = vsel %vm1016, %v11404, %v11408
      %v11410 = vshrl.u32 %v11342, 16
      %v11412 = vor.u32 %v11410, %v11408
      %v11414 = vshll.u32 %v11343, 16
      %v11416 = vrot.slane %v11414, 1
      %v11417 = vsel %vm1016, %v11412, %v11416
      %v11418 = vshrl.u32 %v11343, 16
      %v11420 = vor.u32 %v11418, %v11416
      %v11422 = vshll.u32 %v11344, 16
      %v11424 = vrot.slane %v11422, 1
      %v11425 = vsel %vm1016, %v11420, %v11424
      %v11426 = vshrl.u32 %v11344, 16
      %v11428 = vor.u32 %v11426, %v11424
      %v11430 = vshll.u32 %v11345, 16
      %v11432 = vrot.slane %v11430, 1
      %v11433 = vsel %vm1016, %v11428, %v11432
      %v11434 = vshrl.u32 %v11345, 16
      %v11436 = vor.u32 %v11434, %v11432
      %v11438 = vshll.u32 %v11346, 16
      %v11440 = vrot.slane %v11438, 1
      %v11441 = vsel %vm1016, %v11436, %v11440
      %v11442 = vshrl.u32 %v11346, 16
      %v11444 = vor.u32 %v11442, %v11440
      %v11446 = vshll.u32 %v11347, 16
      %v11448 = vrot.slane %v11446, 1
      %v11449 = vsel %vm1016, %v11444, %v11448
      %v11450 = vshrl.u32 %v11347, 16
      %v11452 = vor.u32 %v11450, %v11448
      %v11454 = vshll.u32 %v11348, 16
      %v11456 = vrot.slane %v11454, 1
      %v11457 = vsel %vm1016, %v11452, %v11456
      %v11458 = vshrl.u32 %v11348, 16
      %v11460 = vor.u32 %v11458, %v11456
      %v11462 = vshll.u32 %v11349, 16
      %v11464 = vrot.slane %v11462, 1
      %v11465 = vsel %vm1016, %v11460, %v11464
      %v11494 = vunpack.c.l.b16 %v11350
      %v11495 = vunpack.c.l.b16 %v11351
      %v11496 = vunpack.c.l.b16 %v11352
      %v11497 = vunpack.c.l.b16 %v11353
      %v11498 = vunpack.c.l.b16 %v11354
      %v11499 = vunpack.c.l.b16 %v11355
      %v11500 = vunpack.c.l.b16 %v11356
      %v11501 = vunpack.c.l.b16 %v11357
      %v11502 = vunpack.c.l.b16 %v11358
      %v11503 = vunpack.c.l.b16 %v11359
      %v11504 = vunpack.c.l.b16 %v11360
      %v11505 = vunpack.c.l.b16 %v11361
      %v11506 = vunpack.c.l.b16 %v11362
      %v11507 = vunpack.c.l.b16 %v11363
      %v11508 = vunpack.c.l.b16 %v11364
      %v11509 = vunpack.c.l.b16 %v11365
      %v11510 = vpack.c.b16 %v11495, %v11494
      %v11511 = vpack.c.b16 %v11497, %v11496
      %v11512 = vpack.c.b16 %v11499, %v11498
      %v11513 = vpack.c.b16 %v11501, %v11500
      %v11514 = vpack.c.b16 %v11503, %v11502
      %v11515 = vpack.c.b16 %v11505, %v11504
      %v11516 = vpack.c.b16 %v11507, %v11506
      %v11517 = vpack.c.b16 %v11509, %v11508
      %11526 = vmatprep.subr.bf16.mxu0 0
      %11527 = vmatpush1.bf16.msra.mxu0 %v11510
      %11528 = vmatprep.subr.bf16.mxu0 0
      %11529 = vmatpush1.bf16.msra.mxu0 %v11511
      %11530 = vmatprep.subr.bf16.mxu0 0
      %11531 = vmatpush1.bf16.msra.mxu0 %v11512
      %11532 = vmatprep.subr.bf16.mxu0 0
      %11533 = vmatpush1.bf16.msra.mxu0 %v11513
      %11534 = vmatprep.subr.bf16.mxu0 0
      %11535 = vmatpush1.bf16.msra.mxu0 %v11514
      %11536 = vmatprep.subr.bf16.mxu0 0
      %11537 = vmatpush1.bf16.msra.mxu0 %v11515
      %11538 = vmatprep.subr.bf16.mxu0 0
      %11539 = vmatpush1.bf16.msra.mxu0 %v11516
      %11540 = vmatprep.subr.bf16.mxu0 0
      %11541 = vmatpush1.bf16.msra.mxu0 %v11517
      %11542 = vmatprep.subr.bf16.mxu0 0
      %11543 = vmatpush1.bf16.msra.mxu0 0
      %11544 = vmatprep.subr.bf16.mxu0 0
      %11545 = vmatpush1.bf16.msra.mxu0 0
      %11546 = vmatprep.subr.bf16.mxu0 0
      %11547 = vmatpush1.bf16.msra.mxu0 0
      %11548 = vmatprep.subr.bf16.mxu0 0
      %11549 = vmatpush1.bf16.msra.mxu0 0
      %11550 = vmatprep.subr.bf16.mxu0 0
      %11551 = vmatpush1.bf16.msra.mxu0 0
      %11552 = vmatprep.subr.bf16.mxu0 0
      %11553 = vmatpush1.bf16.msra.mxu0 0
      %11554 = vmatprep.subr.bf16.mxu0 0
      %11555 = vmatpush1.bf16.msra.mxu0 0
      %11556 = vmatprep.subr.bf16.mxu0 0
      %11557 = vmatpush1.bf16.msra.mxu0 0
      %11558 = vmatprep.mubr.bf16.mxu0 0
      %11559 = vmatmul.mubr.bf16.gmra.mrb[0].mxu0 %v11377
      %v11560 = vpop.f32.mrb[0].mxu0
      %v11561 = vadd.f32 0.0, %v11560
      %v11562 = vpop.f32.mrb[0].mxu0
      %v11563 = vpop.f32.mrb[0].mxu0
      %v11564 = vadd.f32 0.0, %v11563
      %v11565 = vpop.f32.mrb[0].mxu0
      %11566 = vmatprep.mubr.bf16.mxu0 0
      %11567 = vmatmul.mubr.bf16.gmra.mrb[0].mxu0 %v11385
      %v11568 = vpop.f32.mrb[0].mxu0
      %v11569 = vadd.f32 0.0, %v11568
      %v11570 = vpop.f32.mrb[0].mxu0
      %v11571 = vpop.f32.mrb[0].mxu0
      %v11572 = vadd.f32 0.0, %v11571
      %v11573 = vpop.f32.mrb[0].mxu0
      %11574 = vmatprep.mubr.bf16.mxu0 0
      %11575 = vmatmul.mubr.bf16.gmra.mrb[0].mxu0 %v11393
      %v11576 = vpop.f32.mrb[0].mxu0
      %v11577 = vadd.f32 0.0, %v11576
      %v11578 = vpop.f32.mrb[0].mxu0
      %v11579 = vpop.f32.mrb[0].mxu0
      %v11580 = vadd.f32 0.0, %v11579
      %v11581 = vpop.f32.mrb[0].mxu0
      %11582 = vmatprep.mubr.bf16.mxu0 0
      %11583 = vmatmul.mubr.bf16.gmra.mrb[0].mxu0 %v11401
      %v11584 = vpop.f32.mrb[0].mxu0
      %v11585 = vadd.f32 0.0, %v11584
      %v11586 = vpop.f32.mrb[0].mxu0
      %v11587 = vpop.f32.mrb[0].mxu0
      %v11588 = vadd.f32 0.0, %v11587
      %v11589 = vpop.f32.mrb[0].mxu0
      %11590 = vmatprep.mubr.bf16.mxu0 0
      %11591 = vmatmul.mubr.bf16.gmra.mrb[0].mxu0 %v11409
      %v11592 = vpop.f32.mrb[0].mxu0
      %v11593 = vadd.f32 0.0, %v11592
      %v11594 = vpop.f32.mrb[0].mxu0
      %v11595 = vpop.f32.mrb[0].mxu0
      %v11596 = vadd.f32 0.0, %v11595
      %v11597 = vpop.f32.mrb[0].mxu0
      %11598 = vmatprep.mubr.bf16.mxu0 0
      %11599 = vmatmul.mubr.bf16.gmra.mrb[0].mxu0 %v11417
      %v11600 = vpop.f32.mrb[0].mxu0
      %v11601 = vadd.f32 0.0, %v11600
      %v11602 = vpop.f32.mrb[0].mxu0
      %v11603 = vpop.f32.mrb[0].mxu0
      %v11604 = vadd.f32 0.0, %v11603
      %v11605 = vpop.f32.mrb[0].mxu0
      %11606 = vmatprep.mubr.bf16.mxu0 0
      %11607 = vmatmul.mubr.bf16.gmra.mrb[0].mxu0 %v11425
      %v11608 = vpop.f32.mrb[0].mxu0
      %v11609 = vadd.f32 0.0, %v11608
      %v11610 = vpop.f32.mrb[0].mxu0
      %v11611 = vpop.f32.mrb[0].mxu0
      %v11612 = vadd.f32 0.0, %v11611
      %v11613 = vpop.f32.mrb[0].mxu0
      %11614 = vmatprep.mubr.bf16.mxu0 0
      %11615 = vmatmul.mubr.bf16.gmra.mrb[0].mxu0 %v11433
      %v11616 = vpop.f32.mrb[0].mxu0
      %v11617 = vadd.f32 0.0, %v11616
      %v11618 = vpop.f32.mrb[0].mxu0
      %v11619 = vpop.f32.mrb[0].mxu0
      %v11620 = vadd.f32 0.0, %v11619
      %v11621 = vpop.f32.mrb[0].mxu0
      %11622 = vmatprep.mubr.bf16.mxu0 0
      %11623 = vmatmul.mubr.bf16.gmra.mrb[0].mxu0 %v11441
      %v11624 = vpop.f32.mrb[0].mxu0
      %v11625 = vadd.f32 0.0, %v11624
      %v11626 = vpop.f32.mrb[0].mxu0
      %v11627 = vpop.f32.mrb[0].mxu0
      %v11628 = vadd.f32 0.0, %v11627
      %v11629 = vpop.f32.mrb[0].mxu0
      %11630 = vmatprep.mubr.bf16.mxu0 0
      %11631 = vmatmul.mubr.bf16.gmra.mrb[0].mxu0 %v11449
      %v11632 = vpop.f32.mrb[0].mxu0
      %v11633 = vadd.f32 0.0, %v11632
      %v11634 = vpop.f32.mrb[0].mxu0
      %v11635 = vpop.f32.mrb[0].mxu0
      %v11636 = vadd.f32 0.0, %v11635
      %v11637 = vpop.f32.mrb[0].mxu0
      %11638 = vmatprep.mubr.bf16.mxu0 0
      %11639 = vmatmul.mubr.bf16.gmra.mrb[0].mxu0 %v11457
      %v11640 = vpop.f32.mrb[0].mxu0
      %v11641 = vadd.f32 0.0, %v11640
      %v11642 = vpop.f32.mrb[0].mxu0
      %v11643 = vpop.f32.mrb[0].mxu0
      %v11644 = vadd.f32 0.0, %v11643
      %v11645 = vpop.f32.mrb[0].mxu0
      %11646 = vmatprep.mubr.bf16.mxu0 0
      %11647 = vmatmul.mubr.bf16.gmra.mrb[0].mxu0 %v11465
      %v11648 = vpop.f32.mrb[0].mxu0
      %v11649 = vadd.f32 0.0, %v11648
      %v11650 = vpop.f32.mrb[0].mxu0
      %v11651 = vpop.f32.mrb[0].mxu0
      %v11652 = vadd.f32 0.0, %v11651
      %v11653 = vpop.f32.mrb[0].mxu0
      %11654 = vdwg.mxu0
      %v11655 = vadd.f32 %v11313, %v11561
      %v11656 = vadd.f32 %v11314, %v11564
      %v11657 = vadd.f32 %v11315, %v11569
      %v11658 = vadd.f32 %v11316, %v11572
      %v11659 = vadd.f32 %v11317, %v11577
      %v11660 = vadd.f32 %v11318, %v11580
      %v11661 = vadd.f32 %v11319, %v11585
      %v11662 = vadd.f32 %v11320, %v11588
      %v11663 = vadd.f32 %v11321, %v11593
      %v11664 = vadd.f32 %v11322, %v11596
      %v11665 = vadd.f32 %v11323, %v11601
      %v11666 = vadd.f32 %v11324, %v11604
      %v11667 = vadd.f32 %v11325, %v11609
      %v11668 = vadd.f32 %v11326, %v11612
      %v11669 = vadd.f32 %v11327, %v11617
      %v11670 = vadd.f32 %v11328, %v11620
      %v11671 = vadd.f32 %v11329, %v11625
      %v11672 = vadd.f32 %v11330, %v11628
      %v11673 = vadd.f32 %v11331, %v11633
      %v11674 = vadd.f32 %v11332, %v11636
      %v11675 = vadd.f32 %v11333, %v11641
      %v11676 = vadd.f32 %v11334, %v11644
      %v11677 = vadd.f32 %v11335, %v11649
      %v11678 = vadd.f32 %v11336, %v11652
      %v11679 = vld [vmem:[#allocation2 + $0x78] sm:$0xf8]
      %v11680 = vld [vmem:[#allocation2 + $0x80] sm:$0xff]
      %v11681 = vld [vmem:[#allocation2 + $0x88] sm:$0xff]
      %v11682 = vld [vmem:[#allocation2 + $0x90] sm:$0xff]
      %v11683 = vld [vmem:[#allocation2 + $0x98] sm:$0xff]
      %v11684 = vld [vmem:[#allocation2 + $0xa0] sm:$0xff]
      %v11685 = vld [vmem:[#allocation2 + $0xa8] sm:$0xff]
      %v11686 = vld [vmem:[#allocation2 + $0xb0] sm:$0xff]
      %v11687 = vld [vmem:[#allocation2 + $0xb8] sm:$0xff]
      %v11688 = vld [vmem:[#allocation2 + $0xc0] sm:$0xff]
      %v11689 = vld [vmem:[#allocation2 + $0xc8] sm:$0xff]
      %v11690 = vld [vmem:[#allocation2 + $0xd0] sm:$0xff]
      %v11691 = vld [vmem:[#allocation2 + $0xd8] sm:$0xf]
      %v11692 = vld [vmem:[%s8852] sm:$0xf]
      %v11693 = vld [vmem:[%s8852 + $0x4] sm:$0xf]
      %v11694 = vld [vmem:[%s8852 + $0x8] sm:$0xf]
      %v11695 = vld [vmem:[%s8852 + $0xc] sm:$0xf]
      %v11696 = vld [vmem:[%s8852 + $0x10] sm:$0xf]
      %v11697 = vld [vmem:[%s8852 + $0x14] sm:$0xf]
      %v11698 = vld [vmem:[%s8852 + $0x18] sm:$0xf]
      %v11699 = vld [vmem:[%s8852 + $0x1c] sm:$0xf]
      %v11700 = vld [vmem:[%s8852 + $0x20] sm:$0xf]
      %v11701 = vld [vmem:[%s8852 + $0x24] sm:$0xf]
      %v11702 = vld [vmem:[%s8852 + $0x28] sm:$0xf]
      %v11703 = vld [vmem:[%s8852 + $0x2c] sm:$0xf]
      %v11704 = vld [vmem:[%s8852 + $0x30] sm:$0xf]
      %v11705 = vld [vmem:[%s8852 + $0x34] sm:$0xf]
      %v11706 = vld [vmem:[%s8852 + $0x38] sm:$0xf]
      %v11707 = vld [vmem:[%s8852 + $0x3c] sm:$0xf]
      %v11709 = vshrl.u32 %v11679, 16
      %v11711 = vrot.slane %v11709, 3
      %v11712 = vshll.u32 %v11679, 16
      %v11714 = vrot.slane %v11712, 4
      %v11715 = vor.u32 %v11711, %v11714
      %v11717 = vshrl.u32 %v11680, 16
      %v11719 = vrot.slane %v11717, 3
      %v11720 = vshll.u32 %v11680, 16
      %v11722 = vrot.slane %v11720, 4
      %v11723 = vor.u32 %v11719, %v11722
      %v11724 = vsel %vm605, %v11715, %v11723
      %v11726 = vshrl.u32 %v11681, 16
      %v11728 = vrot.slane %v11726, 3
      %v11729 = vshll.u32 %v11681, 16
      %v11731 = vrot.slane %v11729, 4
      %v11732 = vor.u32 %v11728, %v11731
      %v11733 = vsel %vm605, %v11723, %v11732
      %v11735 = vshrl.u32 %v11682, 16
      %v11737 = vrot.slane %v11735, 3
      %v11738 = vshll.u32 %v11682, 16
      %v11740 = vrot.slane %v11738, 4
      %v11741 = vor.u32 %v11737, %v11740
      %v11742 = vsel %vm605, %v11732, %v11741
      %v11744 = vshrl.u32 %v11683, 16
      %v11746 = vrot.slane %v11744, 3
      %v11747 = vshll.u32 %v11683, 16
      %v11749 = vrot.slane %v11747, 4
      %v11750 = vor.u32 %v11746, %v11749
      %v11751 = vsel %vm605, %v11741, %v11750
      %v11753 = vshrl.u32 %v11684, 16
      %v11755 = vrot.slane %v11753, 3
      %v11756 = vshll.u32 %v11684, 16
      %v11758 = vrot.slane %v11756, 4
      %v11759 = vor.u32 %v11755, %v11758
      %v11760 = vsel %vm605, %v11750, %v11759
      %v11762 = vshrl.u32 %v11685, 16
      %v11764 = vrot.slane %v11762, 3
      %v11765 = vshll.u32 %v11685, 16
      %v11767 = vrot.slane %v11765, 4
      %v11768 = vor.u32 %v11764, %v11767
      %v11769 = vsel %vm605, %v11759, %v11768
      %v11771 = vshrl.u32 %v11686, 16
      %v11773 = vrot.slane %v11771, 3
      %v11774 = vshll.u32 %v11686, 16
      %v11776 = vrot.slane %v11774, 4
      %v11777 = vor.u32 %v11773, %v11776
      %v11778 = vsel %vm605, %v11768, %v11777
      %v11780 = vshrl.u32 %v11687, 16
      %v11782 = vrot.slane %v11780, 3
      %v11783 = vshll.u32 %v11687, 16
      %v11785 = vrot.slane %v11783, 4
      %v11786 = vor.u32 %v11782, %v11785
      %v11787 = vsel %vm605, %v11777, %v11786
      %v11789 = vshrl.u32 %v11688, 16
      %v11791 = vrot.slane %v11789, 3
      %v11792 = vshll.u32 %v11688, 16
      %v11794 = vrot.slane %v11792, 4
      %v11795 = vor.u32 %v11791, %v11794
      %v11796 = vsel %vm605, %v11786, %v11795
      %v11798 = vshrl.u32 %v11689, 16
      %v11800 = vrot.slane %v11798, 3
      %v11801 = vshll.u32 %v11689, 16
      %v11803 = vrot.slane %v11801, 4
      %v11804 = vor.u32 %v11800, %v11803
      %v11805 = vsel %vm605, %v11795, %v11804
      %v11807 = vshrl.u32 %v11690, 16
      %v11809 = vrot.slane %v11807, 3
      %v11810 = vshll.u32 %v11690, 16
      %v11812 = vrot.slane %v11810, 4
      %v11813 = vor.u32 %v11809, %v11812
      %v11814 = vsel %vm605, %v11804, %v11813
      %v11816 = vshrl.u32 %v11691, 16
      %v11818 = vrot.slane %v11816, 3
      %v11819 = vshll.u32 %v11691, 16
      %v11821 = vrot.slane %v11819, 4
      %v11822 = vor.u32 %v11818, %v11821
      %v11823 = vsel %vm605, %v11813, %v11822
      %v11852 = vunpack.c.l.b16 %v11692
      %v11853 = vunpack.c.l.b16 %v11693
      %v11854 = vunpack.c.l.b16 %v11694
      %v11855 = vunpack.c.l.b16 %v11695
      %v11856 = vunpack.c.l.b16 %v11696
      %v11857 = vunpack.c.l.b16 %v11697
      %v11858 = vunpack.c.l.b16 %v11698
      %v11859 = vunpack.c.l.b16 %v11699
      %v11860 = vunpack.c.l.b16 %v11700
      %v11861 = vunpack.c.l.b16 %v11701
      %v11862 = vunpack.c.l.b16 %v11702
      %v11863 = vunpack.c.l.b16 %v11703
      %v11864 = vunpack.c.l.b16 %v11704
      %v11865 = vunpack.c.l.b16 %v11705
      %v11866 = vunpack.c.l.b16 %v11706
      %v11867 = vunpack.c.l.b16 %v11707
      %v11868 = vpack.c.b16 %v11853, %v11852
      %v11869 = vpack.c.b16 %v11855, %v11854
      %v11870 = vpack.c.b16 %v11857, %v11856
      %v11871 = vpack.c.b16 %v11859, %v11858
      %v11872 = vpack.c.b16 %v11861, %v11860
      %v11873 = vpack.c.b16 %v11863, %v11862
      %v11874 = vpack.c.b16 %v11865, %v11864
      %v11875 = vpack.c.b16 %v11867, %v11866
      %11884 = vmatprep.subr.bf16.mxu0 0
      %11885 = vmatpush1.bf16.msra.mxu0 %v11868
      %11886 = vmatprep.subr.bf16.mxu0 0
      %11887 = vmatpush1.bf16.msra.mxu0 %v11869
      %11888 = vmatprep.subr.bf16.mxu0 0
      %11889 = vmatpush1.bf16.msra.mxu0 %v11870
      %11890 = vmatprep.subr.bf16.mxu0 0
      %11891 = vmatpush1.bf16.msra.mxu0 %v11871
      %11892 = vmatprep.subr.bf16.mxu0 0
      %11893 = vmatpush1.bf16.msra.mxu0 %v11872
      %11894 = vmatprep.subr.bf16.mxu0 0
      %11895 = vmatpush1.bf16.msra.mxu0 %v11873
      %11896 = vmatprep.subr.bf16.mxu0 0
      %11897 = vmatpush1.bf16.msra.mxu0 %v11874
      %11898 = vmatprep.subr.bf16.mxu0 0
      %11899 = vmatpush1.bf16.msra.mxu0 %v11875
      %11900 = vmatprep.subr.bf16.mxu0 0
      %11901 = vmatpush1.bf16.msra.mxu0 0
      %11902 = vmatprep.subr.bf16.mxu0 0
      %11903 = vmatpush1.bf16.msra.mxu0 0
      %11904 = vmatprep.subr.bf16.mxu0 0
      %11905 = vmatpush1.bf16.msra.mxu0 0
      %11906 = vmatprep.subr.bf16.mxu0 0
      %11907 = vmatpush1.bf16.msra.mxu0 0
      %11908 = vmatprep.subr.bf16.mxu0 0
      %11909 = vmatpush1.bf16.msra.mxu0 0
      %11910 = vmatprep.subr.bf16.mxu0 0
      %11911 = vmatpush1.bf16.msra.mxu0 0
      %11912 = vmatprep.subr.bf16.mxu0 0
      %11913 = vmatpush1.bf16.msra.mxu0 0
      %11914 = vmatprep.subr.bf16.mxu0 0
      %11915 = vmatpush1.bf16.msra.mxu0 0
      %11916 = vmatprep.mubr.bf16.mxu0 0
      %11917 = vmatmul.mubr.bf16.gmra.mrb[0].mxu0 %v11724
      %v11918 = vpop.f32.mrb[0].mxu0
      %v11919 = vadd.f32 0.0, %v11918
      %v11920 = vpop.f32.mrb[0].mxu0
      %v11921 = vpop.f32.mrb[0].mxu0
      %v11922 = vadd.f32 0.0, %v11921
      %v11923 = vpop.f32.mrb[0].mxu0
      %11924 = vmatprep.mubr.bf16.mxu0 0
      %11925 = vmatmul.mubr.bf16.gmra.mrb[0].mxu0 %v11733
      %v11926 = vpop.f32.mrb[0].mxu0
      %v11927 = vadd.f32 0.0, %v11926
      %v11928 = vpop.f32.mrb[0].mxu0
      %v11929 = vpop.f32.mrb[0].mxu0
      %v11930 = vadd.f32 0.0, %v11929
      %v11931 = vpop.f32.mrb[0].mxu0
      %11932 = vmatprep.mubr.bf16.mxu0 0
      %11933 = vmatmul.mubr.bf16.gmra.mrb[0].mxu0 %v11742
      %v11934 = vpop.f32.mrb[0].mxu0
      %v11935 = vadd.f32 0.0, %v11934
      %v11936 = vpop.f32.mrb[0].mxu0
      %v11937 = vpop.f32.mrb[0].mxu0
      %v11938 = vadd.f32 0.0, %v11937
      %v11939 = vpop.f32.mrb[0].mxu0
      %11940 = vmatprep.mubr.bf16.mxu0 0
      %11941 = vmatmul.mubr.bf16.gmra.mrb[0].mxu0 %v11751
      %v11942 = vpop.f32.mrb[0].mxu0
      %v11943 = vadd.f32 0.0, %v11942
      %v11944 = vpop.f32.mrb[0].mxu0
      %v11945 = vpop.f32.mrb[0].mxu0
      %v11946 = vadd.f32 0.0, %v11945
      %v11947 = vpop.f32.mrb[0].mxu0
      %11948 = vmatprep.mubr.bf16.mxu0 0
      %11949 = vmatmul.mubr.bf16.gmra.mrb[0].mxu0 %v11760
      %v11950 = vpop.f32.mrb[0].mxu0
      %v11951 = vadd.f32 0.0, %v11950
      %v11952 = vpop.f32.mrb[0].mxu0
      %v11953 = vpop.f32.mrb[0].mxu0
      %v11954 = vadd.f32 0.0, %v11953
      %v11955 = vpop.f32.mrb[0].mxu0
      %11956 = vmatprep.mubr.bf16.mxu0 0
      %11957 = vmatmul.mubr.bf16.gmra.mrb[0].mxu0 %v11769
      %v11958 = vpop.f32.mrb[0].mxu0
      %v11959 = vadd.f32 0.0, %v11958
      %v11960 = vpop.f32.mrb[0].mxu0
      %v11961 = vpop.f32.mrb[0].mxu0
      %v11962 = vadd.f32 0.0, %v11961
      %v11963 = vpop.f32.mrb[0].mxu0
      %11964 = vmatprep.mubr.bf16.mxu0 0
      %11965 = vmatmul.mubr.bf16.gmra.mrb[0].mxu0 %v11778
      %v11966 = vpop.f32.mrb[0].mxu0
      %v11967 = vadd.f32 0.0, %v11966
      %v11968 = vpop.f32.mrb[0].mxu0
      %v11969 = vpop.f32.mrb[0].mxu0
      %v11970 = vadd.f32 0.0, %v11969
      %v11971 = vpop.f32.mrb[0].mxu0
      %11972 = vmatprep.mubr.bf16.mxu0 0
      %11973 = vmatmul.mubr.bf16.gmra.mrb[0].mxu0 %v11787
      %v11974 = vpop.f32.mrb[0].mxu0
      %v11975 = vadd.f32 0.0, %v11974
      %v11976 = vpop.f32.mrb[0].mxu0
      %v11977 = vpop.f32.mrb[0].mxu0
      %v11978 = vadd.f32 0.0, %v11977
      %v11979 = vpop.f32.mrb[0].mxu0
      %11980 = vmatprep.mubr.bf16.mxu0 0
      %11981 = vmatmul.mubr.bf16.gmra.mrb[0].mxu0 %v11796
      %v11982 = vpop.f32.mrb[0].mxu0
      %v11983 = vadd.f32 0.0, %v11982
      %v11984 = vpop.f32.mrb[0].mxu0
      %v11985 = vpop.f32.mrb[0].mxu0
      %v11986 = vadd.f32 0.0, %v11985
      %v11987 = vpop.f32.mrb[0].mxu0
      %11988 = vmatprep.mubr.bf16.mxu0 0
      %11989 = vmatmul.mubr.bf16.gmra.mrb[0].mxu0 %v11805
      %v11990 = vpop.f32.mrb[0].mxu0
      %v11991 = vadd.f32 0.0, %v11990
      %v11992 = vpop.f32.mrb[0].mxu0
      %v11993 = vpop.f32.mrb[0].mxu0
      %v11994 = vadd.f32 0.0, %v11993
      %v11995 = vpop.f32.mrb[0].mxu0
      %11996 = vmatprep.mubr.bf16.mxu0 0
      %11997 = vmatmul.mubr.bf16.gmra.mrb[0].mxu0 %v11814
      %v11998 = vpop.f32.mrb[0].mxu0
      %v11999 = vadd.f32 0.0, %v11998
      %v12000 = vpop.f32.mrb[0].mxu0
      %v12001 = vpop.f32.mrb[0].mxu0
      %v12002 = vadd.f32 0.0, %v12001
      %v12003 = vpop.f32.mrb[0].mxu0
      %12004 = vmatprep.mubr.bf16.mxu0 0
      %12005 = vmatmul.mubr.bf16.gmra.mrb[0].mxu0 %v11823
      %v12006 = vpop.f32.mrb[0].mxu0
      %v12007 = vadd.f32 0.0, %v12006
      %v12008 = vpop.f32.mrb[0].mxu0
      %v12009 = vpop.f32.mrb[0].mxu0
      %v12010 = vadd.f32 0.0, %v12009
      %v12011 = vpop.f32.mrb[0].mxu0
      %12012 = vdwg.mxu0
      %v12013 = vadd.f32 %v11655, %v11919
      %v12014 = vadd.f32 %v11656, %v11922
      %v12015 = vadd.f32 %v11657, %v11927
      %v12016 = vadd.f32 %v11658, %v11930
      %v12017 = vadd.f32 %v11659, %v11935
      %v12018 = vadd.f32 %v11660, %v11938
      %v12019 = vadd.f32 %v11661, %v11943
      %v12020 = vadd.f32 %v11662, %v11946
      %v12021 = vadd.f32 %v11663, %v11951
      %v12022 = vadd.f32 %v11664, %v11954
      %v12023 = vadd.f32 %v11665, %v11959
      %v12024 = vadd.f32 %v11666, %v11962
      %v12025 = vadd.f32 %v11667, %v11967
      %v12026 = vadd.f32 %v11668, %v11970
      %v12027 = vadd.f32 %v11669, %v11975
      %v12028 = vadd.f32 %v11670, %v11978
      %v12029 = vadd.f32 %v11671, %v11983
      %v12030 = vadd.f32 %v11672, %v11986
      %v12031 = vadd.f32 %v11673, %v11991
      %v12032 = vadd.f32 %v11674, %v11994
      %v12033 = vadd.f32 %v11675, %v11999
      %v12034 = vadd.f32 %v11676, %v12002
      %v12035 = vadd.f32 %v11677, %v12007
      %v12036 = vadd.f32 %v11678, %v12010
      %v12037 = vld [vmem:[#allocation2 + $0x78] sm:$0xf0]
      %v12038 = vld [vmem:[%s9199] sm:$0xf]
      %v12039 = vld [vmem:[%s9199 + $0x4] sm:$0xf]
      %v12040 = vld [vmem:[%s9199 + $0x8] sm:$0xf]
      %v12041 = vld [vmem:[%s9199 + $0xc] sm:$0xf]
      %v12042 = vld [vmem:[%s9199 + $0x10] sm:$0xf]
      %v12043 = vld [vmem:[%s9199 + $0x14] sm:$0xf]
      %v12044 = vld [vmem:[%s9199 + $0x18] sm:$0xf]
      %v12045 = vld [vmem:[%s9199 + $0x1c] sm:$0xf]
      %v12046 = vld [vmem:[%s9199 + $0x20] sm:$0xf]
      %v12047 = vld [vmem:[%s9199 + $0x24] sm:$0xf]
      %v12048 = vld [vmem:[%s9199 + $0x28] sm:$0xf]
      %v12049 = vld [vmem:[%s9199 + $0x2c] sm:$0xf]
      %v12050 = vld [vmem:[%s9199 + $0x30] sm:$0xf]
      %v12051 = vld [vmem:[%s9199 + $0x34] sm:$0xf]
      %v12052 = vld [vmem:[%s9199 + $0x38] sm:$0xf]
      %v12053 = vld [vmem:[%s9199 + $0x3c] sm:$0xf]
      %v12067 = vrot.slane %v12037, 4
      %v12068 = vrot.slane %v11680, 4
      %v12069 = vsel %vm7121, %v12067, %v12068
      %v12070 = vrot.slane %v11681, 4
      %v12071 = vsel %vm7121, %v12068, %v12070
      %v12072 = vrot.slane %v11682, 4
      %v12073 = vsel %vm7121, %v12070, %v12072
      %v12074 = vrot.slane %v11683, 4
      %v12075 = vsel %vm7121, %v12072, %v12074
      %v12076 = vrot.slane %v11684, 4
      %v12077 = vsel %vm7121, %v12074, %v12076
      %v12078 = vrot.slane %v11685, 4
      %v12079 = vsel %vm7121, %v12076, %v12078
      %v12080 = vrot.slane %v11686, 4
      %v12081 = vsel %vm7121, %v12078, %v12080
      %v12082 = vrot.slane %v11687, 4
      %v12083 = vsel %vm7121, %v12080, %v12082
      %v12084 = vrot.slane %v11688, 4
      %v12085 = vsel %vm7121, %v12082, %v12084
      %v12086 = vrot.slane %v11689, 4
      %v12087 = vsel %vm7121, %v12084, %v12086
      %v12088 = vrot.slane %v11690, 4
      %v12089 = vsel %vm7121, %v12086, %v12088
      %v12090 = vrot.slane %v11691, 4
      %v12091 = vsel %vm7121, %v12088, %v12090
      %v12120 = vunpack.c.l.b16 %v12038
      %v12121 = vunpack.c.l.b16 %v12039
      %v12122 = vunpack.c.l.b16 %v12040
      %v12123 = vunpack.c.l.b16 %v12041
      %v12124 = vunpack.c.l.b16 %v12042
      %v12125 = vunpack.c.l.b16 %v12043
      %v12126 = vunpack.c.l.b16 %v12044
      %v12127 = vunpack.c.l.b16 %v12045
      %v12128 = vunpack.c.l.b16 %v12046
      %v12129 = vunpack.c.l.b16 %v12047
      %v12130 = vunpack.c.l.b16 %v12048
      %v12131 = vunpack.c.l.b16 %v12049
      %v12132 = vunpack.c.l.b16 %v12050
      %v12133 = vunpack.c.l.b16 %v12051
      %v12134 = vunpack.c.l.b16 %v12052
      %v12135 = vunpack.c.l.b16 %v12053
      %v12136 = vpack.c.b16 %v12121, %v12120
      %v12137 = vpack.c.b16 %v12123, %v12122
      %v12138 = vpack.c.b16 %v12125, %v12124
      %v12139 = vpack.c.b16 %v12127, %v12126
      %v12140 = vpack.c.b16 %v12129, %v12128
      %v12141 = vpack.c.b16 %v12131, %v12130
      %v12142 = vpack.c.b16 %v12133, %v12132
      %v12143 = vpack.c.b16 %v12135, %v12134
      %12152 = vmatprep.subr.bf16.mxu0 0
      %12153 = vmatpush1.bf16.msra.mxu0 %v12136
      %12154 = vmatprep.subr.bf16.mxu0 0
      %12155 = vmatpush1.bf16.msra.mxu0 %v12137
      %12156 = vmatprep.subr.bf16.mxu0 0
      %12157 = vmatpush1.bf16.msra.mxu0 %v12138
      %12158 = vmatprep.subr.bf16.mxu0 0
      %12159 = vmatpush1.bf16.msra.mxu0 %v12139
      %12160 = vmatprep.subr.bf16.mxu0 0
      %12161 = vmatpush1.bf16.msra.mxu0 %v12140
      %12162 = vmatprep.subr.bf16.mxu0 0
      %12163 = vmatpush1.bf16.msra.mxu0 %v12141
      %12164 = vmatprep.subr.bf16.mxu0 0
      %12165 = vmatpush1.bf16.msra.mxu0 %v12142
      %12166 = vmatprep.subr.bf16.mxu0 0
      %12167 = vmatpush1.bf16.msra.mxu0 %v12143
      %12168 = vmatprep.subr.bf16.mxu0 0
      %12169 = vmatpush1.bf16.msra.mxu0 0
      %12170 = vmatprep.subr.bf16.mxu0 0
      %12171 = vmatpush1.bf16.msra.mxu0 0
      %12172 = vmatprep.subr.bf16.mxu0 0
      %12173 = vmatpush1.bf16.msra.mxu0 0
      %12174 = vmatprep.subr.bf16.mxu0 0
      %12175 = vmatpush1.bf16.msra.mxu0 0
      %12176 = vmatprep.subr.bf16.mxu0 0
      %12177 = vmatpush1.bf16.msra.mxu0 0
      %12178 = vmatprep.subr.bf16.mxu0 0
      %12179 = vmatpush1.bf16.msra.mxu0 0
      %12180 = vmatprep.subr.bf16.mxu0 0
      %12181 = vmatpush1.bf16.msra.mxu0 0
      %12182 = vmatprep.subr.bf16.mxu0 0
      %12183 = vmatpush1.bf16.msra.mxu0 0
      %12184 = vmatprep.mubr.bf16.mxu0 0
      %12185 = vmatmul.mubr.bf16.gmra.mrb[0].mxu0 %v12069
      %v12186 = vpop.f32.mrb[0].mxu0
      %v12187 = vadd.f32 0.0, %v12186
      %v12188 = vpop.f32.mrb[0].mxu0
      %v12189 = vpop.f32.mrb[0].mxu0
      %v12190 = vadd.f32 0.0, %v12189
      %v12191 = vpop.f32.mrb[0].mxu0
      %12192 = vmatprep.mubr.bf16.mxu0 0
      %12193 = vmatmul.mubr.bf16.gmra.mrb[0].mxu0 %v12071
      %v12194 = vpop.f32.mrb[0].mxu0
      %v12195 = vadd.f32 0.0, %v12194
      %v12196 = vpop.f32.mrb[0].mxu0
      %v12197 = vpop.f32.mrb[0].mxu0
      %v12198 = vadd.f32 0.0, %v12197
      %v12199 = vpop.f32.mrb[0].mxu0
      %12200 = vmatprep.mubr.bf16.mxu0 0
      %12201 = vmatmul.mubr.bf16.gmra.mrb[0].mxu0 %v12073
      %v12202 = vpop.f32.mrb[0].mxu0
      %v12203 = vadd.f32 0.0, %v12202
      %v12204 = vpop.f32.mrb[0].mxu0
      %v12205 = vpop.f32.mrb[0].mxu0
      %v12206 = vadd.f32 0.0, %v12205
      %v12207 = vpop.f32.mrb[0].mxu0
      %12208 = vmatprep.mubr.bf16.mxu0 0
      %12209 = vmatmul.mubr.bf16.gmra.mrb[0].mxu0 %v12075
      %v12210 = vpop.f32.mrb[0].mxu0
      %v12211 = vadd.f32 0.0, %v12210
      %v12212 = vpop.f32.mrb[0].mxu0
      %v12213 = vpop.f32.mrb[0].mxu0
      %v12214 = vadd.f32 0.0, %v12213
      %v12215 = vpop.f32.mrb[0].mxu0
      %12216 = vmatprep.mubr.bf16.mxu0 0
      %12217 = vmatmul.mubr.bf16.gmra.mrb[0].mxu0 %v12077
      %v12218 = vpop.f32.mrb[0].mxu0
      %v12219 = vadd.f32 0.0, %v12218
      %v12220 = vpop.f32.mrb[0].mxu0
      %v12221 = vpop.f32.mrb[0].mxu0
      %v12222 = vadd.f32 0.0, %v12221
      %v12223 = vpop.f32.mrb[0].mxu0
      %12224 = vmatprep.mubr.bf16.mxu0 0
      %12225 = vmatmul.mubr.bf16.gmra.mrb[0].mxu0 %v12079
      %v12226 = vpop.f32.mrb[0].mxu0
      %v12227 = vadd.f32 0.0, %v12226
      %v12228 = vpop.f32.mrb[0].mxu0
      %v12229 = vpop.f32.mrb[0].mxu0
      %v12230 = vadd.f32 0.0, %v12229
      %v12231 = vpop.f32.mrb[0].mxu0
      %12232 = vmatprep.mubr.bf16.mxu0 0
      %12233 = vmatmul.mubr.bf16.gmra.mrb[0].mxu0 %v12081
      %v12234 = vpop.f32.mrb[0].mxu0
      %v12235 = vadd.f32 0.0, %v12234
      %v12236 = vpop.f32.mrb[0].mxu0
      %v12237 = vpop.f32.mrb[0].mxu0
      %v12238 = vadd.f32 0.0, %v12237
      %v12239 = vpop.f32.mrb[0].mxu0
      %12240 = vmatprep.mubr.bf16.mxu0 0
      %12241 = vmatmul.mubr.bf16.gmra.mrb[0].mxu0 %v12083
      %v12242 = vpop.f32.mrb[0].mxu0
      %v12243 = vadd.f32 0.0, %v12242
      %v12244 = vpop.f32.mrb[0].mxu0
      %v12245 = vpop.f32.mrb[0].mxu0
      %v12246 = vadd.f32 0.0, %v12245
      %v12247 = vpop.f32.mrb[0].mxu0
      %12248 = vmatprep.mubr.bf16.mxu0 0
      %12249 = vmatmul.mubr.bf16.gmra.mrb[0].mxu0 %v12085
      %v12250 = vpop.f32.mrb[0].mxu0
      %v12251 = vadd.f32 0.0, %v12250
      %v12252 = vpop.f32.mrb[0].mxu0
      %v12253 = vpop.f32.mrb[0].mxu0
      %v12254 = vadd.f32 0.0, %v12253
      %v12255 = vpop.f32.mrb[0].mxu0
      %12256 = vmatprep.mubr.bf16.mxu0 0
      %12257 = vmatmul.mubr.bf16.gmra.mrb[0].mxu0 %v12087
      %v12258 = vpop.f32.mrb[0].mxu0
      %v12259 = vadd.f32 0.0, %v12258
      %v12260 = vpop.f32.mrb[0].mxu0
      %v12261 = vpop.f32.mrb[0].mxu0
      %v12262 = vadd.f32 0.0, %v12261
      %v12263 = vpop.f32.mrb[0].mxu0
      %12264 = vmatprep.mubr.bf16.mxu0 0
      %12265 = vmatmul.mubr.bf16.gmra.mrb[0].mxu0 %v12089
      %v12266 = vpop.f32.mrb[0].mxu0
      %v12267 = vadd.f32 0.0, %v12266
      %v12268 = vpop.f32.mrb[0].mxu0
      %v12269 = vpop.f32.mrb[0].mxu0
      %v12270 = vadd.f32 0.0, %v12269
      %v12271 = vpop.f32.mrb[0].mxu0
      %12272 = vmatprep.mubr.bf16.mxu0 0
      %12273 = vmatmul.mubr.bf16.gmra.mrb[0].mxu0 %v12091
      %v12274 = vpop.f32.mrb[0].mxu0
      %v12275 = vadd.f32 0.0, %v12274
      %v12276 = vpop.f32.mrb[0].mxu0
      %v12277 = vpop.f32.mrb[0].mxu0
      %v12278 = vadd.f32 0.0, %v12277
      %v12279 = vpop.f32.mrb[0].mxu0
      %12280 = vdwg.mxu0
      %v12281 = vadd.f32 %v12013, %v12187
      %v12282 = vadd.f32 %v12014, %v12190
      %v12283 = vadd.f32 %v12015, %v12195
      %v12284 = vadd.f32 %v12016, %v12198
      %v12285 = vadd.f32 %v12017, %v12203
      %v12286 = vadd.f32 %v12018, %v12206
      %v12287 = vadd.f32 %v12019, %v12211
      %v12288 = vadd.f32 %v12020, %v12214
      %v12289 = vadd.f32 %v12021, %v12219
      %v12290 = vadd.f32 %v12022, %v12222
      %v12291 = vadd.f32 %v12023, %v12227
      %v12292 = vadd.f32 %v12024, %v12230
      %v12293 = vadd.f32 %v12025, %v12235
      %v12294 = vadd.f32 %v12026, %v12238
      %v12295 = vadd.f32 %v12027, %v12243
      %v12296 = vadd.f32 %v12028, %v12246
      %v12297 = vadd.f32 %v12029, %v12251
      %v12298 = vadd.f32 %v12030, %v12254
      %v12299 = vadd.f32 %v12031, %v12259
      %v12300 = vadd.f32 %v12032, %v12262
      %v12301 = vadd.f32 %v12033, %v12267
      %v12302 = vadd.f32 %v12034, %v12270
      %v12303 = vadd.f32 %v12035, %v12275
      %v12304 = vadd.f32 %v12036, %v12278
      %v12305 = vld [vmem:[#allocation2 + $0xd8] sm:$0x1f]
      %v12306 = vld [vmem:[%s9468] sm:$0xf]
      %v12307 = vld [vmem:[%s9468 + $0x4] sm:$0xf]
      %v12308 = vld [vmem:[%s9468 + $0x8] sm:$0xf]
      %v12309 = vld [vmem:[%s9468 + $0xc] sm:$0xf]
      %v12310 = vld [vmem:[%s9468 + $0x10] sm:$0xf]
      %v12311 = vld [vmem:[%s9468 + $0x14] sm:$0xf]
      %v12312 = vld [vmem:[%s9468 + $0x18] sm:$0xf]
      %v12313 = vld [vmem:[%s9468 + $0x1c] sm:$0xf]
      %v12314 = vld [vmem:[%s9468 + $0x20] sm:$0xf]
      %v12315 = vld [vmem:[%s9468 + $0x24] sm:$0xf]
      %v12316 = vld [vmem:[%s9468 + $0x28] sm:$0xf]
      %v12317 = vld [vmem:[%s9468 + $0x2c] sm:$0xf]
      %v12318 = vld [vmem:[%s9468 + $0x30] sm:$0xf]
      %v12319 = vld [vmem:[%s9468 + $0x34] sm:$0xf]
      %v12320 = vld [vmem:[%s9468 + $0x38] sm:$0xf]
      %v12321 = vld [vmem:[%s9468 + $0x3c] sm:$0xf]
      %v12323 = vshrl.u32 %v12037, 16
      %v12325 = vrot.slane %v12323, 4
      %v12326 = vshll.u32 %v12037, 16
      %v12328 = vrot.slane %v12326, 5
      %v12329 = vor.u32 %v12325, %v12328
      %v12330 = vrot.slane %v11717, 4
      %v12331 = vrot.slane %v11720, 5
      %v12332 = vor.u32 %v12330, %v12331
      %v12333 = vsel %vm7659, %v12329, %v12332
      %v12334 = vrot.slane %v11726, 4
      %v12335 = vrot.slane %v11729, 5
      %v12336 = vor.u32 %v12334, %v12335
      %v12337 = vsel %vm7659, %v12332, %v12336
      %v12338 = vrot.slane %v11735, 4
      %v12339 = vrot.slane %v11738, 5
      %v12340 = vor.u32 %v12338, %v12339
      %v12341 = vsel %vm7659, %v12336, %v12340
      %v12342 = vrot.slane %v11744, 4
      %v12343 = vrot.slane %v11747, 5
      %v12344 = vor.u32 %v12342, %v12343
      %v12345 = vsel %vm7659, %v12340, %v12344
      %v12346 = vrot.slane %v11753, 4
      %v12347 = vrot.slane %v11756, 5
      %v12348 = vor.u32 %v12346, %v12347
      %v12349 = vsel %vm7659, %v12344, %v12348
      %v12350 = vrot.slane %v11762, 4
      %v12351 = vrot.slane %v11765, 5
      %v12352 = vor.u32 %v12350, %v12351
      %v12353 = vsel %vm7659, %v12348, %v12352
      %v12354 = vrot.slane %v11771, 4
      %v12355 = vrot.slane %v11774, 5
      %v12356 = vor.u32 %v12354, %v12355
      %v12357 = vsel %vm7659, %v12352, %v12356
      %v12358 = vrot.slane %v11780, 4
      %v12359 = vrot.slane %v11783, 5
      %v12360 = vor.u32 %v12358, %v12359
      %v12361 = vsel %vm7659, %v12356, %v12360
      %v12362 = vrot.slane %v11789, 4
      %v12363 = vrot.slane %v11792, 5
      %v12364 = vor.u32 %v12362, %v12363
      %v12365 = vsel %vm7659, %v12360, %v12364
      %v12366 = vrot.slane %v11798, 4
      %v12367 = vrot.slane %v11801, 5
      %v12368 = vor.u32 %v12366, %v12367
      %v12369 = vsel %vm7659, %v12364, %v12368
      %v12370 = vrot.slane %v11807, 4
      %v12371 = vrot.slane %v11810, 5
      %v12372 = vor.u32 %v12370, %v12371
      %v12373 = vsel %vm7659, %v12368, %v12372
      %v12375 = vshrl.u32 %v12305, 16
      %v12377 = vrot.slane %v12375, 4
      %v12378 = vshll.u32 %v12305, 16
      %v12380 = vrot.slane %v12378, 5
      %v12381 = vor.u32 %v12377, %v12380
      %v12382 = vsel %vm7659, %v12372, %v12381
      %v12411 = vunpack.c.l.b16 %v12306
      %v12412 = vunpack.c.l.b16 %v12307
      %v12413 = vunpack.c.l.b16 %v12308
      %v12414 = vunpack.c.l.b16 %v12309
      %v12415 = vunpack.c.l.b16 %v12310
      %v12416 = vunpack.c.l.b16 %v12311
      %v12417 = vunpack.c.l.b16 %v12312
      %v12418 = vunpack.c.l.b16 %v12313
      %v12419 = vunpack.c.l.b16 %v12314
      %v12420 = vunpack.c.l.b16 %v12315
      %v12421 = vunpack.c.l.b16 %v12316
      %v12422 = vunpack.c.l.b16 %v12317
      %v12423 = vunpack.c.l.b16 %v12318
      %v12424 = vunpack.c.l.b16 %v12319
      %v12425 = vunpack.c.l.b16 %v12320
      %v12426 = vunpack.c.l.b16 %v12321
      %v12427 = vpack.c.b16 %v12412, %v12411
      %v12428 = vpack.c.b16 %v12414, %v12413
      %v12429 = vpack.c.b16 %v12416, %v12415
      %v12430 = vpack.c.b16 %v12418, %v12417
      %v12431 = vpack.c.b16 %v12420, %v12419
      %v12432 = vpack.c.b16 %v12422, %v12421
      %v12433 = vpack.c.b16 %v12424, %v12423
      %v12434 = vpack.c.b16 %v12426, %v12425
      %12443 = vmatprep.subr.bf16.mxu0 0
      %12444 = vmatpush1.bf16.msra.mxu0 %v12427
      %12445 = vmatprep.subr.bf16.mxu0 0
      %12446 = vmatpush1.bf16.msra.mxu0 %v12428
      %12447 = vmatprep.subr.bf16.mxu0 0
      %12448 = vmatpush1.bf16.msra.mxu0 %v12429
      %12449 = vmatprep.subr.bf16.mxu0 0
      %12450 = vmatpush1.bf16.msra.mxu0 %v12430
      %12451 = vmatprep.subr.bf16.mxu0 0
      %12452 = vmatpush1.bf16.msra.mxu0 %v12431
      %12453 = vmatprep.subr.bf16.mxu0 0
      %12454 = vmatpush1.bf16.msra.mxu0 %v12432
      %12455 = vmatprep.subr.bf16.mxu0 0
      %12456 = vmatpush1.bf16.msra.mxu0 %v12433
      %12457 = vmatprep.subr.bf16.mxu0 0
      %12458 = vmatpush1.bf16.msra.mxu0 %v12434
      %12459 = vmatprep.subr.bf16.mxu0 0
      %12460 = vmatpush1.bf16.msra.mxu0 0
      %12461 = vmatprep.subr.bf16.mxu0 0
      %12462 = vmatpush1.bf16.msra.mxu0 0
      %12463 = vmatprep.subr.bf16.mxu0 0
      %12464 = vmatpush1.bf16.msra.mxu0 0
      %12465 = vmatprep.subr.bf16.mxu0 0
      %12466 = vmatpush1.bf16.msra.mxu0 0
      %12467 = vmatprep.subr.bf16.mxu0 0
      %12468 = vmatpush1.bf16.msra.mxu0 0
      %12469 = vmatprep.subr.bf16.mxu0 0
      %12470 = vmatpush1.bf16.msra.mxu0 0
      %12471 = vmatprep.subr.bf16.mxu0 0
      %12472 = vmatpush1.bf16.msra.mxu0 0
      %12473 = vmatprep.subr.bf16.mxu0 0
      %12474 = vmatpush1.bf16.msra.mxu0 0
      %12475 = vmatprep.mubr.bf16.mxu0 0
      %12476 = vmatmul.mubr.bf16.gmra.mrb[0].mxu0 %v12333
      %v12477 = vpop.f32.mrb[0].mxu0
      %v12478 = vadd.f32 0.0, %v12477
      %v12479 = vpop.f32.mrb[0].mxu0
      %v12480 = vpop.f32.mrb[0].mxu0
      %v12481 = vadd.f32 0.0, %v12480
      %v12482 = vpop.f32.mrb[0].mxu0
      %12483 = vmatprep.mubr.bf16.mxu0 0
      %12484 = vmatmul.mubr.bf16.gmra.mrb[0].mxu0 %v12337
      %v12485 = vpop.f32.mrb[0].mxu0
      %v12486 = vadd.f32 0.0, %v12485
      %v12487 = vpop.f32.mrb[0].mxu0
      %v12488 = vpop.f32.mrb[0].mxu0
      %v12489 = vadd.f32 0.0, %v12488
      %v12490 = vpop.f32.mrb[0].mxu0
      %12491 = vmatprep.mubr.bf16.mxu0 0
      %12492 = vmatmul.mubr.bf16.gmra.mrb[0].mxu0 %v12341
      %v12493 = vpop.f32.mrb[0].mxu0
      %v12494 = vadd.f32 0.0, %v12493
      %v12495 = vpop.f32.mrb[0].mxu0
      %v12496 = vpop.f32.mrb[0].mxu0
      %v12497 = vadd.f32 0.0, %v12496
      %v12498 = vpop.f32.mrb[0].mxu0
      %12499 = vmatprep.mubr.bf16.mxu0 0
      %12500 = vmatmul.mubr.bf16.gmra.mrb[0].mxu0 %v12345
      %v12501 = vpop.f32.mrb[0].mxu0
      %v12502 = vadd.f32 0.0, %v12501
      %v12503 = vpop.f32.mrb[0].mxu0
      %v12504 = vpop.f32.mrb[0].mxu0
      %v12505 = vadd.f32 0.0, %v12504
      %v12506 = vpop.f32.mrb[0].mxu0
      %12507 = vmatprep.mubr.bf16.mxu0 0
      %12508 = vmatmul.mubr.bf16.gmra.mrb[0].mxu0 %v12349
      %v12509 = vpop.f32.mrb[0].mxu0
      %v12510 = vadd.f32 0.0, %v12509
      %v12511 = vpop.f32.mrb[0].mxu0
      %v12512 = vpop.f32.mrb[0].mxu0
      %v12513 = vadd.f32 0.0, %v12512
      %v12514 = vpop.f32.mrb[0].mxu0
      %12515 = vmatprep.mubr.bf16.mxu0 0
      %12516 = vmatmul.mubr.bf16.gmra.mrb[0].mxu0 %v12353
      %v12517 = vpop.f32.mrb[0].mxu0
      %v12518 = vadd.f32 0.0, %v12517
      %v12519 = vpop.f32.mrb[0].mxu0
      %v12520 = vpop.f32.mrb[0].mxu0
      %v12521 = vadd.f32 0.0, %v12520
      %v12522 = vpop.f32.mrb[0].mxu0
      %12523 = vmatprep.mubr.bf16.mxu0 0
      %12524 = vmatmul.mubr.bf16.gmra.mrb[0].mxu0 %v12357
      %v12525 = vpop.f32.mrb[0].mxu0
      %v12526 = vadd.f32 0.0, %v12525
      %v12527 = vpop.f32.mrb[0].mxu0
      %v12528 = vpop.f32.mrb[0].mxu0
      %v12529 = vadd.f32 0.0, %v12528
      %v12530 = vpop.f32.mrb[0].mxu0
      %12531 = vmatprep.mubr.bf16.mxu0 0
      %12532 = vmatmul.mubr.bf16.gmra.mrb[0].mxu0 %v12361
      %v12533 = vpop.f32.mrb[0].mxu0
      %v12534 = vadd.f32 0.0, %v12533
      %v12535 = vpop.f32.mrb[0].mxu0
      %v12536 = vpop.f32.mrb[0].mxu0
      %v12537 = vadd.f32 0.0, %v12536
      %v12538 = vpop.f32.mrb[0].mxu0
      %12539 = vmatprep.mubr.bf16.mxu0 0
      %12540 = vmatmul.mubr.bf16.gmra.mrb[0].mxu0 %v12365
      %v12541 = vpop.f32.mrb[0].mxu0
      %v12542 = vadd.f32 0.0, %v12541
      %v12543 = vpop.f32.mrb[0].mxu0
      %v12544 = vpop.f32.mrb[0].mxu0
      %v12545 = vadd.f32 0.0, %v12544
      %v12546 = vpop.f32.mrb[0].mxu0
      %12547 = vmatprep.mubr.bf16.mxu0 0
      %12548 = vmatmul.mubr.bf16.gmra.mrb[0].mxu0 %v12369
      %v12549 = vpop.f32.mrb[0].mxu0
      %v12550 = vadd.f32 0.0, %v12549
      %v12551 = vpop.f32.mrb[0].mxu0
      %v12552 = vpop.f32.mrb[0].mxu0
      %v12553 = vadd.f32 0.0, %v12552
      %v12554 = vpop.f32.mrb[0].mxu0
      %12555 = vmatprep.mubr.bf16.mxu0 0
      %12556 = vmatmul.mubr.bf16.gmra.mrb[0].mxu0 %v12373
      %v12557 = vpop.f32.mrb[0].mxu0
      %v12558 = vadd.f32 0.0, %v12557
      %v12559 = vpop.f32.mrb[0].mxu0
      %v12560 = vpop.f32.mrb[0].mxu0
      %v12561 = vadd.f32 0.0, %v12560
      %v12562 = vpop.f32.mrb[0].mxu0
      %12563 = vmatprep.mubr.bf16.mxu0 0
      %12564 = vmatmul.mubr.bf16.gmra.mrb[0].mxu0 %v12382
      %v12565 = vpop.f32.mrb[0].mxu0
      %v12566 = vadd.f32 0.0, %v12565
      %v12567 = vpop.f32.mrb[0].mxu0
      %v12568 = vpop.f32.mrb[0].mxu0
      %v12569 = vadd.f32 0.0, %v12568
      %v12570 = vpop.f32.mrb[0].mxu0
      %12571 = vdwg.mxu0
      %v12572 = vadd.f32 %v12281, %v12478
      %v12573 = vadd.f32 %v12282, %v12481
      %v12574 = vadd.f32 %v12283, %v12486
      %v12575 = vadd.f32 %v12284, %v12489
      %v12576 = vadd.f32 %v12285, %v12494
      %v12577 = vadd.f32 %v12286, %v12497
      %v12578 = vadd.f32 %v12287, %v12502
      %v12579 = vadd.f32 %v12288, %v12505
      %v12580 = vadd.f32 %v12289, %v12510
      %v12581 = vadd.f32 %v12290, %v12513
      %v12582 = vadd.f32 %v12291, %v12518
      %v12583 = vadd.f32 %v12292, %v12521
      %v12584 = vadd.f32 %v12293, %v12526
      %v12585 = vadd.f32 %v12294, %v12529
      %v12586 = vadd.f32 %v12295, %v12534
      %v12587 = vadd.f32 %v12296, %v12537
      %v12588 = vadd.f32 %v12297, %v12542
      %v12589 = vadd.f32 %v12298, %v12545
      %v12590 = vadd.f32 %v12299, %v12550
      %v12591 = vadd.f32 %v12300, %v12553
      %v12592 = vadd.f32 %v12301, %v12558
      %v12593 = vadd.f32 %v12302, %v12561
      %v12594 = vadd.f32 %v12303, %v12566
      %v12595 = vadd.f32 %v12304, %v12569
      %v12596 = vld [vmem:[%s246 + $0x70] sm:$0xf]
      %v12597 = vld [vmem:[%s246 + $0x74] sm:$0xf]
      %v12598 = vld [vmem:[%s246 + $0x78] sm:$0xf]
      %v12599 = vld [vmem:[%s246 + $0x7c] sm:$0xf]
      %v12600 = vld [vmem:[%s246 + $0x80] sm:$0xf]
      %v12601 = vld [vmem:[%s246 + $0x84] sm:$0xf]
      %v12602 = vld [vmem:[%s246 + $0x88] sm:$0xf]
      %v12603 = vld [vmem:[%s246 + $0x8c] sm:$0xf]
      %v12604 = vld [vmem:[%s246 + $0x90] sm:$0xf]
      %v12605 = vld [vmem:[%s246 + $0x94] sm:$0xf]
      %v12606 = vld [vmem:[%s246 + $0x98] sm:$0xf]
      %v12607 = vld [vmem:[%s246 + $0x9c] sm:$0xf]
      %v12608 = vld [vmem:[%s246 + $0xa0] sm:$0xf]
      %v12609 = vld [vmem:[%s246 + $0xa4] sm:$0xf]
      %v12610 = vld [vmem:[%s246 + $0xa8] sm:$0xf]
      %v12611 = vld [vmem:[%s246 + $0xac] sm:$0xf]
      %v12612 = vld [vmem:[%s246 + $0xb0] sm:$0xf]
      %v12613 = vld [vmem:[%s246 + $0xb4] sm:$0xf]
      %v12614 = vld [vmem:[%s246 + $0xb8] sm:$0xf]
      %v12615 = vld [vmem:[%s246 + $0xbc] sm:$0xf]
      %v12616 = vld [vmem:[%s246 + $0xc0] sm:$0xf]
      %v12617 = vld [vmem:[%s246 + $0xc4] sm:$0xf]
      %v12618 = vld [vmem:[%s246 + $0xc8] sm:$0xf]
      %v12619 = vld [vmem:[%s246 + $0xcc] sm:$0xf]
      %v12620 = vunpack.c.l.bf16 %v12596
      %v12621 = vunpack.c.l.bf16 %v12597
      %v12622 = vunpack.c.l.bf16 %v12598
      %v12623 = vunpack.c.l.bf16 %v12599
      %v12624 = vunpack.c.l.bf16 %v12600
      %v12625 = vunpack.c.l.bf16 %v12601
      %v12626 = vunpack.c.l.bf16 %v12602
      %v12627 = vunpack.c.l.bf16 %v12603
      %v12628 = vunpack.c.l.bf16 %v12604
      %v12629 = vunpack.c.l.bf16 %v12605
      %v12630 = vunpack.c.l.bf16 %v12606
      %v12631 = vunpack.c.l.bf16 %v12607
      %v12632 = vunpack.c.l.bf16 %v12608
      %v12633 = vunpack.c.l.bf16 %v12609
      %v12634 = vunpack.c.l.bf16 %v12610
      %v12635 = vunpack.c.l.bf16 %v12611
      %v12636 = vunpack.c.l.bf16 %v12612
      %v12637 = vunpack.c.l.bf16 %v12613
      %v12638 = vunpack.c.l.bf16 %v12614
      %v12639 = vunpack.c.l.bf16 %v12615
      %v12640 = vunpack.c.l.bf16 %v12616
      %v12641 = vunpack.c.l.bf16 %v12617
      %v12642 = vunpack.c.l.bf16 %v12618
      %v12643 = vunpack.c.l.bf16 %v12619
      %v12644 = vadd.f32 %v12572, %v9811
      %v12645 = vadd.f32 %v12573, %v9811
      %v12646 = vadd.f32 %v12574, %v9811
      %v12647 = vadd.f32 %v12575, %v9811
      %v12648 = vadd.f32 %v12576, %v9811
      %v12649 = vadd.f32 %v12577, %v9811
      %v12650 = vadd.f32 %v12578, %v9811
      %v12651 = vadd.f32 %v12579, %v9811
      %v12652 = vadd.f32 %v12580, %v9811
      %v12653 = vadd.f32 %v12581, %v9811
      %v12654 = vadd.f32 %v12582, %v9811
      %v12655 = vadd.f32 %v12583, %v9811
      %v12656 = vadd.f32 %v12584, %v9811
      %v12657 = vadd.f32 %v12585, %v9811
      %v12658 = vadd.f32 %v12586, %v9811
      %v12659 = vadd.f32 %v12587, %v9811
      %v12660 = vadd.f32 %v12588, %v9811
      %v12661 = vadd.f32 %v12589, %v9811
      %v12662 = vadd.f32 %v12590, %v9811
      %v12663 = vadd.f32 %v12591, %v9811
      %v12664 = vadd.f32 %v12592, %v9811
      %v12665 = vadd.f32 %v12593, %v9811
      %v12666 = vadd.f32 %v12594, %v9811
      %v12667 = vadd.f32 %v12595, %v9811
      %v12668 = vadd.f32 %v12644, %v12620
      %v12669 = vadd.f32 %v12645, %v12621
      %v12670 = vadd.f32 %v12646, %v12622
      %v12671 = vadd.f32 %v12647, %v12623
      %v12672 = vadd.f32 %v12648, %v12624
      %v12673 = vadd.f32 %v12649, %v12625
      %v12674 = vadd.f32 %v12650, %v12626
      %v12675 = vadd.f32 %v12651, %v12627
      %v12676 = vadd.f32 %v12652, %v12628
      %v12677 = vadd.f32 %v12653, %v12629
      %v12678 = vadd.f32 %v12654, %v12630
      %v12679 = vadd.f32 %v12655, %v12631
      %v12680 = vadd.f32 %v12656, %v12632
      %v12681 = vadd.f32 %v12657, %v12633
      %v12682 = vadd.f32 %v12658, %v12634
      %v12683 = vadd.f32 %v12659, %v12635
      %v12684 = vadd.f32 %v12660, %v12636
      %v12685 = vadd.f32 %v12661, %v12637
      %v12686 = vadd.f32 %v12662, %v12638
      %v12687 = vadd.f32 %v12663, %v12639
      %v12688 = vadd.f32 %v12664, %v12640
      %v12689 = vadd.f32 %v12665, %v12641
      %v12690 = vadd.f32 %v12666, %v12642
      %v12691 = vadd.f32 %v12667, %v12643
      %v12692 = vmax.f32 %v12668, 0.0
      %v12693 = vmax.f32 %v12669, 0.0
      %v12694 = vmax.f32 %v12670, 0.0
      %v12695 = vmax.f32 %v12671, 0.0
      %v12696 = vmax.f32 %v12672, 0.0
      %v12697 = vmax.f32 %v12673, 0.0
      %v12698 = vmax.f32 %v12674, 0.0
      %v12699 = vmax.f32 %v12675, 0.0
      %v12700 = vmax.f32 %v12676, 0.0
      %v12701 = vmax.f32 %v12677, 0.0
      %v12702 = vmax.f32 %v12678, 0.0
      %v12703 = vmax.f32 %v12679, 0.0
      %v12704 = vmax.f32 %v12680, 0.0
      %v12705 = vmax.f32 %v12681, 0.0
      %v12706 = vmax.f32 %v12682, 0.0
      %v12707 = vmax.f32 %v12683, 0.0
      %v12708 = vmax.f32 %v12684, 0.0
      %v12709 = vmax.f32 %v12685, 0.0
      %v12710 = vmax.f32 %v12686, 0.0
      %v12711 = vmax.f32 %v12687, 0.0
      %v12712 = vmax.f32 %v12688, 0.0
      %v12713 = vmax.f32 %v12689, 0.0
      %v12714 = vmax.f32 %v12690, 0.0
      %v12715 = vmax.f32 %v12691, 0.0
      %12716 = vst [vmem:[%s251 + $0xc0] sm:$0xff] %v12692
      %12717 = vst [vmem:[%s251 + $0xc8] sm:$0xff] %v12693
      %12718 = vst [vmem:[%s251 + $0xd0] sm:$0xff] %v12694
      %12719 = vst [vmem:[%s251 + $0xd8] sm:$0xff] %v12695
      %12720 = vst [vmem:[%s251 + $0xe0] sm:$0xff] %v12696
      %12721 = vst [vmem:[%s251 + $0xe8] sm:$0xff] %v12697
      %12722 = vst [vmem:[%s251 + $0xf0] sm:$0xff] %v12698
      %12723 = vst [vmem:[%s251 + $0xf8] sm:$0xff] %v12699
      %12724 = vst [vmem:[%s251 + $0x100] sm:$0xff] %v12700
      %12725 = vst [vmem:[%s251 + $0x108] sm:$0xff] %v12701
      %12726 = vst [vmem:[%s251 + $0x110] sm:$0xff] %v12702
      %12727 = vst [vmem:[%s251 + $0x118] sm:$0xff] %v12703
      %12728 = vst [vmem:[%s251 + $0x120] sm:$0xff] %v12704
      %12729 = vst [vmem:[%s251 + $0x128] sm:$0xff] %v12705
      %12730 = vst [vmem:[%s251 + $0x130] sm:$0xff] %v12706
      %12731 = vst [vmem:[%s251 + $0x138] sm:$0xff] %v12707
      %12732 = vst [vmem:[%s251 + $0x140] sm:$0xff] %v12708
      %12733 = vst [vmem:[%s251 + $0x148] sm:$0xff] %v12709
      %12734 = vst [vmem:[%s251 + $0x150] sm:$0xff] %v12710
      %12735 = vst [vmem:[%s251 + $0x158] sm:$0xff] %v12711
      %12736 = vst [vmem:[%s251 + $0x160] sm:$0xff] %v12712
      %12737 = vst [vmem:[%s251 + $0x168] sm:$0xff] %v12713
      %12738 = vst [vmem:[%s251 + $0x170] sm:$0xff] %v12714
      %12739 = vst [vmem:[%s251 + $0x178] sm:$0xff] %v12715
      %p12740 = scmp.lt.s32.totalorder %s17, 1
      %s12741 = scalar_select %p12740, %s17, 1
      %s12742 = smul.addr %s12741, 48
      %s12743 = smul.addr %s12742, 8
      %s12744 = scalar_lea.vmem %s6, %s12743
      // Predicated region
      $region45: #{basic_block_pallas.1} parent=43 // pred_check
        %p12745 = pneg %p166
      $region46: #{basic_block_pallas.1} parent=43 // pred_check_branch
        %12747 = sbr.rel (%p12745) target = $region48
      $region47: #{basic_block_pallas.1} parent=43 // pred_region
        _
      $region48: #{basic_block_pallas.1} parent=43 // pred_fallthru
        _
    $region44: #{basic_block_pallas.1} parent=5 // pred_fallthru
      _
    %p12748 = scmp.le.s32.totalorder 2, %s12
    // Predicated region
    $region49: #{basic_block_pallas.1} parent=5 // pred_check
      %p12749 = pneg %p12748
    $region50: #{basic_block_pallas.1} parent=5 // pred_check_branch
      %12751 = sbr.rel (%p12749) target = $region52
    $region51: #{basic_block_pallas.1} parent=5 // pred_region
      %s12752 = ssub.s32 %s12, 2
      // Predicated region
      $region53: #{basic_block_pallas.1} parent=51 // pred_check
        %p12753 = pneg %p172
      $region54: #{basic_block_pallas.1} parent=51 // pred_check_branch
        %12755 = sbr.rel (%p12753) target = $region56
      $region55: #{basic_block_pallas.1} parent=51 // pred_region
        %p12756 = scmp.lt.s32.totalorder %s18, 1
        %s12757 = scalar_select %p12756, %s18, 1
        %s12758 = smul.addr %s12757, 48
        %s12759 = smul.addr %s12758, 8
        %s12760 = scalar_lea.vmem %s6, %s12759
      $region56: #{basic_block_pallas.1} parent=51 // pred_fallthru
        _
    $region52: #{basic_block_pallas.1} parent=5 // pred_fallthru
      _
  $region6: #{basic_block_pallas.1} parent=0 // loop_footer
    %s16 = sadd.s32 1, %s12
  $region7: #{basic_block_pallas.1} parent=0 // loop_footer_branch
    %11 = sbr.rel target = $region3
  $region8: #{basic_block_pallas.1} parent=0 // loop_exit
    _

</llo_original>
